<compile_context>
chip_gen: v7x
topology: tpu7x:2x2x1
jax: 0.10.0
libtpu: 0.0.40
codegen_flags: <defaults>
</compile_context>

<pallas_src>
import jax
import jax.numpy as jnp
from jax.experimental import pallas as pl
from jax.experimental.pallas import tpu as pltpu

HIDDEN = 32       # hidden_size
VOCAB = 64        # output_size (target vocab size)
MAX_LENGTH = 10   # max_length (L)

LANES = 128
L_PAD = 32        # attention length padded to 32 lanes; pad masked via -1e30 bias

# ---- packed weight-blob row layout (every row is 128 lanes wide, f32) --------
R_W_ATTN_E = 0      # rows   0: 32  (H, L)   attn weight, embedded half
R_W_ATTN_H = 32     # rows  32: 64  (H, L)   attn weight, hidden half
R_W_COMB_E = 64     # rows  64: 96  (H, H)   attn_combine weight, embedded half
R_W_COMB_C = 96     # rows  96:128  (H, H)   attn_combine weight, context half
R_W_GRU_X = 128     # rows 128:160  (H, 4H)  GRU x-block  [w_ir | w_iz | w_in | 0]
R_W_GRU_H = 160     # rows 160:192  (H, 4H)  GRU h-block  [w_hr | w_hz | 0 | w_hn]
R_W_OUT = 192       # rows 192:224  (H, V)   output projection
R_B_ATTN = 224      # bias rows (attn bias + -1e30 softmax pad mask)
R_B_COMB = 225
R_B_GRU = 226       # [b_ir+b_hr | b_iz+b_hz | b_in | b_hn]
R_B_OUT = 227
BLOB_ROWS = 232     # padded to a multiple of 8 sublanes


def attn_decoder_kernel(tok_ref, emb_ref, hid0_ref, enc_ref, blob_ref,
                        logp_ref, hid_ref, attn_ref):
    """Runs all T decode steps inside one grid step; hidden carried as a value."""
    f32 = jnp.float32
    H, V = HIDDEN, VOCAB
    T = tok_ref.shape[0]

    enc = enc_ref[...]          # (L_PAD, H) encoder outputs, zero-padded rows
    hidden = hid0_ref[...]      # (1, H) f32 initial hidden state

    for t in range(T):          # fully unrolled static loop (T is small)
        # ---- embedding gather: dynamic leading-dim read of resident table ----
        embedded = emb_ref[tok_ref[t]]                        # (1, H)
        # TODO(synk): dropout(p=0.1) treated as inference-mode identity.

        # ---- GRU hidden-only half dot, hoisted: only depends on `hidden`, so
        # its MXU fill/drain hides under the attention/softmax/combine chain.
        g_h = jnp.dot(hidden, blob_ref[R_W_GRU_H:R_W_GRU_H + H, :],
                      preferred_element_type=f32)             # (1, 4H)

        # ---- attention: softmax(attn(cat(embedded, hidden))) as 2 half-dots --
        attn_logits = (
            jnp.dot(embedded, blob_ref[R_W_ATTN_E:R_W_ATTN_E + H, 0:L_PAD],
                    preferred_element_type=f32)
            + jnp.dot(hidden, blob_ref[R_W_ATTN_H:R_W_ATTN_H + H, 0:L_PAD],
                      preferred_element_type=f32)
            + blob_ref[R_B_ATTN:R_B_ATTN + 1, 0:L_PAD])       # pad lanes = -1e30
        m = jnp.max(attn_logits, axis=1, keepdims=True)
        e = jnp.exp(attn_logits - m)
        denom = jnp.sum(e, axis=1, keepdims=True)
        inv = pl.reciprocal(denom, approx=True)               # EUP slot
        inv = inv * (2.0 - denom * inv)                       # one Newton step
        attn_w = e * inv                                      # (1, L_PAD)

        # ---- attn_applied = attn_weights @ encoder_outputs --------------------
        attn_applied = jnp.dot(attn_w, enc, preferred_element_type=f32)  # (1, H)

        # ---- attn_combine(cat(embedded, attn_applied)) + relu, 2 half-dots ----
        x = (jnp.dot(embedded, blob_ref[R_W_COMB_E:R_W_COMB_E + H, 0:H],
                     preferred_element_type=f32)
             + jnp.dot(attn_applied, blob_ref[R_W_COMB_C:R_W_COMB_C + H, 0:H],
                       preferred_element_type=f32)
             + blob_ref[R_B_COMB:R_B_COMB + 1, 0:H])
        x = jnp.maximum(x, 0.0)

        # ---- GRU x-half dot + hoisted h-half; PyTorch gate order (r, z, n) ----
        g = (jnp.dot(x, blob_ref[R_W_GRU_X:R_W_GRU_X + H, :],
                     preferred_element_type=f32)
             + g_h + blob_ref[R_B_GRU:R_B_GRU + 1, :])        # (1, 4H)
        r = jax.nn.sigmoid(g[:, 0:H])
        z = jax.nn.sigmoid(g[:, H:2 * H])
        n = jnp.tanh(g[:, 2 * H:3 * H] + r * g[:, 3 * H:4 * H])
        new_h = (1.0 - z) * n + z * hidden

        # ---- output projection + log_softmax ----------------------------------
        logits = (jnp.dot(new_h, blob_ref[R_W_OUT:R_W_OUT + H, 0:V],
                          preferred_element_type=f32)
                  + blob_ref[R_B_OUT:R_B_OUT + 1, 0:V])
        mm = jnp.max(logits, axis=1, keepdims=True)
        lse = jnp.log(jnp.sum(jnp.exp(logits - mm), axis=1, keepdims=True)) + mm
        logp = logits - lse                                   # (1, V)

        # ---- static-row stores into the resident VMEM output blocks -----------
        logp_ref[pl.ds(t, 1), :] = logp
        hid_ref[pl.ds(t, 1), :] = new_h
        attn_ref[pl.ds(t, 1), :] = attn_w

        hidden = new_h          # carried loop value (no scratch round-trip)


def prepare_kernel_params(p):
    """Pack all weights/biases into one f32 (BLOB_ROWS, 128) blob (single DMA).

    f32 is kept deliberately: the blob is DMA'd once, M=1 makes MXU throughput
    irrelevant, and f32 biases keep exact parity on all generations (v5e has no
    bf16 VPU/EUP path anyway).
    """
    H, V, L = HIDDEN, VOCAB, MAX_LENGTH
    blob = jnp.zeros((BLOB_ROWS, LANES), jnp.float32)
    # attn: Linear(2H, L) split along the input (cat) axis -> two half-blocks.
    blob = blob.at[R_W_ATTN_E:R_W_ATTN_E + H, 0:L].set(p["attn_we"])
    blob = blob.at[R_W_ATTN_H:R_W_ATTN_H + H, 0:L].set(p["attn_wh"])
    # attn_combine: Linear(2H, H) split the same way.
    blob = blob.at[R_W_COMB_E:R_W_COMB_E + H, 0:H].set(p["comb_we"])
    blob = blob.at[R_W_COMB_C:R_W_COMB_C + H, 0:H].set(p["comb_wc"])
    # GRU split into x-block and h-block so the h-half dot can be hoisted;
    # i_n / h_n kept in separate lane groups for r*(W_hn h + b_hn).
    zero = jnp.zeros((H, H), jnp.float32)
    blob = blob.at[R_W_GRU_X:R_W_GRU_X + H, :].set(
        jnp.concatenate([p["w_ir"], p["w_iz"], p["w_in"], zero], axis=1))
    blob = blob.at[R_W_GRU_H:R_W_GRU_H + H, :].set(
        jnp.concatenate([p["w_hr"], p["w_hz"], zero, p["w_hn"]], axis=1))
    # out: Linear(H, V)
    blob = blob.at[R_W_OUT:R_W_OUT + H, 0:V].set(p["out_w"])
    # bias rows
    blob = blob.at[R_B_ATTN, 0:L].set(p["attn_b"][0])
    blob = blob.at[R_B_ATTN, L:L_PAD].set(-1e30)   # mask softmax padding lanes
    blob = blob.at[R_B_COMB, 0:H].set(p["comb_b"][0])
    b_gru = jnp.concatenate(
        [p["b_ir"] + p["b_hr"], p["b_iz"] + p["b_hz"], p["b_in"], p["b_hn"]],
        axis=1)                                      # (1, 4H) = (1, 128)
    blob = blob.at[R_B_GRU, :].set(b_gru[0])
    blob = blob.at[R_B_OUT, 0:V].set(p["out_b"][0])
    # Embedding kept separate, shaped (V, 1, H) so the in-kernel per-token row
    # gather is a dynamic leading-dim VMEM read.
    emb = p["embedding"].astype(jnp.float32).reshape(V, 1, H)
    return emb, blob


@jax.jit
def attn_decoder_decode(tokens, hidden0, encoder_outputs, emb_table, weight_blob):
    """Runs T = len(tokens) teacher-forced decode steps in ONE pallas_call,
    with the whole loop inside a single grid step (grid=(1,))."""
    T = tokens.shape[0]
    H, V, L = HIDDEN, VOCAB, MAX_LENGTH
    hid0 = hidden0.reshape(1, H).astype(jnp.float32)
    enc_pad = jnp.zeros((L_PAD, H), jnp.float32).at[0:L, :].set(
        encoder_outputs.astype(jnp.float32))

    grid_spec = pltpu.PrefetchScalarGridSpec(
        num_scalar_prefetch=1,            # tokens -> SMEM (read per step in-kernel)
        grid=(1,),                        # single grid step; loop lives in-kernel
        in_specs=[
            # All inputs use a constant block index: each is DMA'd to VMEM once
            # and stays resident for the entire decode loop.
            pl.BlockSpec((V, 1, H), lambda i, tok: (0, 0, 0)),        # emb table
            pl.BlockSpec((1, H), lambda i, tok: (0, 0)),              # hidden0
            pl.BlockSpec((L_PAD, H), lambda i, tok: (0, 0)),          # encoder
            pl.BlockSpec((BLOB_ROWS, LANES), lambda i, tok: (0, 0)),  # weights
        ],
        out_specs=[
            pl.BlockSpec((T, V), lambda i, tok: (0, 0)),
            pl.BlockSpec((T, H), lambda i, tok: (0, 0)),
            pl.BlockSpec((T, L_PAD), lambda i, tok: (0, 0)),
        ],
    )
    logp, hiddens, attn_w = pl.pallas_call(
        attn_decoder_kernel,
        out_shape=(jax.ShapeDtypeStruct((T, V), jnp.float32),
                   jax.ShapeDtypeStruct((T, H), jnp.float32),
                   jax.ShapeDtypeStruct((T, L_PAD), jnp.float32)),
        grid_spec=grid_spec,
        compiler_params=pltpu.CompilerParams(
            dimension_semantics=("arbitrary",)),
    )(tokens, emb_table, hid0, enc_pad, weight_blob)
    return logp, hiddens, attn_w[:, 0:L]


# ---------------------------- parameters / reference -------------------------
def make_params(key):
    """Deterministic synthetic parameters matching the module's __init__ shapes."""
    H, V, L = HIDDEN, VOCAB, MAX_LENGTH
    keys = jax.random.split(key, 16)
    s = 0.1

    def rnd(k, shape):
        return s * jax.random.normal(k, shape, dtype=jnp.float32)

    return {
        "embedding": rnd(keys[0], (V, H)),
        # nn.Linear(2H, L) split along the input (cat) axis: [emb-half; hid-half]
        "attn_we": rnd(keys[1], (H, L)),
        "attn_wh": rnd(keys[2], (H, L)),
        "attn_b": rnd(keys[3], (1, L)),
        # nn.Linear(2H, H) split: [emb-half; context-half]
        "comb_we": rnd(keys[4], (H, H)),
        "comb_wc": rnd(keys[5], (H, H)),
        "comb_b": rnd(keys[6], (1, H)),
        # nn.GRU(H, H): gate weights (r, z, n), stored transposed for x @ W.
        "w_ir": rnd(keys[7], (H, H)),
        "w_iz": rnd(keys[8], (H, H)),
        "w_in": rnd(keys[9], (H, H)),
        "w_hr": rnd(keys[10], (H, H)),
        "w_hz": rnd(keys[11], (H, H)),
        "w_hn": rnd(keys[12], (H, H)),
        "b_ir": rnd(keys[13], (1, H)),
        "b_iz": rnd(keys[13], (1, H)) * 0.5,
        "b_in": rnd(keys[13], (1, H)) * 2.0,
        "b_hr": rnd(keys[14], (1, H)),
        "b_hz": rnd(keys[14], (1, H)) * 0.5,
        "b_hn": rnd(keys[14], (1, H)) * 2.0,
        # nn.Linear(H, V)
        "out_w": rnd(keys[15], (H, V)),
        "out_b": rnd(keys[15], (1, V)) * 0.3,
    }


def _mm(a, b):
    return jnp.dot(a, b, precision=jax.lax.Precision.HIGHEST)


def reference_step(token, hid, enc, p):
    """Pure-JAX single step mirroring the PyTorch forward (eval-mode dropout)."""
    H = HIDDEN
    embedded = p["embedding"][token].reshape(1, H)
    cat1 = jnp.concatenate([embedded, hid], axis=1)
    attn_w_full = jnp.concatenate([p["attn_we"], p["attn_wh"]], axis=0)
    attn_weights = jax.nn.softmax(_mm(cat1, attn_w_full) + p["attn_b"], axis=1)
    attn_applied = _mm(attn_weights, enc)
    cat2 = jnp.concatenate([embedded, attn_applied], axis=1)
    comb_full = jnp.concatenate([p["comb_we"], p["comb_wc"]], axis=0)
    x = jax.nn.relu(_mm(cat2, comb_full) + p["comb_b"])
    r = jax.nn.sigmoid(_mm(x, p["w_ir"]) + p["b_ir"] + _mm(hid, p["w_hr"]) + p["b_hr"])
    z = jax.nn.sigmoid(_mm(x, p["w_iz"]) + p["b_iz"] + _mm(hid, p["w_hz"]) + p["b_hz"])
    n = jnp.tanh(_mm(x, p["w_in"]) + p["b_in"] + r * (_mm(hid, p["w_hn"]) + p["b_hn"]))
    new_h = (1.0 - z) * n + z * hid
    log_probs = jax.nn.log_softmax(_mm(new_h, p["out_w"]) + p["out_b"], axis=1)
    return log_probs, new_h, attn_weights


def reference_decode(tokens, hidden0, enc, p):
    hid = hidden0.reshape(1, HIDDEN)
    lps, hs, aws = [], [], []
    for i in range(tokens.shape[0]):
        lp, hid, aw = reference_step(tokens[i], hid, enc, p)
        lps.append(lp)
        hs.append(hid)
        aws.append(aw)
    return (jnp.concatenate(lps, axis=0),
            jnp.concatenate(hs, axis=0),
            jnp.concatenate(aws, axis=0))


if __name__ == "__main__":
    key = jax.random.PRNGKey(0)
    pkey, hkey, ekey, tkey = jax.random.split(key, 4)
    params = make_params(pkey)
    emb_table, weight_blob = prepare_kernel_params(params)   # f32 blob, 1 DMA

    T = 8
    tokens = jax.random.randint(tkey, (T,), 0, VOCAB, dtype=jnp.int32)
    hidden0 = 0.1 * jax.random.normal(hkey, (1, 1, HIDDEN), dtype=jnp.float32)
    encoder_outputs = 0.1 * jax.random.normal(
        ekey, (MAX_LENGTH, HIDDEN), dtype=jnp.float32)

    log_probs, hiddens, attn_ws = attn_decoder_decode(
        tokens, hidden0, encoder_outputs, emb_table, weight_blob)
    jax.block_until_ready((log_probs, hiddens, attn_ws))

    ref_lp, ref_h, ref_aw = reference_decode(tokens, hidden0, encoder_outputs, params)

    assert log_probs.shape == (T, VOCAB)
    assert hiddens.shape == (T, HIDDEN)
    assert attn_ws.shape == (T, MAX_LENGTH)
    assert jnp.allclose(log_probs, ref_lp, atol=1e-4, rtol=1e-4), (
        float(jnp.max(jnp.abs(log_probs - ref_lp))))
    assert jnp.allclose(hiddens, ref_h, atol=1e-4, rtol=1e-4), (
        float(jnp.max(jnp.abs(hiddens - ref_h))))
    assert jnp.allclose(attn_ws, ref_aw, atol=1e-4, rtol=1e-4), (
        float(jnp.max(jnp.abs(attn_ws - ref_aw))))

    print("KERNEL_OK")
</pallas_src>

<mosaic_0001>
module attributes {stable_mosaic.version = 11 : i64} {
  func.func @attn_decoder_kernel(%arg0: i32, %arg1: memref<8xi32, #tpu.memory_space<smem>>, %arg2: memref<64x1x32xf32, #tpu.memory_space<vmem>>, %arg3: memref<1x32xf32, #tpu.memory_space<vmem>>, %arg4: memref<32x32xf32, #tpu.memory_space<vmem>>, %arg5: memref<232x128xf32, #tpu.memory_space<vmem>>, %arg6: memref<8x64xf32, #tpu.memory_space<vmem>>, %arg7: memref<8x32xf32, #tpu.memory_space<vmem>>, %arg8: memref<8x32xf32, #tpu.memory_space<vmem>>) attributes {dimension_semantics = [#tpu.dimension_semantics<arbitrary>], iteration_bounds = array<i64: 1>, scalar_prefetch = 1 : i64, scratch_operands = 0 : i64, tpu.core_type = #tpu.core_type<tc>, window_params = [{pipeline_mode = #tpu.pipeline_mode<synchronous>, transform_indices = @transform_0, window_bounds = array<i64: 64, 1, 32>}, {pipeline_mode = #tpu.pipeline_mode<synchronous>, transform_indices = @transform_1, window_bounds = array<i64: 1, 32>}, {pipeline_mode = #tpu.pipeline_mode<synchronous>, transform_indices = @transform_2, window_bounds = array<i64: 32, 32>}, {pipeline_mode = #tpu.pipeline_mode<synchronous>, transform_indices = @transform_3, window_bounds = array<i64: 232, 128>}, {pipeline_mode = #tpu.pipeline_mode<synchronous>, transform_indices = @transform_4, window_bounds = array<i64: 8, 64>}, {pipeline_mode = #tpu.pipeline_mode<synchronous>, transform_indices = @transform_5, window_bounds = array<i64: 8, 32>}, {pipeline_mode = #tpu.pipeline_mode<synchronous>, transform_indices = @transform_6, window_bounds = array<i64: 8, 32>}]} {
    %c0 = arith.constant 0 : index
    %c0_0 = arith.constant 0 : index
    %0 = vector.load %arg4[%c0, %c0_0] : memref<32x32xf32, #tpu.memory_space<vmem>>, vector<32x32xf32>
    %c0_1 = arith.constant 0 : index
    %c0_2 = arith.constant 0 : index
    %1 = vector.load %arg3[%c0_1, %c0_2] : memref<1x32xf32, #tpu.memory_space<vmem>>, vector<1x32xf32>
    %c0_3 = arith.constant 0 : index
    %2 = memref.load %arg1[%c0_3] : memref<8xi32, #tpu.memory_space<smem>>
    %3 = arith.index_cast %2 : i32 to index
    %c0_4 = arith.constant 0 : index
    %c0_5 = arith.constant 0 : index
    %4 = vector.load %arg2[%3, %c0_4, %c0_5] : memref<64x1x32xf32, #tpu.memory_space<vmem>>, vector<1x1x32xf32>
    %5 = vector.shape_cast %4 : vector<1x1x32xf32> to vector<1x32xf32>
    %c160 = arith.constant 160 : index
    %c0_6 = arith.constant 0 : index
    %6 = vector.load %arg5[%c160, %c0_6] : memref<232x128xf32, #tpu.memory_space<vmem>>, vector<32x128xf32>
    %cst = arith.constant dense<0.000000e+00> : vector<1x128xf32>
    %7 = tpu.matmul %1, %6, %cst {dimension_numbers = #tpu.dot_dimension_numbers<[1], [0], [0], [1], [0, 0, 1, 1], [], []>} : vector<1x32xf32>, vector<32x128xf32>, vector<1x128xf32> -> vector<1x128xf32>
    %c0_7 = arith.constant 0 : index
    %c0_8 = arith.constant 0 : index
    %8 = vector.load %arg5[%c0_7, %c0_8] : memref<232x128xf32, #tpu.memory_space<vmem>>, vector<32x32xf32>
    %cst_9 = arith.constant dense<0.000000e+00> : vector<1x32xf32>
    %9 = tpu.matmul %5, %8, %cst_9 {dimension_numbers = #tpu.dot_dimension_numbers<[1], [0], [0], [1], [0, 0, 1, 1], [], []>} : vector<1x32xf32>, vector<32x32xf32>, vector<1x32xf32> -> vector<1x32xf32>
    %c32 = arith.constant 32 : index
    %c0_10 = arith.constant 0 : index
    %10 = vector.load %arg5[%c32, %c0_10] : memref<232x128xf32, #tpu.memory_space<vmem>>, vector<32x32xf32>
    %cst_11 = arith.constant dense<0.000000e+00> : vector<1x32xf32>
    %11 = tpu.matmul %1, %10, %cst_11 {dimension_numbers = #tpu.dot_dimension_numbers<[1], [0], [0], [1], [0, 0, 1, 1], [], []>} : vector<1x32xf32>, vector<32x32xf32>, vector<1x32xf32> -> vector<1x32xf32>
    %12 = arith.addf %9, %11 : vector<1x32xf32>
    %c224 = arith.constant 224 : index
    %c0_12 = arith.constant 0 : index
    %13 = vector.load %arg5[%c224, %c0_12] : memref<232x128xf32, #tpu.memory_space<vmem>>, vector<1x32xf32>
    %14 = arith.addf %12, %13 : vector<1x32xf32>
    %cst_13 = arith.constant dense<0xFF800000> : vector<1xf32>
    %15 = vector.multi_reduction <maximumf>, %14, %cst_13 [1] : vector<1x32xf32> to vector<1xf32>
    %16 = vector.shape_cast %15 : vector<1xf32> to vector<1x1xf32>
    %17 = vector.broadcast %16 : vector<1x1xf32> to vector<1x32xf32>
    %18 = arith.subf %14, %17 : vector<1x32xf32>
    %19 = math.exp %18 : vector<1x32xf32>
    %cst_14 = arith.constant dense<0.000000e+00> : vector<1xf32>
    %20 = vector.multi_reduction <add>, %19, %cst_14 [1] : vector<1x32xf32> to vector<1xf32>
    %21 = vector.shape_cast %20 : vector<1xf32> to vector<1x1xf32>
    %22 = tpu.reciprocal %21 {approx = true} : vector<1x1xf32> -> vector<1x1xf32>
    %23 = arith.mulf %21, %22 : vector<1x1xf32>
    %cst_15 = arith.constant 2.000000e+00 : f32
    %24 = vector.broadcast %cst_15 : f32 to vector<1x1xf32>
    %25 = arith.subf %24, %23 : vector<1x1xf32>
    %26 = arith.mulf %22, %25 : vector<1x1xf32>
    %27 = vector.broadcast %26 : vector<1x1xf32> to vector<1x32xf32>
    %28 = arith.mulf %19, %27 : vector<1x32xf32>
    %cst_16 = arith.constant dense<0.000000e+00> : vector<1x32xf32>
    %29 = tpu.matmul %28, %0, %cst_16 {dimension_numbers = #tpu.dot_dimension_numbers<[1], [0], [0], [1], [0, 0, 1, 1], [], []>} : vector<1x32xf32>, vector<32x32xf32>, vector<1x32xf32> -> vector<1x32xf32>
    %c64 = arith.constant 64 : index
    %c0_17 = arith.constant 0 : index
    %30 = vector.load %arg5[%c64, %c0_17] : memref<232x128xf32, #tpu.memory_space<vmem>>, vector<32x32xf32>
    %cst_18 = arith.constant dense<0.000000e+00> : vector<1x32xf32>
    %31 = tpu.matmul %5, %30, %cst_18 {dimension_numbers = #tpu.dot_dimension_numbers<[1], [0], [0], [1], [0, 0, 1, 1], [], []>} : vector<1x32xf32>, vector<32x32xf32>, vector<1x32xf32> -> vector<1x32xf32>
    %c96 = arith.constant 96 : index
    %c0_19 = arith.constant 0 : index
    %32 = vector.load %arg5[%c96, %c0_19] : memref<232x128xf32, #tpu.memory_space<vmem>>, vector<32x32xf32>
    %cst_20 = arith.constant dense<0.000000e+00> : vector<1x32xf32>
    %33 = tpu.matmul %29, %32, %cst_20 {dimension_numbers = #tpu.dot_dimension_numbers<[1], [0], [0], [1], [0, 0, 1, 1], [], []>} : vector<1x32xf32>, vector<32x32xf32>, vector<1x32xf32> -> vector<1x32xf32>
    %34 = arith.addf %31, %33 : vector<1x32xf32>
    %c225 = arith.constant 225 : index
    %c0_21 = arith.constant 0 : index
    %35 = vector.load %arg5[%c225, %c0_21] : memref<232x128xf32, #tpu.memory_space<vmem>>, vector<1x32xf32>
    %36 = arith.addf %34, %35 : vector<1x32xf32>
    %cst_22 = arith.constant 0.000000e+00 : f32
    %37 = vector.broadcast %cst_22 : f32 to vector<1x32xf32>
    %38 = arith.maximumf %36, %37 : vector<1x32xf32>
    %c128 = arith.constant 128 : index
    %c0_23 = arith.constant 0 : index
    %39 = vector.load %arg5[%c128, %c0_23] : memref<232x128xf32, #tpu.memory_space<vmem>>, vector<32x128xf32>
    %cst_24 = arith.constant dense<0.000000e+00> : vector<1x128xf32>
    %40 = tpu.matmul %38, %39, %cst_24 {dimension_numbers = #tpu.dot_dimension_numbers<[1], [0], [0], [1], [0, 0, 1, 1], [], []>} : vector<1x32xf32>, vector<32x128xf32>, vector<1x128xf32> -> vector<1x128xf32>
    %41 = arith.addf %40, %7 : vector<1x128xf32>
    %c226 = arith.constant 226 : index
    %c0_25 = arith.constant 0 : index
    %42 = vector.load %arg5[%c226, %c0_25] : memref<232x128xf32, #tpu.memory_space<vmem>>, vector<1x128xf32>
    %43 = arith.addf %41, %42 : vector<1x128xf32>
    %44 = vector.extract_strided_slice %43 {offsets = [0, 0], sizes = [1, 32], strides = [1, 1]} : vector<1x128xf32> to vector<1x32xf32>
    %45 = arith.negf %44 : vector<1x32xf32>
    %46 = math.exp %45 : vector<1x32xf32>
    %cst_26 = arith.constant 1.000000e+00 : f32
    %47 = vector.broadcast %cst_26 : f32 to vector<1x32xf32>
    %48 = arith.addf %47, %46 : vector<1x32xf32>
    %49 = arith.divf %47, %48 : vector<1x32xf32>
    %50 = vector.extract_strided_slice %43 {offsets = [0, 32], sizes = [1, 32], strides = [1, 1]} : vector<1x128xf32> to vector<1x32xf32>
    %51 = arith.negf %50 : vector<1x32xf32>
    %52 = math.exp %51 : vector<1x32xf32>
    %cst_27 = arith.constant 1.000000e+00 : f32
    %53 = vector.broadcast %cst_27 : f32 to vector<1x32xf32>
    %54 = arith.addf %53, %52 : vector<1x32xf32>
    %55 = arith.divf %53, %54 : vector<1x32xf32>
    %56 = vector.extract_strided_slice %43 {offsets = [0, 64], sizes = [1, 32], strides = [1, 1]} : vector<1x128xf32> to vector<1x32xf32>
    %57 = vector.extract_strided_slice %43 {offsets = [0, 96], sizes = [1, 32], strides = [1, 1]} : vector<1x128xf32> to vector<1x32xf32>
    %58 = arith.mulf %49, %57 : vector<1x32xf32>
    %59 = arith.addf %56, %58 : vector<1x32xf32>
    %60 = math.tanh %59 : vector<1x32xf32>
    %cst_28 = arith.constant 1.000000e+00 : f32
    %61 = vector.broadcast %cst_28 : f32 to vector<1x32xf32>
    %62 = arith.subf %61, %55 : vector<1x32xf32>
    %63 = arith.mulf %62, %60 : vector<1x32xf32>
    %64 = arith.mulf %55, %1 : vector<1x32xf32>
    %65 = arith.addf %63, %64 : vector<1x32xf32>
    %c192 = arith.constant 192 : index
    %c0_29 = arith.constant 0 : index
    %66 = vector.load %arg5[%c192, %c0_29] : memref<232x128xf32, #tpu.memory_space<vmem>>, vector<32x64xf32>
    %cst_30 = arith.constant dense<0.000000e+00> : vector<1x64xf32>
    %67 = tpu.matmul %65, %66, %cst_30 {dimension_numbers = #tpu.dot_dimension_numbers<[1], [0], [0], [1], [0, 0, 1, 1], [], []>} : vector<1x32xf32>, vector<32x64xf32>, vector<1x64xf32> -> vector<1x64xf32>
    %c227 = arith.constant 227 : index
    %c0_31 = arith.constant 0 : index
    %68 = vector.load %arg5[%c227, %c0_31] : memref<232x128xf32, #tpu.memory_space<vmem>>, vector<1x64xf32>
    %69 = arith.addf %67, %68 : vector<1x64xf32>
    %cst_32 = arith.constant dense<0xFF800000> : vector<1xf32>
    %70 = vector.multi_reduction <maximumf>, %69, %cst_32 [1] : vector<1x64xf32> to vector<1xf32>
    %71 = vector.shape_cast %70 : vector<1xf32> to vector<1x1xf32>
    %72 = vector.broadcast %71 : vector<1x1xf32> to vector<1x64xf32>
    %73 = arith.subf %69, %72 : vector<1x64xf32>
    %74 = math.exp %73 : vector<1x64xf32>
    %cst_33 = arith.constant dense<0.000000e+00> : vector<1xf32>
    %75 = vector.multi_reduction <add>, %74, %cst_33 [1] : vector<1x64xf32> to vector<1xf32>
    %76 = vector.shape_cast %75 : vector<1xf32> to vector<1x1xf32>
    %77 = math.log %76 : vector<1x1xf32>
    %78 = arith.addf %77, %71 : vector<1x1xf32>
    %79 = vector.broadcast %78 : vector<1x1xf32> to vector<1x64xf32>
    %80 = arith.subf %69, %79 : vector<1x64xf32>
    %c0_34 = arith.constant 0 : index
    %c0_35 = arith.constant 0 : index
    %81 = vector.load %arg6[%c0_34, %c0_35] : memref<8x64xf32, #tpu.memory_space<vmem>>, vector<1x64xf32>
    tpu.vector_store %arg6[%c0_34, %c0_35], %80 {strides = array<i32>} : memref<8x64xf32, #tpu.memory_space<vmem>>, vector<1x64xf32>,
    %c0_36 = arith.constant 0 : index
    %c0_37 = arith.constant 0 : index
    %82 = vector.load %arg7[%c0_36, %c0_37] : memref<8x32xf32, #tpu.memory_space<vmem>>, vector<1x32xf32>
    tpu.vector_store %arg7[%c0_36, %c0_37], %65 {strides = array<i32>} : memref<8x32xf32, #tpu.memory_space<vmem>>, vector<1x32xf32>,
    %c0_38 = arith.constant 0 : index
    %c0_39 = arith.constant 0 : index
    %83 = vector.load %arg8[%c0_38, %c0_39] : memref<8x32xf32, #tpu.memory_space<vmem>>, vector<1x32xf32>
    tpu.vector_store %arg8[%c0_38, %c0_39], %28 {strides = array<i32>} : memref<8x32xf32, #tpu.memory_space<vmem>>, vector<1x32xf32>,
    %c1 = arith.constant 1 : index
    %84 = memref.load %arg1[%c1] : memref<8xi32, #tpu.memory_space<smem>>
    %85 = arith.index_cast %84 : i32 to index
    %c0_40 = arith.constant 0 : index
    %c0_41 = arith.constant 0 : index
    %86 = vector.load %arg2[%85, %c0_40, %c0_41] : memref<64x1x32xf32, #tpu.memory_space<vmem>>, vector<1x1x32xf32>
    %87 = vector.shape_cast %86 : vector<1x1x32xf32> to vector<1x32xf32>
    %c160_42 = arith.constant 160 : index
    %c0_43 = arith.constant 0 : index
    %88 = vector.load %arg5[%c160_42, %c0_43] : memref<232x128xf32, #tpu.memory_space<vmem>>, vector<32x128xf32>
    %cst_44 = arith.constant dense<0.000000e+00> : vector<1x128xf32>
    %89 = tpu.matmul %65, %88, %cst_44 {dimension_numbers = #tpu.dot_dimension_numbers<[1], [0], [0], [1], [0, 0, 1, 1], [], []>} : vector<1x32xf32>, vector<32x128xf32>, vector<1x128xf32> -> vector<1x128xf32>
    %c0_45 = arith.constant 0 : index
    %c0_46 = arith.constant 0 : index
    %90 = vector.load %arg5[%c0_45, %c0_46] : memref<232x128xf32, #tpu.memory_space<vmem>>, vector<32x32xf32>
    %cst_47 = arith.constant dense<0.000000e+00> : vector<1x32xf32>
    %91 = tpu.matmul %87, %90, %cst_47 {dimension_numbers = #tpu.dot_dimension_numbers<[1], [0], [0], [1], [0, 0, 1, 1], [], []>} : vector<1x32xf32>, vector<32x32xf32>, vector<1x32xf32> -> vector<1x32xf32>
    %c32_48 = arith.constant 32 : index
    %c0_49 = arith.constant 0 : index
    %92 = vector.load %arg5[%c32_48, %c0_49] : memref<232x128xf32, #tpu.memory_space<vmem>>, vector<32x32xf32>
    %cst_50 = arith.constant dense<0.000000e+00> : vector<1x32xf32>
    %93 = tpu.matmul %65, %92, %cst_50 {dimension_numbers = #tpu.dot_dimension_numbers<[1], [0], [0], [1], [0, 0, 1, 1], [], []>} : vector<1x32xf32>, vector<32x32xf32>, vector<1x32xf32> -> vector<1x32xf32>
    %94 = arith.addf %91, %93 : vector<1x32xf32>
    %c224_51 = arith.constant 224 : index
    %c0_52 = arith.constant 0 : index
    %95 = vector.load %arg5[%c224_51, %c0_52] : memref<232x128xf32, #tpu.memory_space<vmem>>, vector<1x32xf32>
    %96 = arith.addf %94, %95 : vector<1x32xf32>
    %cst_53 = arith.constant dense<0xFF800000> : vector<1xf32>
    %97 = vector.multi_reduction <maximumf>, %96, %cst_53 [1] : vector<1x32xf32> to vector<1xf32>
    %98 = vector.shape_cast %97 : vector<1xf32> to vector<1x1xf32>
    %99 = vector.broadcast %98 : vector<1x1xf32> to vector<1x32xf32>
    %100 = arith.subf %96, %99 : vector<1x32xf32>
    %101 = math.exp %100 : vector<1x32xf32>
    %cst_54 = arith.constant dense<0.000000e+00> : vector<1xf32>
    %102 = vector.multi_reduction <add>, %101, %cst_54 [1] : vector<1x32xf32> to vector<1xf32>
    %103 = vector.shape_cast %102 : vector<1xf32> to vector<1x1xf32>
    %104 = tpu.reciprocal %103 {approx = true} : vector<1x1xf32> -> vector<1x1xf32>
    %105 = arith.mulf %103, %104 : vector<1x1xf32>
    %cst_55 = arith.constant 2.000000e+00 : f32
    %106 = vector.broadcast %cst_55 : f32 to vector<1x1xf32>
    %107 = arith.subf %106, %105 : vector<1x1xf32>
    %108 = arith.mulf %104, %107 : vector<1x1xf32>
    %109 = vector.broadcast %108 : vector<1x1xf32> to vector<1x32xf32>
    %110 = arith.mulf %101, %109 : vector<1x32xf32>
    %cst_56 = arith.constant dense<0.000000e+00> : vector<1x32xf32>
    %111 = tpu.matmul %110, %0, %cst_56 {dimension_numbers = #tpu.dot_dimension_numbers<[1], [0], [0], [1], [0, 0, 1, 1], [], []>} : vector<1x32xf32>, vector<32x32xf32>, vector<1x32xf32> -> vector<1x32xf32>
    %c64_57 = arith.constant 64 : index
    %c0_58 = arith.constant 0 : index
    %112 = vector.load %arg5[%c64_57, %c0_58] : memref<232x128xf32, #tpu.memory_space<vmem>>, vector<32x32xf32>
    %cst_59 = arith.constant dense<0.000000e+00> : vector<1x32xf32>
    %113 = tpu.matmul %87, %112, %cst_59 {dimension_numbers = #tpu.dot_dimension_numbers<[1], [0], [0], [1], [0, 0, 1, 1], [], []>} : vector<1x32xf32>, vector<32x32xf32>, vector<1x32xf32> -> vector<1x32xf32>
    %c96_60 = arith.constant 96 : index
    %c0_61 = arith.constant 0 : index
    %114 = vector.load %arg5[%c96_60, %c0_61] : memref<232x128xf32, #tpu.memory_space<vmem>>, vector<32x32xf32>
    %cst_62 = arith.constant dense<0.000000e+00> : vector<1x32xf32>
    %115 = tpu.matmul %111, %114, %cst_62 {dimension_numbers = #tpu.dot_dimension_numbers<[1], [0], [0], [1], [0, 0, 1, 1], [], []>} : vector<1x32xf32>, vector<32x32xf32>, vector<1x32xf32> -> vector<1x32xf32>
    %116 = arith.addf %113, %115 : vector<1x32xf32>
    %c225_63 = arith.constant 225 : index
    %c0_64 = arith.constant 0 : index
    %117 = vector.load %arg5[%c225_63, %c0_64] : memref<232x128xf32, #tpu.memory_space<vmem>>, vector<1x32xf32>
    %118 = arith.addf %116, %117 : vector<1x32xf32>
    %cst_65 = arith.constant 0.000000e+00 : f32
    %119 = vector.broadcast %cst_65 : f32 to vector<1x32xf32>
    %120 = arith.maximumf %118, %119 : vector<1x32xf32>
    %c128_66 = arith.constant 128 : index
    %c0_67 = arith.constant 0 : index
    %121 = vector.load %arg5[%c128_66, %c0_67] : memref<232x128xf32, #tpu.memory_space<vmem>>, vector<32x128xf32>
    %cst_68 = arith.constant dense<0.000000e+00> : vector<1x128xf32>
    %122 = tpu.matmul %120, %121, %cst_68 {dimension_numbers = #tpu.dot_dimension_numbers<[1], [0], [0], [1], [0, 0, 1, 1], [], []>} : vector<1x32xf32>, vector<32x128xf32>, vector<1x128xf32> -> vector<1x128xf32>
    %123 = arith.addf %122, %89 : vector<1x128xf32>
    %c226_69 = arith.constant 226 : index
    %c0_70 = arith.constant 0 : index
    %124 = vector.load %arg5[%c226_69, %c0_70] : memref<232x128xf32, #tpu.memory_space<vmem>>, vector<1x128xf32>
    %125 = arith.addf %123, %124 : vector<1x128xf32>
    %126 = vector.extract_strided_slice %125 {offsets = [0, 0], sizes = [1, 32], strides = [1, 1]} : vector<1x128xf32> to vector<1x32xf32>
    %127 = arith.negf %126 : vector<1x32xf32>
    %128 = math.exp %127 : vector<1x32xf32>
    %cst_71 = arith.constant 1.000000e+00 : f32
    %129 = vector.broadcast %cst_71 : f32 to vector<1x32xf32>
    %130 = arith.addf %129, %128 : vector<1x32xf32>
    %131 = arith.divf %129, %130 : vector<1x32xf32>
    %132 = vector.extract_strided_slice %125 {offsets = [0, 32], sizes = [1, 32], strides = [1, 1]} : vector<1x128xf32> to vector<1x32xf32>
    %133 = arith.negf %132 : vector<1x32xf32>
    %134 = math.exp %133 : vector<1x32xf32>
    %cst_72 = arith.constant 1.000000e+00 : f32
    %135 = vector.broadcast %cst_72 : f32 to vector<1x32xf32>
    %136 = arith.addf %135, %134 : vector<1x32xf32>
    %137 = arith.divf %135, %136 : vector<1x32xf32>
    %138 = vector.extract_strided_slice %125 {offsets = [0, 64], sizes = [1, 32], strides = [1, 1]} : vector<1x128xf32> to vector<1x32xf32>
    %139 = vector.extract_strided_slice %125 {offsets = [0, 96], sizes = [1, 32], strides = [1, 1]} : vector<1x128xf32> to vector<1x32xf32>
    %140 = arith.mulf %131, %139 : vector<1x32xf32>
    %141 = arith.addf %138, %140 : vector<1x32xf32>
    %142 = math.tanh %141 : vector<1x32xf32>
    %cst_73 = arith.constant 1.000000e+00 : f32
    %143 = vector.broadcast %cst_73 : f32 to vector<1x32xf32>
    %144 = arith.subf %143, %137 : vector<1x32xf32>
    %145 = arith.mulf %144, %142 : vector<1x32xf32>
    %146 = arith.mulf %137, %65 : vector<1x32xf32>
    %147 = arith.addf %145, %146 : vector<1x32xf32>
    %c192_74 = arith.constant 192 : index
    %c0_75 = arith.constant 0 : index
    %148 = vector.load %arg5[%c192_74, %c0_75] : memref<232x128xf32, #tpu.memory_space<vmem>>, vector<32x64xf32>
    %cst_76 = arith.constant dense<0.000000e+00> : vector<1x64xf32>
    %149 = tpu.matmul %147, %148, %cst_76 {dimension_numbers = #tpu.dot_dimension_numbers<[1], [0], [0], [1], [0, 0, 1, 1], [], []>} : vector<1x32xf32>, vector<32x64xf32>, vector<1x64xf32> -> vector<1x64xf32>
    %c227_77 = arith.constant 227 : index
    %c0_78 = arith.constant 0 : index
    %150 = vector.load %arg5[%c227_77, %c0_78] : memref<232x128xf32, #tpu.memory_space<vmem>>, vector<1x64xf32>
    %151 = arith.addf %149, %150 : vector<1x64xf32>
    %cst_79 = arith.constant dense<0xFF800000> : vector<1xf32>
    %152 = vector.multi_reduction <maximumf>, %151, %cst_79 [1] : vector<1x64xf32> to vector<1xf32>
    %153 = vector.shape_cast %152 : vector<1xf32> to vector<1x1xf32>
    %154 = vector.broadcast %153 : vector<1x1xf32> to vector<1x64xf32>
    %155 = arith.subf %151, %154 : vector<1x64xf32>
    %156 = math.exp %155 : vector<1x64xf32>
    %cst_80 = arith.constant dense<0.000000e+00> : vector<1xf32>
    %157 = vector.multi_reduction <add>, %156, %cst_80 [1] : vector<1x64xf32> to vector<1xf32>
    %158 = vector.shape_cast %157 : vector<1xf32> to vector<1x1xf32>
    %159 = math.log %158 : vector<1x1xf32>
    %160 = arith.addf %159, %153 : vector<1x1xf32>
    %161 = vector.broadcast %160 : vector<1x1xf32> to vector<1x64xf32>
    %162 = arith.subf %151, %161 : vector<1x64xf32>
    %c1_81 = arith.constant 1 : index
    %c0_82 = arith.constant 0 : index
    %163 = vector.load %arg6[%c1_81, %c0_82] : memref<8x64xf32, #tpu.memory_space<vmem>>, vector<1x64xf32>
    tpu.vector_store %arg6[%c1_81, %c0_82], %162 {strides = array<i32>} : memref<8x64xf32, #tpu.memory_space<vmem>>, vector<1x64xf32>,
    %c1_83 = arith.constant 1 : index
    %c0_84 = arith.constant 0 : index
    %164 = vector.load %arg7[%c1_83, %c0_84] : memref<8x32xf32, #tpu.memory_space<vmem>>, vector<1x32xf32>
    tpu.vector_store %arg7[%c1_83, %c0_84], %147 {strides = array<i32>} : memref<8x32xf32, #tpu.memory_space<vmem>>, vector<1x32xf32>,
    %c1_85 = arith.constant 1 : index
    %c0_86 = arith.constant 0 : index
    %165 = vector.load %arg8[%c1_85, %c0_86] : memref<8x32xf32, #tpu.memory_space<vmem>>, vector<1x32xf32>
    tpu.vector_store %arg8[%c1_85, %c0_86], %110 {strides = array<i32>} : memref<8x32xf32, #tpu.memory_space<vmem>>, vector<1x32xf32>,
    %c2 = arith.constant 2 : index
    %166 = memref.load %arg1[%c2] : memref<8xi32, #tpu.memory_space<smem>>
    %167 = arith.index_cast %166 : i32 to index
    %c0_87 = arith.constant 0 : index
    %c0_88 = arith.constant 0 : index
    %168 = vector.load %arg2[%167, %c0_87, %c0_88] : memref<64x1x32xf32, #tpu.memory_space<vmem>>, vector<1x1x32xf32>
    %169 = vector.shape_cast %168 : vector<1x1x32xf32> to vector<1x32xf32>
    %c160_89 = arith.constant 160 : index
    %c0_90 = arith.constant 0 : index
    %170 = vector.load %arg5[%c160_89, %c0_90] : memref<232x128xf32, #tpu.memory_space<vmem>>, vector<32x128xf32>
    %cst_91 = arith.constant dense<0.000000e+00> : vector<1x128xf32>
    %171 = tpu.matmul %147, %170, %cst_91 {dimension_numbers = #tpu.dot_dimension_numbers<[1], [0], [0], [1], [0, 0, 1, 1], [], []>} : vector<1x32xf32>, vector<32x128xf32>, vector<1x128xf32> -> vector<1x128xf32>
    %c0_92 = arith.constant 0 : index
    %c0_93 = arith.constant 0 : index
    %172 = vector.load %arg5[%c0_92, %c0_93] : memref<232x128xf32, #tpu.memory_space<vmem>>, vector<32x32xf32>
    %cst_94 = arith.constant dense<0.000000e+00> : vector<1x32xf32>
    %173 = tpu.matmul %169, %172, %cst_94 {dimension_numbers = #tpu.dot_dimension_numbers<[1], [0], [0], [1], [0, 0, 1, 1], [], []>} : vector<1x32xf32>, vector<32x32xf32>, vector<1x32xf32> -> vector<1x32xf32>
    %c32_95 = arith.constant 32 : index
    %c0_96 = arith.constant 0 : index
    %174 = vector.load %arg5[%c32_95, %c0_96] : memref<232x128xf32, #tpu.memory_space<vmem>>, vector<32x32xf32>
    %cst_97 = arith.constant dense<0.000000e+00> : vector<1x32xf32>
    %175 = tpu.matmul %147, %174, %cst_97 {dimension_numbers = #tpu.dot_dimension_numbers<[1], [0], [0], [1], [0, 0, 1, 1], [], []>} : vector<1x32xf32>, vector<32x32xf32>, vector<1x32xf32> -> vector<1x32xf32>
    %176 = arith.addf %173, %175 : vector<1x32xf32>
    %c224_98 = arith.constant 224 : index
    %c0_99 = arith.constant 0 : index
    %177 = vector.load %arg5[%c224_98, %c0_99] : memref<232x128xf32, #tpu.memory_space<vmem>>, vector<1x32xf32>
    %178 = arith.addf %176, %177 : vector<1x32xf32>
    %cst_100 = arith.constant dense<0xFF800000> : vector<1xf32>
    %179 = vector.multi_reduction <maximumf>, %178, %cst_100 [1] : vector<1x32xf32> to vector<1xf32>
    %180 = vector.shape_cast %179 : vector<1xf32> to vector<1x1xf32>
    %181 = vector.broadcast %180 : vector<1x1xf32> to vector<1x32xf32>
    %182 = arith.subf %178, %181 : vector<1x32xf32>
    %183 = math.exp %182 : vector<1x32xf32>
    %cst_101 = arith.constant dense<0.000000e+00> : vector<1xf32>
    %184 = vector.multi_reduction <add>, %183, %cst_101 [1] : vector<1x32xf32> to vector<1xf32>
    %185 = vector.shape_cast %184 : vector<1xf32> to vector<1x1xf32>
    %186 = tpu.reciprocal %185 {approx = true} : vector<1x1xf32> -> vector<1x1xf32>
    %187 = arith.mulf %185, %186 : vector<1x1xf32>
    %cst_102 = arith.constant 2.000000e+00 : f32
    %188 = vector.broadcast %cst_102 : f32 to vector<1x1xf32>
    %189 = arith.subf %188, %187 : vector<1x1xf32>
    %190 = arith.mulf %186, %189 : vector<1x1xf32>
    %191 = vector.broadcast %190 : vector<1x1xf32> to vector<1x32xf32>
    %192 = arith.mulf %183, %191 : vector<1x32xf32>
    %cst_103 = arith.constant dense<0.000000e+00> : vector<1x32xf32>
    %193 = tpu.matmul %192, %0, %cst_103 {dimension_numbers = #tpu.dot_dimension_numbers<[1], [0], [0], [1], [0, 0, 1, 1], [], []>} : vector<1x32xf32>, vector<32x32xf32>, vector<1x32xf32> -> vector<1x32xf32>
    %c64_104 = arith.constant 64 : index
    %c0_105 = arith.constant 0 : index
    %194 = vector.load %arg5[%c64_104, %c0_105] : memref<232x128xf32, #tpu.memory_space<vmem>>, vector<32x32xf32>
    %cst_106 = arith.constant dense<0.000000e+00> : vector<1x32xf32>
    %195 = tpu.matmul %169, %194, %cst_106 {dimension_numbers = #tpu.dot_dimension_numbers<[1], [0], [0], [1], [0, 0, 1, 1], [], []>} : vector<1x32xf32>, vector<32x32xf32>, vector<1x32xf32> -> vector<1x32xf32>
    %c96_107 = arith.constant 96 : index
    %c0_108 = arith.constant 0 : index
    %196 = vector.load %arg5[%c96_107, %c0_108] : memref<232x128xf32, #tpu.memory_space<vmem>>, vector<32x32xf32>
    %cst_109 = arith.constant dense<0.000000e+00> : vector<1x32xf32>
    %197 = tpu.matmul %193, %196, %cst_109 {dimension_numbers = #tpu.dot_dimension_numbers<[1], [0], [0], [1], [0, 0, 1, 1], [], []>} : vector<1x32xf32>, vector<32x32xf32>, vector<1x32xf32> -> vector<1x32xf32>
    %198 = arith.addf %195, %197 : vector<1x32xf32>
    %c225_110 = arith.constant 225 : index
    %c0_111 = arith.constant 0 : index
    %199 = vector.load %arg5[%c225_110, %c0_111] : memref<232x128xf32, #tpu.memory_space<vmem>>, vector<1x32xf32>
    %200 = arith.addf %198, %199 : vector<1x32xf32>
    %cst_112 = arith.constant 0.000000e+00 : f32
    %201 = vector.broadcast %cst_112 : f32 to vector<1x32xf32>
    %202 = arith.maximumf %200, %201 : vector<1x32xf32>
    %c128_113 = arith.constant 128 : index
    %c0_114 = arith.constant 0 : index
    %203 = vector.load %arg5[%c128_113, %c0_114] : memref<232x128xf32, #tpu.memory_space<vmem>>, vector<32x128xf32>
    %cst_115 = arith.constant dense<0.000000e+00> : vector<1x128xf32>
    %204 = tpu.matmul %202, %203, %cst_115 {dimension_numbers = #tpu.dot_dimension_numbers<[1], [0], [0], [1], [0, 0, 1, 1], [], []>} : vector<1x32xf32>, vector<32x128xf32>, vector<1x128xf32> -> vector<1x128xf32>
    %205 = arith.addf %204, %171 : vector<1x128xf32>
    %c226_116 = arith.constant 226 : index
    %c0_117 = arith.constant 0 : index
    %206 = vector.load %arg5[%c226_116, %c0_117] : memref<232x128xf32, #tpu.memory_space<vmem>>, vector<1x128xf32>
    %207 = arith.addf %205, %206 : vector<1x128xf32>
    %208 = vector.extract_strided_slice %207 {offsets = [0, 0], sizes = [1, 32], strides = [1, 1]} : vector<1x128xf32> to vector<1x32xf32>
    %209 = arith.negf %208 : vector<1x32xf32>
    %210 = math.exp %209 : vector<1x32xf32>
    %cst_118 = arith.constant 1.000000e+00 : f32
    %211 = vector.broadcast %cst_118 : f32 to vector<1x32xf32>
    %212 = arith.addf %211, %210 : vector<1x32xf32>
    %213 = arith.divf %211, %212 : vector<1x32xf32>
    %214 = vector.extract_strided_slice %207 {offsets = [0, 32], sizes = [1, 32], strides = [1, 1]} : vector<1x128xf32> to vector<1x32xf32>
    %215 = arith.negf %214 : vector<1x32xf32>
    %216 = math.exp %215 : vector<1x32xf32>
    %cst_119 = arith.constant 1.000000e+00 : f32
    %217 = vector.broadcast %cst_119 : f32 to vector<1x32xf32>
    %218 = arith.addf %217, %216 : vector<1x32xf32>
    %219 = arith.divf %217, %218 : vector<1x32xf32>
    %220 = vector.extract_strided_slice %207 {offsets = [0, 64], sizes = [1, 32], strides = [1, 1]} : vector<1x128xf32> to vector<1x32xf32>
    %221 = vector.extract_strided_slice %207 {offsets = [0, 96], sizes = [1, 32], strides = [1, 1]} : vector<1x128xf32> to vector<1x32xf32>
    %222 = arith.mulf %213, %221 : vector<1x32xf32>
    %223 = arith.addf %220, %222 : vector<1x32xf32>
    %224 = math.tanh %223 : vector<1x32xf32>
    %cst_120 = arith.constant 1.000000e+00 : f32
    %225 = vector.broadcast %cst_120 : f32 to vector<1x32xf32>
    %226 = arith.subf %225, %219 : vector<1x32xf32>
    %227 = arith.mulf %226, %224 : vector<1x32xf32>
    %228 = arith.mulf %219, %147 : vector<1x32xf32>
    %229 = arith.addf %227, %228 : vector<1x32xf32>
    %c192_121 = arith.constant 192 : index
    %c0_122 = arith.constant 0 : index
    %230 = vector.load %arg5[%c192_121, %c0_122] : memref<232x128xf32, #tpu.memory_space<vmem>>, vector<32x64xf32>
    %cst_123 = arith.constant dense<0.000000e+00> : vector<1x64xf32>
    %231 = tpu.matmul %229, %230, %cst_123 {dimension_numbers = #tpu.dot_dimension_numbers<[1], [0], [0], [1], [0, 0, 1, 1], [], []>} : vector<1x32xf32>, vector<32x64xf32>, vector<1x64xf32> -> vector<1x64xf32>
    %c227_124 = arith.constant 227 : index
    %c0_125 = arith.constant 0 : index
    %232 = vector.load %arg5[%c227_124, %c0_125] : memref<232x128xf32, #tpu.memory_space<vmem>>, vector<1x64xf32>
    %233 = arith.addf %231, %232 : vector<1x64xf32>
    %cst_126 = arith.constant dense<0xFF800000> : vector<1xf32>
    %234 = vector.multi_reduction <maximumf>, %233, %cst_126 [1] : vector<1x64xf32> to vector<1xf32>
    %235 = vector.shape_cast %234 : vector<1xf32> to vector<1x1xf32>
    %236 = vector.broadcast %235 : vector<1x1xf32> to vector<1x64xf32>
    %237 = arith.subf %233, %236 : vector<1x64xf32>
    %238 = math.exp %237 : vector<1x64xf32>
    %cst_127 = arith.constant dense<0.000000e+00> : vector<1xf32>
    %239 = vector.multi_reduction <add>, %238, %cst_127 [1] : vector<1x64xf32> to vector<1xf32>
    %240 = vector.shape_cast %239 : vector<1xf32> to vector<1x1xf32>
    %241 = math.log %240 : vector<1x1xf32>
    %242 = arith.addf %241, %235 : vector<1x1xf32>
    %243 = vector.broadcast %242 : vector<1x1xf32> to vector<1x64xf32>
    %244 = arith.subf %233, %243 : vector<1x64xf32>
    %c2_128 = arith.constant 2 : index
    %c0_129 = arith.constant 0 : index
    %245 = vector.load %arg6[%c2_128, %c0_129] : memref<8x64xf32, #tpu.memory_space<vmem>>, vector<1x64xf32>
    tpu.vector_store %arg6[%c2_128, %c0_129], %244 {strides = array<i32>} : memref<8x64xf32, #tpu.memory_space<vmem>>, vector<1x64xf32>,
    %c2_130 = arith.constant 2 : index
    %c0_131 = arith.constant 0 : index
    %246 = vector.load %arg7[%c2_130, %c0_131] : memref<8x32xf32, #tpu.memory_space<vmem>>, vector<1x32xf32>
    tpu.vector_store %arg7[%c2_130, %c0_131], %229 {strides = array<i32>} : memref<8x32xf32, #tpu.memory_space<vmem>>, vector<1x32xf32>,
    %c2_132 = arith.constant 2 : index
    %c0_133 = arith.constant 0 : index
    %247 = vector.load %arg8[%c2_132, %c0_133] : memref<8x32xf32, #tpu.memory_space<vmem>>, vector<1x32xf32>
    tpu.vector_store %arg8[%c2_132, %c0_133], %192 {strides = array<i32>} : memref<8x32xf32, #tpu.memory_space<vmem>>, vector<1x32xf32>,
    %c3 = arith.constant 3 : index
    %248 = memref.load %arg1[%c3] : memref<8xi32, #tpu.memory_space<smem>>
    %249 = arith.index_cast %248 : i32 to index
    %c0_134 = arith.constant 0 : index
    %c0_135 = arith.constant 0 : index
    %250 = vector.load %arg2[%249, %c0_134, %c0_135] : memref<64x1x32xf32, #tpu.memory_space<vmem>>, vector<1x1x32xf32>
    %251 = vector.shape_cast %250 : vector<1x1x32xf32> to vector<1x32xf32>
    %c160_136 = arith.constant 160 : index
    %c0_137 = arith.constant 0 : index
    %252 = vector.load %arg5[%c160_136, %c0_137] : memref<232x128xf32, #tpu.memory_space<vmem>>, vector<32x128xf32>
    %cst_138 = arith.constant dense<0.000000e+00> : vector<1x128xf32>
    %253 = tpu.matmul %229, %252, %cst_138 {dimension_numbers = #tpu.dot_dimension_numbers<[1], [0], [0], [1], [0, 0, 1, 1], [], []>} : vector<1x32xf32>, vector<32x128xf32>, vector<1x128xf32> -> vector<1x128xf32>
    %c0_139 = arith.constant 0 : index
    %c0_140 = arith.constant 0 : index
    %254 = vector.load %arg5[%c0_139, %c0_140] : memref<232x128xf32, #tpu.memory_space<vmem>>, vector<32x32xf32>
    %cst_141 = arith.constant dense<0.000000e+00> : vector<1x32xf32>
    %255 = tpu.matmul %251, %254, %cst_141 {dimension_numbers = #tpu.dot_dimension_numbers<[1], [0], [0], [1], [0, 0, 1, 1], [], []>} : vector<1x32xf32>, vector<32x32xf32>, vector<1x32xf32> -> vector<1x32xf32>
    %c32_142 = arith.constant 32 : index
    %c0_143 = arith.constant 0 : index
    %256 = vector.load %arg5[%c32_142, %c0_143] : memref<232x128xf32, #tpu.memory_space<vmem>>, vector<32x32xf32>
    %cst_144 = arith.constant dense<0.000000e+00> : vector<1x32xf32>
    %257 = tpu.matmul %229, %256, %cst_144 {dimension_numbers = #tpu.dot_dimension_numbers<[1], [0], [0], [1], [0, 0, 1, 1], [], []>} : vector<1x32xf32>, vector<32x32xf32>, vector<1x32xf32> -> vector<1x32xf32>
    %258 = arith.addf %255, %257 : vector<1x32xf32>
    %c224_145 = arith.constant 224 : index
    %c0_146 = arith.constant 0 : index
    %259 = vector.load %arg5[%c224_145, %c0_146] : memref<232x128xf32, #tpu.memory_space<vmem>>, vector<1x32xf32>
    %260 = arith.addf %258, %259 : vector<1x32xf32>
    %cst_147 = arith.constant dense<0xFF800000> : vector<1xf32>
    %261 = vector.multi_reduction <maximumf>, %260, %cst_147 [1] : vector<1x32xf32> to vector<1xf32>
    %262 = vector.shape_cast %261 : vector<1xf32> to vector<1x1xf32>
    %263 = vector.broadcast %262 : vector<1x1xf32> to vector<1x32xf32>
    %264 = arith.subf %260, %263 : vector<1x32xf32>
    %265 = math.exp %264 : vector<1x32xf32>
    %cst_148 = arith.constant dense<0.000000e+00> : vector<1xf32>
    %266 = vector.multi_reduction <add>, %265, %cst_148 [1] : vector<1x32xf32> to vector<1xf32>
    %267 = vector.shape_cast %266 : vector<1xf32> to vector<1x1xf32>
    %268 = tpu.reciprocal %267 {approx = true} : vector<1x1xf32> -> vector<1x1xf32>
    %269 = arith.mulf %267, %268 : vector<1x1xf32>
    %cst_149 = arith.constant 2.000000e+00 : f32
    %270 = vector.broadcast %cst_149 : f32 to vector<1x1xf32>
    %271 = arith.subf %270, %269 : vector<1x1xf32>
    %272 = arith.mulf %268, %271 : vector<1x1xf32>
    %273 = vector.broadcast %272 : vector<1x1xf32> to vector<1x32xf32>
    %274 = arith.mulf %265, %273 : vector<1x32xf32>
    %cst_150 = arith.constant dense<0.000000e+00> : vector<1x32xf32>
    %275 = tpu.matmul %274, %0, %cst_150 {dimension_numbers = #tpu.dot_dimension_numbers<[1], [0], [0], [1], [0, 0, 1, 1], [], []>} : vector<1x32xf32>, vector<32x32xf32>, vector<1x32xf32> -> vector<1x32xf32>
    %c64_151 = arith.constant 64 : index
    %c0_152 = arith.constant 0 : index
    %276 = vector.load %arg5[%c64_151, %c0_152] : memref<232x128xf32, #tpu.memory_space<vmem>>, vector<32x32xf32>
    %cst_153 = arith.constant dense<0.000000e+00> : vector<1x32xf32>
    %277 = tpu.matmul %251, %276, %cst_153 {dimension_numbers = #tpu.dot_dimension_numbers<[1], [0], [0], [1], [0, 0, 1, 1], [], []>} : vector<1x32xf32>, vector<32x32xf32>, vector<1x32xf32> -> vector<1x32xf32>
    %c96_154 = arith.constant 96 : index
    %c0_155 = arith.constant 0 : index
    %278 = vector.load %arg5[%c96_154, %c0_155] : memref<232x128xf32, #tpu.memory_space<vmem>>, vector<32x32xf32>
    %cst_156 = arith.constant dense<0.000000e+00> : vector<1x32xf32>
    %279 = tpu.matmul %275, %278, %cst_156 {dimension_numbers = #tpu.dot_dimension_numbers<[1], [0], [0], [1], [0, 0, 1, 1], [], []>} : vector<1x32xf32>, vector<32x32xf32>, vector<1x32xf32> -> vector<1x32xf32>
    %280 = arith.addf %277, %279 : vector<1x32xf32>
    %c225_157 = arith.constant 225 : index
    %c0_158 = arith.constant 0 : index
    %281 = vector.load %arg5[%c225_157, %c0_158] : memref<232x128xf32, #tpu.memory_space<vmem>>, vector<1x32xf32>
    %282 = arith.addf %280, %281 : vector<1x32xf32>
    %cst_159 = arith.constant 0.000000e+00 : f32
    %283 = vector.broadcast %cst_159 : f32 to vector<1x32xf32>
    %284 = arith.maximumf %282, %283 : vector<1x32xf32>
    %c128_160 = arith.constant 128 : index
    %c0_161 = arith.constant 0 : index
    %285 = vector.load %arg5[%c128_160, %c0_161] : memref<232x128xf32, #tpu.memory_space<vmem>>, vector<32x128xf32>
    %cst_162 = arith.constant dense<0.000000e+00> : vector<1x128xf32>
    %286 = tpu.matmul %284, %285, %cst_162 {dimension_numbers = #tpu.dot_dimension_numbers<[1], [0], [0], [1], [0, 0, 1, 1], [], []>} : vector<1x32xf32>, vector<32x128xf32>, vector<1x128xf32> -> vector<1x128xf32>
    %287 = arith.addf %286, %253 : vector<1x128xf32>
    %c226_163 = arith.constant 226 : index
    %c0_164 = arith.constant 0 : index
    %288 = vector.load %arg5[%c226_163, %c0_164] : memref<232x128xf32, #tpu.memory_space<vmem>>, vector<1x128xf32>
    %289 = arith.addf %287, %288 : vector<1x128xf32>
    %290 = vector.extract_strided_slice %289 {offsets = [0, 0], sizes = [1, 32], strides = [1, 1]} : vector<1x128xf32> to vector<1x32xf32>
    %291 = arith.negf %290 : vector<1x32xf32>
    %292 = math.exp %291 : vector<1x32xf32>
    %cst_165 = arith.constant 1.000000e+00 : f32
    %293 = vector.broadcast %cst_165 : f32 to vector<1x32xf32>
    %294 = arith.addf %293, %292 : vector<1x32xf32>
    %295 = arith.divf %293, %294 : vector<1x32xf32>
    %296 = vector.extract_strided_slice %289 {offsets = [0, 32], sizes = [1, 32], strides = [1, 1]} : vector<1x128xf32> to vector<1x32xf32>
    %297 = arith.negf %296 : vector<1x32xf32>
    %298 = math.exp %297 : vector<1x32xf32>
    %cst_166 = arith.constant 1.000000e+00 : f32
    %299 = vector.broadcast %cst_166 : f32 to vector<1x32xf32>
    %300 = arith.addf %299, %298 : vector<1x32xf32>
    %301 = arith.divf %299, %300 : vector<1x32xf32>
    %302 = vector.extract_strided_slice %289 {offsets = [0, 64], sizes = [1, 32], strides = [1, 1]} : vector<1x128xf32> to vector<1x32xf32>
    %303 = vector.extract_strided_slice %289 {offsets = [0, 96], sizes = [1, 32], strides = [1, 1]} : vector<1x128xf32> to vector<1x32xf32>
    %304 = arith.mulf %295, %303 : vector<1x32xf32>
    %305 = arith.addf %302, %304 : vector<1x32xf32>
    %306 = math.tanh %305 : vector<1x32xf32>
    %cst_167 = arith.constant 1.000000e+00 : f32
    %307 = vector.broadcast %cst_167 : f32 to vector<1x32xf32>
    %308 = arith.subf %307, %301 : vector<1x32xf32>
    %309 = arith.mulf %308, %306 : vector<1x32xf32>
    %310 = arith.mulf %301, %229 : vector<1x32xf32>
    %311 = arith.addf %309, %310 : vector<1x32xf32>
    %c192_168 = arith.constant 192 : index
    %c0_169 = arith.constant 0 : index
    %312 = vector.load %arg5[%c192_168, %c0_169] : memref<232x128xf32, #tpu.memory_space<vmem>>, vector<32x64xf32>
    %cst_170 = arith.constant dense<0.000000e+00> : vector<1x64xf32>
    %313 = tpu.matmul %311, %312, %cst_170 {dimension_numbers = #tpu.dot_dimension_numbers<[1], [0], [0], [1], [0, 0, 1, 1], [], []>} : vector<1x32xf32>, vector<32x64xf32>, vector<1x64xf32> -> vector<1x64xf32>
    %c227_171 = arith.constant 227 : index
    %c0_172 = arith.constant 0 : index
    %314 = vector.load %arg5[%c227_171, %c0_172] : memref<232x128xf32, #tpu.memory_space<vmem>>, vector<1x64xf32>
    %315 = arith.addf %313, %314 : vector<1x64xf32>
    %cst_173 = arith.constant dense<0xFF800000> : vector<1xf32>
    %316 = vector.multi_reduction <maximumf>, %315, %cst_173 [1] : vector<1x64xf32> to vector<1xf32>
    %317 = vector.shape_cast %316 : vector<1xf32> to vector<1x1xf32>
    %318 = vector.broadcast %317 : vector<1x1xf32> to vector<1x64xf32>
    %319 = arith.subf %315, %318 : vector<1x64xf32>
    %320 = math.exp %319 : vector<1x64xf32>
    %cst_174 = arith.constant dense<0.000000e+00> : vector<1xf32>
    %321 = vector.multi_reduction <add>, %320, %cst_174 [1] : vector<1x64xf32> to vector<1xf32>
    %322 = vector.shape_cast %321 : vector<1xf32> to vector<1x1xf32>
    %323 = math.log %322 : vector<1x1xf32>
    %324 = arith.addf %323, %317 : vector<1x1xf32>
    %325 = vector.broadcast %324 : vector<1x1xf32> to vector<1x64xf32>
    %326 = arith.subf %315, %325 : vector<1x64xf32>
    %c3_175 = arith.constant 3 : index
    %c0_176 = arith.constant 0 : index
    %327 = vector.load %arg6[%c3_175, %c0_176] : memref<8x64xf32, #tpu.memory_space<vmem>>, vector<1x64xf32>
    tpu.vector_store %arg6[%c3_175, %c0_176], %326 {strides = array<i32>} : memref<8x64xf32, #tpu.memory_space<vmem>>, vector<1x64xf32>,
    %c3_177 = arith.constant 3 : index
    %c0_178 = arith.constant 0 : index
    %328 = vector.load %arg7[%c3_177, %c0_178] : memref<8x32xf32, #tpu.memory_space<vmem>>, vector<1x32xf32>
    tpu.vector_store %arg7[%c3_177, %c0_178], %311 {strides = array<i32>} : memref<8x32xf32, #tpu.memory_space<vmem>>, vector<1x32xf32>,
    %c3_179 = arith.constant 3 : index
    %c0_180 = arith.constant 0 : index
    %329 = vector.load %arg8[%c3_179, %c0_180] : memref<8x32xf32, #tpu.memory_space<vmem>>, vector<1x32xf32>
    tpu.vector_store %arg8[%c3_179, %c0_180], %274 {strides = array<i32>} : memref<8x32xf32, #tpu.memory_space<vmem>>, vector<1x32xf32>,
    %c4 = arith.constant 4 : index
    %330 = memref.load %arg1[%c4] : memref<8xi32, #tpu.memory_space<smem>>
    %331 = arith.index_cast %330 : i32 to index
    %c0_181 = arith.constant 0 : index
    %c0_182 = arith.constant 0 : index
    %332 = vector.load %arg2[%331, %c0_181, %c0_182] : memref<64x1x32xf32, #tpu.memory_space<vmem>>, vector<1x1x32xf32>
    %333 = vector.shape_cast %332 : vector<1x1x32xf32> to vector<1x32xf32>
    %c160_183 = arith.constant 160 : index
    %c0_184 = arith.constant 0 : index
    %334 = vector.load %arg5[%c160_183, %c0_184] : memref<232x128xf32, #tpu.memory_space<vmem>>, vector<32x128xf32>
    %cst_185 = arith.constant dense<0.000000e+00> : vector<1x128xf32>
    %335 = tpu.matmul %311, %334, %cst_185 {dimension_numbers = #tpu.dot_dimension_numbers<[1], [0], [0], [1], [0, 0, 1, 1], [], []>} : vector<1x32xf32>, vector<32x128xf32>, vector<1x128xf32> -> vector<1x128xf32>
    %c0_186 = arith.constant 0 : index
    %c0_187 = arith.constant 0 : index
    %336 = vector.load %arg5[%c0_186, %c0_187] : memref<232x128xf32, #tpu.memory_space<vmem>>, vector<32x32xf32>
    %cst_188 = arith.constant dense<0.000000e+00> : vector<1x32xf32>
    %337 = tpu.matmul %333, %336, %cst_188 {dimension_numbers = #tpu.dot_dimension_numbers<[1], [0], [0], [1], [0, 0, 1, 1], [], []>} : vector<1x32xf32>, vector<32x32xf32>, vector<1x32xf32> -> vector<1x32xf32>
    %c32_189 = arith.constant 32 : index
    %c0_190 = arith.constant 0 : index
    %338 = vector.load %arg5[%c32_189, %c0_190] : memref<232x128xf32, #tpu.memory_space<vmem>>, vector<32x32xf32>
    %cst_191 = arith.constant dense<0.000000e+00> : vector<1x32xf32>
    %339 = tpu.matmul %311, %338, %cst_191 {dimension_numbers = #tpu.dot_dimension_numbers<[1], [0], [0], [1], [0, 0, 1, 1], [], []>} : vector<1x32xf32>, vector<32x32xf32>, vector<1x32xf32> -> vector<1x32xf32>
    %340 = arith.addf %337, %339 : vector<1x32xf32>
    %c224_192 = arith.constant 224 : index
    %c0_193 = arith.constant 0 : index
    %341 = vector.load %arg5[%c224_192, %c0_193] : memref<232x128xf32, #tpu.memory_space<vmem>>, vector<1x32xf32>
    %342 = arith.addf %340, %341 : vector<1x32xf32>
    %cst_194 = arith.constant dense<0xFF800000> : vector<1xf32>
    %343 = vector.multi_reduction <maximumf>, %342, %cst_194 [1] : vector<1x32xf32> to vector<1xf32>
    %344 = vector.shape_cast %343 : vector<1xf32> to vector<1x1xf32>
    %345 = vector.broadcast %344 : vector<1x1xf32> to vector<1x32xf32>
    %346 = arith.subf %342, %345 : vector<1x32xf32>
    %347 = math.exp %346 : vector<1x32xf32>
    %cst_195 = arith.constant dense<0.000000e+00> : vector<1xf32>
    %348 = vector.multi_reduction <add>, %347, %cst_195 [1] : vector<1x32xf32> to vector<1xf32>
    %349 = vector.shape_cast %348 : vector<1xf32> to vector<1x1xf32>
    %350 = tpu.reciprocal %349 {approx = true} : vector<1x1xf32> -> vector<1x1xf32>
    %351 = arith.mulf %349, %350 : vector<1x1xf32>
    %cst_196 = arith.constant 2.000000e+00 : f32
    %352 = vector.broadcast %cst_196 : f32 to vector<1x1xf32>
    %353 = arith.subf %352, %351 : vector<1x1xf32>
    %354 = arith.mulf %350, %353 : vector<1x1xf32>
    %355 = vector.broadcast %354 : vector<1x1xf32> to vector<1x32xf32>
    %356 = arith.mulf %347, %355 : vector<1x32xf32>
    %cst_197 = arith.constant dense<0.000000e+00> : vector<1x32xf32>
    %357 = tpu.matmul %356, %0, %cst_197 {dimension_numbers = #tpu.dot_dimension_numbers<[1], [0], [0], [1], [0, 0, 1, 1], [], []>} : vector<1x32xf32>, vector<32x32xf32>, vector<1x32xf32> -> vector<1x32xf32>
    %c64_198 = arith.constant 64 : index
    %c0_199 = arith.constant 0 : index
    %358 = vector.load %arg5[%c64_198, %c0_199] : memref<232x128xf32, #tpu.memory_space<vmem>>, vector<32x32xf32>
    %cst_200 = arith.constant dense<0.000000e+00> : vector<1x32xf32>
    %359 = tpu.matmul %333, %358, %cst_200 {dimension_numbers = #tpu.dot_dimension_numbers<[1], [0], [0], [1], [0, 0, 1, 1], [], []>} : vector<1x32xf32>, vector<32x32xf32>, vector<1x32xf32> -> vector<1x32xf32>
    %c96_201 = arith.constant 96 : index
    %c0_202 = arith.constant 0 : index
    %360 = vector.load %arg5[%c96_201, %c0_202] : memref<232x128xf32, #tpu.memory_space<vmem>>, vector<32x32xf32>
    %cst_203 = arith.constant dense<0.000000e+00> : vector<1x32xf32>
    %361 = tpu.matmul %357, %360, %cst_203 {dimension_numbers = #tpu.dot_dimension_numbers<[1], [0], [0], [1], [0, 0, 1, 1], [], []>} : vector<1x32xf32>, vector<32x32xf32>, vector<1x32xf32> -> vector<1x32xf32>
    %362 = arith.addf %359, %361 : vector<1x32xf32>
    %c225_204 = arith.constant 225 : index
    %c0_205 = arith.constant 0 : index
    %363 = vector.load %arg5[%c225_204, %c0_205] : memref<232x128xf32, #tpu.memory_space<vmem>>, vector<1x32xf32>
    %364 = arith.addf %362, %363 : vector<1x32xf32>
    %cst_206 = arith.constant 0.000000e+00 : f32
    %365 = vector.broadcast %cst_206 : f32 to vector<1x32xf32>
    %366 = arith.maximumf %364, %365 : vector<1x32xf32>
    %c128_207 = arith.constant 128 : index
    %c0_208 = arith.constant 0 : index
    %367 = vector.load %arg5[%c128_207, %c0_208] : memref<232x128xf32, #tpu.memory_space<vmem>>, vector<32x128xf32>
    %cst_209 = arith.constant dense<0.000000e+00> : vector<1x128xf32>
    %368 = tpu.matmul %366, %367, %cst_209 {dimension_numbers = #tpu.dot_dimension_numbers<[1], [0], [0], [1], [0, 0, 1, 1], [], []>} : vector<1x32xf32>, vector<32x128xf32>, vector<1x128xf32> -> vector<1x128xf32>
    %369 = arith.addf %368, %335 : vector<1x128xf32>
    %c226_210 = arith.constant 226 : index
    %c0_211 = arith.constant 0 : index
    %370 = vector.load %arg5[%c226_210, %c0_211] : memref<232x128xf32, #tpu.memory_space<vmem>>, vector<1x128xf32>
    %371 = arith.addf %369, %370 : vector<1x128xf32>
    %372 = vector.extract_strided_slice %371 {offsets = [0, 0], sizes = [1, 32], strides = [1, 1]} : vector<1x128xf32> to vector<1x32xf32>
    %373 = arith.negf %372 : vector<1x32xf32>
    %374 = math.exp %373 : vector<1x32xf32>
    %cst_212 = arith.constant 1.000000e+00 : f32
    %375 = vector.broadcast %cst_212 : f32 to vector<1x32xf32>
    %376 = arith.addf %375, %374 : vector<1x32xf32>
    %377 = arith.divf %375, %376 : vector<1x32xf32>
    %378 = vector.extract_strided_slice %371 {offsets = [0, 32], sizes = [1, 32], strides = [1, 1]} : vector<1x128xf32> to vector<1x32xf32>
    %379 = arith.negf %378 : vector<1x32xf32>
    %380 = math.exp %379 : vector<1x32xf32>
    %cst_213 = arith.constant 1.000000e+00 : f32
    %381 = vector.broadcast %cst_213 : f32 to vector<1x32xf32>
    %382 = arith.addf %381, %380 : vector<1x32xf32>
    %383 = arith.divf %381, %382 : vector<1x32xf32>
    %384 = vector.extract_strided_slice %371 {offsets = [0, 64], sizes = [1, 32], strides = [1, 1]} : vector<1x128xf32> to vector<1x32xf32>
    %385 = vector.extract_strided_slice %371 {offsets = [0, 96], sizes = [1, 32], strides = [1, 1]} : vector<1x128xf32> to vector<1x32xf32>
    %386 = arith.mulf %377, %385 : vector<1x32xf32>
    %387 = arith.addf %384, %386 : vector<1x32xf32>
    %388 = math.tanh %387 : vector<1x32xf32>
    %cst_214 = arith.constant 1.000000e+00 : f32
    %389 = vector.broadcast %cst_214 : f32 to vector<1x32xf32>
    %390 = arith.subf %389, %383 : vector<1x32xf32>
    %391 = arith.mulf %390, %388 : vector<1x32xf32>
    %392 = arith.mulf %383, %311 : vector<1x32xf32>
    %393 = arith.addf %391, %392 : vector<1x32xf32>
    %c192_215 = arith.constant 192 : index
    %c0_216 = arith.constant 0 : index
    %394 = vector.load %arg5[%c192_215, %c0_216] : memref<232x128xf32, #tpu.memory_space<vmem>>, vector<32x64xf32>
    %cst_217 = arith.constant dense<0.000000e+00> : vector<1x64xf32>
    %395 = tpu.matmul %393, %394, %cst_217 {dimension_numbers = #tpu.dot_dimension_numbers<[1], [0], [0], [1], [0, 0, 1, 1], [], []>} : vector<1x32xf32>, vector<32x64xf32>, vector<1x64xf32> -> vector<1x64xf32>
    %c227_218 = arith.constant 227 : index
    %c0_219 = arith.constant 0 : index
    %396 = vector.load %arg5[%c227_218, %c0_219] : memref<232x128xf32, #tpu.memory_space<vmem>>, vector<1x64xf32>
    %397 = arith.addf %395, %396 : vector<1x64xf32>
    %cst_220 = arith.constant dense<0xFF800000> : vector<1xf32>
    %398 = vector.multi_reduction <maximumf>, %397, %cst_220 [1] : vector<1x64xf32> to vector<1xf32>
    %399 = vector.shape_cast %398 : vector<1xf32> to vector<1x1xf32>
    %400 = vector.broadcast %399 : vector<1x1xf32> to vector<1x64xf32>
    %401 = arith.subf %397, %400 : vector<1x64xf32>
    %402 = math.exp %401 : vector<1x64xf32>
    %cst_221 = arith.constant dense<0.000000e+00> : vector<1xf32>
    %403 = vector.multi_reduction <add>, %402, %cst_221 [1] : vector<1x64xf32> to vector<1xf32>
    %404 = vector.shape_cast %403 : vector<1xf32> to vector<1x1xf32>
    %405 = math.log %404 : vector<1x1xf32>
    %406 = arith.addf %405, %399 : vector<1x1xf32>
    %407 = vector.broadcast %406 : vector<1x1xf32> to vector<1x64xf32>
    %408 = arith.subf %397, %407 : vector<1x64xf32>
    %c4_222 = arith.constant 4 : index
    %c0_223 = arith.constant 0 : index
    %409 = vector.load %arg6[%c4_222, %c0_223] : memref<8x64xf32, #tpu.memory_space<vmem>>, vector<1x64xf32>
    tpu.vector_store %arg6[%c4_222, %c0_223], %408 {strides = array<i32>} : memref<8x64xf32, #tpu.memory_space<vmem>>, vector<1x64xf32>,
    %c4_224 = arith.constant 4 : index
    %c0_225 = arith.constant 0 : index
    %410 = vector.load %arg7[%c4_224, %c0_225] : memref<8x32xf32, #tpu.memory_space<vmem>>, vector<1x32xf32>
    tpu.vector_store %arg7[%c4_224, %c0_225], %393 {strides = array<i32>} : memref<8x32xf32, #tpu.memory_space<vmem>>, vector<1x32xf32>,
    %c4_226 = arith.constant 4 : index
    %c0_227 = arith.constant 0 : index
    %411 = vector.load %arg8[%c4_226, %c0_227] : memref<8x32xf32, #tpu.memory_space<vmem>>, vector<1x32xf32>
    tpu.vector_store %arg8[%c4_226, %c0_227], %356 {strides = array<i32>} : memref<8x32xf32, #tpu.memory_space<vmem>>, vector<1x32xf32>,
    %c5 = arith.constant 5 : index
    %412 = memref.load %arg1[%c5] : memref<8xi32, #tpu.memory_space<smem>>
    %413 = arith.index_cast %412 : i32 to index
    %c0_228 = arith.constant 0 : index
    %c0_229 = arith.constant 0 : index
    %414 = vector.load %arg2[%413, %c0_228, %c0_229] : memref<64x1x32xf32, #tpu.memory_space<vmem>>, vector<1x1x32xf32>
    %415 = vector.shape_cast %414 : vector<1x1x32xf32> to vector<1x32xf32>
    %c160_230 = arith.constant 160 : index
    %c0_231 = arith.constant 0 : index
    %416 = vector.load %arg5[%c160_230, %c0_231] : memref<232x128xf32, #tpu.memory_space<vmem>>, vector<32x128xf32>
    %cst_232 = arith.constant dense<0.000000e+00> : vector<1x128xf32>
    %417 = tpu.matmul %393, %416, %cst_232 {dimension_numbers = #tpu.dot_dimension_numbers<[1], [0], [0], [1], [0, 0, 1, 1], [], []>} : vector<1x32xf32>, vector<32x128xf32>, vector<1x128xf32> -> vector<1x128xf32>
    %c0_233 = arith.constant 0 : index
    %c0_234 = arith.constant 0 : index
    %418 = vector.load %arg5[%c0_233, %c0_234] : memref<232x128xf32, #tpu.memory_space<vmem>>, vector<32x32xf32>
    %cst_235 = arith.constant dense<0.000000e+00> : vector<1x32xf32>
    %419 = tpu.matmul %415, %418, %cst_235 {dimension_numbers = #tpu.dot_dimension_numbers<[1], [0], [0], [1], [0, 0, 1, 1], [], []>} : vector<1x32xf32>, vector<32x32xf32>, vector<1x32xf32> -> vector<1x32xf32>
    %c32_236 = arith.constant 32 : index
    %c0_237 = arith.constant 0 : index
    %420 = vector.load %arg5[%c32_236, %c0_237] : memref<232x128xf32, #tpu.memory_space<vmem>>, vector<32x32xf32>
    %cst_238 = arith.constant dense<0.000000e+00> : vector<1x32xf32>
    %421 = tpu.matmul %393, %420, %cst_238 {dimension_numbers = #tpu.dot_dimension_numbers<[1], [0], [0], [1], [0, 0, 1, 1], [], []>} : vector<1x32xf32>, vector<32x32xf32>, vector<1x32xf32> -> vector<1x32xf32>
    %422 = arith.addf %419, %421 : vector<1x32xf32>
    %c224_239 = arith.constant 224 : index
    %c0_240 = arith.constant 0 : index
    %423 = vector.load %arg5[%c224_239, %c0_240] : memref<232x128xf32, #tpu.memory_space<vmem>>, vector<1x32xf32>
    %424 = arith.addf %422, %423 : vector<1x32xf32>
    %cst_241 = arith.constant dense<0xFF800000> : vector<1xf32>
    %425 = vector.multi_reduction <maximumf>, %424, %cst_241 [1] : vector<1x32xf32> to vector<1xf32>
    %426 = vector.shape_cast %425 : vector<1xf32> to vector<1x1xf32>
    %427 = vector.broadcast %426 : vector<1x1xf32> to vector<1x32xf32>
    %428 = arith.subf %424, %427 : vector<1x32xf32>
    %429 = math.exp %428 : vector<1x32xf32>
    %cst_242 = arith.constant dense<0.000000e+00> : vector<1xf32>
    %430 = vector.multi_reduction <add>, %429, %cst_242 [1] : vector<1x32xf32> to vector<1xf32>
    %431 = vector.shape_cast %430 : vector<1xf32> to vector<1x1xf32>
    %432 = tpu.reciprocal %431 {approx = true} : vector<1x1xf32> -> vector<1x1xf32>
    %433 = arith.mulf %431, %432 : vector<1x1xf32>
    %cst_243 = arith.constant 2.000000e+00 : f32
    %434 = vector.broadcast %cst_243 : f32 to vector<1x1xf32>
    %435 = arith.subf %434, %433 : vector<1x1xf32>
    %436 = arith.mulf %432, %435 : vector<1x1xf32>
    %437 = vector.broadcast %436 : vector<1x1xf32> to vector<1x32xf32>
    %438 = arith.mulf %429, %437 : vector<1x32xf32>
    %cst_244 = arith.constant dense<0.000000e+00> : vector<1x32xf32>
    %439 = tpu.matmul %438, %0, %cst_244 {dimension_numbers = #tpu.dot_dimension_numbers<[1], [0], [0], [1], [0, 0, 1, 1], [], []>} : vector<1x32xf32>, vector<32x32xf32>, vector<1x32xf32> -> vector<1x32xf32>
    %c64_245 = arith.constant 64 : index
    %c0_246 = arith.constant 0 : index
    %440 = vector.load %arg5[%c64_245, %c0_246] : memref<232x128xf32, #tpu.memory_space<vmem>>, vector<32x32xf32>
    %cst_247 = arith.constant dense<0.000000e+00> : vector<1x32xf32>
    %441 = tpu.matmul %415, %440, %cst_247 {dimension_numbers = #tpu.dot_dimension_numbers<[1], [0], [0], [1], [0, 0, 1, 1], [], []>} : vector<1x32xf32>, vector<32x32xf32>, vector<1x32xf32> -> vector<1x32xf32>
    %c96_248 = arith.constant 96 : index
    %c0_249 = arith.constant 0 : index
    %442 = vector.load %arg5[%c96_248, %c0_249] : memref<232x128xf32, #tpu.memory_space<vmem>>, vector<32x32xf32>
    %cst_250 = arith.constant dense<0.000000e+00> : vector<1x32xf32>
    %443 = tpu.matmul %439, %442, %cst_250 {dimension_numbers = #tpu.dot_dimension_numbers<[1], [0], [0], [1], [0, 0, 1, 1], [], []>} : vector<1x32xf32>, vector<32x32xf32>, vector<1x32xf32> -> vector<1x32xf32>
    %444 = arith.addf %441, %443 : vector<1x32xf32>
    %c225_251 = arith.constant 225 : index
    %c0_252 = arith.constant 0 : index
    %445 = vector.load %arg5[%c225_251, %c0_252] : memref<232x128xf32, #tpu.memory_space<vmem>>, vector<1x32xf32>
    %446 = arith.addf %444, %445 : vector<1x32xf32>
    %cst_253 = arith.constant 0.000000e+00 : f32
    %447 = vector.broadcast %cst_253 : f32 to vector<1x32xf32>
    %448 = arith.maximumf %446, %447 : vector<1x32xf32>
    %c128_254 = arith.constant 128 : index
    %c0_255 = arith.constant 0 : index
    %449 = vector.load %arg5[%c128_254, %c0_255] : memref<232x128xf32, #tpu.memory_space<vmem>>, vector<32x128xf32>
    %cst_256 = arith.constant dense<0.000000e+00> : vector<1x128xf32>
    %450 = tpu.matmul %448, %449, %cst_256 {dimension_numbers = #tpu.dot_dimension_numbers<[1], [0], [0], [1], [0, 0, 1, 1], [], []>} : vector<1x32xf32>, vector<32x128xf32>, vector<1x128xf32> -> vector<1x128xf32>
    %451 = arith.addf %450, %417 : vector<1x128xf32>
    %c226_257 = arith.constant 226 : index
    %c0_258 = arith.constant 0 : index
    %452 = vector.load %arg5[%c226_257, %c0_258] : memref<232x128xf32, #tpu.memory_space<vmem>>, vector<1x128xf32>
    %453 = arith.addf %451, %452 : vector<1x128xf32>
    %454 = vector.extract_strided_slice %453 {offsets = [0, 0], sizes = [1, 32], strides = [1, 1]} : vector<1x128xf32> to vector<1x32xf32>
    %455 = arith.negf %454 : vector<1x32xf32>
    %456 = math.exp %455 : vector<1x32xf32>
    %cst_259 = arith.constant 1.000000e+00 : f32
    %457 = vector.broadcast %cst_259 : f32 to vector<1x32xf32>
    %458 = arith.addf %457, %456 : vector<1x32xf32>
    %459 = arith.divf %457, %458 : vector<1x32xf32>
    %460 = vector.extract_strided_slice %453 {offsets = [0, 32], sizes = [1, 32], strides = [1, 1]} : vector<1x128xf32> to vector<1x32xf32>
    %461 = arith.negf %460 : vector<1x32xf32>
    %462 = math.exp %461 : vector<1x32xf32>
    %cst_260 = arith.constant 1.000000e+00 : f32
    %463 = vector.broadcast %cst_260 : f32 to vector<1x32xf32>
    %464 = arith.addf %463, %462 : vector<1x32xf32>
    %465 = arith.divf %463, %464 : vector<1x32xf32>
    %466 = vector.extract_strided_slice %453 {offsets = [0, 64], sizes = [1, 32], strides = [1, 1]} : vector<1x128xf32> to vector<1x32xf32>
    %467 = vector.extract_strided_slice %453 {offsets = [0, 96], sizes = [1, 32], strides = [1, 1]} : vector<1x128xf32> to vector<1x32xf32>
    %468 = arith.mulf %459, %467 : vector<1x32xf32>
    %469 = arith.addf %466, %468 : vector<1x32xf32>
    %470 = math.tanh %469 : vector<1x32xf32>
    %cst_261 = arith.constant 1.000000e+00 : f32
    %471 = vector.broadcast %cst_261 : f32 to vector<1x32xf32>
    %472 = arith.subf %471, %465 : vector<1x32xf32>
    %473 = arith.mulf %472, %470 : vector<1x32xf32>
    %474 = arith.mulf %465, %393 : vector<1x32xf32>
    %475 = arith.addf %473, %474 : vector<1x32xf32>
    %c192_262 = arith.constant 192 : index
    %c0_263 = arith.constant 0 : index
    %476 = vector.load %arg5[%c192_262, %c0_263] : memref<232x128xf32, #tpu.memory_space<vmem>>, vector<32x64xf32>
    %cst_264 = arith.constant dense<0.000000e+00> : vector<1x64xf32>
    %477 = tpu.matmul %475, %476, %cst_264 {dimension_numbers = #tpu.dot_dimension_numbers<[1], [0], [0], [1], [0, 0, 1, 1], [], []>} : vector<1x32xf32>, vector<32x64xf32>, vector<1x64xf32> -> vector<1x64xf32>
    %c227_265 = arith.constant 227 : index
    %c0_266 = arith.constant 0 : index
    %478 = vector.load %arg5[%c227_265, %c0_266] : memref<232x128xf32, #tpu.memory_space<vmem>>, vector<1x64xf32>
    %479 = arith.addf %477, %478 : vector<1x64xf32>
    %cst_267 = arith.constant dense<0xFF800000> : vector<1xf32>
    %480 = vector.multi_reduction <maximumf>, %479, %cst_267 [1] : vector<1x64xf32> to vector<1xf32>
    %481 = vector.shape_cast %480 : vector<1xf32> to vector<1x1xf32>
    %482 = vector.broadcast %481 : vector<1x1xf32> to vector<1x64xf32>
    %483 = arith.subf %479, %482 : vector<1x64xf32>
    %484 = math.exp %483 : vector<1x64xf32>
    %cst_268 = arith.constant dense<0.000000e+00> : vector<1xf32>
    %485 = vector.multi_reduction <add>, %484, %cst_268 [1] : vector<1x64xf32> to vector<1xf32>
    %486 = vector.shape_cast %485 : vector<1xf32> to vector<1x1xf32>
    %487 = math.log %486 : vector<1x1xf32>
    %488 = arith.addf %487, %481 : vector<1x1xf32>
    %489 = vector.broadcast %488 : vector<1x1xf32> to vector<1x64xf32>
    %490 = arith.subf %479, %489 : vector<1x64xf32>
    %c5_269 = arith.constant 5 : index
    %c0_270 = arith.constant 0 : index
    %491 = vector.load %arg6[%c5_269, %c0_270] : memref<8x64xf32, #tpu.memory_space<vmem>>, vector<1x64xf32>
    tpu.vector_store %arg6[%c5_269, %c0_270], %490 {strides = array<i32>} : memref<8x64xf32, #tpu.memory_space<vmem>>, vector<1x64xf32>,
    %c5_271 = arith.constant 5 : index
    %c0_272 = arith.constant 0 : index
    %492 = vector.load %arg7[%c5_271, %c0_272] : memref<8x32xf32, #tpu.memory_space<vmem>>, vector<1x32xf32>
    tpu.vector_store %arg7[%c5_271, %c0_272], %475 {strides = array<i32>} : memref<8x32xf32, #tpu.memory_space<vmem>>, vector<1x32xf32>,
    %c5_273 = arith.constant 5 : index
    %c0_274 = arith.constant 0 : index
    %493 = vector.load %arg8[%c5_273, %c0_274] : memref<8x32xf32, #tpu.memory_space<vmem>>, vector<1x32xf32>
    tpu.vector_store %arg8[%c5_273, %c0_274], %438 {strides = array<i32>} : memref<8x32xf32, #tpu.memory_space<vmem>>, vector<1x32xf32>,
    %c6 = arith.constant 6 : index
    %494 = memref.load %arg1[%c6] : memref<8xi32, #tpu.memory_space<smem>>
    %495 = arith.index_cast %494 : i32 to index
    %c0_275 = arith.constant 0 : index
    %c0_276 = arith.constant 0 : index
    %496 = vector.load %arg2[%495, %c0_275, %c0_276] : memref<64x1x32xf32, #tpu.memory_space<vmem>>, vector<1x1x32xf32>
    %497 = vector.shape_cast %496 : vector<1x1x32xf32> to vector<1x32xf32>
    %c160_277 = arith.constant 160 : index
    %c0_278 = arith.constant 0 : index
    %498 = vector.load %arg5[%c160_277, %c0_278] : memref<232x128xf32, #tpu.memory_space<vmem>>, vector<32x128xf32>
    %cst_279 = arith.constant dense<0.000000e+00> : vector<1x128xf32>
    %499 = tpu.matmul %475, %498, %cst_279 {dimension_numbers = #tpu.dot_dimension_numbers<[1], [0], [0], [1], [0, 0, 1, 1], [], []>} : vector<1x32xf32>, vector<32x128xf32>, vector<1x128xf32> -> vector<1x128xf32>
    %c0_280 = arith.constant 0 : index
    %c0_281 = arith.constant 0 : index
    %500 = vector.load %arg5[%c0_280, %c0_281] : memref<232x128xf32, #tpu.memory_space<vmem>>, vector<32x32xf32>
    %cst_282 = arith.constant dense<0.000000e+00> : vector<1x32xf32>
    %501 = tpu.matmul %497, %500, %cst_282 {dimension_numbers = #tpu.dot_dimension_numbers<[1], [0], [0], [1], [0, 0, 1, 1], [], []>} : vector<1x32xf32>, vector<32x32xf32>, vector<1x32xf32> -> vector<1x32xf32>
    %c32_283 = arith.constant 32 : index
    %c0_284 = arith.constant 0 : index
    %502 = vector.load %arg5[%c32_283, %c0_284] : memref<232x128xf32, #tpu.memory_space<vmem>>, vector<32x32xf32>
    %cst_285 = arith.constant dense<0.000000e+00> : vector<1x32xf32>
    %503 = tpu.matmul %475, %502, %cst_285 {dimension_numbers = #tpu.dot_dimension_numbers<[1], [0], [0], [1], [0, 0, 1, 1], [], []>} : vector<1x32xf32>, vector<32x32xf32>, vector<1x32xf32> -> vector<1x32xf32>
    %504 = arith.addf %501, %503 : vector<1x32xf32>
    %c224_286 = arith.constant 224 : index
    %c0_287 = arith.constant 0 : index
    %505 = vector.load %arg5[%c224_286, %c0_287] : memref<232x128xf32, #tpu.memory_space<vmem>>, vector<1x32xf32>
    %506 = arith.addf %504, %505 : vector<1x32xf32>
    %cst_288 = arith.constant dense<0xFF800000> : vector<1xf32>
    %507 = vector.multi_reduction <maximumf>, %506, %cst_288 [1] : vector<1x32xf32> to vector<1xf32>
    %508 = vector.shape_cast %507 : vector<1xf32> to vector<1x1xf32>
    %509 = vector.broadcast %508 : vector<1x1xf32> to vector<1x32xf32>
    %510 = arith.subf %506, %509 : vector<1x32xf32>
    %511 = math.exp %510 : vector<1x32xf32>
    %cst_289 = arith.constant dense<0.000000e+00> : vector<1xf32>
    %512 = vector.multi_reduction <add>, %511, %cst_289 [1] : vector<1x32xf32> to vector<1xf32>
    %513 = vector.shape_cast %512 : vector<1xf32> to vector<1x1xf32>
    %514 = tpu.reciprocal %513 {approx = true} : vector<1x1xf32> -> vector<1x1xf32>
    %515 = arith.mulf %513, %514 : vector<1x1xf32>
    %cst_290 = arith.constant 2.000000e+00 : f32
    %516 = vector.broadcast %cst_290 : f32 to vector<1x1xf32>
    %517 = arith.subf %516, %515 : vector<1x1xf32>
    %518 = arith.mulf %514, %517 : vector<1x1xf32>
    %519 = vector.broadcast %518 : vector<1x1xf32> to vector<1x32xf32>
    %520 = arith.mulf %511, %519 : vector<1x32xf32>
    %cst_291 = arith.constant dense<0.000000e+00> : vector<1x32xf32>
    %521 = tpu.matmul %520, %0, %cst_291 {dimension_numbers = #tpu.dot_dimension_numbers<[1], [0], [0], [1], [0, 0, 1, 1], [], []>} : vector<1x32xf32>, vector<32x32xf32>, vector<1x32xf32> -> vector<1x32xf32>
    %c64_292 = arith.constant 64 : index
    %c0_293 = arith.constant 0 : index
    %522 = vector.load %arg5[%c64_292, %c0_293] : memref<232x128xf32, #tpu.memory_space<vmem>>, vector<32x32xf32>
    %cst_294 = arith.constant dense<0.000000e+00> : vector<1x32xf32>
    %523 = tpu.matmul %497, %522, %cst_294 {dimension_numbers = #tpu.dot_dimension_numbers<[1], [0], [0], [1], [0, 0, 1, 1], [], []>} : vector<1x32xf32>, vector<32x32xf32>, vector<1x32xf32> -> vector<1x32xf32>
    %c96_295 = arith.constant 96 : index
    %c0_296 = arith.constant 0 : index
    %524 = vector.load %arg5[%c96_295, %c0_296] : memref<232x128xf32, #tpu.memory_space<vmem>>, vector<32x32xf32>
    %cst_297 = arith.constant dense<0.000000e+00> : vector<1x32xf32>
    %525 = tpu.matmul %521, %524, %cst_297 {dimension_numbers = #tpu.dot_dimension_numbers<[1], [0], [0], [1], [0, 0, 1, 1], [], []>} : vector<1x32xf32>, vector<32x32xf32>, vector<1x32xf32> -> vector<1x32xf32>
    %526 = arith.addf %523, %525 : vector<1x32xf32>
    %c225_298 = arith.constant 225 : index
    %c0_299 = arith.constant 0 : index
    %527 = vector.load %arg5[%c225_298, %c0_299] : memref<232x128xf32, #tpu.memory_space<vmem>>, vector<1x32xf32>
    %528 = arith.addf %526, %527 : vector<1x32xf32>
    %cst_300 = arith.constant 0.000000e+00 : f32
    %529 = vector.broadcast %cst_300 : f32 to vector<1x32xf32>
    %530 = arith.maximumf %528, %529 : vector<1x32xf32>
    %c128_301 = arith.constant 128 : index
    %c0_302 = arith.constant 0 : index
    %531 = vector.load %arg5[%c128_301, %c0_302] : memref<232x128xf32, #tpu.memory_space<vmem>>, vector<32x128xf32>
    %cst_303 = arith.constant dense<0.000000e+00> : vector<1x128xf32>
    %532 = tpu.matmul %530, %531, %cst_303 {dimension_numbers = #tpu.dot_dimension_numbers<[1], [0], [0], [1], [0, 0, 1, 1], [], []>} : vector<1x32xf32>, vector<32x128xf32>, vector<1x128xf32> -> vector<1x128xf32>
    %533 = arith.addf %532, %499 : vector<1x128xf32>
    %c226_304 = arith.constant 226 : index
    %c0_305 = arith.constant 0 : index
    %534 = vector.load %arg5[%c226_304, %c0_305] : memref<232x128xf32, #tpu.memory_space<vmem>>, vector<1x128xf32>
    %535 = arith.addf %533, %534 : vector<1x128xf32>
    %536 = vector.extract_strided_slice %535 {offsets = [0, 0], sizes = [1, 32], strides = [1, 1]} : vector<1x128xf32> to vector<1x32xf32>
    %537 = arith.negf %536 : vector<1x32xf32>
    %538 = math.exp %537 : vector<1x32xf32>
    %cst_306 = arith.constant 1.000000e+00 : f32
    %539 = vector.broadcast %cst_306 : f32 to vector<1x32xf32>
    %540 = arith.addf %539, %538 : vector<1x32xf32>
    %541 = arith.divf %539, %540 : vector<1x32xf32>
    %542 = vector.extract_strided_slice %535 {offsets = [0, 32], sizes = [1, 32], strides = [1, 1]} : vector<1x128xf32> to vector<1x32xf32>
    %543 = arith.negf %542 : vector<1x32xf32>
    %544 = math.exp %543 : vector<1x32xf32>
    %cst_307 = arith.constant 1.000000e+00 : f32
    %545 = vector.broadcast %cst_307 : f32 to vector<1x32xf32>
    %546 = arith.addf %545, %544 : vector<1x32xf32>
    %547 = arith.divf %545, %546 : vector<1x32xf32>
    %548 = vector.extract_strided_slice %535 {offsets = [0, 64], sizes = [1, 32], strides = [1, 1]} : vector<1x128xf32> to vector<1x32xf32>
    %549 = vector.extract_strided_slice %535 {offsets = [0, 96], sizes = [1, 32], strides = [1, 1]} : vector<1x128xf32> to vector<1x32xf32>
    %550 = arith.mulf %541, %549 : vector<1x32xf32>
    %551 = arith.addf %548, %550 : vector<1x32xf32>
    %552 = math.tanh %551 : vector<1x32xf32>
    %cst_308 = arith.constant 1.000000e+00 : f32
    %553 = vector.broadcast %cst_308 : f32 to vector<1x32xf32>
    %554 = arith.subf %553, %547 : vector<1x32xf32>
    %555 = arith.mulf %554, %552 : vector<1x32xf32>
    %556 = arith.mulf %547, %475 : vector<1x32xf32>
    %557 = arith.addf %555, %556 : vector<1x32xf32>
    %c192_309 = arith.constant 192 : index
    %c0_310 = arith.constant 0 : index
    %558 = vector.load %arg5[%c192_309, %c0_310] : memref<232x128xf32, #tpu.memory_space<vmem>>, vector<32x64xf32>
    %cst_311 = arith.constant dense<0.000000e+00> : vector<1x64xf32>
    %559 = tpu.matmul %557, %558, %cst_311 {dimension_numbers = #tpu.dot_dimension_numbers<[1], [0], [0], [1], [0, 0, 1, 1], [], []>} : vector<1x32xf32>, vector<32x64xf32>, vector<1x64xf32> -> vector<1x64xf32>
    %c227_312 = arith.constant 227 : index
    %c0_313 = arith.constant 0 : index
    %560 = vector.load %arg5[%c227_312, %c0_313] : memref<232x128xf32, #tpu.memory_space<vmem>>, vector<1x64xf32>
    %561 = arith.addf %559, %560 : vector<1x64xf32>
    %cst_314 = arith.constant dense<0xFF800000> : vector<1xf32>
    %562 = vector.multi_reduction <maximumf>, %561, %cst_314 [1] : vector<1x64xf32> to vector<1xf32>
    %563 = vector.shape_cast %562 : vector<1xf32> to vector<1x1xf32>
    %564 = vector.broadcast %563 : vector<1x1xf32> to vector<1x64xf32>
    %565 = arith.subf %561, %564 : vector<1x64xf32>
    %566 = math.exp %565 : vector<1x64xf32>
    %cst_315 = arith.constant dense<0.000000e+00> : vector<1xf32>
    %567 = vector.multi_reduction <add>, %566, %cst_315 [1] : vector<1x64xf32> to vector<1xf32>
    %568 = vector.shape_cast %567 : vector<1xf32> to vector<1x1xf32>
    %569 = math.log %568 : vector<1x1xf32>
    %570 = arith.addf %569, %563 : vector<1x1xf32>
    %571 = vector.broadcast %570 : vector<1x1xf32> to vector<1x64xf32>
    %572 = arith.subf %561, %571 : vector<1x64xf32>
    %c6_316 = arith.constant 6 : index
    %c0_317 = arith.constant 0 : index
    %573 = vector.load %arg6[%c6_316, %c0_317] : memref<8x64xf32, #tpu.memory_space<vmem>>, vector<1x64xf32>
    tpu.vector_store %arg6[%c6_316, %c0_317], %572 {strides = array<i32>} : memref<8x64xf32, #tpu.memory_space<vmem>>, vector<1x64xf32>,
    %c6_318 = arith.constant 6 : index
    %c0_319 = arith.constant 0 : index
    %574 = vector.load %arg7[%c6_318, %c0_319] : memref<8x32xf32, #tpu.memory_space<vmem>>, vector<1x32xf32>
    tpu.vector_store %arg7[%c6_318, %c0_319], %557 {strides = array<i32>} : memref<8x32xf32, #tpu.memory_space<vmem>>, vector<1x32xf32>,
    %c6_320 = arith.constant 6 : index
    %c0_321 = arith.constant 0 : index
    %575 = vector.load %arg8[%c6_320, %c0_321] : memref<8x32xf32, #tpu.memory_space<vmem>>, vector<1x32xf32>
    tpu.vector_store %arg8[%c6_320, %c0_321], %520 {strides = array<i32>} : memref<8x32xf32, #tpu.memory_space<vmem>>, vector<1x32xf32>,
    %c7 = arith.constant 7 : index
    %576 = memref.load %arg1[%c7] : memref<8xi32, #tpu.memory_space<smem>>
    %577 = arith.index_cast %576 : i32 to index
    %c0_322 = arith.constant 0 : index
    %c0_323 = arith.constant 0 : index
    %578 = vector.load %arg2[%577, %c0_322, %c0_323] : memref<64x1x32xf32, #tpu.memory_space<vmem>>, vector<1x1x32xf32>
    %579 = vector.shape_cast %578 : vector<1x1x32xf32> to vector<1x32xf32>
    %c160_324 = arith.constant 160 : index
    %c0_325 = arith.constant 0 : index
    %580 = vector.load %arg5[%c160_324, %c0_325] : memref<232x128xf32, #tpu.memory_space<vmem>>, vector<32x128xf32>
    %cst_326 = arith.constant dense<0.000000e+00> : vector<1x128xf32>
    %581 = tpu.matmul %557, %580, %cst_326 {dimension_numbers = #tpu.dot_dimension_numbers<[1], [0], [0], [1], [0, 0, 1, 1], [], []>} : vector<1x32xf32>, vector<32x128xf32>, vector<1x128xf32> -> vector<1x128xf32>
    %c0_327 = arith.constant 0 : index
    %c0_328 = arith.constant 0 : index
    %582 = vector.load %arg5[%c0_327, %c0_328] : memref<232x128xf32, #tpu.memory_space<vmem>>, vector<32x32xf32>
    %cst_329 = arith.constant dense<0.000000e+00> : vector<1x32xf32>
    %583 = tpu.matmul %579, %582, %cst_329 {dimension_numbers = #tpu.dot_dimension_numbers<[1], [0], [0], [1], [0, 0, 1, 1], [], []>} : vector<1x32xf32>, vector<32x32xf32>, vector<1x32xf32> -> vector<1x32xf32>
    %c32_330 = arith.constant 32 : index
    %c0_331 = arith.constant 0 : index
    %584 = vector.load %arg5[%c32_330, %c0_331] : memref<232x128xf32, #tpu.memory_space<vmem>>, vector<32x32xf32>
    %cst_332 = arith.constant dense<0.000000e+00> : vector<1x32xf32>
    %585 = tpu.matmul %557, %584, %cst_332 {dimension_numbers = #tpu.dot_dimension_numbers<[1], [0], [0], [1], [0, 0, 1, 1], [], []>} : vector<1x32xf32>, vector<32x32xf32>, vector<1x32xf32> -> vector<1x32xf32>
    %586 = arith.addf %583, %585 : vector<1x32xf32>
    %c224_333 = arith.constant 224 : index
    %c0_334 = arith.constant 0 : index
    %587 = vector.load %arg5[%c224_333, %c0_334] : memref<232x128xf32, #tpu.memory_space<vmem>>, vector<1x32xf32>
    %588 = arith.addf %586, %587 : vector<1x32xf32>
    %cst_335 = arith.constant dense<0xFF800000> : vector<1xf32>
    %589 = vector.multi_reduction <maximumf>, %588, %cst_335 [1] : vector<1x32xf32> to vector<1xf32>
    %590 = vector.shape_cast %589 : vector<1xf32> to vector<1x1xf32>
    %591 = vector.broadcast %590 : vector<1x1xf32> to vector<1x32xf32>
    %592 = arith.subf %588, %591 : vector<1x32xf32>
    %593 = math.exp %592 : vector<1x32xf32>
    %cst_336 = arith.constant dense<0.000000e+00> : vector<1xf32>
    %594 = vector.multi_reduction <add>, %593, %cst_336 [1] : vector<1x32xf32> to vector<1xf32>
    %595 = vector.shape_cast %594 : vector<1xf32> to vector<1x1xf32>
    %596 = tpu.reciprocal %595 {approx = true} : vector<1x1xf32> -> vector<1x1xf32>
    %597 = arith.mulf %595, %596 : vector<1x1xf32>
    %cst_337 = arith.constant 2.000000e+00 : f32
    %598 = vector.broadcast %cst_337 : f32 to vector<1x1xf32>
    %599 = arith.subf %598, %597 : vector<1x1xf32>
    %600 = arith.mulf %596, %599 : vector<1x1xf32>
    %601 = vector.broadcast %600 : vector<1x1xf32> to vector<1x32xf32>
    %602 = arith.mulf %593, %601 : vector<1x32xf32>
    %cst_338 = arith.constant dense<0.000000e+00> : vector<1x32xf32>
    %603 = tpu.matmul %602, %0, %cst_338 {dimension_numbers = #tpu.dot_dimension_numbers<[1], [0], [0], [1], [0, 0, 1, 1], [], []>} : vector<1x32xf32>, vector<32x32xf32>, vector<1x32xf32> -> vector<1x32xf32>
    %c64_339 = arith.constant 64 : index
    %c0_340 = arith.constant 0 : index
    %604 = vector.load %arg5[%c64_339, %c0_340] : memref<232x128xf32, #tpu.memory_space<vmem>>, vector<32x32xf32>
    %cst_341 = arith.constant dense<0.000000e+00> : vector<1x32xf32>
    %605 = tpu.matmul %579, %604, %cst_341 {dimension_numbers = #tpu.dot_dimension_numbers<[1], [0], [0], [1], [0, 0, 1, 1], [], []>} : vector<1x32xf32>, vector<32x32xf32>, vector<1x32xf32> -> vector<1x32xf32>
    %c96_342 = arith.constant 96 : index
    %c0_343 = arith.constant 0 : index
    %606 = vector.load %arg5[%c96_342, %c0_343] : memref<232x128xf32, #tpu.memory_space<vmem>>, vector<32x32xf32>
    %cst_344 = arith.constant dense<0.000000e+00> : vector<1x32xf32>
    %607 = tpu.matmul %603, %606, %cst_344 {dimension_numbers = #tpu.dot_dimension_numbers<[1], [0], [0], [1], [0, 0, 1, 1], [], []>} : vector<1x32xf32>, vector<32x32xf32>, vector<1x32xf32> -> vector<1x32xf32>
    %608 = arith.addf %605, %607 : vector<1x32xf32>
    %c225_345 = arith.constant 225 : index
    %c0_346 = arith.constant 0 : index
    %609 = vector.load %arg5[%c225_345, %c0_346] : memref<232x128xf32, #tpu.memory_space<vmem>>, vector<1x32xf32>
    %610 = arith.addf %608, %609 : vector<1x32xf32>
    %cst_347 = arith.constant 0.000000e+00 : f32
    %611 = vector.broadcast %cst_347 : f32 to vector<1x32xf32>
    %612 = arith.maximumf %610, %611 : vector<1x32xf32>
    %c128_348 = arith.constant 128 : index
    %c0_349 = arith.constant 0 : index
    %613 = vector.load %arg5[%c128_348, %c0_349] : memref<232x128xf32, #tpu.memory_space<vmem>>, vector<32x128xf32>
    %cst_350 = arith.constant dense<0.000000e+00> : vector<1x128xf32>
    %614 = tpu.matmul %612, %613, %cst_350 {dimension_numbers = #tpu.dot_dimension_numbers<[1], [0], [0], [1], [0, 0, 1, 1], [], []>} : vector<1x32xf32>, vector<32x128xf32>, vector<1x128xf32> -> vector<1x128xf32>
    %615 = arith.addf %614, %581 : vector<1x128xf32>
    %c226_351 = arith.constant 226 : index
    %c0_352 = arith.constant 0 : index
    %616 = vector.load %arg5[%c226_351, %c0_352] : memref<232x128xf32, #tpu.memory_space<vmem>>, vector<1x128xf32>
    %617 = arith.addf %615, %616 : vector<1x128xf32>
    %618 = vector.extract_strided_slice %617 {offsets = [0, 0], sizes = [1, 32], strides = [1, 1]} : vector<1x128xf32> to vector<1x32xf32>
    %619 = arith.negf %618 : vector<1x32xf32>
    %620 = math.exp %619 : vector<1x32xf32>
    %cst_353 = arith.constant 1.000000e+00 : f32
    %621 = vector.broadcast %cst_353 : f32 to vector<1x32xf32>
    %622 = arith.addf %621, %620 : vector<1x32xf32>
    %623 = arith.divf %621, %622 : vector<1x32xf32>
    %624 = vector.extract_strided_slice %617 {offsets = [0, 32], sizes = [1, 32], strides = [1, 1]} : vector<1x128xf32> to vector<1x32xf32>
    %625 = arith.negf %624 : vector<1x32xf32>
    %626 = math.exp %625 : vector<1x32xf32>
    %cst_354 = arith.constant 1.000000e+00 : f32
    %627 = vector.broadcast %cst_354 : f32 to vector<1x32xf32>
    %628 = arith.addf %627, %626 : vector<1x32xf32>
    %629 = arith.divf %627, %628 : vector<1x32xf32>
    %630 = vector.extract_strided_slice %617 {offsets = [0, 64], sizes = [1, 32], strides = [1, 1]} : vector<1x128xf32> to vector<1x32xf32>
    %631 = vector.extract_strided_slice %617 {offsets = [0, 96], sizes = [1, 32], strides = [1, 1]} : vector<1x128xf32> to vector<1x32xf32>
    %632 = arith.mulf %623, %631 : vector<1x32xf32>
    %633 = arith.addf %630, %632 : vector<1x32xf32>
    %634 = math.tanh %633 : vector<1x32xf32>
    %cst_355 = arith.constant 1.000000e+00 : f32
    %635 = vector.broadcast %cst_355 : f32 to vector<1x32xf32>
    %636 = arith.subf %635, %629 : vector<1x32xf32>
    %637 = arith.mulf %636, %634 : vector<1x32xf32>
    %638 = arith.mulf %629, %557 : vector<1x32xf32>
    %639 = arith.addf %637, %638 : vector<1x32xf32>
    %c192_356 = arith.constant 192 : index
    %c0_357 = arith.constant 0 : index
    %640 = vector.load %arg5[%c192_356, %c0_357] : memref<232x128xf32, #tpu.memory_space<vmem>>, vector<32x64xf32>
    %cst_358 = arith.constant dense<0.000000e+00> : vector<1x64xf32>
    %641 = tpu.matmul %639, %640, %cst_358 {dimension_numbers = #tpu.dot_dimension_numbers<[1], [0], [0], [1], [0, 0, 1, 1], [], []>} : vector<1x32xf32>, vector<32x64xf32>, vector<1x64xf32> -> vector<1x64xf32>
    %c227_359 = arith.constant 227 : index
    %c0_360 = arith.constant 0 : index
    %642 = vector.load %arg5[%c227_359, %c0_360] : memref<232x128xf32, #tpu.memory_space<vmem>>, vector<1x64xf32>
    %643 = arith.addf %641, %642 : vector<1x64xf32>
    %cst_361 = arith.constant dense<0xFF800000> : vector<1xf32>
    %644 = vector.multi_reduction <maximumf>, %643, %cst_361 [1] : vector<1x64xf32> to vector<1xf32>
    %645 = vector.shape_cast %644 : vector<1xf32> to vector<1x1xf32>
    %646 = vector.broadcast %645 : vector<1x1xf32> to vector<1x64xf32>
    %647 = arith.subf %643, %646 : vector<1x64xf32>
    %648 = math.exp %647 : vector<1x64xf32>
    %cst_362 = arith.constant dense<0.000000e+00> : vector<1xf32>
    %649 = vector.multi_reduction <add>, %648, %cst_362 [1] : vector<1x64xf32> to vector<1xf32>
    %650 = vector.shape_cast %649 : vector<1xf32> to vector<1x1xf32>
    %651 = math.log %650 : vector<1x1xf32>
    %652 = arith.addf %651, %645 : vector<1x1xf32>
    %653 = vector.broadcast %652 : vector<1x1xf32> to vector<1x64xf32>
    %654 = arith.subf %643, %653 : vector<1x64xf32>
    %c7_363 = arith.constant 7 : index
    %c0_364 = arith.constant 0 : index
    %655 = vector.load %arg6[%c7_363, %c0_364] : memref<8x64xf32, #tpu.memory_space<vmem>>, vector<1x64xf32>
    tpu.vector_store %arg6[%c7_363, %c0_364], %654 {strides = array<i32>} : memref<8x64xf32, #tpu.memory_space<vmem>>, vector<1x64xf32>,
    %c7_365 = arith.constant 7 : index
    %c0_366 = arith.constant 0 : index
    %656 = vector.load %arg7[%c7_365, %c0_366] : memref<8x32xf32, #tpu.memory_space<vmem>>, vector<1x32xf32>
    tpu.vector_store %arg7[%c7_365, %c0_366], %639 {strides = array<i32>} : memref<8x32xf32, #tpu.memory_space<vmem>>, vector<1x32xf32>,
    %c7_367 = arith.constant 7 : index
    %c0_368 = arith.constant 0 : index
    %657 = vector.load %arg8[%c7_367, %c0_368] : memref<8x32xf32, #tpu.memory_space<vmem>>, vector<1x32xf32>
    tpu.vector_store %arg8[%c7_367, %c0_368], %602 {strides = array<i32>} : memref<8x32xf32, #tpu.memory_space<vmem>>, vector<1x32xf32>,
    return
  }
  func.func @transform_0(%arg0: i32, %arg1: memref<8xi32, #tpu.memory_space<smem>>) -> (i32, i32, i32) {
    %c0_i32 = arith.constant 0 : i32
    %c0_i32_0 = arith.constant 0 : i32
    %c0_i32_1 = arith.constant 0 : i32
    %c0_i32_2 = arith.constant 0 : i32
    return %c0_i32, %c0_i32_0, %c0_i32_1 : i32, i32, i32
  }
  func.func @transform_1(%arg0: i32, %arg1: memref<8xi32, #tpu.memory_space<smem>>) -> (i32, i32) {
    %c0_i32 = arith.constant 0 : i32
    %c0_i32_0 = arith.constant 0 : i32
    %c0_i32_1 = arith.constant 0 : i32
    return %c0_i32, %c0_i32_0 : i32, i32
  }
  func.func @transform_2(%arg0: i32, %arg1: memref<8xi32, #tpu.memory_space<smem>>) -> (i32, i32) {
    %c0_i32 = arith.constant 0 : i32
    %c0_i32_0 = arith.constant 0 : i32
    %c0_i32_1 = arith.constant 0 : i32
    return %c0_i32, %c0_i32_0 : i32, i32
  }
  func.func @transform_3(%arg0: i32, %arg1: memref<8xi32, #tpu.memory_space<smem>>) -> (i32, i32) {
    %c0_i32 = arith.constant 0 : i32
    %c0_i32_0 = arith.constant 0 : i32
    %c0_i32_1 = arith.constant 0 : i32
    return %c0_i32, %c0_i32_0 : i32, i32
  }
  func.func @transform_4(%arg0: i32, %arg1: memref<8xi32, #tpu.memory_space<smem>>) -> (i32, i32) {
    %c0_i32 = arith.constant 0 : i32
    %c0_i32_0 = arith.constant 0 : i32
    %c0_i32_1 = arith.constant 0 : i32
    return %c0_i32, %c0_i32_0 : i32, i32
  }
  func.func @transform_5(%arg0: i32, %arg1: memref<8xi32, #tpu.memory_space<smem>>) -> (i32, i32) {
    %c0_i32 = arith.constant 0 : i32
    %c0_i32_0 = arith.constant 0 : i32
    %c0_i32_1 = arith.constant 0 : i32
    return %c0_i32, %c0_i32_0 : i32, i32
  }
  func.func @transform_6(%arg0: i32, %arg1: memref<8xi32, #tpu.memory_space<smem>>) -> (i32, i32) {
    %c0_i32 = arith.constant 0 : i32
    %c0_i32_0 = arith.constant 0 : i32
    %c0_i32_1 = arith.constant 0 : i32
    return %c0_i32, %c0_i32_0 : i32, i32
  }
}

</mosaic_0001>

<llo_original>
// kernel: attn_decoder_decode.1
$region0: #{attn_decoder_decode.1}
  #allocation0 [shape = 'u32[]', space=smem, size = 0x4, offset = 0x4, fixed_abs, tag = 'smem constant byte address 0x4 - core index']
  #allocation1 [shape = 'u32[144,128]{1,0:T(1,128)}', space=vmem, size = 0x12000, scoped, tag = 'internal scratch']
  #allocation2 [shape = 's32[1]{0}', space=sflag, size = 0x4, scoped, tag = 'scoped memory for attn_decoder_decode.1']
  #allocation3 [shape = 'u8[512]{0}', space=smem, size = 0x200, scoped, tag = 'prefetched SMEM operand 0']
  %s0 = inlined_call_operand.vmem [shape: s32[8], index: 0, kind: input, shape index: {}]
  %s1 = inlined_call_operand.vmem [shape: f32[64,1,32], index: 1, kind: input, shape index: {}]
  %s2 = inlined_call_operand.vmem [shape: f32[1,32], index: 2, kind: input, shape index: {}]
  %s3 = inlined_call_operand.vmem [shape: f32[32,32], index: 3, kind: input, shape index: {}]
  %s4 = inlined_call_operand.hbm [shape: f32[232,128], index: 4, kind: input, shape index: {}]
  %s5 = inlined_call_operand.hbm [shape: f32[8,64], index: 5, kind: output, shape index: {0}]
  %s6 = inlined_call_operand.hbm [shape: f32[8,32], index: 6, kind: output, shape index: {1}]
  %s7 = inlined_call_operand.hbm [shape: f32[8,32], index: 7, kind: output, shape index: {2}]
  %8 = xla_tuple %s5, %s6, %s7
  %s9 = sld [smem:[#allocation0]]
  $region46: #{attn_decoder_decode.1} parent=0
    _
  %s11 = ssub.s32 1, %s9
  %s12 = scalar_select 0, %s11, %s9
  %s13 = sshll.u32 %s0, 4
  %s14 = int_to_ptr.vmem [resolvable:$true] %s13
  %16 = dma.vmem_to_smem %s14, 16, [#allocation3], [#allocation2]
  %17 = dma.done [#allocation2], 16
  %18 = sfence
  $region1: #{attn_decoder_decode.1} parent=0
    #allocation4 [shape = 'u8[118784]{0}', space=vmem, size = 0x1d000, scoped, tag = 'input window, operand 4, single buffered']
    #allocation5 [shape = 's32[1]{0}', space=sflag, size = 0x4, scoped, tag = 'scoped memory for attn_decoder_decode.1']
    #allocation6 [shape = 's32[1]{0}', space=sflag, size = 0x4, scoped, tag = 'scoped memory for attn_decoder_decode.1']
    #allocation7 [shape = 'u8[4096]{0}', space=vmem, size = 0x1000, scoped, tag = 'output window, operand 0, single buffered']
    #allocation8 [shape = 'u8[4096]{0}', space=vmem, size = 0x1000, scoped, tag = 'output window, operand 1, single buffered']
    #allocation9 [shape = 's32[1]{0}', space=sflag, size = 0x4, scoped, tag = 'scoped memory for attn_decoder_decode.1']
    #allocation10 [shape = 'u8[4096]{0}', space=vmem, size = 0x1000, scoped, tag = 'output window, operand 2, single buffered']
    %19 = vsyncpa [#allocation5], 0
    %20 = vsyncpa [#allocation6], 0
    %21 = vsyncpa [#allocation9], 0
    // Predicated region
    $region2: #{attn_decoder_decode.1} parent=1 // pred_check
      _
    $region3: #{attn_decoder_decode.1} parent=1 // pred_check_branch
      %23 = sbr.rel (0) target = $region5
    $region4: #{attn_decoder_decode.1} parent=1 // pred_region
      _
    $region5: #{attn_decoder_decode.1} parent=1 // pred_fallthru
      _
    // Predicated region
    $region6: #{attn_decoder_decode.1} parent=1 // pred_check
      _
    $region7: #{attn_decoder_decode.1} parent=1 // pred_check_branch
      %25 = sbr.rel (0) target = $region9
    $region8: #{attn_decoder_decode.1} parent=1 // pred_region
      _
    $region9: #{attn_decoder_decode.1} parent=1 // pred_fallthru
      _
    // Predicated region
    $region10: #{attn_decoder_decode.1} parent=1 // pred_check
      _
    $region11: #{attn_decoder_decode.1} parent=1 // pred_check_branch
      %27 = sbr.rel (0) target = $region13
    $region12: #{attn_decoder_decode.1} parent=1 // pred_region
      _
    $region13: #{attn_decoder_decode.1} parent=1 // pred_fallthru
      _
    // Predicated region
    $region14: #{attn_decoder_decode.1} parent=1 // pred_check
      _
    $region15: #{attn_decoder_decode.1} parent=1 // pred_check_branch
      %29 = sbr.rel (0) target = $region17
    $region16: #{attn_decoder_decode.1} parent=1 // pred_region
      %s31 = ssub.s32 3712, 3712
      %32 = vsyncadd [#allocation5], %s31
      %s33 = sshll.u32 [#allocation4], 4
      %s34 = int_to_ptr.vmem [resolvable:$true] %s33
      %39 = dma.hbm_to_vmem [thread:$0]  %s4, 3712, %s34, [#allocation5], 128, 128, 8
    $region17: #{attn_decoder_decode.1} parent=1 // pred_fallthru
      _
    // Predicated region
    $region18: #{attn_decoder_decode.1} parent=1 // pred_check
      _
    $region19: #{attn_decoder_decode.1} parent=1 // pred_check_branch
      %41 = sbr.rel (0) target = $region21
    $region20: #{attn_decoder_decode.1} parent=1 // pred_region
      %42 = dma.done [#allocation5], 3712
    $region21: #{attn_decoder_decode.1} parent=1 // pred_fallthru
      _
    %v43 = vld [vmem:[%s3] sm:$0xff]
    %v44 = vld [vmem:[%s3 + $0x8] sm:$0xff]
    %v45 = vld [vmem:[%s3 + $0x10] sm:$0xff]
    %v46 = vld [vmem:[%s3 + $0x18] sm:$0xff]
    %v47 = vld [vmem:[%s2] sm:$0x1]
    %s48 = sld [smem:[#allocation3]]
    %s49 = scalar_lea.vmem %s1, %s48
    %v50 = vld [vmem:[%s49] sm:$0x1]
    %v51 = vld [vmem:[#allocation4 + $0xa0] sm:$0xff]
    %v52 = vld [vmem:[#allocation4 + $0xa8] sm:$0xff]
    %v53 = vld [vmem:[#allocation4 + $0xb0] sm:$0xff]
    %v54 = vld [vmem:[#allocation4 + $0xb8] sm:$0xff]
    %vm55 = vcmask 261120
    %v57 = vsel %vm55, %v47, 0
    %59 = vmatprep.subr.mxu0 0.0
    %60 = vmatpush1.msra.mxu0 %v51
    %61 = vmatprep.subr.mxu0 0.0
    %62 = vmatpush1.msra.mxu0 %v52
    %63 = vmatprep.subr.mxu0 0.0
    %64 = vmatpush1.msra.mxu0 %v53
    %65 = vmatprep.subr.mxu0 0.0
    %66 = vmatpush1.msra.mxu0 %v54
    %67 = vmatprep.subr.mxu0 0.0
    %68 = vmatpush1.msra.mxu0 0.0
    %69 = vmatprep.subr.mxu0 0.0
    %70 = vmatpush1.msra.mxu0 0.0
    %71 = vmatprep.subr.mxu0 0.0
    %72 = vmatpush1.msra.mxu0 0.0
    %73 = vmatprep.subr.mxu0 0.0
    %74 = vmatpush1.msra.mxu0 0.0
    %75 = vmatprep.subr.mxu0 0.0
    %76 = vmatpush1.msra.mxu0 0.0
    %77 = vmatprep.subr.mxu0 0.0
    %78 = vmatpush1.msra.mxu0 0.0
    %79 = vmatprep.subr.mxu0 0.0
    %80 = vmatpush1.msra.mxu0 0.0
    %81 = vmatprep.subr.mxu0 0.0
    %82 = vmatpush1.msra.mxu0 0.0
    %83 = vmatprep.subr.mxu0 0.0
    %84 = vmatpush1.msra.mxu0 0.0
    %85 = vmatprep.subr.mxu0 0.0
    %86 = vmatpush1.msra.mxu0 0.0
    %87 = vmatprep.subr.mxu0 0.0
    %88 = vmatpush1.msra.mxu0 0.0
    %89 = vmatprep.subr.mxu0 0.0
    %90 = vmatpush1.msra.mxu0 0.0
    %91 = vmatprep.subr.mxu0 0.0
    %92 = vmatpush1.msra.mxu0 0.0
    %93 = vmatprep.subr.mxu0 0.0
    %94 = vmatpush1.msra.mxu0 0.0
    %95 = vmatprep.subr.mxu0 0.0
    %96 = vmatpush1.msra.mxu0 0.0
    %97 = vmatprep.subr.mxu0 0.0
    %98 = vmatpush1.msra.mxu0 0.0
    %99 = vmatprep.subr.mxu0 0.0
    %100 = vmatpush1.msra.mxu0 0.0
    %101 = vmatprep.subr.mxu0 0.0
    %102 = vmatpush1.msra.mxu0 0.0
    %103 = vmatprep.subr.mxu0 0.0
    %104 = vmatpush1.msra.mxu0 0.0
    %105 = vmatprep.subr.mxu0 0.0
    %106 = vmatpush1.msra.mxu0 0.0
    %107 = vmatprep.subr.mxu0 0.0
    %108 = vmatpush1.msra.mxu0 0.0
    %109 = vmatprep.subr.mxu0 0.0
    %110 = vmatpush1.msra.mxu0 0.0
    %111 = vmatprep.subr.mxu0 0.0
    %112 = vmatpush1.msra.mxu0 0.0
    %113 = vmatprep.subr.mxu0 0.0
    %114 = vmatpush1.msra.mxu0 0.0
    %115 = vmatprep.subr.mxu0 0.0
    %116 = vmatpush1.msra.mxu0 0.0
    %117 = vmatprep.subr.mxu0 0.0
    %118 = vmatpush1.msra.mxu0 0.0
    %119 = vmatprep.subr.mxu0 0.0
    %120 = vmatpush1.msra.mxu0 0.0
    %121 = vmatprep.subr.mxu0 0.0
    %122 = vmatpush1.msra.mxu0 0.0
    %123 = vmatprep.mubr.f32.mxu0 0.0
    %124 = vmatmul.mubr.f32.gmra.mrb[0].mxu0 %v57
    %v125 = vpop.f32.mrb[0].mxu0
    %v126 = vadd.f32 0.0, %v125
    %v127 = vpop.f32.mrb[0].mxu0
    %128 = vdwg.mxu0
    %v129 = vld [vmem:[#allocation4] sm:$0xff]
    %v130 = vld [vmem:[#allocation4 + $0x8] sm:$0xff]
    %v131 = vld [vmem:[#allocation4 + $0x10] sm:$0xff]
    %v132 = vld [vmem:[#allocation4 + $0x18] sm:$0xff]
    %v133 = vld [vmem:[#allocation4 + $0x20] sm:$0xff]
    %v134 = vld [vmem:[#allocation4 + $0x28] sm:$0xff]
    %v135 = vld [vmem:[#allocation4 + $0x30] sm:$0xff]
    %v136 = vld [vmem:[#allocation4 + $0x38] sm:$0xff]
    %137 = vmatprep.subr.mxu0 0.0
    %138 = vmatpush1.msra.mxu0 %v133
    %139 = vmatprep.subr.mxu0 0.0
    %140 = vmatpush1.msra.mxu0 %v134
    %141 = vmatprep.subr.mxu0 0.0
    %142 = vmatpush1.msra.mxu0 %v135
    %143 = vmatprep.subr.mxu0 0.0
    %144 = vmatpush1.msra.mxu0 %v136
    %145 = vmatprep.subr.mxu0 0.0
    %146 = vmatpush1.msra.mxu0 0.0
    %147 = vmatprep.subr.mxu0 0.0
    %148 = vmatpush1.msra.mxu0 0.0
    %149 = vmatprep.subr.mxu0 0.0
    %150 = vmatpush1.msra.mxu0 0.0
    %151 = vmatprep.subr.mxu0 0.0
    %152 = vmatpush1.msra.mxu0 0.0
    %153 = vmatprep.subr.mxu0 0.0
    %154 = vmatpush1.msra.mxu0 0.0
    %155 = vmatprep.subr.mxu0 0.0
    %156 = vmatpush1.msra.mxu0 0.0
    %157 = vmatprep.subr.mxu0 0.0
    %158 = vmatpush1.msra.mxu0 0.0
    %159 = vmatprep.subr.mxu0 0.0
    %160 = vmatpush1.msra.mxu0 0.0
    %161 = vmatprep.subr.mxu0 0.0
    %162 = vmatpush1.msra.mxu0 0.0
    %163 = vmatprep.subr.mxu0 0.0
    %164 = vmatpush1.msra.mxu0 0.0
    %165 = vmatprep.subr.mxu0 0.0
    %166 = vmatpush1.msra.mxu0 0.0
    %167 = vmatprep.subr.mxu0 0.0
    %168 = vmatpush1.msra.mxu0 0.0
    %169 = vmatprep.subr.mxu0 0.0
    %170 = vmatpush1.msra.mxu0 0.0
    %171 = vmatprep.subr.mxu0 0.0
    %172 = vmatpush1.msra.mxu0 0.0
    %173 = vmatprep.subr.mxu0 0.0
    %174 = vmatpush1.msra.mxu0 0.0
    %175 = vmatprep.subr.mxu0 0.0
    %176 = vmatpush1.msra.mxu0 0.0
    %177 = vmatprep.subr.mxu0 0.0
    %178 = vmatpush1.msra.mxu0 0.0
    %179 = vmatprep.subr.mxu0 0.0
    %180 = vmatpush1.msra.mxu0 0.0
    %181 = vmatprep.subr.mxu0 0.0
    %182 = vmatpush1.msra.mxu0 0.0
    %183 = vmatprep.subr.mxu0 0.0
    %184 = vmatpush1.msra.mxu0 0.0
    %185 = vmatprep.subr.mxu0 0.0
    %186 = vmatpush1.msra.mxu0 0.0
    %187 = vmatprep.subr.mxu0 0.0
    %188 = vmatpush1.msra.mxu0 0.0
    %189 = vmatprep.subr.mxu0 0.0
    %190 = vmatpush1.msra.mxu0 0.0
    %191 = vmatprep.subr.mxu0 0.0
    %192 = vmatpush1.msra.mxu0 0.0
    %193 = vmatprep.subr.mxu0 0.0
    %194 = vmatpush1.msra.mxu0 0.0
    %195 = vmatprep.subr.mxu0 0.0
    %196 = vmatpush1.msra.mxu0 0.0
    %197 = vmatprep.subr.mxu0 0.0
    %198 = vmatpush1.msra.mxu0 0.0
    %199 = vmatprep.subr.mxu0 0.0
    %200 = vmatpush1.msra.mxu0 0.0
    %201 = vmatprep.mubr.f32.mxu0 0.0
    %202 = vmatmul.mubr.f32.gmra.mrb[0].mxu0 %v57
    %v203 = vpop.f32.mrb[0].mxu0
    %v204 = vadd.f32 0.0, %v203
    %v205 = vpop.f32.mrb[0].mxu0
    %206 = vdwg.mxu0
    %v208 = vsel %vm55, %v50, 0
    %210 = vmatprep.subr.mxu0 0.0
    %211 = vmatpush1.msra.mxu0 %v129
    %212 = vmatprep.subr.mxu0 0.0
    %213 = vmatpush1.msra.mxu0 %v130
    %214 = vmatprep.subr.mxu0 0.0
    %215 = vmatpush1.msra.mxu0 %v131
    %216 = vmatprep.subr.mxu0 0.0
    %217 = vmatpush1.msra.mxu0 %v132
    %218 = vmatprep.subr.mxu0 0.0
    %219 = vmatpush1.msra.mxu0 0.0
    %220 = vmatprep.subr.mxu0 0.0
    %221 = vmatpush1.msra.mxu0 0.0
    %222 = vmatprep.subr.mxu0 0.0
    %223 = vmatpush1.msra.mxu0 0.0
    %224 = vmatprep.subr.mxu0 0.0
    %225 = vmatpush1.msra.mxu0 0.0
    %226 = vmatprep.subr.mxu0 0.0
    %227 = vmatpush1.msra.mxu0 0.0
    %228 = vmatprep.subr.mxu0 0.0
    %229 = vmatpush1.msra.mxu0 0.0
    %230 = vmatprep.subr.mxu0 0.0
    %231 = vmatpush1.msra.mxu0 0.0
    %232 = vmatprep.subr.mxu0 0.0
    %233 = vmatpush1.msra.mxu0 0.0
    %234 = vmatprep.subr.mxu0 0.0
    %235 = vmatpush1.msra.mxu0 0.0
    %236 = vmatprep.subr.mxu0 0.0
    %237 = vmatpush1.msra.mxu0 0.0
    %238 = vmatprep.subr.mxu0 0.0
    %239 = vmatpush1.msra.mxu0 0.0
    %240 = vmatprep.subr.mxu0 0.0
    %241 = vmatpush1.msra.mxu0 0.0
    %242 = vmatprep.subr.mxu0 0.0
    %243 = vmatpush1.msra.mxu0 0.0
    %244 = vmatprep.subr.mxu0 0.0
    %245 = vmatpush1.msra.mxu0 0.0
    %246 = vmatprep.subr.mxu0 0.0
    %247 = vmatpush1.msra.mxu0 0.0
    %248 = vmatprep.subr.mxu0 0.0
    %249 = vmatpush1.msra.mxu0 0.0
    %250 = vmatprep.subr.mxu0 0.0
    %251 = vmatpush1.msra.mxu0 0.0
    %252 = vmatprep.subr.mxu0 0.0
    %253 = vmatpush1.msra.mxu0 0.0
    %254 = vmatprep.subr.mxu0 0.0
    %255 = vmatpush1.msra.mxu0 0.0
    %256 = vmatprep.subr.mxu0 0.0
    %257 = vmatpush1.msra.mxu0 0.0
    %258 = vmatprep.subr.mxu0 0.0
    %259 = vmatpush1.msra.mxu0 0.0
    %260 = vmatprep.subr.mxu0 0.0
    %261 = vmatpush1.msra.mxu0 0.0
    %262 = vmatprep.subr.mxu0 0.0
    %263 = vmatpush1.msra.mxu0 0.0
    %264 = vmatprep.subr.mxu0 0.0
    %265 = vmatpush1.msra.mxu0 0.0
    %266 = vmatprep.subr.mxu0 0.0
    %267 = vmatpush1.msra.mxu0 0.0
    %268 = vmatprep.subr.mxu0 0.0
    %269 = vmatpush1.msra.mxu0 0.0
    %270 = vmatprep.subr.mxu0 0.0
    %271 = vmatpush1.msra.mxu0 0.0
    %272 = vmatprep.subr.mxu0 0.0
    %273 = vmatpush1.msra.mxu0 0.0
    %274 = vmatprep.mubr.f32.mxu0 0.0
    %275 = vmatmul.mubr.f32.gmra.mrb[0].mxu0 %v208
    %v276 = vpop.f32.mrb[0].mxu0
    %v277 = vadd.f32 %v204, %v276
    %v278 = vpop.f32.mrb[0].mxu0
    %279 = vdwg.mxu0
    %v280 = vld [vmem:[#allocation4 + $0xe0] sm:$0x1]
    %v281 = vadd.f32 %v277, %v280
    %vm282 = vcmask 253952
    %v283 = vsel %vm282, %v281, -inf
    %284 = vmax.xlane.f32.xlu0 %v283
    %v285 = vpop.xlane.xlu0 %284
    %v286 = vsub.f32 %v281, %v285
    %v287 = vmul.f32 %v286, 1.442695
    %v288 = vpow.pop %v287
    %v289 = vsel %vm282, %v288, 0.0
    %290 = vadd.xlane.f32.xlu0 %v289
    %v291 = vpop.xlane.xlu0 %290
    %v292 = vrcp.pop %v291
    %v293 = vmul.f32 %v291, %v292
    %v294 = vsub.f32 2.0, %v293
    %v295 = vmul.f32 %v292, %v294
    %v296 = vmul.f32 %v288, %v295
    %v298 = vsel %vm55, %v296, 0
    %300 = vmatprep.subr.mxu0 0.0
    %301 = vmatpush1.msra.mxu0 %v43
    %302 = vmatprep.subr.mxu0 0.0
    %303 = vmatpush1.msra.mxu0 %v44
    %304 = vmatprep.subr.mxu0 0.0
    %305 = vmatpush1.msra.mxu0 %v45
    %306 = vmatprep.subr.mxu0 0.0
    %307 = vmatpush1.msra.mxu0 %v46
    %308 = vmatprep.subr.mxu0 0.0
    %309 = vmatpush1.msra.mxu0 0.0
    %310 = vmatprep.subr.mxu0 0.0
    %311 = vmatpush1.msra.mxu0 0.0
    %312 = vmatprep.subr.mxu0 0.0
    %313 = vmatpush1.msra.mxu0 0.0
    %314 = vmatprep.subr.mxu0 0.0
    %315 = vmatpush1.msra.mxu0 0.0
    %316 = vmatprep.subr.mxu0 0.0
    %317 = vmatpush1.msra.mxu0 0.0
    %318 = vmatprep.subr.mxu0 0.0
    %319 = vmatpush1.msra.mxu0 0.0
    %320 = vmatprep.subr.mxu0 0.0
    %321 = vmatpush1.msra.mxu0 0.0
    %322 = vmatprep.subr.mxu0 0.0
    %323 = vmatpush1.msra.mxu0 0.0
    %324 = vmatprep.subr.mxu0 0.0
    %325 = vmatpush1.msra.mxu0 0.0
    %326 = vmatprep.subr.mxu0 0.0
    %327 = vmatpush1.msra.mxu0 0.0
    %328 = vmatprep.subr.mxu0 0.0
    %329 = vmatpush1.msra.mxu0 0.0
    %330 = vmatprep.subr.mxu0 0.0
    %331 = vmatpush1.msra.mxu0 0.0
    %332 = vmatprep.subr.mxu0 0.0
    %333 = vmatpush1.msra.mxu0 0.0
    %334 = vmatprep.subr.mxu0 0.0
    %335 = vmatpush1.msra.mxu0 0.0
    %336 = vmatprep.subr.mxu0 0.0
    %337 = vmatpush1.msra.mxu0 0.0
    %338 = vmatprep.subr.mxu0 0.0
    %339 = vmatpush1.msra.mxu0 0.0
    %340 = vmatprep.subr.mxu0 0.0
    %341 = vmatpush1.msra.mxu0 0.0
    %342 = vmatprep.subr.mxu0 0.0
    %343 = vmatpush1.msra.mxu0 0.0
    %344 = vmatprep.subr.mxu0 0.0
    %345 = vmatpush1.msra.mxu0 0.0
    %346 = vmatprep.subr.mxu0 0.0
    %347 = vmatpush1.msra.mxu0 0.0
    %348 = vmatprep.subr.mxu0 0.0
    %349 = vmatpush1.msra.mxu0 0.0
    %350 = vmatprep.subr.mxu0 0.0
    %351 = vmatpush1.msra.mxu0 0.0
    %352 = vmatprep.subr.mxu0 0.0
    %353 = vmatpush1.msra.mxu0 0.0
    %354 = vmatprep.subr.mxu0 0.0
    %355 = vmatpush1.msra.mxu0 0.0
    %356 = vmatprep.subr.mxu0 0.0
    %357 = vmatpush1.msra.mxu0 0.0
    %358 = vmatprep.subr.mxu0 0.0
    %359 = vmatpush1.msra.mxu0 0.0
    %360 = vmatprep.subr.mxu0 0.0
    %361 = vmatpush1.msra.mxu0 0.0
    %362 = vmatprep.subr.mxu0 0.0
    %363 = vmatpush1.msra.mxu0 0.0
    %364 = vmatprep.mubr.f32.mxu0 0.0
    %365 = vmatmul.mubr.f32.gmra.mrb[0].mxu0 %v298
    %v366 = vpop.f32.mrb[0].mxu0
    %v367 = vadd.f32 0.0, %v366
    %v368 = vpop.f32.mrb[0].mxu0
    %369 = vdwg.mxu0
    %v370 = vld [vmem:[#allocation4 + $0x40] sm:$0xff]
    %v371 = vld [vmem:[#allocation4 + $0x48] sm:$0xff]
    %v372 = vld [vmem:[#allocation4 + $0x50] sm:$0xff]
    %v373 = vld [vmem:[#allocation4 + $0x58] sm:$0xff]
    %v374 = vld [vmem:[#allocation4 + $0x60] sm:$0xff]
    %v375 = vld [vmem:[#allocation4 + $0x68] sm:$0xff]
    %v376 = vld [vmem:[#allocation4 + $0x70] sm:$0xff]
    %v377 = vld [vmem:[#allocation4 + $0x78] sm:$0xff]
    %v379 = vsel %vm55, %v367, 0
    %381 = vmatprep.subr.mxu0 0.0
    %382 = vmatpush1.msra.mxu0 %v374
    %383 = vmatprep.subr.mxu0 0.0
    %384 = vmatpush1.msra.mxu0 %v375
    %385 = vmatprep.subr.mxu0 0.0
    %386 = vmatpush1.msra.mxu0 %v376
    %387 = vmatprep.subr.mxu0 0.0
    %388 = vmatpush1.msra.mxu0 %v377
    %389 = vmatprep.subr.mxu0 0.0
    %390 = vmatpush1.msra.mxu0 0.0
    %391 = vmatprep.subr.mxu0 0.0
    %392 = vmatpush1.msra.mxu0 0.0
    %393 = vmatprep.subr.mxu0 0.0
    %394 = vmatpush1.msra.mxu0 0.0
    %395 = vmatprep.subr.mxu0 0.0
    %396 = vmatpush1.msra.mxu0 0.0
    %397 = vmatprep.subr.mxu0 0.0
    %398 = vmatpush1.msra.mxu0 0.0
    %399 = vmatprep.subr.mxu0 0.0
    %400 = vmatpush1.msra.mxu0 0.0
    %401 = vmatprep.subr.mxu0 0.0
    %402 = vmatpush1.msra.mxu0 0.0
    %403 = vmatprep.subr.mxu0 0.0
    %404 = vmatpush1.msra.mxu0 0.0
    %405 = vmatprep.subr.mxu0 0.0
    %406 = vmatpush1.msra.mxu0 0.0
    %407 = vmatprep.subr.mxu0 0.0
    %408 = vmatpush1.msra.mxu0 0.0
    %409 = vmatprep.subr.mxu0 0.0
    %410 = vmatpush1.msra.mxu0 0.0
    %411 = vmatprep.subr.mxu0 0.0
    %412 = vmatpush1.msra.mxu0 0.0
    %413 = vmatprep.subr.mxu0 0.0
    %414 = vmatpush1.msra.mxu0 0.0
    %415 = vmatprep.subr.mxu0 0.0
    %416 = vmatpush1.msra.mxu0 0.0
    %417 = vmatprep.subr.mxu0 0.0
    %418 = vmatpush1.msra.mxu0 0.0
    %419 = vmatprep.subr.mxu0 0.0
    %420 = vmatpush1.msra.mxu0 0.0
    %421 = vmatprep.subr.mxu0 0.0
    %422 = vmatpush1.msra.mxu0 0.0
    %423 = vmatprep.subr.mxu0 0.0
    %424 = vmatpush1.msra.mxu0 0.0
    %425 = vmatprep.subr.mxu0 0.0
    %426 = vmatpush1.msra.mxu0 0.0
    %427 = vmatprep.subr.mxu0 0.0
    %428 = vmatpush1.msra.mxu0 0.0
    %429 = vmatprep.subr.mxu0 0.0
    %430 = vmatpush1.msra.mxu0 0.0
    %431 = vmatprep.subr.mxu0 0.0
    %432 = vmatpush1.msra.mxu0 0.0
    %433 = vmatprep.subr.mxu0 0.0
    %434 = vmatpush1.msra.mxu0 0.0
    %435 = vmatprep.subr.mxu0 0.0
    %436 = vmatpush1.msra.mxu0 0.0
    %437 = vmatprep.subr.mxu0 0.0
    %438 = vmatpush1.msra.mxu0 0.0
    %439 = vmatprep.subr.mxu0 0.0
    %440 = vmatpush1.msra.mxu0 0.0
    %441 = vmatprep.subr.mxu0 0.0
    %442 = vmatpush1.msra.mxu0 0.0
    %443 = vmatprep.subr.mxu0 0.0
    %444 = vmatpush1.msra.mxu0 0.0
    %445 = vmatprep.mubr.f32.mxu0 0.0
    %446 = vmatmul.mubr.f32.gmra.mrb[0].mxu0 %v379
    %v447 = vpop.f32.mrb[0].mxu0
    %v448 = vadd.f32 0.0, %v447
    %v449 = vpop.f32.mrb[0].mxu0
    %450 = vdwg.mxu0
    %451 = vmatprep.subr.mxu0 0.0
    %452 = vmatpush1.msra.mxu0 %v370
    %453 = vmatprep.subr.mxu0 0.0
    %454 = vmatpush1.msra.mxu0 %v371
    %455 = vmatprep.subr.mxu0 0.0
    %456 = vmatpush1.msra.mxu0 %v372
    %457 = vmatprep.subr.mxu0 0.0
    %458 = vmatpush1.msra.mxu0 %v373
    %459 = vmatprep.subr.mxu0 0.0
    %460 = vmatpush1.msra.mxu0 0.0
    %461 = vmatprep.subr.mxu0 0.0
    %462 = vmatpush1.msra.mxu0 0.0
    %463 = vmatprep.subr.mxu0 0.0
    %464 = vmatpush1.msra.mxu0 0.0
    %465 = vmatprep.subr.mxu0 0.0
    %466 = vmatpush1.msra.mxu0 0.0
    %467 = vmatprep.subr.mxu0 0.0
    %468 = vmatpush1.msra.mxu0 0.0
    %469 = vmatprep.subr.mxu0 0.0
    %470 = vmatpush1.msra.mxu0 0.0
    %471 = vmatprep.subr.mxu0 0.0
    %472 = vmatpush1.msra.mxu0 0.0
    %473 = vmatprep.subr.mxu0 0.0
    %474 = vmatpush1.msra.mxu0 0.0
    %475 = vmatprep.subr.mxu0 0.0
    %476 = vmatpush1.msra.mxu0 0.0
    %477 = vmatprep.subr.mxu0 0.0
    %478 = vmatpush1.msra.mxu0 0.0
    %479 = vmatprep.subr.mxu0 0.0
    %480 = vmatpush1.msra.mxu0 0.0
    %481 = vmatprep.subr.mxu0 0.0
    %482 = vmatpush1.msra.mxu0 0.0
    %483 = vmatprep.subr.mxu0 0.0
    %484 = vmatpush1.msra.mxu0 0.0
    %485 = vmatprep.subr.mxu0 0.0
    %486 = vmatpush1.msra.mxu0 0.0
    %487 = vmatprep.subr.mxu0 0.0
    %488 = vmatpush1.msra.mxu0 0.0
    %489 = vmatprep.subr.mxu0 0.0
    %490 = vmatpush1.msra.mxu0 0.0
    %491 = vmatprep.subr.mxu0 0.0
    %492 = vmatpush1.msra.mxu0 0.0
    %493 = vmatprep.subr.mxu0 0.0
    %494 = vmatpush1.msra.mxu0 0.0
    %495 = vmatprep.subr.mxu0 0.0
    %496 = vmatpush1.msra.mxu0 0.0
    %497 = vmatprep.subr.mxu0 0.0
    %498 = vmatpush1.msra.mxu0 0.0
    %499 = vmatprep.subr.mxu0 0.0
    %500 = vmatpush1.msra.mxu0 0.0
    %501 = vmatprep.subr.mxu0 0.0
    %502 = vmatpush1.msra.mxu0 0.0
    %503 = vmatprep.subr.mxu0 0.0
    %504 = vmatpush1.msra.mxu0 0.0
    %505 = vmatprep.subr.mxu0 0.0
    %506 = vmatpush1.msra.mxu0 0.0
    %507 = vmatprep.subr.mxu0 0.0
    %508 = vmatpush1.msra.mxu0 0.0
    %509 = vmatprep.subr.mxu0 0.0
    %510 = vmatpush1.msra.mxu0 0.0
    %511 = vmatprep.subr.mxu0 0.0
    %512 = vmatpush1.msra.mxu0 0.0
    %513 = vmatprep.subr.mxu0 0.0
    %514 = vmatpush1.msra.mxu0 0.0
    %515 = vmatprep.mubr.f32.mxu0 0.0
    %516 = vmatmul.mubr.f32.gmra.mrb[0].mxu0 %v208
    %v517 = vpop.f32.mrb[0].mxu0
    %v518 = vadd.f32 %v448, %v517
    %v519 = vpop.f32.mrb[0].mxu0
    %520 = vdwg.mxu0
    %v521 = vld [vmem:[#allocation4 + $0xe1] sm:$0x1]
    %v522 = vadd.f32 %v518, %v521
    %v523 = vmax.f32 %v522, 0.0
    %v524 = vld [vmem:[#allocation4 + $0x80] sm:$0xff]
    %v525 = vld [vmem:[#allocation4 + $0x88] sm:$0xff]
    %v526 = vld [vmem:[#allocation4 + $0x90] sm:$0xff]
    %v527 = vld [vmem:[#allocation4 + $0x98] sm:$0xff]
    %v529 = vsel %vm55, %v523, 0
    %531 = vmatprep.subr.mxu0 0.0
    %532 = vmatpush1.msra.mxu0 %v524
    %533 = vmatprep.subr.mxu0 0.0
    %534 = vmatpush1.msra.mxu0 %v525
    %535 = vmatprep.subr.mxu0 0.0
    %536 = vmatpush1.msra.mxu0 %v526
    %537 = vmatprep.subr.mxu0 0.0
    %538 = vmatpush1.msra.mxu0 %v527
    %539 = vmatprep.subr.mxu0 0.0
    %540 = vmatpush1.msra.mxu0 0.0
    %541 = vmatprep.subr.mxu0 0.0
    %542 = vmatpush1.msra.mxu0 0.0
    %543 = vmatprep.subr.mxu0 0.0
    %544 = vmatpush1.msra.mxu0 0.0
    %545 = vmatprep.subr.mxu0 0.0
    %546 = vmatpush1.msra.mxu0 0.0
    %547 = vmatprep.subr.mxu0 0.0
    %548 = vmatpush1.msra.mxu0 0.0
    %549 = vmatprep.subr.mxu0 0.0
    %550 = vmatpush1.msra.mxu0 0.0
    %551 = vmatprep.subr.mxu0 0.0
    %552 = vmatpush1.msra.mxu0 0.0
    %553 = vmatprep.subr.mxu0 0.0
    %554 = vmatpush1.msra.mxu0 0.0
    %555 = vmatprep.subr.mxu0 0.0
    %556 = vmatpush1.msra.mxu0 0.0
    %557 = vmatprep.subr.mxu0 0.0
    %558 = vmatpush1.msra.mxu0 0.0
    %559 = vmatprep.subr.mxu0 0.0
    %560 = vmatpush1.msra.mxu0 0.0
    %561 = vmatprep.subr.mxu0 0.0
    %562 = vmatpush1.msra.mxu0 0.0
    %563 = vmatprep.subr.mxu0 0.0
    %564 = vmatpush1.msra.mxu0 0.0
    %565 = vmatprep.subr.mxu0 0.0
    %566 = vmatpush1.msra.mxu0 0.0
    %567 = vmatprep.subr.mxu0 0.0
    %568 = vmatpush1.msra.mxu0 0.0
    %569 = vmatprep.subr.mxu0 0.0
    %570 = vmatpush1.msra.mxu0 0.0
    %571 = vmatprep.subr.mxu0 0.0
    %572 = vmatpush1.msra.mxu0 0.0
    %573 = vmatprep.subr.mxu0 0.0
    %574 = vmatpush1.msra.mxu0 0.0
    %575 = vmatprep.subr.mxu0 0.0
    %576 = vmatpush1.msra.mxu0 0.0
    %577 = vmatprep.subr.mxu0 0.0
    %578 = vmatpush1.msra.mxu0 0.0
    %579 = vmatprep.subr.mxu0 0.0
    %580 = vmatpush1.msra.mxu0 0.0
    %581 = vmatprep.subr.mxu0 0.0
    %582 = vmatpush1.msra.mxu0 0.0
    %583 = vmatprep.subr.mxu0 0.0
    %584 = vmatpush1.msra.mxu0 0.0
    %585 = vmatprep.subr.mxu0 0.0
    %586 = vmatpush1.msra.mxu0 0.0
    %587 = vmatprep.subr.mxu0 0.0
    %588 = vmatpush1.msra.mxu0 0.0
    %589 = vmatprep.subr.mxu0 0.0
    %590 = vmatpush1.msra.mxu0 0.0
    %591 = vmatprep.subr.mxu0 0.0
    %592 = vmatpush1.msra.mxu0 0.0
    %593 = vmatprep.subr.mxu0 0.0
    %594 = vmatpush1.msra.mxu0 0.0
    %595 = vmatprep.mubr.f32.mxu0 0.0
    %596 = vmatmul.mubr.f32.gmra.mrb[0].mxu0 %v529
    %v597 = vpop.f32.mrb[0].mxu0
    %v598 = vadd.f32 %v126, %v597
    %v599 = vpop.f32.mrb[0].mxu0
    %600 = vdwg.mxu0
    %v601 = vld [vmem:[#allocation4 + $0xe2] sm:$0x1]
    %v602 = vadd.f32 %v598, %v601
    %v603 = vxor.u32 %v602, 2147483648
    %v604 = vmul.f32 %v603, 1.442695
    %v605 = vpow.pop %v604
    %v606 = vadd.f32 %v605, 1.0
    %v607 = vrcp.pop %v606
    %v608 = vmul.f32 1.0, %v607
    %610 = vrot.lane.b32.xlu0 %v602, 32
    %v611 = vpop.permute.xlu0 %610
    %v613 = vmul.f32 %v608, %v611
    %615 = vrot.lane.b32.xlu0 %v613, 64
    %v616 = vpop.permute.xlu0 %615
    %v618 = vadd.f32 %v602, %v616
    %v619 = vtanh.pop %v618
    %v620 = vsub.f32 1.0, %v608
    %622 = vrot.lane.b32.xlu0 %v619, 96
    %v623 = vpop.permute.xlu0 %622
    %v625 = vmul.f32 %v620, %v623
    %v626 = vlaneseq
    %v627 = vshrl.u32 %v626, 7
    %v628 = vsub.s32 0, %v627
    %v629 = vrot.slane %v47, %v628
    %630 = vrot.lane.b32.xlu0 %v629, 32
    %v631 = vpop.permute.xlu0 %630
    %v633 = vmul.f32 %v608, %v631
    %v634 = vadd.f32 %v625, %v633
    %v635 = vld [vmem:[#allocation4 + $0xc0] sm:$0xff]
    %v636 = vld [vmem:[#allocation4 + $0xc8] sm:$0xff]
    %v637 = vld [vmem:[#allocation4 + $0xd0] sm:$0xff]
    %v638 = vld [vmem:[#allocation4 + $0xd8] sm:$0xff]
    %v639 = vld [vmem:[#allocation4 + $0xe3] sm:$0x1]
    %641 = vrot.lane.b32.xlu0 %v634, 96
    %v642 = vpop.permute.xlu0 %641
    %v643 = vsel %vm55, %v642, 0
    %645 = vmatprep.subr.mxu0 0.0
    %646 = vmatpush1.msra.mxu0 %v635
    %647 = vmatprep.subr.mxu0 0.0
    %648 = vmatpush1.msra.mxu0 %v636
    %649 = vmatprep.subr.mxu0 0.0
    %650 = vmatpush1.msra.mxu0 %v637
    %651 = vmatprep.subr.mxu0 0.0
    %652 = vmatpush1.msra.mxu0 %v638
    %653 = vmatprep.subr.mxu0 0.0
    %654 = vmatpush1.msra.mxu0 0.0
    %655 = vmatprep.subr.mxu0 0.0
    %656 = vmatpush1.msra.mxu0 0.0
    %657 = vmatprep.subr.mxu0 0.0
    %658 = vmatpush1.msra.mxu0 0.0
    %659 = vmatprep.subr.mxu0 0.0
    %660 = vmatpush1.msra.mxu0 0.0
    %661 = vmatprep.subr.mxu0 0.0
    %662 = vmatpush1.msra.mxu0 0.0
    %663 = vmatprep.subr.mxu0 0.0
    %664 = vmatpush1.msra.mxu0 0.0
    %665 = vmatprep.subr.mxu0 0.0
    %666 = vmatpush1.msra.mxu0 0.0
    %667 = vmatprep.subr.mxu0 0.0
    %668 = vmatpush1.msra.mxu0 0.0
    %669 = vmatprep.subr.mxu0 0.0
    %670 = vmatpush1.msra.mxu0 0.0
    %671 = vmatprep.subr.mxu0 0.0
    %672 = vmatpush1.msra.mxu0 0.0
    %673 = vmatprep.subr.mxu0 0.0
    %674 = vmatpush1.msra.mxu0 0.0
    %675 = vmatprep.subr.mxu0 0.0
    %676 = vmatpush1.msra.mxu0 0.0
    %677 = vmatprep.subr.mxu0 0.0
    %678 = vmatpush1.msra.mxu0 0.0
    %679 = vmatprep.subr.mxu0 0.0
    %680 = vmatpush1.msra.mxu0 0.0
    %681 = vmatprep.subr.mxu0 0.0
    %682 = vmatpush1.msra.mxu0 0.0
    %683 = vmatprep.subr.mxu0 0.0
    %684 = vmatpush1.msra.mxu0 0.0
    %685 = vmatprep.subr.mxu0 0.0
    %686 = vmatpush1.msra.mxu0 0.0
    %687 = vmatprep.subr.mxu0 0.0
    %688 = vmatpush1.msra.mxu0 0.0
    %689 = vmatprep.subr.mxu0 0.0
    %690 = vmatpush1.msra.mxu0 0.0
    %691 = vmatprep.subr.mxu0 0.0
    %692 = vmatpush1.msra.mxu0 0.0
    %693 = vmatprep.subr.mxu0 0.0
    %694 = vmatpush1.msra.mxu0 0.0
    %695 = vmatprep.subr.mxu0 0.0
    %696 = vmatpush1.msra.mxu0 0.0
    %697 = vmatprep.subr.mxu0 0.0
    %698 = vmatpush1.msra.mxu0 0.0
    %699 = vmatprep.subr.mxu0 0.0
    %700 = vmatpush1.msra.mxu0 0.0
    %701 = vmatprep.subr.mxu0 0.0
    %702 = vmatpush1.msra.mxu0 0.0
    %703 = vmatprep.subr.mxu0 0.0
    %704 = vmatpush1.msra.mxu0 0.0
    %705 = vmatprep.subr.mxu0 0.0
    %706 = vmatpush1.msra.mxu0 0.0
    %707 = vmatprep.subr.mxu0 0.0
    %708 = vmatpush1.msra.mxu0 0.0
    %709 = vmatprep.mubr.f32.mxu0 0.0
    %710 = vmatmul.mubr.f32.gmra.mrb[0].mxu0 %v643
    %v711 = vpop.f32.mrb[0].mxu0
    %v712 = vadd.f32 %v639, %v711
    %v713 = vpop.f32.mrb[0].mxu0
    %714 = vdwg.mxu0
    %vm715 = vcmask 516096
    %v716 = vsel %vm715, %v712, -inf
    %717 = vmax.xlane.f32.xlu0 %v716
    %v718 = vpop.xlane.xlu0 %717
    %v719 = vsub.f32 %v712, %v718
    %v720 = vmul.f32 %v719, 1.442695
    %v721 = vpow.pop %v720
    %v722 = vsel %vm715, %v721, 0.0
    %723 = vadd.xlane.f32.xlu0 %v722
    %v724 = vpop.xlane.xlu0 %723
    %v725 = vlog2.pop %v724
    %v726 = vmul.f32 %v725, 0.6931472
    %v727 = vadd.f32 %v726, %v718
    %v728 = vsub.f32 %v712, %v727
    %729 = vst.msk [vmem:[#allocation7] sm:$0x1] %vm715, %v728
    %731 = vst.msk [vmem:[#allocation8] sm:$0x1] %vm282, %v642
    %732 = vst.msk [vmem:[#allocation10] sm:$0x1] %vm282, %v296
    %s733 = sld [smem:[#allocation3 + $0x1]]
    %s734 = scalar_lea.vmem %s1, %s733
    %v735 = vld [vmem:[%s734] sm:$0x1]
    %v736 = vld [vmem:[#allocation4 + $0xa0] sm:$0xff]
    %v737 = vld [vmem:[#allocation4 + $0xa8] sm:$0xff]
    %v738 = vld [vmem:[#allocation4 + $0xb0] sm:$0xff]
    %v739 = vld [vmem:[#allocation4 + $0xb8] sm:$0xff]
    %740 = vmatprep.subr.mxu0 0.0
    %741 = vmatpush1.msra.mxu0 %v736
    %742 = vmatprep.subr.mxu0 0.0
    %743 = vmatpush1.msra.mxu0 %v737
    %744 = vmatprep.subr.mxu0 0.0
    %745 = vmatpush1.msra.mxu0 %v738
    %746 = vmatprep.subr.mxu0 0.0
    %747 = vmatpush1.msra.mxu0 %v739
    %748 = vmatprep.subr.mxu0 0.0
    %749 = vmatpush1.msra.mxu0 0.0
    %750 = vmatprep.subr.mxu0 0.0
    %751 = vmatpush1.msra.mxu0 0.0
    %752 = vmatprep.subr.mxu0 0.0
    %753 = vmatpush1.msra.mxu0 0.0
    %754 = vmatprep.subr.mxu0 0.0
    %755 = vmatpush1.msra.mxu0 0.0
    %756 = vmatprep.subr.mxu0 0.0
    %757 = vmatpush1.msra.mxu0 0.0
    %758 = vmatprep.subr.mxu0 0.0
    %759 = vmatpush1.msra.mxu0 0.0
    %760 = vmatprep.subr.mxu0 0.0
    %761 = vmatpush1.msra.mxu0 0.0
    %762 = vmatprep.subr.mxu0 0.0
    %763 = vmatpush1.msra.mxu0 0.0
    %764 = vmatprep.subr.mxu0 0.0
    %765 = vmatpush1.msra.mxu0 0.0
    %766 = vmatprep.subr.mxu0 0.0
    %767 = vmatpush1.msra.mxu0 0.0
    %768 = vmatprep.subr.mxu0 0.0
    %769 = vmatpush1.msra.mxu0 0.0
    %770 = vmatprep.subr.mxu0 0.0
    %771 = vmatpush1.msra.mxu0 0.0
    %772 = vmatprep.subr.mxu0 0.0
    %773 = vmatpush1.msra.mxu0 0.0
    %774 = vmatprep.subr.mxu0 0.0
    %775 = vmatpush1.msra.mxu0 0.0
    %776 = vmatprep.subr.mxu0 0.0
    %777 = vmatpush1.msra.mxu0 0.0
    %778 = vmatprep.subr.mxu0 0.0
    %779 = vmatpush1.msra.mxu0 0.0
    %780 = vmatprep.subr.mxu0 0.0
    %781 = vmatpush1.msra.mxu0 0.0
    %782 = vmatprep.subr.mxu0 0.0
    %783 = vmatpush1.msra.mxu0 0.0
    %784 = vmatprep.subr.mxu0 0.0
    %785 = vmatpush1.msra.mxu0 0.0
    %786 = vmatprep.subr.mxu0 0.0
    %787 = vmatpush1.msra.mxu0 0.0
    %788 = vmatprep.subr.mxu0 0.0
    %789 = vmatpush1.msra.mxu0 0.0
    %790 = vmatprep.subr.mxu0 0.0
    %791 = vmatpush1.msra.mxu0 0.0
    %792 = vmatprep.subr.mxu0 0.0
    %793 = vmatpush1.msra.mxu0 0.0
    %794 = vmatprep.subr.mxu0 0.0
    %795 = vmatpush1.msra.mxu0 0.0
    %796 = vmatprep.subr.mxu0 0.0
    %797 = vmatpush1.msra.mxu0 0.0
    %798 = vmatprep.subr.mxu0 0.0
    %799 = vmatpush1.msra.mxu0 0.0
    %800 = vmatprep.subr.mxu0 0.0
    %801 = vmatpush1.msra.mxu0 0.0
    %802 = vmatprep.subr.mxu0 0.0
    %803 = vmatpush1.msra.mxu0 0.0
    %804 = vmatprep.mubr.f32.mxu0 0.0
    %805 = vmatmul.mubr.f32.gmra.mrb[0].mxu0 %v643
    %v806 = vpop.f32.mrb[0].mxu0
    %v807 = vadd.f32 0.0, %v806
    %v808 = vpop.f32.mrb[0].mxu0
    %809 = vdwg.mxu0
    %v810 = vld [vmem:[#allocation4] sm:$0xff]
    %v811 = vld [vmem:[#allocation4 + $0x8] sm:$0xff]
    %v812 = vld [vmem:[#allocation4 + $0x10] sm:$0xff]
    %v813 = vld [vmem:[#allocation4 + $0x18] sm:$0xff]
    %v814 = vld [vmem:[#allocation4 + $0x20] sm:$0xff]
    %v815 = vld [vmem:[#allocation4 + $0x28] sm:$0xff]
    %v816 = vld [vmem:[#allocation4 + $0x30] sm:$0xff]
    %v817 = vld [vmem:[#allocation4 + $0x38] sm:$0xff]
    %818 = vmatprep.subr.mxu0 0.0
    %819 = vmatpush1.msra.mxu0 %v814
    %820 = vmatprep.subr.mxu0 0.0
    %821 = vmatpush1.msra.mxu0 %v815
    %822 = vmatprep.subr.mxu0 0.0
    %823 = vmatpush1.msra.mxu0 %v816
    %824 = vmatprep.subr.mxu0 0.0
    %825 = vmatpush1.msra.mxu0 %v817
    %826 = vmatprep.subr.mxu0 0.0
    %827 = vmatpush1.msra.mxu0 0.0
    %828 = vmatprep.subr.mxu0 0.0
    %829 = vmatpush1.msra.mxu0 0.0
    %830 = vmatprep.subr.mxu0 0.0
    %831 = vmatpush1.msra.mxu0 0.0
    %832 = vmatprep.subr.mxu0 0.0
    %833 = vmatpush1.msra.mxu0 0.0
    %834 = vmatprep.subr.mxu0 0.0
    %835 = vmatpush1.msra.mxu0 0.0
    %836 = vmatprep.subr.mxu0 0.0
    %837 = vmatpush1.msra.mxu0 0.0
    %838 = vmatprep.subr.mxu0 0.0
    %839 = vmatpush1.msra.mxu0 0.0
    %840 = vmatprep.subr.mxu0 0.0
    %841 = vmatpush1.msra.mxu0 0.0
    %842 = vmatprep.subr.mxu0 0.0
    %843 = vmatpush1.msra.mxu0 0.0
    %844 = vmatprep.subr.mxu0 0.0
    %845 = vmatpush1.msra.mxu0 0.0
    %846 = vmatprep.subr.mxu0 0.0
    %847 = vmatpush1.msra.mxu0 0.0
    %848 = vmatprep.subr.mxu0 0.0
    %849 = vmatpush1.msra.mxu0 0.0
    %850 = vmatprep.subr.mxu0 0.0
    %851 = vmatpush1.msra.mxu0 0.0
    %852 = vmatprep.subr.mxu0 0.0
    %853 = vmatpush1.msra.mxu0 0.0
    %854 = vmatprep.subr.mxu0 0.0
    %855 = vmatpush1.msra.mxu0 0.0
    %856 = vmatprep.subr.mxu0 0.0
    %857 = vmatpush1.msra.mxu0 0.0
    %858 = vmatprep.subr.mxu0 0.0
    %859 = vmatpush1.msra.mxu0 0.0
    %860 = vmatprep.subr.mxu0 0.0
    %861 = vmatpush1.msra.mxu0 0.0
    %862 = vmatprep.subr.mxu0 0.0
    %863 = vmatpush1.msra.mxu0 0.0
    %864 = vmatprep.subr.mxu0 0.0
    %865 = vmatpush1.msra.mxu0 0.0
    %866 = vmatprep.subr.mxu0 0.0
    %867 = vmatpush1.msra.mxu0 0.0
    %868 = vmatprep.subr.mxu0 0.0
    %869 = vmatpush1.msra.mxu0 0.0
    %870 = vmatprep.subr.mxu0 0.0
    %871 = vmatpush1.msra.mxu0 0.0
    %872 = vmatprep.subr.mxu0 0.0
    %873 = vmatpush1.msra.mxu0 0.0
    %874 = vmatprep.subr.mxu0 0.0
    %875 = vmatpush1.msra.mxu0 0.0
    %876 = vmatprep.subr.mxu0 0.0
    %877 = vmatpush1.msra.mxu0 0.0
    %878 = vmatprep.subr.mxu0 0.0
    %879 = vmatpush1.msra.mxu0 0.0
    %880 = vmatprep.subr.mxu0 0.0
    %881 = vmatpush1.msra.mxu0 0.0
    %882 = vmatprep.mubr.f32.mxu0 0.0
    %883 = vmatmul.mubr.f32.gmra.mrb[0].mxu0 %v643
    %v884 = vpop.f32.mrb[0].mxu0
    %v885 = vadd.f32 0.0, %v884
    %v886 = vpop.f32.mrb[0].mxu0
    %887 = vdwg.mxu0
    %v889 = vsel %vm55, %v735, 0
    %891 = vmatprep.subr.mxu0 0.0
    %892 = vmatpush1.msra.mxu0 %v810
    %893 = vmatprep.subr.mxu0 0.0
    %894 = vmatpush1.msra.mxu0 %v811
    %895 = vmatprep.subr.mxu0 0.0
    %896 = vmatpush1.msra.mxu0 %v812
    %897 = vmatprep.subr.mxu0 0.0
    %898 = vmatpush1.msra.mxu0 %v813
    %899 = vmatprep.subr.mxu0 0.0
    %900 = vmatpush1.msra.mxu0 0.0
    %901 = vmatprep.subr.mxu0 0.0
    %902 = vmatpush1.msra.mxu0 0.0
    %903 = vmatprep.subr.mxu0 0.0
    %904 = vmatpush1.msra.mxu0 0.0
    %905 = vmatprep.subr.mxu0 0.0
    %906 = vmatpush1.msra.mxu0 0.0
    %907 = vmatprep.subr.mxu0 0.0
    %908 = vmatpush1.msra.mxu0 0.0
    %909 = vmatprep.subr.mxu0 0.0
    %910 = vmatpush1.msra.mxu0 0.0
    %911 = vmatprep.subr.mxu0 0.0
    %912 = vmatpush1.msra.mxu0 0.0
    %913 = vmatprep.subr.mxu0 0.0
    %914 = vmatpush1.msra.mxu0 0.0
    %915 = vmatprep.subr.mxu0 0.0
    %916 = vmatpush1.msra.mxu0 0.0
    %917 = vmatprep.subr.mxu0 0.0
    %918 = vmatpush1.msra.mxu0 0.0
    %919 = vmatprep.subr.mxu0 0.0
    %920 = vmatpush1.msra.mxu0 0.0
    %921 = vmatprep.subr.mxu0 0.0
    %922 = vmatpush1.msra.mxu0 0.0
    %923 = vmatprep.subr.mxu0 0.0
    %924 = vmatpush1.msra.mxu0 0.0
    %925 = vmatprep.subr.mxu0 0.0
    %926 = vmatpush1.msra.mxu0 0.0
    %927 = vmatprep.subr.mxu0 0.0
    %928 = vmatpush1.msra.mxu0 0.0
    %929 = vmatprep.subr.mxu0 0.0
    %930 = vmatpush1.msra.mxu0 0.0
    %931 = vmatprep.subr.mxu0 0.0
    %932 = vmatpush1.msra.mxu0 0.0
    %933 = vmatprep.subr.mxu0 0.0
    %934 = vmatpush1.msra.mxu0 0.0
    %935 = vmatprep.subr.mxu0 0.0
    %936 = vmatpush1.msra.mxu0 0.0
    %937 = vmatprep.subr.mxu0 0.0
    %938 = vmatpush1.msra.mxu0 0.0
    %939 = vmatprep.subr.mxu0 0.0
    %940 = vmatpush1.msra.mxu0 0.0
    %941 = vmatprep.subr.mxu0 0.0
    %942 = vmatpush1.msra.mxu0 0.0
    %943 = vmatprep.subr.mxu0 0.0
    %944 = vmatpush1.msra.mxu0 0.0
    %945 = vmatprep.subr.mxu0 0.0
    %946 = vmatpush1.msra.mxu0 0.0
    %947 = vmatprep.subr.mxu0 0.0
    %948 = vmatpush1.msra.mxu0 0.0
    %949 = vmatprep.subr.mxu0 0.0
    %950 = vmatpush1.msra.mxu0 0.0
    %951 = vmatprep.subr.mxu0 0.0
    %952 = vmatpush1.msra.mxu0 0.0
    %953 = vmatprep.subr.mxu0 0.0
    %954 = vmatpush1.msra.mxu0 0.0
    %955 = vmatprep.mubr.f32.mxu0 0.0
    %956 = vmatmul.mubr.f32.gmra.mrb[0].mxu0 %v889
    %v957 = vpop.f32.mrb[0].mxu0
    %v958 = vadd.f32 %v885, %v957
    %v959 = vpop.f32.mrb[0].mxu0
    %960 = vdwg.mxu0
    %v961 = vld [vmem:[#allocation4 + $0xe0] sm:$0x1]
    %v962 = vadd.f32 %v958, %v961
    %v963 = vsel %vm282, %v962, -inf
    %964 = vmax.xlane.f32.xlu0 %v963
    %v965 = vpop.xlane.xlu0 %964
    %v966 = vsub.f32 %v962, %v965
    %v967 = vmul.f32 %v966, 1.442695
    %v968 = vpow.pop %v967
    %v969 = vsel %vm282, %v968, 0.0
    %970 = vadd.xlane.f32.xlu0 %v969
    %v971 = vpop.xlane.xlu0 %970
    %v972 = vrcp.pop %v971
    %v973 = vmul.f32 %v971, %v972
    %v974 = vsub.f32 2.0, %v973
    %v975 = vmul.f32 %v972, %v974
    %v976 = vmul.f32 %v968, %v975
    %v978 = vsel %vm55, %v976, 0
    %980 = vmatprep.subr.mxu0 0.0
    %981 = vmatpush1.msra.mxu0 %v43
    %982 = vmatprep.subr.mxu0 0.0
    %983 = vmatpush1.msra.mxu0 %v44
    %984 = vmatprep.subr.mxu0 0.0
    %985 = vmatpush1.msra.mxu0 %v45
    %986 = vmatprep.subr.mxu0 0.0
    %987 = vmatpush1.msra.mxu0 %v46
    %988 = vmatprep.subr.mxu0 0.0
    %989 = vmatpush1.msra.mxu0 0.0
    %990 = vmatprep.subr.mxu0 0.0
    %991 = vmatpush1.msra.mxu0 0.0
    %992 = vmatprep.subr.mxu0 0.0
    %993 = vmatpush1.msra.mxu0 0.0
    %994 = vmatprep.subr.mxu0 0.0
    %995 = vmatpush1.msra.mxu0 0.0
    %996 = vmatprep.subr.mxu0 0.0
    %997 = vmatpush1.msra.mxu0 0.0
    %998 = vmatprep.subr.mxu0 0.0
    %999 = vmatpush1.msra.mxu0 0.0
    %1000 = vmatprep.subr.mxu0 0.0
    %1001 = vmatpush1.msra.mxu0 0.0
    %1002 = vmatprep.subr.mxu0 0.0
    %1003 = vmatpush1.msra.mxu0 0.0
    %1004 = vmatprep.subr.mxu0 0.0
    %1005 = vmatpush1.msra.mxu0 0.0
    %1006 = vmatprep.subr.mxu0 0.0
    %1007 = vmatpush1.msra.mxu0 0.0
    %1008 = vmatprep.subr.mxu0 0.0
    %1009 = vmatpush1.msra.mxu0 0.0
    %1010 = vmatprep.subr.mxu0 0.0
    %1011 = vmatpush1.msra.mxu0 0.0
    %1012 = vmatprep.subr.mxu0 0.0
    %1013 = vmatpush1.msra.mxu0 0.0
    %1014 = vmatprep.subr.mxu0 0.0
    %1015 = vmatpush1.msra.mxu0 0.0
    %1016 = vmatprep.subr.mxu0 0.0
    %1017 = vmatpush1.msra.mxu0 0.0
    %1018 = vmatprep.subr.mxu0 0.0
    %1019 = vmatpush1.msra.mxu0 0.0
    %1020 = vmatprep.subr.mxu0 0.0
    %1021 = vmatpush1.msra.mxu0 0.0
    %1022 = vmatprep.subr.mxu0 0.0
    %1023 = vmatpush1.msra.mxu0 0.0
    %1024 = vmatprep.subr.mxu0 0.0
    %1025 = vmatpush1.msra.mxu0 0.0
    %1026 = vmatprep.subr.mxu0 0.0
    %1027 = vmatpush1.msra.mxu0 0.0
    %1028 = vmatprep.subr.mxu0 0.0
    %1029 = vmatpush1.msra.mxu0 0.0
    %1030 = vmatprep.subr.mxu0 0.0
    %1031 = vmatpush1.msra.mxu0 0.0
    %1032 = vmatprep.subr.mxu0 0.0
    %1033 = vmatpush1.msra.mxu0 0.0
    %1034 = vmatprep.subr.mxu0 0.0
    %1035 = vmatpush1.msra.mxu0 0.0
    %1036 = vmatprep.subr.mxu0 0.0
    %1037 = vmatpush1.msra.mxu0 0.0
    %1038 = vmatprep.subr.mxu0 0.0
    %1039 = vmatpush1.msra.mxu0 0.0
    %1040 = vmatprep.subr.mxu0 0.0
    %1041 = vmatpush1.msra.mxu0 0.0
    %1042 = vmatprep.subr.mxu0 0.0
    %1043 = vmatpush1.msra.mxu0 0.0
    %1044 = vmatprep.mubr.f32.mxu0 0.0
    %1045 = vmatmul.mubr.f32.gmra.mrb[0].mxu0 %v978
    %v1046 = vpop.f32.mrb[0].mxu0
    %v1047 = vadd.f32 0.0, %v1046
    %v1048 = vpop.f32.mrb[0].mxu0
    %1049 = vdwg.mxu0
    %v1050 = vld [vmem:[#allocation4 + $0x40] sm:$0xff]
    %v1051 = vld [vmem:[#allocation4 + $0x48] sm:$0xff]
    %v1052 = vld [vmem:[#allocation4 + $0x50] sm:$0xff]
    %v1053 = vld [vmem:[#allocation4 + $0x58] sm:$0xff]
    %v1054 = vld [vmem:[#allocation4 + $0x60] sm:$0xff]
    %v1055 = vld [vmem:[#allocation4 + $0x68] sm:$0xff]
    %v1056 = vld [vmem:[#allocation4 + $0x70] sm:$0xff]
    %v1057 = vld [vmem:[#allocation4 + $0x78] sm:$0xff]
    %v1059 = vsel %vm55, %v1047, 0
    %1061 = vmatprep.subr.mxu0 0.0
    %1062 = vmatpush1.msra.mxu0 %v1054
    %1063 = vmatprep.subr.mxu0 0.0
    %1064 = vmatpush1.msra.mxu0 %v1055
    %1065 = vmatprep.subr.mxu0 0.0
    %1066 = vmatpush1.msra.mxu0 %v1056
    %1067 = vmatprep.subr.mxu0 0.0
    %1068 = vmatpush1.msra.mxu0 %v1057
    %1069 = vmatprep.subr.mxu0 0.0
    %1070 = vmatpush1.msra.mxu0 0.0
    %1071 = vmatprep.subr.mxu0 0.0
    %1072 = vmatpush1.msra.mxu0 0.0
    %1073 = vmatprep.subr.mxu0 0.0
    %1074 = vmatpush1.msra.mxu0 0.0
    %1075 = vmatprep.subr.mxu0 0.0
    %1076 = vmatpush1.msra.mxu0 0.0
    %1077 = vmatprep.subr.mxu0 0.0
    %1078 = vmatpush1.msra.mxu0 0.0
    %1079 = vmatprep.subr.mxu0 0.0
    %1080 = vmatpush1.msra.mxu0 0.0
    %1081 = vmatprep.subr.mxu0 0.0
    %1082 = vmatpush1.msra.mxu0 0.0
    %1083 = vmatprep.subr.mxu0 0.0
    %1084 = vmatpush1.msra.mxu0 0.0
    %1085 = vmatprep.subr.mxu0 0.0
    %1086 = vmatpush1.msra.mxu0 0.0
    %1087 = vmatprep.subr.mxu0 0.0
    %1088 = vmatpush1.msra.mxu0 0.0
    %1089 = vmatprep.subr.mxu0 0.0
    %1090 = vmatpush1.msra.mxu0 0.0
    %1091 = vmatprep.subr.mxu0 0.0
    %1092 = vmatpush1.msra.mxu0 0.0
    %1093 = vmatprep.subr.mxu0 0.0
    %1094 = vmatpush1.msra.mxu0 0.0
    %1095 = vmatprep.subr.mxu0 0.0
    %1096 = vmatpush1.msra.mxu0 0.0
    %1097 = vmatprep.subr.mxu0 0.0
    %1098 = vmatpush1.msra.mxu0 0.0
    %1099 = vmatprep.subr.mxu0 0.0
    %1100 = vmatpush1.msra.mxu0 0.0
    %1101 = vmatprep.subr.mxu0 0.0
    %1102 = vmatpush1.msra.mxu0 0.0
    %1103 = vmatprep.subr.mxu0 0.0
    %1104 = vmatpush1.msra.mxu0 0.0
    %1105 = vmatprep.subr.mxu0 0.0
    %1106 = vmatpush1.msra.mxu0 0.0
    %1107 = vmatprep.subr.mxu0 0.0
    %1108 = vmatpush1.msra.mxu0 0.0
    %1109 = vmatprep.subr.mxu0 0.0
    %1110 = vmatpush1.msra.mxu0 0.0
    %1111 = vmatprep.subr.mxu0 0.0
    %1112 = vmatpush1.msra.mxu0 0.0
    %1113 = vmatprep.subr.mxu0 0.0
    %1114 = vmatpush1.msra.mxu0 0.0
    %1115 = vmatprep.subr.mxu0 0.0
    %1116 = vmatpush1.msra.mxu0 0.0
    %1117 = vmatprep.subr.mxu0 0.0
    %1118 = vmatpush1.msra.mxu0 0.0
    %1119 = vmatprep.subr.mxu0 0.0
    %1120 = vmatpush1.msra.mxu0 0.0
    %1121 = vmatprep.subr.mxu0 0.0
    %1122 = vmatpush1.msra.mxu0 0.0
    %1123 = vmatprep.subr.mxu0 0.0
    %1124 = vmatpush1.msra.mxu0 0.0
    %1125 = vmatprep.mubr.f32.mxu0 0.0
    %1126 = vmatmul.mubr.f32.gmra.mrb[0].mxu0 %v1059
    %v1127 = vpop.f32.mrb[0].mxu0
    %v1128 = vadd.f32 0.0, %v1127
    %v1129 = vpop.f32.mrb[0].mxu0
    %1130 = vdwg.mxu0
    %1131 = vmatprep.subr.mxu0 0.0
    %1132 = vmatpush1.msra.mxu0 %v1050
    %1133 = vmatprep.subr.mxu0 0.0
    %1134 = vmatpush1.msra.mxu0 %v1051
    %1135 = vmatprep.subr.mxu0 0.0
    %1136 = vmatpush1.msra.mxu0 %v1052
    %1137 = vmatprep.subr.mxu0 0.0
    %1138 = vmatpush1.msra.mxu0 %v1053
    %1139 = vmatprep.subr.mxu0 0.0
    %1140 = vmatpush1.msra.mxu0 0.0
    %1141 = vmatprep.subr.mxu0 0.0
    %1142 = vmatpush1.msra.mxu0 0.0
    %1143 = vmatprep.subr.mxu0 0.0
    %1144 = vmatpush1.msra.mxu0 0.0
    %1145 = vmatprep.subr.mxu0 0.0
    %1146 = vmatpush1.msra.mxu0 0.0
    %1147 = vmatprep.subr.mxu0 0.0
    %1148 = vmatpush1.msra.mxu0 0.0
    %1149 = vmatprep.subr.mxu0 0.0
    %1150 = vmatpush1.msra.mxu0 0.0
    %1151 = vmatprep.subr.mxu0 0.0
    %1152 = vmatpush1.msra.mxu0 0.0
    %1153 = vmatprep.subr.mxu0 0.0
    %1154 = vmatpush1.msra.mxu0 0.0
    %1155 = vmatprep.subr.mxu0 0.0
    %1156 = vmatpush1.msra.mxu0 0.0
    %1157 = vmatprep.subr.mxu0 0.0
    %1158 = vmatpush1.msra.mxu0 0.0
    %1159 = vmatprep.subr.mxu0 0.0
    %1160 = vmatpush1.msra.mxu0 0.0
    %1161 = vmatprep.subr.mxu0 0.0
    %1162 = vmatpush1.msra.mxu0 0.0
    %1163 = vmatprep.subr.mxu0 0.0
    %1164 = vmatpush1.msra.mxu0 0.0
    %1165 = vmatprep.subr.mxu0 0.0
    %1166 = vmatpush1.msra.mxu0 0.0
    %1167 = vmatprep.subr.mxu0 0.0
    %1168 = vmatpush1.msra.mxu0 0.0
    %1169 = vmatprep.subr.mxu0 0.0
    %1170 = vmatpush1.msra.mxu0 0.0
    %1171 = vmatprep.subr.mxu0 0.0
    %1172 = vmatpush1.msra.mxu0 0.0
    %1173 = vmatprep.subr.mxu0 0.0
    %1174 = vmatpush1.msra.mxu0 0.0
    %1175 = vmatprep.subr.mxu0 0.0
    %1176 = vmatpush1.msra.mxu0 0.0
    %1177 = vmatprep.subr.mxu0 0.0
    %1178 = vmatpush1.msra.mxu0 0.0
    %1179 = vmatprep.subr.mxu0 0.0
    %1180 = vmatpush1.msra.mxu0 0.0
    %1181 = vmatprep.subr.mxu0 0.0
    %1182 = vmatpush1.msra.mxu0 0.0
    %1183 = vmatprep.subr.mxu0 0.0
    %1184 = vmatpush1.msra.mxu0 0.0
    %1185 = vmatprep.subr.mxu0 0.0
    %1186 = vmatpush1.msra.mxu0 0.0
    %1187 = vmatprep.subr.mxu0 0.0
    %1188 = vmatpush1.msra.mxu0 0.0
    %1189 = vmatprep.subr.mxu0 0.0
    %1190 = vmatpush1.msra.mxu0 0.0
    %1191 = vmatprep.subr.mxu0 0.0
    %1192 = vmatpush1.msra.mxu0 0.0
    %1193 = vmatprep.subr.mxu0 0.0
    %1194 = vmatpush1.msra.mxu0 0.0
    %1195 = vmatprep.mubr.f32.mxu0 0.0
    %1196 = vmatmul.mubr.f32.gmra.mrb[0].mxu0 %v889
    %v1197 = vpop.f32.mrb[0].mxu0
    %v1198 = vadd.f32 %v1128, %v1197
    %v1199 = vpop.f32.mrb[0].mxu0
    %1200 = vdwg.mxu0
    %v1201 = vld [vmem:[#allocation4 + $0xe1] sm:$0x1]
    %v1202 = vadd.f32 %v1198, %v1201
    %v1203 = vmax.f32 %v1202, 0.0
    %v1204 = vld [vmem:[#allocation4 + $0x80] sm:$0xff]
    %v1205 = vld [vmem:[#allocation4 + $0x88] sm:$0xff]
    %v1206 = vld [vmem:[#allocation4 + $0x90] sm:$0xff]
    %v1207 = vld [vmem:[#allocation4 + $0x98] sm:$0xff]
    %v1209 = vsel %vm55, %v1203, 0
    %1211 = vmatprep.subr.mxu0 0.0
    %1212 = vmatpush1.msra.mxu0 %v1204
    %1213 = vmatprep.subr.mxu0 0.0
    %1214 = vmatpush1.msra.mxu0 %v1205
    %1215 = vmatprep.subr.mxu0 0.0
    %1216 = vmatpush1.msra.mxu0 %v1206
    %1217 = vmatprep.subr.mxu0 0.0
    %1218 = vmatpush1.msra.mxu0 %v1207
    %1219 = vmatprep.subr.mxu0 0.0
    %1220 = vmatpush1.msra.mxu0 0.0
    %1221 = vmatprep.subr.mxu0 0.0
    %1222 = vmatpush1.msra.mxu0 0.0
    %1223 = vmatprep.subr.mxu0 0.0
    %1224 = vmatpush1.msra.mxu0 0.0
    %1225 = vmatprep.subr.mxu0 0.0
    %1226 = vmatpush1.msra.mxu0 0.0
    %1227 = vmatprep.subr.mxu0 0.0
    %1228 = vmatpush1.msra.mxu0 0.0
    %1229 = vmatprep.subr.mxu0 0.0
    %1230 = vmatpush1.msra.mxu0 0.0
    %1231 = vmatprep.subr.mxu0 0.0
    %1232 = vmatpush1.msra.mxu0 0.0
    %1233 = vmatprep.subr.mxu0 0.0
    %1234 = vmatpush1.msra.mxu0 0.0
    %1235 = vmatprep.subr.mxu0 0.0
    %1236 = vmatpush1.msra.mxu0 0.0
    %1237 = vmatprep.subr.mxu0 0.0
    %1238 = vmatpush1.msra.mxu0 0.0
    %1239 = vmatprep.subr.mxu0 0.0
    %1240 = vmatpush1.msra.mxu0 0.0
    %1241 = vmatprep.subr.mxu0 0.0
    %1242 = vmatpush1.msra.mxu0 0.0
    %1243 = vmatprep.subr.mxu0 0.0
    %1244 = vmatpush1.msra.mxu0 0.0
    %1245 = vmatprep.subr.mxu0 0.0
    %1246 = vmatpush1.msra.mxu0 0.0
    %1247 = vmatprep.subr.mxu0 0.0
    %1248 = vmatpush1.msra.mxu0 0.0
    %1249 = vmatprep.subr.mxu0 0.0
    %1250 = vmatpush1.msra.mxu0 0.0
    %1251 = vmatprep.subr.mxu0 0.0
    %1252 = vmatpush1.msra.mxu0 0.0
    %1253 = vmatprep.subr.mxu0 0.0
    %1254 = vmatpush1.msra.mxu0 0.0
    %1255 = vmatprep.subr.mxu0 0.0
    %1256 = vmatpush1.msra.mxu0 0.0
    %1257 = vmatprep.subr.mxu0 0.0
    %1258 = vmatpush1.msra.mxu0 0.0
    %1259 = vmatprep.subr.mxu0 0.0
    %1260 = vmatpush1.msra.mxu0 0.0
    %1261 = vmatprep.subr.mxu0 0.0
    %1262 = vmatpush1.msra.mxu0 0.0
    %1263 = vmatprep.subr.mxu0 0.0
    %1264 = vmatpush1.msra.mxu0 0.0
    %1265 = vmatprep.subr.mxu0 0.0
    %1266 = vmatpush1.msra.mxu0 0.0
    %1267 = vmatprep.subr.mxu0 0.0
    %1268 = vmatpush1.msra.mxu0 0.0
    %1269 = vmatprep.subr.mxu0 0.0
    %1270 = vmatpush1.msra.mxu0 0.0
    %1271 = vmatprep.subr.mxu0 0.0
    %1272 = vmatpush1.msra.mxu0 0.0
    %1273 = vmatprep.subr.mxu0 0.0
    %1274 = vmatpush1.msra.mxu0 0.0
    %1275 = vmatprep.mubr.f32.mxu0 0.0
    %1276 = vmatmul.mubr.f32.gmra.mrb[0].mxu0 %v1209
    %v1277 = vpop.f32.mrb[0].mxu0
    %v1278 = vadd.f32 %v807, %v1277
    %v1279 = vpop.f32.mrb[0].mxu0
    %1280 = vdwg.mxu0
    %v1281 = vld [vmem:[#allocation4 + $0xe2] sm:$0x1]
    %v1282 = vadd.f32 %v1278, %v1281
    %v1283 = vxor.u32 %v1282, 2147483648
    %v1284 = vmul.f32 %v1283, 1.442695
    %v1285 = vpow.pop %v1284
    %v1286 = vadd.f32 %v1285, 1.0
    %v1287 = vrcp.pop %v1286
    %v1288 = vmul.f32 1.0, %v1287
    %1290 = vrot.lane.b32.xlu0 %v1282, 32
    %v1291 = vpop.permute.xlu0 %1290
    %v1293 = vmul.f32 %v1288, %v1291
    %1295 = vrot.lane.b32.xlu0 %v1293, 64
    %v1296 = vpop.permute.xlu0 %1295
    %v1298 = vadd.f32 %v1282, %v1296
    %v1299 = vtanh.pop %v1298
    %v1300 = vsub.f32 1.0, %v1288
    %1302 = vrot.lane.b32.xlu0 %v1299, 96
    %v1303 = vpop.permute.xlu0 %1302
    %v1305 = vmul.f32 %v1300, %v1303
    %v1306 = vmul.f32 %v1288, %v634
    %v1307 = vadd.f32 %v1305, %v1306
    %v1308 = vld [vmem:[#allocation4 + $0xc0] sm:$0xff]
    %v1309 = vld [vmem:[#allocation4 + $0xc8] sm:$0xff]
    %v1310 = vld [vmem:[#allocation4 + $0xd0] sm:$0xff]
    %v1311 = vld [vmem:[#allocation4 + $0xd8] sm:$0xff]
    %v1312 = vld [vmem:[#allocation4 + $0xe3] sm:$0x1]
    %1314 = vrot.lane.b32.xlu0 %v1307, 96
    %v1315 = vpop.permute.xlu0 %1314
    %v1316 = vsel %vm55, %v1315, 0
    %1318 = vmatprep.subr.mxu0 0.0
    %1319 = vmatpush1.msra.mxu0 %v1308
    %1320 = vmatprep.subr.mxu0 0.0
    %1321 = vmatpush1.msra.mxu0 %v1309
    %1322 = vmatprep.subr.mxu0 0.0
    %1323 = vmatpush1.msra.mxu0 %v1310
    %1324 = vmatprep.subr.mxu0 0.0
    %1325 = vmatpush1.msra.mxu0 %v1311
    %1326 = vmatprep.subr.mxu0 0.0
    %1327 = vmatpush1.msra.mxu0 0.0
    %1328 = vmatprep.subr.mxu0 0.0
    %1329 = vmatpush1.msra.mxu0 0.0
    %1330 = vmatprep.subr.mxu0 0.0
    %1331 = vmatpush1.msra.mxu0 0.0
    %1332 = vmatprep.subr.mxu0 0.0
    %1333 = vmatpush1.msra.mxu0 0.0
    %1334 = vmatprep.subr.mxu0 0.0
    %1335 = vmatpush1.msra.mxu0 0.0
    %1336 = vmatprep.subr.mxu0 0.0
    %1337 = vmatpush1.msra.mxu0 0.0
    %1338 = vmatprep.subr.mxu0 0.0
    %1339 = vmatpush1.msra.mxu0 0.0
    %1340 = vmatprep.subr.mxu0 0.0
    %1341 = vmatpush1.msra.mxu0 0.0
    %1342 = vmatprep.subr.mxu0 0.0
    %1343 = vmatpush1.msra.mxu0 0.0
    %1344 = vmatprep.subr.mxu0 0.0
    %1345 = vmatpush1.msra.mxu0 0.0
    %1346 = vmatprep.subr.mxu0 0.0
    %1347 = vmatpush1.msra.mxu0 0.0
    %1348 = vmatprep.subr.mxu0 0.0
    %1349 = vmatpush1.msra.mxu0 0.0
    %1350 = vmatprep.subr.mxu0 0.0
    %1351 = vmatpush1.msra.mxu0 0.0
    %1352 = vmatprep.subr.mxu0 0.0
    %1353 = vmatpush1.msra.mxu0 0.0
    %1354 = vmatprep.subr.mxu0 0.0
    %1355 = vmatpush1.msra.mxu0 0.0
    %1356 = vmatprep.subr.mxu0 0.0
    %1357 = vmatpush1.msra.mxu0 0.0
    %1358 = vmatprep.subr.mxu0 0.0
    %1359 = vmatpush1.msra.mxu0 0.0
    %1360 = vmatprep.subr.mxu0 0.0
    %1361 = vmatpush1.msra.mxu0 0.0
    %1362 = vmatprep.subr.mxu0 0.0
    %1363 = vmatpush1.msra.mxu0 0.0
    %1364 = vmatprep.subr.mxu0 0.0
    %1365 = vmatpush1.msra.mxu0 0.0
    %1366 = vmatprep.subr.mxu0 0.0
    %1367 = vmatpush1.msra.mxu0 0.0
    %1368 = vmatprep.subr.mxu0 0.0
    %1369 = vmatpush1.msra.mxu0 0.0
    %1370 = vmatprep.subr.mxu0 0.0
    %1371 = vmatpush1.msra.mxu0 0.0
    %1372 = vmatprep.subr.mxu0 0.0
    %1373 = vmatpush1.msra.mxu0 0.0
    %1374 = vmatprep.subr.mxu0 0.0
    %1375 = vmatpush1.msra.mxu0 0.0
    %1376 = vmatprep.subr.mxu0 0.0
    %1377 = vmatpush1.msra.mxu0 0.0
    %1378 = vmatprep.subr.mxu0 0.0
    %1379 = vmatpush1.msra.mxu0 0.0
    %1380 = vmatprep.subr.mxu0 0.0
    %1381 = vmatpush1.msra.mxu0 0.0
    %1382 = vmatprep.mubr.f32.mxu0 0.0
    %1383 = vmatmul.mubr.f32.gmra.mrb[0].mxu0 %v1316
    %v1384 = vpop.f32.mrb[0].mxu0
    %v1385 = vadd.f32 %v1312, %v1384
    %v1386 = vpop.f32.mrb[0].mxu0
    %1387 = vdwg.mxu0
    %v1388 = vsel %vm715, %v1385, -inf
    %1389 = vmax.xlane.f32.xlu0 %v1388
    %v1390 = vpop.xlane.xlu0 %1389
    %v1391 = vsub.f32 %v1385, %v1390
    %v1392 = vmul.f32 %v1391, 1.442695
    %v1393 = vpow.pop %v1392
    %v1394 = vsel %vm715, %v1393, 0.0
    %1395 = vadd.xlane.f32.xlu0 %v1394
    %v1396 = vpop.xlane.xlu0 %1395
    %v1397 = vlog2.pop %v1396
    %v1398 = vmul.f32 %v1397, 0.6931472
    %v1399 = vadd.f32 %v1398, %v1390
    %v1400 = vsub.f32 %v1385, %v1399
    %1401 = vst.msk [vmem:[#allocation7 + $0x1] sm:$0x1] %vm715, %v1400
    %1403 = vst.msk [vmem:[#allocation8 + $0x1] sm:$0x1] %vm282, %v1315
    %1404 = vst.msk [vmem:[#allocation10 + $0x1] sm:$0x1] %vm282, %v976
    %s1405 = sld [smem:[#allocation3 + $0x2]]
    %s1406 = scalar_lea.vmem %s1, %s1405
    %v1407 = vld [vmem:[%s1406] sm:$0x1]
    %v1408 = vld [vmem:[#allocation4 + $0xa0] sm:$0xff]
    %v1409 = vld [vmem:[#allocation4 + $0xa8] sm:$0xff]
    %v1410 = vld [vmem:[#allocation4 + $0xb0] sm:$0xff]
    %v1411 = vld [vmem:[#allocation4 + $0xb8] sm:$0xff]
    %1412 = vmatprep.subr.mxu0 0.0
    %1413 = vmatpush1.msra.mxu0 %v1408
    %1414 = vmatprep.subr.mxu0 0.0
    %1415 = vmatpush1.msra.mxu0 %v1409
    %1416 = vmatprep.subr.mxu0 0.0
    %1417 = vmatpush1.msra.mxu0 %v1410
    %1418 = vmatprep.subr.mxu0 0.0
    %1419 = vmatpush1.msra.mxu0 %v1411
    %1420 = vmatprep.subr.mxu0 0.0
    %1421 = vmatpush1.msra.mxu0 0.0
    %1422 = vmatprep.subr.mxu0 0.0
    %1423 = vmatpush1.msra.mxu0 0.0
    %1424 = vmatprep.subr.mxu0 0.0
    %1425 = vmatpush1.msra.mxu0 0.0
    %1426 = vmatprep.subr.mxu0 0.0
    %1427 = vmatpush1.msra.mxu0 0.0
    %1428 = vmatprep.subr.mxu0 0.0
    %1429 = vmatpush1.msra.mxu0 0.0
    %1430 = vmatprep.subr.mxu0 0.0
    %1431 = vmatpush1.msra.mxu0 0.0
    %1432 = vmatprep.subr.mxu0 0.0
    %1433 = vmatpush1.msra.mxu0 0.0
    %1434 = vmatprep.subr.mxu0 0.0
    %1435 = vmatpush1.msra.mxu0 0.0
    %1436 = vmatprep.subr.mxu0 0.0
    %1437 = vmatpush1.msra.mxu0 0.0
    %1438 = vmatprep.subr.mxu0 0.0
    %1439 = vmatpush1.msra.mxu0 0.0
    %1440 = vmatprep.subr.mxu0 0.0
    %1441 = vmatpush1.msra.mxu0 0.0
    %1442 = vmatprep.subr.mxu0 0.0
    %1443 = vmatpush1.msra.mxu0 0.0
    %1444 = vmatprep.subr.mxu0 0.0
    %1445 = vmatpush1.msra.mxu0 0.0
    %1446 = vmatprep.subr.mxu0 0.0
    %1447 = vmatpush1.msra.mxu0 0.0
    %1448 = vmatprep.subr.mxu0 0.0
    %1449 = vmatpush1.msra.mxu0 0.0
    %1450 = vmatprep.subr.mxu0 0.0
    %1451 = vmatpush1.msra.mxu0 0.0
    %1452 = vmatprep.subr.mxu0 0.0
    %1453 = vmatpush1.msra.mxu0 0.0
    %1454 = vmatprep.subr.mxu0 0.0
    %1455 = vmatpush1.msra.mxu0 0.0
    %1456 = vmatprep.subr.mxu0 0.0
    %1457 = vmatpush1.msra.mxu0 0.0
    %1458 = vmatprep.subr.mxu0 0.0
    %1459 = vmatpush1.msra.mxu0 0.0
    %1460 = vmatprep.subr.mxu0 0.0
    %1461 = vmatpush1.msra.mxu0 0.0
    %1462 = vmatprep.subr.mxu0 0.0
    %1463 = vmatpush1.msra.mxu0 0.0
    %1464 = vmatprep.subr.mxu0 0.0
    %1465 = vmatpush1.msra.mxu0 0.0
    %1466 = vmatprep.subr.mxu0 0.0
    %1467 = vmatpush1.msra.mxu0 0.0
    %1468 = vmatprep.subr.mxu0 0.0
    %1469 = vmatpush1.msra.mxu0 0.0
    %1470 = vmatprep.subr.mxu0 0.0
    %1471 = vmatpush1.msra.mxu0 0.0
    %1472 = vmatprep.subr.mxu0 0.0
    %1473 = vmatpush1.msra.mxu0 0.0
    %1474 = vmatprep.subr.mxu0 0.0
    %1475 = vmatpush1.msra.mxu0 0.0
    %1476 = vmatprep.mubr.f32.mxu0 0.0
    %1477 = vmatmul.mubr.f32.gmra.mrb[0].mxu0 %v1316
    %v1478 = vpop.f32.mrb[0].mxu0
    %v1479 = vadd.f32 0.0, %v1478
    %v1480 = vpop.f32.mrb[0].mxu0
    %1481 = vdwg.mxu0
    %v1482 = vld [vmem:[#allocation4] sm:$0xff]
    %v1483 = vld [vmem:[#allocation4 + $0x8] sm:$0xff]
    %v1484 = vld [vmem:[#allocation4 + $0x10] sm:$0xff]
    %v1485 = vld [vmem:[#allocation4 + $0x18] sm:$0xff]
    %v1486 = vld [vmem:[#allocation4 + $0x20] sm:$0xff]
    %v1487 = vld [vmem:[#allocation4 + $0x28] sm:$0xff]
    %v1488 = vld [vmem:[#allocation4 + $0x30] sm:$0xff]
    %v1489 = vld [vmem:[#allocation4 + $0x38] sm:$0xff]
    %1490 = vmatprep.subr.mxu0 0.0
    %1491 = vmatpush1.msra.mxu0 %v1486
    %1492 = vmatprep.subr.mxu0 0.0
    %1493 = vmatpush1.msra.mxu0 %v1487
    %1494 = vmatprep.subr.mxu0 0.0
    %1495 = vmatpush1.msra.mxu0 %v1488
    %1496 = vmatprep.subr.mxu0 0.0
    %1497 = vmatpush1.msra.mxu0 %v1489
    %1498 = vmatprep.subr.mxu0 0.0
    %1499 = vmatpush1.msra.mxu0 0.0
    %1500 = vmatprep.subr.mxu0 0.0
    %1501 = vmatpush1.msra.mxu0 0.0
    %1502 = vmatprep.subr.mxu0 0.0
    %1503 = vmatpush1.msra.mxu0 0.0
    %1504 = vmatprep.subr.mxu0 0.0
    %1505 = vmatpush1.msra.mxu0 0.0
    %1506 = vmatprep.subr.mxu0 0.0
    %1507 = vmatpush1.msra.mxu0 0.0
    %1508 = vmatprep.subr.mxu0 0.0
    %1509 = vmatpush1.msra.mxu0 0.0
    %1510 = vmatprep.subr.mxu0 0.0
    %1511 = vmatpush1.msra.mxu0 0.0
    %1512 = vmatprep.subr.mxu0 0.0
    %1513 = vmatpush1.msra.mxu0 0.0
    %1514 = vmatprep.subr.mxu0 0.0
    %1515 = vmatpush1.msra.mxu0 0.0
    %1516 = vmatprep.subr.mxu0 0.0
    %1517 = vmatpush1.msra.mxu0 0.0
    %1518 = vmatprep.subr.mxu0 0.0
    %1519 = vmatpush1.msra.mxu0 0.0
    %1520 = vmatprep.subr.mxu0 0.0
    %1521 = vmatpush1.msra.mxu0 0.0
    %1522 = vmatprep.subr.mxu0 0.0
    %1523 = vmatpush1.msra.mxu0 0.0
    %1524 = vmatprep.subr.mxu0 0.0
    %1525 = vmatpush1.msra.mxu0 0.0
    %1526 = vmatprep.subr.mxu0 0.0
    %1527 = vmatpush1.msra.mxu0 0.0
    %1528 = vmatprep.subr.mxu0 0.0
    %1529 = vmatpush1.msra.mxu0 0.0
    %1530 = vmatprep.subr.mxu0 0.0
    %1531 = vmatpush1.msra.mxu0 0.0
    %1532 = vmatprep.subr.mxu0 0.0
    %1533 = vmatpush1.msra.mxu0 0.0
    %1534 = vmatprep.subr.mxu0 0.0
    %1535 = vmatpush1.msra.mxu0 0.0
    %1536 = vmatprep.subr.mxu0 0.0
    %1537 = vmatpush1.msra.mxu0 0.0
    %1538 = vmatprep.subr.mxu0 0.0
    %1539 = vmatpush1.msra.mxu0 0.0
    %1540 = vmatprep.subr.mxu0 0.0
    %1541 = vmatpush1.msra.mxu0 0.0
    %1542 = vmatprep.subr.mxu0 0.0
    %1543 = vmatpush1.msra.mxu0 0.0
    %1544 = vmatprep.subr.mxu0 0.0
    %1545 = vmatpush1.msra.mxu0 0.0
    %1546 = vmatprep.subr.mxu0 0.0
    %1547 = vmatpush1.msra.mxu0 0.0
    %1548 = vmatprep.subr.mxu0 0.0
    %1549 = vmatpush1.msra.mxu0 0.0
    %1550 = vmatprep.subr.mxu0 0.0
    %1551 = vmatpush1.msra.mxu0 0.0
    %1552 = vmatprep.subr.mxu0 0.0
    %1553 = vmatpush1.msra.mxu0 0.0
    %1554 = vmatprep.mubr.f32.mxu0 0.0
    %1555 = vmatmul.mubr.f32.gmra.mrb[0].mxu0 %v1316
    %v1556 = vpop.f32.mrb[0].mxu0
    %v1557 = vadd.f32 0.0, %v1556
    %v1558 = vpop.f32.mrb[0].mxu0
    %1559 = vdwg.mxu0
    %v1561 = vsel %vm55, %v1407, 0
    %1563 = vmatprep.subr.mxu0 0.0
    %1564 = vmatpush1.msra.mxu0 %v1482
    %1565 = vmatprep.subr.mxu0 0.0
    %1566 = vmatpush1.msra.mxu0 %v1483
    %1567 = vmatprep.subr.mxu0 0.0
    %1568 = vmatpush1.msra.mxu0 %v1484
    %1569 = vmatprep.subr.mxu0 0.0
    %1570 = vmatpush1.msra.mxu0 %v1485
    %1571 = vmatprep.subr.mxu0 0.0
    %1572 = vmatpush1.msra.mxu0 0.0
    %1573 = vmatprep.subr.mxu0 0.0
    %1574 = vmatpush1.msra.mxu0 0.0
    %1575 = vmatprep.subr.mxu0 0.0
    %1576 = vmatpush1.msra.mxu0 0.0
    %1577 = vmatprep.subr.mxu0 0.0
    %1578 = vmatpush1.msra.mxu0 0.0
    %1579 = vmatprep.subr.mxu0 0.0
    %1580 = vmatpush1.msra.mxu0 0.0
    %1581 = vmatprep.subr.mxu0 0.0
    %1582 = vmatpush1.msra.mxu0 0.0
    %1583 = vmatprep.subr.mxu0 0.0
    %1584 = vmatpush1.msra.mxu0 0.0
    %1585 = vmatprep.subr.mxu0 0.0
    %1586 = vmatpush1.msra.mxu0 0.0
    %1587 = vmatprep.subr.mxu0 0.0
    %1588 = vmatpush1.msra.mxu0 0.0
    %1589 = vmatprep.subr.mxu0 0.0
    %1590 = vmatpush1.msra.mxu0 0.0
    %1591 = vmatprep.subr.mxu0 0.0
    %1592 = vmatpush1.msra.mxu0 0.0
    %1593 = vmatprep.subr.mxu0 0.0
    %1594 = vmatpush1.msra.mxu0 0.0
    %1595 = vmatprep.subr.mxu0 0.0
    %1596 = vmatpush1.msra.mxu0 0.0
    %1597 = vmatprep.subr.mxu0 0.0
    %1598 = vmatpush1.msra.mxu0 0.0
    %1599 = vmatprep.subr.mxu0 0.0
    %1600 = vmatpush1.msra.mxu0 0.0
    %1601 = vmatprep.subr.mxu0 0.0
    %1602 = vmatpush1.msra.mxu0 0.0
    %1603 = vmatprep.subr.mxu0 0.0
    %1604 = vmatpush1.msra.mxu0 0.0
    %1605 = vmatprep.subr.mxu0 0.0
    %1606 = vmatpush1.msra.mxu0 0.0
    %1607 = vmatprep.subr.mxu0 0.0
    %1608 = vmatpush1.msra.mxu0 0.0
    %1609 = vmatprep.subr.mxu0 0.0
    %1610 = vmatpush1.msra.mxu0 0.0
    %1611 = vmatprep.subr.mxu0 0.0
    %1612 = vmatpush1.msra.mxu0 0.0
    %1613 = vmatprep.subr.mxu0 0.0
    %1614 = vmatpush1.msra.mxu0 0.0
    %1615 = vmatprep.subr.mxu0 0.0
    %1616 = vmatpush1.msra.mxu0 0.0
    %1617 = vmatprep.subr.mxu0 0.0
    %1618 = vmatpush1.msra.mxu0 0.0
    %1619 = vmatprep.subr.mxu0 0.0
    %1620 = vmatpush1.msra.mxu0 0.0
    %1621 = vmatprep.subr.mxu0 0.0
    %1622 = vmatpush1.msra.mxu0 0.0
    %1623 = vmatprep.subr.mxu0 0.0
    %1624 = vmatpush1.msra.mxu0 0.0
    %1625 = vmatprep.subr.mxu0 0.0
    %1626 = vmatpush1.msra.mxu0 0.0
    %1627 = vmatprep.mubr.f32.mxu0 0.0
    %1628 = vmatmul.mubr.f32.gmra.mrb[0].mxu0 %v1561
    %v1629 = vpop.f32.mrb[0].mxu0
    %v1630 = vadd.f32 %v1557, %v1629
    %v1631 = vpop.f32.mrb[0].mxu0
    %1632 = vdwg.mxu0
    %v1633 = vld [vmem:[#allocation4 + $0xe0] sm:$0x1]
    %v1634 = vadd.f32 %v1630, %v1633
    %v1635 = vsel %vm282, %v1634, -inf
    %1636 = vmax.xlane.f32.xlu0 %v1635
    %v1637 = vpop.xlane.xlu0 %1636
    %v1638 = vsub.f32 %v1634, %v1637
    %v1639 = vmul.f32 %v1638, 1.442695
    %v1640 = vpow.pop %v1639
    %v1641 = vsel %vm282, %v1640, 0.0
    %1642 = vadd.xlane.f32.xlu0 %v1641
    %v1643 = vpop.xlane.xlu0 %1642
    %v1644 = vrcp.pop %v1643
    %v1645 = vmul.f32 %v1643, %v1644
    %v1646 = vsub.f32 2.0, %v1645
    %v1647 = vmul.f32 %v1644, %v1646
    %v1648 = vmul.f32 %v1640, %v1647
    %v1650 = vsel %vm55, %v1648, 0
    %1652 = vmatprep.subr.mxu0 0.0
    %1653 = vmatpush1.msra.mxu0 %v43
    %1654 = vmatprep.subr.mxu0 0.0
    %1655 = vmatpush1.msra.mxu0 %v44
    %1656 = vmatprep.subr.mxu0 0.0
    %1657 = vmatpush1.msra.mxu0 %v45
    %1658 = vmatprep.subr.mxu0 0.0
    %1659 = vmatpush1.msra.mxu0 %v46
    %1660 = vmatprep.subr.mxu0 0.0
    %1661 = vmatpush1.msra.mxu0 0.0
    %1662 = vmatprep.subr.mxu0 0.0
    %1663 = vmatpush1.msra.mxu0 0.0
    %1664 = vmatprep.subr.mxu0 0.0
    %1665 = vmatpush1.msra.mxu0 0.0
    %1666 = vmatprep.subr.mxu0 0.0
    %1667 = vmatpush1.msra.mxu0 0.0
    %1668 = vmatprep.subr.mxu0 0.0
    %1669 = vmatpush1.msra.mxu0 0.0
    %1670 = vmatprep.subr.mxu0 0.0
    %1671 = vmatpush1.msra.mxu0 0.0
    %1672 = vmatprep.subr.mxu0 0.0
    %1673 = vmatpush1.msra.mxu0 0.0
    %1674 = vmatprep.subr.mxu0 0.0
    %1675 = vmatpush1.msra.mxu0 0.0
    %1676 = vmatprep.subr.mxu0 0.0
    %1677 = vmatpush1.msra.mxu0 0.0
    %1678 = vmatprep.subr.mxu0 0.0
    %1679 = vmatpush1.msra.mxu0 0.0
    %1680 = vmatprep.subr.mxu0 0.0
    %1681 = vmatpush1.msra.mxu0 0.0
    %1682 = vmatprep.subr.mxu0 0.0
    %1683 = vmatpush1.msra.mxu0 0.0
    %1684 = vmatprep.subr.mxu0 0.0
    %1685 = vmatpush1.msra.mxu0 0.0
    %1686 = vmatprep.subr.mxu0 0.0
    %1687 = vmatpush1.msra.mxu0 0.0
    %1688 = vmatprep.subr.mxu0 0.0
    %1689 = vmatpush1.msra.mxu0 0.0
    %1690 = vmatprep.subr.mxu0 0.0
    %1691 = vmatpush1.msra.mxu0 0.0
    %1692 = vmatprep.subr.mxu0 0.0
    %1693 = vmatpush1.msra.mxu0 0.0
    %1694 = vmatprep.subr.mxu0 0.0
    %1695 = vmatpush1.msra.mxu0 0.0
    %1696 = vmatprep.subr.mxu0 0.0
    %1697 = vmatpush1.msra.mxu0 0.0
    %1698 = vmatprep.subr.mxu0 0.0
    %1699 = vmatpush1.msra.mxu0 0.0
    %1700 = vmatprep.subr.mxu0 0.0
    %1701 = vmatpush1.msra.mxu0 0.0
    %1702 = vmatprep.subr.mxu0 0.0
    %1703 = vmatpush1.msra.mxu0 0.0
    %1704 = vmatprep.subr.mxu0 0.0
    %1705 = vmatpush1.msra.mxu0 0.0
    %1706 = vmatprep.subr.mxu0 0.0
    %1707 = vmatpush1.msra.mxu0 0.0
    %1708 = vmatprep.subr.mxu0 0.0
    %1709 = vmatpush1.msra.mxu0 0.0
    %1710 = vmatprep.subr.mxu0 0.0
    %1711 = vmatpush1.msra.mxu0 0.0
    %1712 = vmatprep.subr.mxu0 0.0
    %1713 = vmatpush1.msra.mxu0 0.0
    %1714 = vmatprep.subr.mxu0 0.0
    %1715 = vmatpush1.msra.mxu0 0.0
    %1716 = vmatprep.mubr.f32.mxu0 0.0
    %1717 = vmatmul.mubr.f32.gmra.mrb[0].mxu0 %v1650
    %v1718 = vpop.f32.mrb[0].mxu0
    %v1719 = vadd.f32 0.0, %v1718
    %v1720 = vpop.f32.mrb[0].mxu0
    %1721 = vdwg.mxu0
    %v1722 = vld [vmem:[#allocation4 + $0x40] sm:$0xff]
    %v1723 = vld [vmem:[#allocation4 + $0x48] sm:$0xff]
    %v1724 = vld [vmem:[#allocation4 + $0x50] sm:$0xff]
    %v1725 = vld [vmem:[#allocation4 + $0x58] sm:$0xff]
    %v1726 = vld [vmem:[#allocation4 + $0x60] sm:$0xff]
    %v1727 = vld [vmem:[#allocation4 + $0x68] sm:$0xff]
    %v1728 = vld [vmem:[#allocation4 + $0x70] sm:$0xff]
    %v1729 = vld [vmem:[#allocation4 + $0x78] sm:$0xff]
    %v1731 = vsel %vm55, %v1719, 0
    %1733 = vmatprep.subr.mxu0 0.0
    %1734 = vmatpush1.msra.mxu0 %v1726
    %1735 = vmatprep.subr.mxu0 0.0
    %1736 = vmatpush1.msra.mxu0 %v1727
    %1737 = vmatprep.subr.mxu0 0.0
    %1738 = vmatpush1.msra.mxu0 %v1728
    %1739 = vmatprep.subr.mxu0 0.0
    %1740 = vmatpush1.msra.mxu0 %v1729
    %1741 = vmatprep.subr.mxu0 0.0
    %1742 = vmatpush1.msra.mxu0 0.0
    %1743 = vmatprep.subr.mxu0 0.0
    %1744 = vmatpush1.msra.mxu0 0.0
    %1745 = vmatprep.subr.mxu0 0.0
    %1746 = vmatpush1.msra.mxu0 0.0
    %1747 = vmatprep.subr.mxu0 0.0
    %1748 = vmatpush1.msra.mxu0 0.0
    %1749 = vmatprep.subr.mxu0 0.0
    %1750 = vmatpush1.msra.mxu0 0.0
    %1751 = vmatprep.subr.mxu0 0.0
    %1752 = vmatpush1.msra.mxu0 0.0
    %1753 = vmatprep.subr.mxu0 0.0
    %1754 = vmatpush1.msra.mxu0 0.0
    %1755 = vmatprep.subr.mxu0 0.0
    %1756 = vmatpush1.msra.mxu0 0.0
    %1757 = vmatprep.subr.mxu0 0.0
    %1758 = vmatpush1.msra.mxu0 0.0
    %1759 = vmatprep.subr.mxu0 0.0
    %1760 = vmatpush1.msra.mxu0 0.0
    %1761 = vmatprep.subr.mxu0 0.0
    %1762 = vmatpush1.msra.mxu0 0.0
    %1763 = vmatprep.subr.mxu0 0.0
    %1764 = vmatpush1.msra.mxu0 0.0
    %1765 = vmatprep.subr.mxu0 0.0
    %1766 = vmatpush1.msra.mxu0 0.0
    %1767 = vmatprep.subr.mxu0 0.0
    %1768 = vmatpush1.msra.mxu0 0.0
    %1769 = vmatprep.subr.mxu0 0.0
    %1770 = vmatpush1.msra.mxu0 0.0
    %1771 = vmatprep.subr.mxu0 0.0
    %1772 = vmatpush1.msra.mxu0 0.0
    %1773 = vmatprep.subr.mxu0 0.0
    %1774 = vmatpush1.msra.mxu0 0.0
    %1775 = vmatprep.subr.mxu0 0.0
    %1776 = vmatpush1.msra.mxu0 0.0
    %1777 = vmatprep.subr.mxu0 0.0
    %1778 = vmatpush1.msra.mxu0 0.0
    %1779 = vmatprep.subr.mxu0 0.0
    %1780 = vmatpush1.msra.mxu0 0.0
    %1781 = vmatprep.subr.mxu0 0.0
    %1782 = vmatpush1.msra.mxu0 0.0
    %1783 = vmatprep.subr.mxu0 0.0
    %1784 = vmatpush1.msra.mxu0 0.0
    %1785 = vmatprep.subr.mxu0 0.0
    %1786 = vmatpush1.msra.mxu0 0.0
    %1787 = vmatprep.subr.mxu0 0.0
    %1788 = vmatpush1.msra.mxu0 0.0
    %1789 = vmatprep.subr.mxu0 0.0
    %1790 = vmatpush1.msra.mxu0 0.0
    %1791 = vmatprep.subr.mxu0 0.0
    %1792 = vmatpush1.msra.mxu0 0.0
    %1793 = vmatprep.subr.mxu0 0.0
    %1794 = vmatpush1.msra.mxu0 0.0
    %1795 = vmatprep.subr.mxu0 0.0
    %1796 = vmatpush1.msra.mxu0 0.0
    %1797 = vmatprep.mubr.f32.mxu0 0.0
    %1798 = vmatmul.mubr.f32.gmra.mrb[0].mxu0 %v1731
    %v1799 = vpop.f32.mrb[0].mxu0
    %v1800 = vadd.f32 0.0, %v1799
    %v1801 = vpop.f32.mrb[0].mxu0
    %1802 = vdwg.mxu0
    %1803 = vmatprep.subr.mxu0 0.0
    %1804 = vmatpush1.msra.mxu0 %v1722
    %1805 = vmatprep.subr.mxu0 0.0
    %1806 = vmatpush1.msra.mxu0 %v1723
    %1807 = vmatprep.subr.mxu0 0.0
    %1808 = vmatpush1.msra.mxu0 %v1724
    %1809 = vmatprep.subr.mxu0 0.0
    %1810 = vmatpush1.msra.mxu0 %v1725
    %1811 = vmatprep.subr.mxu0 0.0
    %1812 = vmatpush1.msra.mxu0 0.0
    %1813 = vmatprep.subr.mxu0 0.0
    %1814 = vmatpush1.msra.mxu0 0.0
    %1815 = vmatprep.subr.mxu0 0.0
    %1816 = vmatpush1.msra.mxu0 0.0
    %1817 = vmatprep.subr.mxu0 0.0
    %1818 = vmatpush1.msra.mxu0 0.0
    %1819 = vmatprep.subr.mxu0 0.0
    %1820 = vmatpush1.msra.mxu0 0.0
    %1821 = vmatprep.subr.mxu0 0.0
    %1822 = vmatpush1.msra.mxu0 0.0
    %1823 = vmatprep.subr.mxu0 0.0
    %1824 = vmatpush1.msra.mxu0 0.0
    %1825 = vmatprep.subr.mxu0 0.0
    %1826 = vmatpush1.msra.mxu0 0.0
    %1827 = vmatprep.subr.mxu0 0.0
    %1828 = vmatpush1.msra.mxu0 0.0
    %1829 = vmatprep.subr.mxu0 0.0
    %1830 = vmatpush1.msra.mxu0 0.0
    %1831 = vmatprep.subr.mxu0 0.0
    %1832 = vmatpush1.msra.mxu0 0.0
    %1833 = vmatprep.subr.mxu0 0.0
    %1834 = vmatpush1.msra.mxu0 0.0
    %1835 = vmatprep.subr.mxu0 0.0
    %1836 = vmatpush1.msra.mxu0 0.0
    %1837 = vmatprep.subr.mxu0 0.0
    %1838 = vmatpush1.msra.mxu0 0.0
    %1839 = vmatprep.subr.mxu0 0.0
    %1840 = vmatpush1.msra.mxu0 0.0
    %1841 = vmatprep.subr.mxu0 0.0
    %1842 = vmatpush1.msra.mxu0 0.0
    %1843 = vmatprep.subr.mxu0 0.0
    %1844 = vmatpush1.msra.mxu0 0.0
    %1845 = vmatprep.subr.mxu0 0.0
    %1846 = vmatpush1.msra.mxu0 0.0
    %1847 = vmatprep.subr.mxu0 0.0
    %1848 = vmatpush1.msra.mxu0 0.0
    %1849 = vmatprep.subr.mxu0 0.0
    %1850 = vmatpush1.msra.mxu0 0.0
    %1851 = vmatprep.subr.mxu0 0.0
    %1852 = vmatpush1.msra.mxu0 0.0
    %1853 = vmatprep.subr.mxu0 0.0
    %1854 = vmatpush1.msra.mxu0 0.0
    %1855 = vmatprep.subr.mxu0 0.0
    %1856 = vmatpush1.msra.mxu0 0.0
    %1857 = vmatprep.subr.mxu0 0.0
    %1858 = vmatpush1.msra.mxu0 0.0
    %1859 = vmatprep.subr.mxu0 0.0
    %1860 = vmatpush1.msra.mxu0 0.0
    %1861 = vmatprep.subr.mxu0 0.0
    %1862 = vmatpush1.msra.mxu0 0.0
    %1863 = vmatprep.subr.mxu0 0.0
    %1864 = vmatpush1.msra.mxu0 0.0
    %1865 = vmatprep.subr.mxu0 0.0
    %1866 = vmatpush1.msra.mxu0 0.0
    %1867 = vmatprep.mubr.f32.mxu0 0.0
    %1868 = vmatmul.mubr.f32.gmra.mrb[0].mxu0 %v1561
    %v1869 = vpop.f32.mrb[0].mxu0
    %v1870 = vadd.f32 %v1800, %v1869
    %v1871 = vpop.f32.mrb[0].mxu0
    %1872 = vdwg.mxu0
    %v1873 = vld [vmem:[#allocation4 + $0xe1] sm:$0x1]
    %v1874 = vadd.f32 %v1870, %v1873
    %v1875 = vmax.f32 %v1874, 0.0
    %v1876 = vld [vmem:[#allocation4 + $0x80] sm:$0xff]
    %v1877 = vld [vmem:[#allocation4 + $0x88] sm:$0xff]
    %v1878 = vld [vmem:[#allocation4 + $0x90] sm:$0xff]
    %v1879 = vld [vmem:[#allocation4 + $0x98] sm:$0xff]
    %v1881 = vsel %vm55, %v1875, 0
    %1883 = vmatprep.subr.mxu0 0.0
    %1884 = vmatpush1.msra.mxu0 %v1876
    %1885 = vmatprep.subr.mxu0 0.0
    %1886 = vmatpush1.msra.mxu0 %v1877
    %1887 = vmatprep.subr.mxu0 0.0
    %1888 = vmatpush1.msra.mxu0 %v1878
    %1889 = vmatprep.subr.mxu0 0.0
    %1890 = vmatpush1.msra.mxu0 %v1879
    %1891 = vmatprep.subr.mxu0 0.0
    %1892 = vmatpush1.msra.mxu0 0.0
    %1893 = vmatprep.subr.mxu0 0.0
    %1894 = vmatpush1.msra.mxu0 0.0
    %1895 = vmatprep.subr.mxu0 0.0
    %1896 = vmatpush1.msra.mxu0 0.0
    %1897 = vmatprep.subr.mxu0 0.0
    %1898 = vmatpush1.msra.mxu0 0.0
    %1899 = vmatprep.subr.mxu0 0.0
    %1900 = vmatpush1.msra.mxu0 0.0
    %1901 = vmatprep.subr.mxu0 0.0
    %1902 = vmatpush1.msra.mxu0 0.0
    %1903 = vmatprep.subr.mxu0 0.0
    %1904 = vmatpush1.msra.mxu0 0.0
    %1905 = vmatprep.subr.mxu0 0.0
    %1906 = vmatpush1.msra.mxu0 0.0
    %1907 = vmatprep.subr.mxu0 0.0
    %1908 = vmatpush1.msra.mxu0 0.0
    %1909 = vmatprep.subr.mxu0 0.0
    %1910 = vmatpush1.msra.mxu0 0.0
    %1911 = vmatprep.subr.mxu0 0.0
    %1912 = vmatpush1.msra.mxu0 0.0
    %1913 = vmatprep.subr.mxu0 0.0
    %1914 = vmatpush1.msra.mxu0 0.0
    %1915 = vmatprep.subr.mxu0 0.0
    %1916 = vmatpush1.msra.mxu0 0.0
    %1917 = vmatprep.subr.mxu0 0.0
    %1918 = vmatpush1.msra.mxu0 0.0
    %1919 = vmatprep.subr.mxu0 0.0
    %1920 = vmatpush1.msra.mxu0 0.0
    %1921 = vmatprep.subr.mxu0 0.0
    %1922 = vmatpush1.msra.mxu0 0.0
    %1923 = vmatprep.subr.mxu0 0.0
    %1924 = vmatpush1.msra.mxu0 0.0
    %1925 = vmatprep.subr.mxu0 0.0
    %1926 = vmatpush1.msra.mxu0 0.0
    %1927 = vmatprep.subr.mxu0 0.0
    %1928 = vmatpush1.msra.mxu0 0.0
    %1929 = vmatprep.subr.mxu0 0.0
    %1930 = vmatpush1.msra.mxu0 0.0
    %1931 = vmatprep.subr.mxu0 0.0
    %1932 = vmatpush1.msra.mxu0 0.0
    %1933 = vmatprep.subr.mxu0 0.0
    %1934 = vmatpush1.msra.mxu0 0.0
    %1935 = vmatprep.subr.mxu0 0.0
    %1936 = vmatpush1.msra.mxu0 0.0
    %1937 = vmatprep.subr.mxu0 0.0
    %1938 = vmatpush1.msra.mxu0 0.0
    %1939 = vmatprep.subr.mxu0 0.0
    %1940 = vmatpush1.msra.mxu0 0.0
    %1941 = vmatprep.subr.mxu0 0.0
    %1942 = vmatpush1.msra.mxu0 0.0
    %1943 = vmatprep.subr.mxu0 0.0
    %1944 = vmatpush1.msra.mxu0 0.0
    %1945 = vmatprep.subr.mxu0 0.0
    %1946 = vmatpush1.msra.mxu0 0.0
    %1947 = vmatprep.mubr.f32.mxu0 0.0
    %1948 = vmatmul.mubr.f32.gmra.mrb[0].mxu0 %v1881
    %v1949 = vpop.f32.mrb[0].mxu0
    %v1950 = vadd.f32 %v1479, %v1949
    %v1951 = vpop.f32.mrb[0].mxu0
    %1952 = vdwg.mxu0
    %v1953 = vld [vmem:[#allocation4 + $0xe2] sm:$0x1]
    %v1954 = vadd.f32 %v1950, %v1953
    %v1955 = vxor.u32 %v1954, 2147483648
    %v1956 = vmul.f32 %v1955, 1.442695
    %v1957 = vpow.pop %v1956
    %v1958 = vadd.f32 %v1957, 1.0
    %v1959 = vrcp.pop %v1958
    %v1960 = vmul.f32 1.0, %v1959
    %1962 = vrot.lane.b32.xlu0 %v1954, 32
    %v1963 = vpop.permute.xlu0 %1962
    %v1965 = vmul.f32 %v1960, %v1963
    %1967 = vrot.lane.b32.xlu0 %v1965, 64
    %v1968 = vpop.permute.xlu0 %1967
    %v1970 = vadd.f32 %v1954, %v1968
    %v1971 = vtanh.pop %v1970
    %v1972 = vsub.f32 1.0, %v1960
    %1974 = vrot.lane.b32.xlu0 %v1971, 96
    %v1975 = vpop.permute.xlu0 %1974
    %v1977 = vmul.f32 %v1972, %v1975
    %v1978 = vmul.f32 %v1960, %v1307
    %v1979 = vadd.f32 %v1977, %v1978
    %v1980 = vld [vmem:[#allocation4 + $0xc0] sm:$0xff]
    %v1981 = vld [vmem:[#allocation4 + $0xc8] sm:$0xff]
    %v1982 = vld [vmem:[#allocation4 + $0xd0] sm:$0xff]
    %v1983 = vld [vmem:[#allocation4 + $0xd8] sm:$0xff]
    %v1984 = vld [vmem:[#allocation4 + $0xe3] sm:$0x1]
    %1986 = vrot.lane.b32.xlu0 %v1979, 96
    %v1987 = vpop.permute.xlu0 %1986
    %v1988 = vsel %vm55, %v1987, 0
    %1990 = vmatprep.subr.mxu0 0.0
    %1991 = vmatpush1.msra.mxu0 %v1980
    %1992 = vmatprep.subr.mxu0 0.0
    %1993 = vmatpush1.msra.mxu0 %v1981
    %1994 = vmatprep.subr.mxu0 0.0
    %1995 = vmatpush1.msra.mxu0 %v1982
    %1996 = vmatprep.subr.mxu0 0.0
    %1997 = vmatpush1.msra.mxu0 %v1983
    %1998 = vmatprep.subr.mxu0 0.0
    %1999 = vmatpush1.msra.mxu0 0.0
    %2000 = vmatprep.subr.mxu0 0.0
    %2001 = vmatpush1.msra.mxu0 0.0
    %2002 = vmatprep.subr.mxu0 0.0
    %2003 = vmatpush1.msra.mxu0 0.0
    %2004 = vmatprep.subr.mxu0 0.0
    %2005 = vmatpush1.msra.mxu0 0.0
    %2006 = vmatprep.subr.mxu0 0.0
    %2007 = vmatpush1.msra.mxu0 0.0
    %2008 = vmatprep.subr.mxu0 0.0
    %2009 = vmatpush1.msra.mxu0 0.0
    %2010 = vmatprep.subr.mxu0 0.0
    %2011 = vmatpush1.msra.mxu0 0.0
    %2012 = vmatprep.subr.mxu0 0.0
    %2013 = vmatpush1.msra.mxu0 0.0
    %2014 = vmatprep.subr.mxu0 0.0
    %2015 = vmatpush1.msra.mxu0 0.0
    %2016 = vmatprep.subr.mxu0 0.0
    %2017 = vmatpush1.msra.mxu0 0.0
    %2018 = vmatprep.subr.mxu0 0.0
    %2019 = vmatpush1.msra.mxu0 0.0
    %2020 = vmatprep.subr.mxu0 0.0
    %2021 = vmatpush1.msra.mxu0 0.0
    %2022 = vmatprep.subr.mxu0 0.0
    %2023 = vmatpush1.msra.mxu0 0.0
    %2024 = vmatprep.subr.mxu0 0.0
    %2025 = vmatpush1.msra.mxu0 0.0
    %2026 = vmatprep.subr.mxu0 0.0
    %2027 = vmatpush1.msra.mxu0 0.0
    %2028 = vmatprep.subr.mxu0 0.0
    %2029 = vmatpush1.msra.mxu0 0.0
    %2030 = vmatprep.subr.mxu0 0.0
    %2031 = vmatpush1.msra.mxu0 0.0
    %2032 = vmatprep.subr.mxu0 0.0
    %2033 = vmatpush1.msra.mxu0 0.0
    %2034 = vmatprep.subr.mxu0 0.0
    %2035 = vmatpush1.msra.mxu0 0.0
    %2036 = vmatprep.subr.mxu0 0.0
    %2037 = vmatpush1.msra.mxu0 0.0
    %2038 = vmatprep.subr.mxu0 0.0
    %2039 = vmatpush1.msra.mxu0 0.0
    %2040 = vmatprep.subr.mxu0 0.0
    %2041 = vmatpush1.msra.mxu0 0.0
    %2042 = vmatprep.subr.mxu0 0.0
    %2043 = vmatpush1.msra.mxu0 0.0
    %2044 = vmatprep.subr.mxu0 0.0
    %2045 = vmatpush1.msra.mxu0 0.0
    %2046 = vmatprep.subr.mxu0 0.0
    %2047 = vmatpush1.msra.mxu0 0.0
    %2048 = vmatprep.subr.mxu0 0.0
    %2049 = vmatpush1.msra.mxu0 0.0
    %2050 = vmatprep.subr.mxu0 0.0
    %2051 = vmatpush1.msra.mxu0 0.0
    %2052 = vmatprep.subr.mxu0 0.0
    %2053 = vmatpush1.msra.mxu0 0.0
    %2054 = vmatprep.mubr.f32.mxu0 0.0
    %2055 = vmatmul.mubr.f32.gmra.mrb[0].mxu0 %v1988
    %v2056 = vpop.f32.mrb[0].mxu0
    %v2057 = vadd.f32 %v1984, %v2056
    %v2058 = vpop.f32.mrb[0].mxu0
    %2059 = vdwg.mxu0
    %v2060 = vsel %vm715, %v2057, -inf
    %2061 = vmax.xlane.f32.xlu0 %v2060
    %v2062 = vpop.xlane.xlu0 %2061
    %v2063 = vsub.f32 %v2057, %v2062
    %v2064 = vmul.f32 %v2063, 1.442695
    %v2065 = vpow.pop %v2064
    %v2066 = vsel %vm715, %v2065, 0.0
    %2067 = vadd.xlane.f32.xlu0 %v2066
    %v2068 = vpop.xlane.xlu0 %2067
    %v2069 = vlog2.pop %v2068
    %v2070 = vmul.f32 %v2069, 0.6931472
    %v2071 = vadd.f32 %v2070, %v2062
    %v2072 = vsub.f32 %v2057, %v2071
    %2073 = vst.msk [vmem:[#allocation7 + $0x2] sm:$0x1] %vm715, %v2072
    %2075 = vst.msk [vmem:[#allocation8 + $0x2] sm:$0x1] %vm282, %v1987
    %2076 = vst.msk [vmem:[#allocation10 + $0x2] sm:$0x1] %vm282, %v1648
    %s2077 = sld [smem:[#allocation3 + $0x3]]
    %s2078 = scalar_lea.vmem %s1, %s2077
    %v2079 = vld [vmem:[%s2078] sm:$0x1]
    %v2080 = vld [vmem:[#allocation4 + $0xa0] sm:$0xff]
    %v2081 = vld [vmem:[#allocation4 + $0xa8] sm:$0xff]
    %v2082 = vld [vmem:[#allocation4 + $0xb0] sm:$0xff]
    %v2083 = vld [vmem:[#allocation4 + $0xb8] sm:$0xff]
    %2084 = vmatprep.subr.mxu0 0.0
    %2085 = vmatpush1.msra.mxu0 %v2080
    %2086 = vmatprep.subr.mxu0 0.0
    %2087 = vmatpush1.msra.mxu0 %v2081
    %2088 = vmatprep.subr.mxu0 0.0
    %2089 = vmatpush1.msra.mxu0 %v2082
    %2090 = vmatprep.subr.mxu0 0.0
    %2091 = vmatpush1.msra.mxu0 %v2083
    %2092 = vmatprep.subr.mxu0 0.0
    %2093 = vmatpush1.msra.mxu0 0.0
    %2094 = vmatprep.subr.mxu0 0.0
    %2095 = vmatpush1.msra.mxu0 0.0
    %2096 = vmatprep.subr.mxu0 0.0
    %2097 = vmatpush1.msra.mxu0 0.0
    %2098 = vmatprep.subr.mxu0 0.0
    %2099 = vmatpush1.msra.mxu0 0.0
    %2100 = vmatprep.subr.mxu0 0.0
    %2101 = vmatpush1.msra.mxu0 0.0
    %2102 = vmatprep.subr.mxu0 0.0
    %2103 = vmatpush1.msra.mxu0 0.0
    %2104 = vmatprep.subr.mxu0 0.0
    %2105 = vmatpush1.msra.mxu0 0.0
    %2106 = vmatprep.subr.mxu0 0.0
    %2107 = vmatpush1.msra.mxu0 0.0
    %2108 = vmatprep.subr.mxu0 0.0
    %2109 = vmatpush1.msra.mxu0 0.0
    %2110 = vmatprep.subr.mxu0 0.0
    %2111 = vmatpush1.msra.mxu0 0.0
    %2112 = vmatprep.subr.mxu0 0.0
    %2113 = vmatpush1.msra.mxu0 0.0
    %2114 = vmatprep.subr.mxu0 0.0
    %2115 = vmatpush1.msra.mxu0 0.0
    %2116 = vmatprep.subr.mxu0 0.0
    %2117 = vmatpush1.msra.mxu0 0.0
    %2118 = vmatprep.subr.mxu0 0.0
    %2119 = vmatpush1.msra.mxu0 0.0
    %2120 = vmatprep.subr.mxu0 0.0
    %2121 = vmatpush1.msra.mxu0 0.0
    %2122 = vmatprep.subr.mxu0 0.0
    %2123 = vmatpush1.msra.mxu0 0.0
    %2124 = vmatprep.subr.mxu0 0.0
    %2125 = vmatpush1.msra.mxu0 0.0
    %2126 = vmatprep.subr.mxu0 0.0
    %2127 = vmatpush1.msra.mxu0 0.0
    %2128 = vmatprep.subr.mxu0 0.0
    %2129 = vmatpush1.msra.mxu0 0.0
    %2130 = vmatprep.subr.mxu0 0.0
    %2131 = vmatpush1.msra.mxu0 0.0
    %2132 = vmatprep.subr.mxu0 0.0
    %2133 = vmatpush1.msra.mxu0 0.0
    %2134 = vmatprep.subr.mxu0 0.0
    %2135 = vmatpush1.msra.mxu0 0.0
    %2136 = vmatprep.subr.mxu0 0.0
    %2137 = vmatpush1.msra.mxu0 0.0
    %2138 = vmatprep.subr.mxu0 0.0
    %2139 = vmatpush1.msra.mxu0 0.0
    %2140 = vmatprep.subr.mxu0 0.0
    %2141 = vmatpush1.msra.mxu0 0.0
    %2142 = vmatprep.subr.mxu0 0.0
    %2143 = vmatpush1.msra.mxu0 0.0
    %2144 = vmatprep.subr.mxu0 0.0
    %2145 = vmatpush1.msra.mxu0 0.0
    %2146 = vmatprep.subr.mxu0 0.0
    %2147 = vmatpush1.msra.mxu0 0.0
    %2148 = vmatprep.mubr.f32.mxu0 0.0
    %2149 = vmatmul.mubr.f32.gmra.mrb[0].mxu0 %v1988
    %v2150 = vpop.f32.mrb[0].mxu0
    %v2151 = vadd.f32 0.0, %v2150
    %v2152 = vpop.f32.mrb[0].mxu0
    %2153 = vdwg.mxu0
    %v2154 = vld [vmem:[#allocation4] sm:$0xff]
    %v2155 = vld [vmem:[#allocation4 + $0x8] sm:$0xff]
    %v2156 = vld [vmem:[#allocation4 + $0x10] sm:$0xff]
    %v2157 = vld [vmem:[#allocation4 + $0x18] sm:$0xff]
    %v2158 = vld [vmem:[#allocation4 + $0x20] sm:$0xff]
    %v2159 = vld [vmem:[#allocation4 + $0x28] sm:$0xff]
    %v2160 = vld [vmem:[#allocation4 + $0x30] sm:$0xff]
    %v2161 = vld [vmem:[#allocation4 + $0x38] sm:$0xff]
    %2162 = vmatprep.subr.mxu0 0.0
    %2163 = vmatpush1.msra.mxu0 %v2158
    %2164 = vmatprep.subr.mxu0 0.0
    %2165 = vmatpush1.msra.mxu0 %v2159
    %2166 = vmatprep.subr.mxu0 0.0
    %2167 = vmatpush1.msra.mxu0 %v2160
    %2168 = vmatprep.subr.mxu0 0.0
    %2169 = vmatpush1.msra.mxu0 %v2161
    %2170 = vmatprep.subr.mxu0 0.0
    %2171 = vmatpush1.msra.mxu0 0.0
    %2172 = vmatprep.subr.mxu0 0.0
    %2173 = vmatpush1.msra.mxu0 0.0
    %2174 = vmatprep.subr.mxu0 0.0
    %2175 = vmatpush1.msra.mxu0 0.0
    %2176 = vmatprep.subr.mxu0 0.0
    %2177 = vmatpush1.msra.mxu0 0.0
    %2178 = vmatprep.subr.mxu0 0.0
    %2179 = vmatpush1.msra.mxu0 0.0
    %2180 = vmatprep.subr.mxu0 0.0
    %2181 = vmatpush1.msra.mxu0 0.0
    %2182 = vmatprep.subr.mxu0 0.0
    %2183 = vmatpush1.msra.mxu0 0.0
    %2184 = vmatprep.subr.mxu0 0.0
    %2185 = vmatpush1.msra.mxu0 0.0
    %2186 = vmatprep.subr.mxu0 0.0
    %2187 = vmatpush1.msra.mxu0 0.0
    %2188 = vmatprep.subr.mxu0 0.0
    %2189 = vmatpush1.msra.mxu0 0.0
    %2190 = vmatprep.subr.mxu0 0.0
    %2191 = vmatpush1.msra.mxu0 0.0
    %2192 = vmatprep.subr.mxu0 0.0
    %2193 = vmatpush1.msra.mxu0 0.0
    %2194 = vmatprep.subr.mxu0 0.0
    %2195 = vmatpush1.msra.mxu0 0.0
    %2196 = vmatprep.subr.mxu0 0.0
    %2197 = vmatpush1.msra.mxu0 0.0
    %2198 = vmatprep.subr.mxu0 0.0
    %2199 = vmatpush1.msra.mxu0 0.0
    %2200 = vmatprep.subr.mxu0 0.0
    %2201 = vmatpush1.msra.mxu0 0.0
    %2202 = vmatprep.subr.mxu0 0.0
    %2203 = vmatpush1.msra.mxu0 0.0
    %2204 = vmatprep.subr.mxu0 0.0
    %2205 = vmatpush1.msra.mxu0 0.0
    %2206 = vmatprep.subr.mxu0 0.0
    %2207 = vmatpush1.msra.mxu0 0.0
    %2208 = vmatprep.subr.mxu0 0.0
    %2209 = vmatpush1.msra.mxu0 0.0
    %2210 = vmatprep.subr.mxu0 0.0
    %2211 = vmatpush1.msra.mxu0 0.0
    %2212 = vmatprep.subr.mxu0 0.0
    %2213 = vmatpush1.msra.mxu0 0.0
    %2214 = vmatprep.subr.mxu0 0.0
    %2215 = vmatpush1.msra.mxu0 0.0
    %2216 = vmatprep.subr.mxu0 0.0
    %2217 = vmatpush1.msra.mxu0 0.0
    %2218 = vmatprep.subr.mxu0 0.0
    %2219 = vmatpush1.msra.mxu0 0.0
    %2220 = vmatprep.subr.mxu0 0.0
    %2221 = vmatpush1.msra.mxu0 0.0
    %2222 = vmatprep.subr.mxu0 0.0
    %2223 = vmatpush1.msra.mxu0 0.0
    %2224 = vmatprep.subr.mxu0 0.0
    %2225 = vmatpush1.msra.mxu0 0.0
    %2226 = vmatprep.mubr.f32.mxu0 0.0
    %2227 = vmatmul.mubr.f32.gmra.mrb[0].mxu0 %v1988
    %v2228 = vpop.f32.mrb[0].mxu0
    %v2229 = vadd.f32 0.0, %v2228
    %v2230 = vpop.f32.mrb[0].mxu0
    %2231 = vdwg.mxu0
    %v2233 = vsel %vm55, %v2079, 0
    %2235 = vmatprep.subr.mxu0 0.0
    %2236 = vmatpush1.msra.mxu0 %v2154
    %2237 = vmatprep.subr.mxu0 0.0
    %2238 = vmatpush1.msra.mxu0 %v2155
    %2239 = vmatprep.subr.mxu0 0.0
    %2240 = vmatpush1.msra.mxu0 %v2156
    %2241 = vmatprep.subr.mxu0 0.0
    %2242 = vmatpush1.msra.mxu0 %v2157
    %2243 = vmatprep.subr.mxu0 0.0
    %2244 = vmatpush1.msra.mxu0 0.0
    %2245 = vmatprep.subr.mxu0 0.0
    %2246 = vmatpush1.msra.mxu0 0.0
    %2247 = vmatprep.subr.mxu0 0.0
    %2248 = vmatpush1.msra.mxu0 0.0
    %2249 = vmatprep.subr.mxu0 0.0
    %2250 = vmatpush1.msra.mxu0 0.0
    %2251 = vmatprep.subr.mxu0 0.0
    %2252 = vmatpush1.msra.mxu0 0.0
    %2253 = vmatprep.subr.mxu0 0.0
    %2254 = vmatpush1.msra.mxu0 0.0
    %2255 = vmatprep.subr.mxu0 0.0
    %2256 = vmatpush1.msra.mxu0 0.0
    %2257 = vmatprep.subr.mxu0 0.0
    %2258 = vmatpush1.msra.mxu0 0.0
    %2259 = vmatprep.subr.mxu0 0.0
    %2260 = vmatpush1.msra.mxu0 0.0
    %2261 = vmatprep.subr.mxu0 0.0
    %2262 = vmatpush1.msra.mxu0 0.0
    %2263 = vmatprep.subr.mxu0 0.0
    %2264 = vmatpush1.msra.mxu0 0.0
    %2265 = vmatprep.subr.mxu0 0.0
    %2266 = vmatpush1.msra.mxu0 0.0
    %2267 = vmatprep.subr.mxu0 0.0
    %2268 = vmatpush1.msra.mxu0 0.0
    %2269 = vmatprep.subr.mxu0 0.0
    %2270 = vmatpush1.msra.mxu0 0.0
    %2271 = vmatprep.subr.mxu0 0.0
    %2272 = vmatpush1.msra.mxu0 0.0
    %2273 = vmatprep.subr.mxu0 0.0
    %2274 = vmatpush1.msra.mxu0 0.0
    %2275 = vmatprep.subr.mxu0 0.0
    %2276 = vmatpush1.msra.mxu0 0.0
    %2277 = vmatprep.subr.mxu0 0.0
    %2278 = vmatpush1.msra.mxu0 0.0
    %2279 = vmatprep.subr.mxu0 0.0
    %2280 = vmatpush1.msra.mxu0 0.0
    %2281 = vmatprep.subr.mxu0 0.0
    %2282 = vmatpush1.msra.mxu0 0.0
    %2283 = vmatprep.subr.mxu0 0.0
    %2284 = vmatpush1.msra.mxu0 0.0
    %2285 = vmatprep.subr.mxu0 0.0
    %2286 = vmatpush1.msra.mxu0 0.0
    %2287 = vmatprep.subr.mxu0 0.0
    %2288 = vmatpush1.msra.mxu0 0.0
    %2289 = vmatprep.subr.mxu0 0.0
    %2290 = vmatpush1.msra.mxu0 0.0
    %2291 = vmatprep.subr.mxu0 0.0
    %2292 = vmatpush1.msra.mxu0 0.0
    %2293 = vmatprep.subr.mxu0 0.0
    %2294 = vmatpush1.msra.mxu0 0.0
    %2295 = vmatprep.subr.mxu0 0.0
    %2296 = vmatpush1.msra.mxu0 0.0
    %2297 = vmatprep.subr.mxu0 0.0
    %2298 = vmatpush1.msra.mxu0 0.0
    %2299 = vmatprep.mubr.f32.mxu0 0.0
    %2300 = vmatmul.mubr.f32.gmra.mrb[0].mxu0 %v2233
    %v2301 = vpop.f32.mrb[0].mxu0
    %v2302 = vadd.f32 %v2229, %v2301
    %v2303 = vpop.f32.mrb[0].mxu0
    %2304 = vdwg.mxu0
    %v2305 = vld [vmem:[#allocation4 + $0xe0] sm:$0x1]
    %v2306 = vadd.f32 %v2302, %v2305
    %v2307 = vsel %vm282, %v2306, -inf
    %2308 = vmax.xlane.f32.xlu0 %v2307
    %v2309 = vpop.xlane.xlu0 %2308
    %v2310 = vsub.f32 %v2306, %v2309
    %v2311 = vmul.f32 %v2310, 1.442695
    %v2312 = vpow.pop %v2311
    %v2313 = vsel %vm282, %v2312, 0.0
    %2314 = vadd.xlane.f32.xlu0 %v2313
    %v2315 = vpop.xlane.xlu0 %2314
    %v2316 = vrcp.pop %v2315
    %v2317 = vmul.f32 %v2315, %v2316
    %v2318 = vsub.f32 2.0, %v2317
    %v2319 = vmul.f32 %v2316, %v2318
    %v2320 = vmul.f32 %v2312, %v2319
    %v2322 = vsel %vm55, %v2320, 0
    %2324 = vmatprep.subr.mxu0 0.0
    %2325 = vmatpush1.msra.mxu0 %v43
    %2326 = vmatprep.subr.mxu0 0.0
    %2327 = vmatpush1.msra.mxu0 %v44
    %2328 = vmatprep.subr.mxu0 0.0
    %2329 = vmatpush1.msra.mxu0 %v45
    %2330 = vmatprep.subr.mxu0 0.0
    %2331 = vmatpush1.msra.mxu0 %v46
    %2332 = vmatprep.subr.mxu0 0.0
    %2333 = vmatpush1.msra.mxu0 0.0
    %2334 = vmatprep.subr.mxu0 0.0
    %2335 = vmatpush1.msra.mxu0 0.0
    %2336 = vmatprep.subr.mxu0 0.0
    %2337 = vmatpush1.msra.mxu0 0.0
    %2338 = vmatprep.subr.mxu0 0.0
    %2339 = vmatpush1.msra.mxu0 0.0
    %2340 = vmatprep.subr.mxu0 0.0
    %2341 = vmatpush1.msra.mxu0 0.0
    %2342 = vmatprep.subr.mxu0 0.0
    %2343 = vmatpush1.msra.mxu0 0.0
    %2344 = vmatprep.subr.mxu0 0.0
    %2345 = vmatpush1.msra.mxu0 0.0
    %2346 = vmatprep.subr.mxu0 0.0
    %2347 = vmatpush1.msra.mxu0 0.0
    %2348 = vmatprep.subr.mxu0 0.0
    %2349 = vmatpush1.msra.mxu0 0.0
    %2350 = vmatprep.subr.mxu0 0.0
    %2351 = vmatpush1.msra.mxu0 0.0
    %2352 = vmatprep.subr.mxu0 0.0
    %2353 = vmatpush1.msra.mxu0 0.0
    %2354 = vmatprep.subr.mxu0 0.0
    %2355 = vmatpush1.msra.mxu0 0.0
    %2356 = vmatprep.subr.mxu0 0.0
    %2357 = vmatpush1.msra.mxu0 0.0
    %2358 = vmatprep.subr.mxu0 0.0
    %2359 = vmatpush1.msra.mxu0 0.0
    %2360 = vmatprep.subr.mxu0 0.0
    %2361 = vmatpush1.msra.mxu0 0.0
    %2362 = vmatprep.subr.mxu0 0.0
    %2363 = vmatpush1.msra.mxu0 0.0
    %2364 = vmatprep.subr.mxu0 0.0
    %2365 = vmatpush1.msra.mxu0 0.0
    %2366 = vmatprep.subr.mxu0 0.0
    %2367 = vmatpush1.msra.mxu0 0.0
    %2368 = vmatprep.subr.mxu0 0.0
    %2369 = vmatpush1.msra.mxu0 0.0
    %2370 = vmatprep.subr.mxu0 0.0
    %2371 = vmatpush1.msra.mxu0 0.0
    %2372 = vmatprep.subr.mxu0 0.0
    %2373 = vmatpush1.msra.mxu0 0.0
    %2374 = vmatprep.subr.mxu0 0.0
    %2375 = vmatpush1.msra.mxu0 0.0
    %2376 = vmatprep.subr.mxu0 0.0
    %2377 = vmatpush1.msra.mxu0 0.0
    %2378 = vmatprep.subr.mxu0 0.0
    %2379 = vmatpush1.msra.mxu0 0.0
    %2380 = vmatprep.subr.mxu0 0.0
    %2381 = vmatpush1.msra.mxu0 0.0
    %2382 = vmatprep.subr.mxu0 0.0
    %2383 = vmatpush1.msra.mxu0 0.0
    %2384 = vmatprep.subr.mxu0 0.0
    %2385 = vmatpush1.msra.mxu0 0.0
    %2386 = vmatprep.subr.mxu0 0.0
    %2387 = vmatpush1.msra.mxu0 0.0
    %2388 = vmatprep.mubr.f32.mxu0 0.0
    %2389 = vmatmul.mubr.f32.gmra.mrb[0].mxu0 %v2322
    %v2390 = vpop.f32.mrb[0].mxu0
    %v2391 = vadd.f32 0.0, %v2390
    %v2392 = vpop.f32.mrb[0].mxu0
    %2393 = vdwg.mxu0
    %v2394 = vld [vmem:[#allocation4 + $0x40] sm:$0xff]
    %v2395 = vld [vmem:[#allocation4 + $0x48] sm:$0xff]
    %v2396 = vld [vmem:[#allocation4 + $0x50] sm:$0xff]
    %v2397 = vld [vmem:[#allocation4 + $0x58] sm:$0xff]
    %v2398 = vld [vmem:[#allocation4 + $0x60] sm:$0xff]
    %v2399 = vld [vmem:[#allocation4 + $0x68] sm:$0xff]
    %v2400 = vld [vmem:[#allocation4 + $0x70] sm:$0xff]
    %v2401 = vld [vmem:[#allocation4 + $0x78] sm:$0xff]
    %v2403 = vsel %vm55, %v2391, 0
    %2405 = vmatprep.subr.mxu0 0.0
    %2406 = vmatpush1.msra.mxu0 %v2398
    %2407 = vmatprep.subr.mxu0 0.0
    %2408 = vmatpush1.msra.mxu0 %v2399
    %2409 = vmatprep.subr.mxu0 0.0
    %2410 = vmatpush1.msra.mxu0 %v2400
    %2411 = vmatprep.subr.mxu0 0.0
    %2412 = vmatpush1.msra.mxu0 %v2401
    %2413 = vmatprep.subr.mxu0 0.0
    %2414 = vmatpush1.msra.mxu0 0.0
    %2415 = vmatprep.subr.mxu0 0.0
    %2416 = vmatpush1.msra.mxu0 0.0
    %2417 = vmatprep.subr.mxu0 0.0
    %2418 = vmatpush1.msra.mxu0 0.0
    %2419 = vmatprep.subr.mxu0 0.0
    %2420 = vmatpush1.msra.mxu0 0.0
    %2421 = vmatprep.subr.mxu0 0.0
    %2422 = vmatpush1.msra.mxu0 0.0
    %2423 = vmatprep.subr.mxu0 0.0
    %2424 = vmatpush1.msra.mxu0 0.0
    %2425 = vmatprep.subr.mxu0 0.0
    %2426 = vmatpush1.msra.mxu0 0.0
    %2427 = vmatprep.subr.mxu0 0.0
    %2428 = vmatpush1.msra.mxu0 0.0
    %2429 = vmatprep.subr.mxu0 0.0
    %2430 = vmatpush1.msra.mxu0 0.0
    %2431 = vmatprep.subr.mxu0 0.0
    %2432 = vmatpush1.msra.mxu0 0.0
    %2433 = vmatprep.subr.mxu0 0.0
    %2434 = vmatpush1.msra.mxu0 0.0
    %2435 = vmatprep.subr.mxu0 0.0
    %2436 = vmatpush1.msra.mxu0 0.0
    %2437 = vmatprep.subr.mxu0 0.0
    %2438 = vmatpush1.msra.mxu0 0.0
    %2439 = vmatprep.subr.mxu0 0.0
    %2440 = vmatpush1.msra.mxu0 0.0
    %2441 = vmatprep.subr.mxu0 0.0
    %2442 = vmatpush1.msra.mxu0 0.0
    %2443 = vmatprep.subr.mxu0 0.0
    %2444 = vmatpush1.msra.mxu0 0.0
    %2445 = vmatprep.subr.mxu0 0.0
    %2446 = vmatpush1.msra.mxu0 0.0
    %2447 = vmatprep.subr.mxu0 0.0
    %2448 = vmatpush1.msra.mxu0 0.0
    %2449 = vmatprep.subr.mxu0 0.0
    %2450 = vmatpush1.msra.mxu0 0.0
    %2451 = vmatprep.subr.mxu0 0.0
    %2452 = vmatpush1.msra.mxu0 0.0
    %2453 = vmatprep.subr.mxu0 0.0
    %2454 = vmatpush1.msra.mxu0 0.0
    %2455 = vmatprep.subr.mxu0 0.0
    %2456 = vmatpush1.msra.mxu0 0.0
    %2457 = vmatprep.subr.mxu0 0.0
    %2458 = vmatpush1.msra.mxu0 0.0
    %2459 = vmatprep.subr.mxu0 0.0
    %2460 = vmatpush1.msra.mxu0 0.0
    %2461 = vmatprep.subr.mxu0 0.0
    %2462 = vmatpush1.msra.mxu0 0.0
    %2463 = vmatprep.subr.mxu0 0.0
    %2464 = vmatpush1.msra.mxu0 0.0
    %2465 = vmatprep.subr.mxu0 0.0
    %2466 = vmatpush1.msra.mxu0 0.0
    %2467 = vmatprep.subr.mxu0 0.0
    %2468 = vmatpush1.msra.mxu0 0.0
    %2469 = vmatprep.mubr.f32.mxu0 0.0
    %2470 = vmatmul.mubr.f32.gmra.mrb[0].mxu0 %v2403
    %v2471 = vpop.f32.mrb[0].mxu0
    %v2472 = vadd.f32 0.0, %v2471
    %v2473 = vpop.f32.mrb[0].mxu0
    %2474 = vdwg.mxu0
    %2475 = vmatprep.subr.mxu0 0.0
    %2476 = vmatpush1.msra.mxu0 %v2394
    %2477 = vmatprep.subr.mxu0 0.0
    %2478 = vmatpush1.msra.mxu0 %v2395
    %2479 = vmatprep.subr.mxu0 0.0
    %2480 = vmatpush1.msra.mxu0 %v2396
    %2481 = vmatprep.subr.mxu0 0.0
    %2482 = vmatpush1.msra.mxu0 %v2397
    %2483 = vmatprep.subr.mxu0 0.0
    %2484 = vmatpush1.msra.mxu0 0.0
    %2485 = vmatprep.subr.mxu0 0.0
    %2486 = vmatpush1.msra.mxu0 0.0
    %2487 = vmatprep.subr.mxu0 0.0
    %2488 = vmatpush1.msra.mxu0 0.0
    %2489 = vmatprep.subr.mxu0 0.0
    %2490 = vmatpush1.msra.mxu0 0.0
    %2491 = vmatprep.subr.mxu0 0.0
    %2492 = vmatpush1.msra.mxu0 0.0
    %2493 = vmatprep.subr.mxu0 0.0
    %2494 = vmatpush1.msra.mxu0 0.0
    %2495 = vmatprep.subr.mxu0 0.0
    %2496 = vmatpush1.msra.mxu0 0.0
    %2497 = vmatprep.subr.mxu0 0.0
    %2498 = vmatpush1.msra.mxu0 0.0
    %2499 = vmatprep.subr.mxu0 0.0
    %2500 = vmatpush1.msra.mxu0 0.0
    %2501 = vmatprep.subr.mxu0 0.0
    %2502 = vmatpush1.msra.mxu0 0.0
    %2503 = vmatprep.subr.mxu0 0.0
    %2504 = vmatpush1.msra.mxu0 0.0
    %2505 = vmatprep.subr.mxu0 0.0
    %2506 = vmatpush1.msra.mxu0 0.0
    %2507 = vmatprep.subr.mxu0 0.0
    %2508 = vmatpush1.msra.mxu0 0.0
    %2509 = vmatprep.subr.mxu0 0.0
    %2510 = vmatpush1.msra.mxu0 0.0
    %2511 = vmatprep.subr.mxu0 0.0
    %2512 = vmatpush1.msra.mxu0 0.0
    %2513 = vmatprep.subr.mxu0 0.0
    %2514 = vmatpush1.msra.mxu0 0.0
    %2515 = vmatprep.subr.mxu0 0.0
    %2516 = vmatpush1.msra.mxu0 0.0
    %2517 = vmatprep.subr.mxu0 0.0
    %2518 = vmatpush1.msra.mxu0 0.0
    %2519 = vmatprep.subr.mxu0 0.0
    %2520 = vmatpush1.msra.mxu0 0.0
    %2521 = vmatprep.subr.mxu0 0.0
    %2522 = vmatpush1.msra.mxu0 0.0
    %2523 = vmatprep.subr.mxu0 0.0
    %2524 = vmatpush1.msra.mxu0 0.0
    %2525 = vmatprep.subr.mxu0 0.0
    %2526 = vmatpush1.msra.mxu0 0.0
    %2527 = vmatprep.subr.mxu0 0.0
    %2528 = vmatpush1.msra.mxu0 0.0
    %2529 = vmatprep.subr.mxu0 0.0
    %2530 = vmatpush1.msra.mxu0 0.0
    %2531 = vmatprep.subr.mxu0 0.0
    %2532 = vmatpush1.msra.mxu0 0.0
    %2533 = vmatprep.subr.mxu0 0.0
    %2534 = vmatpush1.msra.mxu0 0.0
    %2535 = vmatprep.subr.mxu0 0.0
    %2536 = vmatpush1.msra.mxu0 0.0
    %2537 = vmatprep.subr.mxu0 0.0
    %2538 = vmatpush1.msra.mxu0 0.0
    %2539 = vmatprep.mubr.f32.mxu0 0.0
    %2540 = vmatmul.mubr.f32.gmra.mrb[0].mxu0 %v2233
    %v2541 = vpop.f32.mrb[0].mxu0
    %v2542 = vadd.f32 %v2472, %v2541
    %v2543 = vpop.f32.mrb[0].mxu0
    %2544 = vdwg.mxu0
    %v2545 = vld [vmem:[#allocation4 + $0xe1] sm:$0x1]
    %v2546 = vadd.f32 %v2542, %v2545
    %v2547 = vmax.f32 %v2546, 0.0
    %v2548 = vld [vmem:[#allocation4 + $0x80] sm:$0xff]
    %v2549 = vld [vmem:[#allocation4 + $0x88] sm:$0xff]
    %v2550 = vld [vmem:[#allocation4 + $0x90] sm:$0xff]
    %v2551 = vld [vmem:[#allocation4 + $0x98] sm:$0xff]
    %v2553 = vsel %vm55, %v2547, 0
    %2555 = vmatprep.subr.mxu0 0.0
    %2556 = vmatpush1.msra.mxu0 %v2548
    %2557 = vmatprep.subr.mxu0 0.0
    %2558 = vmatpush1.msra.mxu0 %v2549
    %2559 = vmatprep.subr.mxu0 0.0
    %2560 = vmatpush1.msra.mxu0 %v2550
    %2561 = vmatprep.subr.mxu0 0.0
    %2562 = vmatpush1.msra.mxu0 %v2551
    %2563 = vmatprep.subr.mxu0 0.0
    %2564 = vmatpush1.msra.mxu0 0.0
    %2565 = vmatprep.subr.mxu0 0.0
    %2566 = vmatpush1.msra.mxu0 0.0
    %2567 = vmatprep.subr.mxu0 0.0
    %2568 = vmatpush1.msra.mxu0 0.0
    %2569 = vmatprep.subr.mxu0 0.0
    %2570 = vmatpush1.msra.mxu0 0.0
    %2571 = vmatprep.subr.mxu0 0.0
    %2572 = vmatpush1.msra.mxu0 0.0
    %2573 = vmatprep.subr.mxu0 0.0
    %2574 = vmatpush1.msra.mxu0 0.0
    %2575 = vmatprep.subr.mxu0 0.0
    %2576 = vmatpush1.msra.mxu0 0.0
    %2577 = vmatprep.subr.mxu0 0.0
    %2578 = vmatpush1.msra.mxu0 0.0
    %2579 = vmatprep.subr.mxu0 0.0
    %2580 = vmatpush1.msra.mxu0 0.0
    %2581 = vmatprep.subr.mxu0 0.0
    %2582 = vmatpush1.msra.mxu0 0.0
    %2583 = vmatprep.subr.mxu0 0.0
    %2584 = vmatpush1.msra.mxu0 0.0
    %2585 = vmatprep.subr.mxu0 0.0
    %2586 = vmatpush1.msra.mxu0 0.0
    %2587 = vmatprep.subr.mxu0 0.0
    %2588 = vmatpush1.msra.mxu0 0.0
    %2589 = vmatprep.subr.mxu0 0.0
    %2590 = vmatpush1.msra.mxu0 0.0
    %2591 = vmatprep.subr.mxu0 0.0
    %2592 = vmatpush1.msra.mxu0 0.0
    %2593 = vmatprep.subr.mxu0 0.0
    %2594 = vmatpush1.msra.mxu0 0.0
    %2595 = vmatprep.subr.mxu0 0.0
    %2596 = vmatpush1.msra.mxu0 0.0
    %2597 = vmatprep.subr.mxu0 0.0
    %2598 = vmatpush1.msra.mxu0 0.0
    %2599 = vmatprep.subr.mxu0 0.0
    %2600 = vmatpush1.msra.mxu0 0.0
    %2601 = vmatprep.subr.mxu0 0.0
    %2602 = vmatpush1.msra.mxu0 0.0
    %2603 = vmatprep.subr.mxu0 0.0
    %2604 = vmatpush1.msra.mxu0 0.0
    %2605 = vmatprep.subr.mxu0 0.0
    %2606 = vmatpush1.msra.mxu0 0.0
    %2607 = vmatprep.subr.mxu0 0.0
    %2608 = vmatpush1.msra.mxu0 0.0
    %2609 = vmatprep.subr.mxu0 0.0
    %2610 = vmatpush1.msra.mxu0 0.0
    %2611 = vmatprep.subr.mxu0 0.0
    %2612 = vmatpush1.msra.mxu0 0.0
    %2613 = vmatprep.subr.mxu0 0.0
    %2614 = vmatpush1.msra.mxu0 0.0
    %2615 = vmatprep.subr.mxu0 0.0
    %2616 = vmatpush1.msra.mxu0 0.0
    %2617 = vmatprep.subr.mxu0 0.0
    %2618 = vmatpush1.msra.mxu0 0.0
    %2619 = vmatprep.mubr.f32.mxu0 0.0
    %2620 = vmatmul.mubr.f32.gmra.mrb[0].mxu0 %v2553
    %v2621 = vpop.f32.mrb[0].mxu0
    %v2622 = vadd.f32 %v2151, %v2621
    %v2623 = vpop.f32.mrb[0].mxu0
    %2624 = vdwg.mxu0
    %v2625 = vld [vmem:[#allocation4 + $0xe2] sm:$0x1]
    %v2626 = vadd.f32 %v2622, %v2625
    %v2627 = vxor.u32 %v2626, 2147483648
    %v2628 = vmul.f32 %v2627, 1.442695
    %v2629 = vpow.pop %v2628
    %v2630 = vadd.f32 %v2629, 1.0
    %v2631 = vrcp.pop %v2630
    %v2632 = vmul.f32 1.0, %v2631
    %2634 = vrot.lane.b32.xlu0 %v2626, 32
    %v2635 = vpop.permute.xlu0 %2634
    %v2637 = vmul.f32 %v2632, %v2635
    %2639 = vrot.lane.b32.xlu0 %v2637, 64
    %v2640 = vpop.permute.xlu0 %2639
    %v2642 = vadd.f32 %v2626, %v2640
    %v2643 = vtanh.pop %v2642
    %v2644 = vsub.f32 1.0, %v2632
    %2646 = vrot.lane.b32.xlu0 %v2643, 96
    %v2647 = vpop.permute.xlu0 %2646
    %v2649 = vmul.f32 %v2644, %v2647
    %v2650 = vmul.f32 %v2632, %v1979
    %v2651 = vadd.f32 %v2649, %v2650
    %v2652 = vld [vmem:[#allocation4 + $0xc0] sm:$0xff]
    %v2653 = vld [vmem:[#allocation4 + $0xc8] sm:$0xff]
    %v2654 = vld [vmem:[#allocation4 + $0xd0] sm:$0xff]
    %v2655 = vld [vmem:[#allocation4 + $0xd8] sm:$0xff]
    %v2656 = vld [vmem:[#allocation4 + $0xe3] sm:$0x1]
    %2658 = vrot.lane.b32.xlu0 %v2651, 96
    %v2659 = vpop.permute.xlu0 %2658
    %v2660 = vsel %vm55, %v2659, 0
    %2662 = vmatprep.subr.mxu0 0.0
    %2663 = vmatpush1.msra.mxu0 %v2652
    %2664 = vmatprep.subr.mxu0 0.0
    %2665 = vmatpush1.msra.mxu0 %v2653
    %2666 = vmatprep.subr.mxu0 0.0
    %2667 = vmatpush1.msra.mxu0 %v2654
    %2668 = vmatprep.subr.mxu0 0.0
    %2669 = vmatpush1.msra.mxu0 %v2655
    %2670 = vmatprep.subr.mxu0 0.0
    %2671 = vmatpush1.msra.mxu0 0.0
    %2672 = vmatprep.subr.mxu0 0.0
    %2673 = vmatpush1.msra.mxu0 0.0
    %2674 = vmatprep.subr.mxu0 0.0
    %2675 = vmatpush1.msra.mxu0 0.0
    %2676 = vmatprep.subr.mxu0 0.0
    %2677 = vmatpush1.msra.mxu0 0.0
    %2678 = vmatprep.subr.mxu0 0.0
    %2679 = vmatpush1.msra.mxu0 0.0
    %2680 = vmatprep.subr.mxu0 0.0
    %2681 = vmatpush1.msra.mxu0 0.0
    %2682 = vmatprep.subr.mxu0 0.0
    %2683 = vmatpush1.msra.mxu0 0.0
    %2684 = vmatprep.subr.mxu0 0.0
    %2685 = vmatpush1.msra.mxu0 0.0
    %2686 = vmatprep.subr.mxu0 0.0
    %2687 = vmatpush1.msra.mxu0 0.0
    %2688 = vmatprep.subr.mxu0 0.0
    %2689 = vmatpush1.msra.mxu0 0.0
    %2690 = vmatprep.subr.mxu0 0.0
    %2691 = vmatpush1.msra.mxu0 0.0
    %2692 = vmatprep.subr.mxu0 0.0
    %2693 = vmatpush1.msra.mxu0 0.0
    %2694 = vmatprep.subr.mxu0 0.0
    %2695 = vmatpush1.msra.mxu0 0.0
    %2696 = vmatprep.subr.mxu0 0.0
    %2697 = vmatpush1.msra.mxu0 0.0
    %2698 = vmatprep.subr.mxu0 0.0
    %2699 = vmatpush1.msra.mxu0 0.0
    %2700 = vmatprep.subr.mxu0 0.0
    %2701 = vmatpush1.msra.mxu0 0.0
    %2702 = vmatprep.subr.mxu0 0.0
    %2703 = vmatpush1.msra.mxu0 0.0
    %2704 = vmatprep.subr.mxu0 0.0
    %2705 = vmatpush1.msra.mxu0 0.0
    %2706 = vmatprep.subr.mxu0 0.0
    %2707 = vmatpush1.msra.mxu0 0.0
    %2708 = vmatprep.subr.mxu0 0.0
    %2709 = vmatpush1.msra.mxu0 0.0
    %2710 = vmatprep.subr.mxu0 0.0
    %2711 = vmatpush1.msra.mxu0 0.0
    %2712 = vmatprep.subr.mxu0 0.0
    %2713 = vmatpush1.msra.mxu0 0.0
    %2714 = vmatprep.subr.mxu0 0.0
    %2715 = vmatpush1.msra.mxu0 0.0
    %2716 = vmatprep.subr.mxu0 0.0
    %2717 = vmatpush1.msra.mxu0 0.0
    %2718 = vmatprep.subr.mxu0 0.0
    %2719 = vmatpush1.msra.mxu0 0.0
    %2720 = vmatprep.subr.mxu0 0.0
    %2721 = vmatpush1.msra.mxu0 0.0
    %2722 = vmatprep.subr.mxu0 0.0
    %2723 = vmatpush1.msra.mxu0 0.0
    %2724 = vmatprep.subr.mxu0 0.0
    %2725 = vmatpush1.msra.mxu0 0.0
    %2726 = vmatprep.mubr.f32.mxu0 0.0
    %2727 = vmatmul.mubr.f32.gmra.mrb[0].mxu0 %v2660
    %v2728 = vpop.f32.mrb[0].mxu0
    %v2729 = vadd.f32 %v2656, %v2728
    %v2730 = vpop.f32.mrb[0].mxu0
    %2731 = vdwg.mxu0
    %v2732 = vsel %vm715, %v2729, -inf
    %2733 = vmax.xlane.f32.xlu0 %v2732
    %v2734 = vpop.xlane.xlu0 %2733
    %v2735 = vsub.f32 %v2729, %v2734
    %v2736 = vmul.f32 %v2735, 1.442695
    %v2737 = vpow.pop %v2736
    %v2738 = vsel %vm715, %v2737, 0.0
    %2739 = vadd.xlane.f32.xlu0 %v2738
    %v2740 = vpop.xlane.xlu0 %2739
    %v2741 = vlog2.pop %v2740
    %v2742 = vmul.f32 %v2741, 0.6931472
    %v2743 = vadd.f32 %v2742, %v2734
    %v2744 = vsub.f32 %v2729, %v2743
    %2745 = vst.msk [vmem:[#allocation7 + $0x3] sm:$0x1] %vm715, %v2744
    %2747 = vst.msk [vmem:[#allocation8 + $0x3] sm:$0x1] %vm282, %v2659
    %2748 = vst.msk [vmem:[#allocation10 + $0x3] sm:$0x1] %vm282, %v2320
    %s2749 = sld [smem:[#allocation3 + $0x4]]
    %s2750 = scalar_lea.vmem %s1, %s2749
    %v2751 = vld [vmem:[%s2750] sm:$0x1]
    %v2752 = vld [vmem:[#allocation4 + $0xa0] sm:$0xff]
    %v2753 = vld [vmem:[#allocation4 + $0xa8] sm:$0xff]
    %v2754 = vld [vmem:[#allocation4 + $0xb0] sm:$0xff]
    %v2755 = vld [vmem:[#allocation4 + $0xb8] sm:$0xff]
    %2756 = vmatprep.subr.mxu0 0.0
    %2757 = vmatpush1.msra.mxu0 %v2752
    %2758 = vmatprep.subr.mxu0 0.0
    %2759 = vmatpush1.msra.mxu0 %v2753
    %2760 = vmatprep.subr.mxu0 0.0
    %2761 = vmatpush1.msra.mxu0 %v2754
    %2762 = vmatprep.subr.mxu0 0.0
    %2763 = vmatpush1.msra.mxu0 %v2755
    %2764 = vmatprep.subr.mxu0 0.0
    %2765 = vmatpush1.msra.mxu0 0.0
    %2766 = vmatprep.subr.mxu0 0.0
    %2767 = vmatpush1.msra.mxu0 0.0
    %2768 = vmatprep.subr.mxu0 0.0
    %2769 = vmatpush1.msra.mxu0 0.0
    %2770 = vmatprep.subr.mxu0 0.0
    %2771 = vmatpush1.msra.mxu0 0.0
    %2772 = vmatprep.subr.mxu0 0.0
    %2773 = vmatpush1.msra.mxu0 0.0
    %2774 = vmatprep.subr.mxu0 0.0
    %2775 = vmatpush1.msra.mxu0 0.0
    %2776 = vmatprep.subr.mxu0 0.0
    %2777 = vmatpush1.msra.mxu0 0.0
    %2778 = vmatprep.subr.mxu0 0.0
    %2779 = vmatpush1.msra.mxu0 0.0
    %2780 = vmatprep.subr.mxu0 0.0
    %2781 = vmatpush1.msra.mxu0 0.0
    %2782 = vmatprep.subr.mxu0 0.0
    %2783 = vmatpush1.msra.mxu0 0.0
    %2784 = vmatprep.subr.mxu0 0.0
    %2785 = vmatpush1.msra.mxu0 0.0
    %2786 = vmatprep.subr.mxu0 0.0
    %2787 = vmatpush1.msra.mxu0 0.0
    %2788 = vmatprep.subr.mxu0 0.0
    %2789 = vmatpush1.msra.mxu0 0.0
    %2790 = vmatprep.subr.mxu0 0.0
    %2791 = vmatpush1.msra.mxu0 0.0
    %2792 = vmatprep.subr.mxu0 0.0
    %2793 = vmatpush1.msra.mxu0 0.0
    %2794 = vmatprep.subr.mxu0 0.0
    %2795 = vmatpush1.msra.mxu0 0.0
    %2796 = vmatprep.subr.mxu0 0.0
    %2797 = vmatpush1.msra.mxu0 0.0
    %2798 = vmatprep.subr.mxu0 0.0
    %2799 = vmatpush1.msra.mxu0 0.0
    %2800 = vmatprep.subr.mxu0 0.0
    %2801 = vmatpush1.msra.mxu0 0.0
    %2802 = vmatprep.subr.mxu0 0.0
    %2803 = vmatpush1.msra.mxu0 0.0
    %2804 = vmatprep.subr.mxu0 0.0
    %2805 = vmatpush1.msra.mxu0 0.0
    %2806 = vmatprep.subr.mxu0 0.0
    %2807 = vmatpush1.msra.mxu0 0.0
    %2808 = vmatprep.subr.mxu0 0.0
    %2809 = vmatpush1.msra.mxu0 0.0
    %2810 = vmatprep.subr.mxu0 0.0
    %2811 = vmatpush1.msra.mxu0 0.0
    %2812 = vmatprep.subr.mxu0 0.0
    %2813 = vmatpush1.msra.mxu0 0.0
    %2814 = vmatprep.subr.mxu0 0.0
    %2815 = vmatpush1.msra.mxu0 0.0
    %2816 = vmatprep.subr.mxu0 0.0
    %2817 = vmatpush1.msra.mxu0 0.0
    %2818 = vmatprep.subr.mxu0 0.0
    %2819 = vmatpush1.msra.mxu0 0.0
    %2820 = vmatprep.mubr.f32.mxu0 0.0
    %2821 = vmatmul.mubr.f32.gmra.mrb[0].mxu0 %v2660
    %v2822 = vpop.f32.mrb[0].mxu0
    %v2823 = vadd.f32 0.0, %v2822
    %v2824 = vpop.f32.mrb[0].mxu0
    %2825 = vdwg.mxu0
    %v2826 = vld [vmem:[#allocation4] sm:$0xff]
    %v2827 = vld [vmem:[#allocation4 + $0x8] sm:$0xff]
    %v2828 = vld [vmem:[#allocation4 + $0x10] sm:$0xff]
    %v2829 = vld [vmem:[#allocation4 + $0x18] sm:$0xff]
    %v2830 = vld [vmem:[#allocation4 + $0x20] sm:$0xff]
    %v2831 = vld [vmem:[#allocation4 + $0x28] sm:$0xff]
    %v2832 = vld [vmem:[#allocation4 + $0x30] sm:$0xff]
    %v2833 = vld [vmem:[#allocation4 + $0x38] sm:$0xff]
    %2834 = vmatprep.subr.mxu0 0.0
    %2835 = vmatpush1.msra.mxu0 %v2830
    %2836 = vmatprep.subr.mxu0 0.0
    %2837 = vmatpush1.msra.mxu0 %v2831
    %2838 = vmatprep.subr.mxu0 0.0
    %2839 = vmatpush1.msra.mxu0 %v2832
    %2840 = vmatprep.subr.mxu0 0.0
    %2841 = vmatpush1.msra.mxu0 %v2833
    %2842 = vmatprep.subr.mxu0 0.0
    %2843 = vmatpush1.msra.mxu0 0.0
    %2844 = vmatprep.subr.mxu0 0.0
    %2845 = vmatpush1.msra.mxu0 0.0
    %2846 = vmatprep.subr.mxu0 0.0
    %2847 = vmatpush1.msra.mxu0 0.0
    %2848 = vmatprep.subr.mxu0 0.0
    %2849 = vmatpush1.msra.mxu0 0.0
    %2850 = vmatprep.subr.mxu0 0.0
    %2851 = vmatpush1.msra.mxu0 0.0
    %2852 = vmatprep.subr.mxu0 0.0
    %2853 = vmatpush1.msra.mxu0 0.0
    %2854 = vmatprep.subr.mxu0 0.0
    %2855 = vmatpush1.msra.mxu0 0.0
    %2856 = vmatprep.subr.mxu0 0.0
    %2857 = vmatpush1.msra.mxu0 0.0
    %2858 = vmatprep.subr.mxu0 0.0
    %2859 = vmatpush1.msra.mxu0 0.0
    %2860 = vmatprep.subr.mxu0 0.0
    %2861 = vmatpush1.msra.mxu0 0.0
    %2862 = vmatprep.subr.mxu0 0.0
    %2863 = vmatpush1.msra.mxu0 0.0
    %2864 = vmatprep.subr.mxu0 0.0
    %2865 = vmatpush1.msra.mxu0 0.0
    %2866 = vmatprep.subr.mxu0 0.0
    %2867 = vmatpush1.msra.mxu0 0.0
    %2868 = vmatprep.subr.mxu0 0.0
    %2869 = vmatpush1.msra.mxu0 0.0
    %2870 = vmatprep.subr.mxu0 0.0
    %2871 = vmatpush1.msra.mxu0 0.0
    %2872 = vmatprep.subr.mxu0 0.0
    %2873 = vmatpush1.msra.mxu0 0.0
    %2874 = vmatprep.subr.mxu0 0.0
    %2875 = vmatpush1.msra.mxu0 0.0
    %2876 = vmatprep.subr.mxu0 0.0
    %2877 = vmatpush1.msra.mxu0 0.0
    %2878 = vmatprep.subr.mxu0 0.0
    %2879 = vmatpush1.msra.mxu0 0.0
    %2880 = vmatprep.subr.mxu0 0.0
    %2881 = vmatpush1.msra.mxu0 0.0
    %2882 = vmatprep.subr.mxu0 0.0
    %2883 = vmatpush1.msra.mxu0 0.0
    %2884 = vmatprep.subr.mxu0 0.0
    %2885 = vmatpush1.msra.mxu0 0.0
    %2886 = vmatprep.subr.mxu0 0.0
    %2887 = vmatpush1.msra.mxu0 0.0
    %2888 = vmatprep.subr.mxu0 0.0
    %2889 = vmatpush1.msra.mxu0 0.0
    %2890 = vmatprep.subr.mxu0 0.0
    %2891 = vmatpush1.msra.mxu0 0.0
    %2892 = vmatprep.subr.mxu0 0.0
    %2893 = vmatpush1.msra.mxu0 0.0
    %2894 = vmatprep.subr.mxu0 0.0
    %2895 = vmatpush1.msra.mxu0 0.0
    %2896 = vmatprep.subr.mxu0 0.0
    %2897 = vmatpush1.msra.mxu0 0.0
    %2898 = vmatprep.mubr.f32.mxu0 0.0
    %2899 = vmatmul.mubr.f32.gmra.mrb[0].mxu0 %v2660
    %v2900 = vpop.f32.mrb[0].mxu0
    %v2901 = vadd.f32 0.0, %v2900
    %v2902 = vpop.f32.mrb[0].mxu0
    %2903 = vdwg.mxu0
    %v2905 = vsel %vm55, %v2751, 0
    %2907 = vmatprep.subr.mxu0 0.0
    %2908 = vmatpush1.msra.mxu0 %v2826
    %2909 = vmatprep.subr.mxu0 0.0
    %2910 = vmatpush1.msra.mxu0 %v2827
    %2911 = vmatprep.subr.mxu0 0.0
    %2912 = vmatpush1.msra.mxu0 %v2828
    %2913 = vmatprep.subr.mxu0 0.0
    %2914 = vmatpush1.msra.mxu0 %v2829
    %2915 = vmatprep.subr.mxu0 0.0
    %2916 = vmatpush1.msra.mxu0 0.0
    %2917 = vmatprep.subr.mxu0 0.0
    %2918 = vmatpush1.msra.mxu0 0.0
    %2919 = vmatprep.subr.mxu0 0.0
    %2920 = vmatpush1.msra.mxu0 0.0
    %2921 = vmatprep.subr.mxu0 0.0
    %2922 = vmatpush1.msra.mxu0 0.0
    %2923 = vmatprep.subr.mxu0 0.0
    %2924 = vmatpush1.msra.mxu0 0.0
    %2925 = vmatprep.subr.mxu0 0.0
    %2926 = vmatpush1.msra.mxu0 0.0
    %2927 = vmatprep.subr.mxu0 0.0
    %2928 = vmatpush1.msra.mxu0 0.0
    %2929 = vmatprep.subr.mxu0 0.0
    %2930 = vmatpush1.msra.mxu0 0.0
    %2931 = vmatprep.subr.mxu0 0.0
    %2932 = vmatpush1.msra.mxu0 0.0
    %2933 = vmatprep.subr.mxu0 0.0
    %2934 = vmatpush1.msra.mxu0 0.0
    %2935 = vmatprep.subr.mxu0 0.0
    %2936 = vmatpush1.msra.mxu0 0.0
    %2937 = vmatprep.subr.mxu0 0.0
    %2938 = vmatpush1.msra.mxu0 0.0
    %2939 = vmatprep.subr.mxu0 0.0
    %2940 = vmatpush1.msra.mxu0 0.0
    %2941 = vmatprep.subr.mxu0 0.0
    %2942 = vmatpush1.msra.mxu0 0.0
    %2943 = vmatprep.subr.mxu0 0.0
    %2944 = vmatpush1.msra.mxu0 0.0
    %2945 = vmatprep.subr.mxu0 0.0
    %2946 = vmatpush1.msra.mxu0 0.0
    %2947 = vmatprep.subr.mxu0 0.0
    %2948 = vmatpush1.msra.mxu0 0.0
    %2949 = vmatprep.subr.mxu0 0.0
    %2950 = vmatpush1.msra.mxu0 0.0
    %2951 = vmatprep.subr.mxu0 0.0
    %2952 = vmatpush1.msra.mxu0 0.0
    %2953 = vmatprep.subr.mxu0 0.0
    %2954 = vmatpush1.msra.mxu0 0.0
    %2955 = vmatprep.subr.mxu0 0.0
    %2956 = vmatpush1.msra.mxu0 0.0
    %2957 = vmatprep.subr.mxu0 0.0
    %2958 = vmatpush1.msra.mxu0 0.0
    %2959 = vmatprep.subr.mxu0 0.0
    %2960 = vmatpush1.msra.mxu0 0.0
    %2961 = vmatprep.subr.mxu0 0.0
    %2962 = vmatpush1.msra.mxu0 0.0
    %2963 = vmatprep.subr.mxu0 0.0
    %2964 = vmatpush1.msra.mxu0 0.0
    %2965 = vmatprep.subr.mxu0 0.0
    %2966 = vmatpush1.msra.mxu0 0.0
    %2967 = vmatprep.subr.mxu0 0.0
    %2968 = vmatpush1.msra.mxu0 0.0
    %2969 = vmatprep.subr.mxu0 0.0
    %2970 = vmatpush1.msra.mxu0 0.0
    %2971 = vmatprep.mubr.f32.mxu0 0.0
    %2972 = vmatmul.mubr.f32.gmra.mrb[0].mxu0 %v2905
    %v2973 = vpop.f32.mrb[0].mxu0
    %v2974 = vadd.f32 %v2901, %v2973
    %v2975 = vpop.f32.mrb[0].mxu0
    %2976 = vdwg.mxu0
    %v2977 = vld [vmem:[#allocation4 + $0xe0] sm:$0x1]
    %v2978 = vadd.f32 %v2974, %v2977
    %v2979 = vsel %vm282, %v2978, -inf
    %2980 = vmax.xlane.f32.xlu0 %v2979
    %v2981 = vpop.xlane.xlu0 %2980
    %v2982 = vsub.f32 %v2978, %v2981
    %v2983 = vmul.f32 %v2982, 1.442695
    %v2984 = vpow.pop %v2983
    %v2985 = vsel %vm282, %v2984, 0.0
    %2986 = vadd.xlane.f32.xlu0 %v2985
    %v2987 = vpop.xlane.xlu0 %2986
    %v2988 = vrcp.pop %v2987
    %v2989 = vmul.f32 %v2987, %v2988
    %v2990 = vsub.f32 2.0, %v2989
    %v2991 = vmul.f32 %v2988, %v2990
    %v2992 = vmul.f32 %v2984, %v2991
    %v2994 = vsel %vm55, %v2992, 0
    %2996 = vmatprep.subr.mxu0 0.0
    %2997 = vmatpush1.msra.mxu0 %v43
    %2998 = vmatprep.subr.mxu0 0.0
    %2999 = vmatpush1.msra.mxu0 %v44
    %3000 = vmatprep.subr.mxu0 0.0
    %3001 = vmatpush1.msra.mxu0 %v45
    %3002 = vmatprep.subr.mxu0 0.0
    %3003 = vmatpush1.msra.mxu0 %v46
    %3004 = vmatprep.subr.mxu0 0.0
    %3005 = vmatpush1.msra.mxu0 0.0
    %3006 = vmatprep.subr.mxu0 0.0
    %3007 = vmatpush1.msra.mxu0 0.0
    %3008 = vmatprep.subr.mxu0 0.0
    %3009 = vmatpush1.msra.mxu0 0.0
    %3010 = vmatprep.subr.mxu0 0.0
    %3011 = vmatpush1.msra.mxu0 0.0
    %3012 = vmatprep.subr.mxu0 0.0
    %3013 = vmatpush1.msra.mxu0 0.0
    %3014 = vmatprep.subr.mxu0 0.0
    %3015 = vmatpush1.msra.mxu0 0.0
    %3016 = vmatprep.subr.mxu0 0.0
    %3017 = vmatpush1.msra.mxu0 0.0
    %3018 = vmatprep.subr.mxu0 0.0
    %3019 = vmatpush1.msra.mxu0 0.0
    %3020 = vmatprep.subr.mxu0 0.0
    %3021 = vmatpush1.msra.mxu0 0.0
    %3022 = vmatprep.subr.mxu0 0.0
    %3023 = vmatpush1.msra.mxu0 0.0
    %3024 = vmatprep.subr.mxu0 0.0
    %3025 = vmatpush1.msra.mxu0 0.0
    %3026 = vmatprep.subr.mxu0 0.0
    %3027 = vmatpush1.msra.mxu0 0.0
    %3028 = vmatprep.subr.mxu0 0.0
    %3029 = vmatpush1.msra.mxu0 0.0
    %3030 = vmatprep.subr.mxu0 0.0
    %3031 = vmatpush1.msra.mxu0 0.0
    %3032 = vmatprep.subr.mxu0 0.0
    %3033 = vmatpush1.msra.mxu0 0.0
    %3034 = vmatprep.subr.mxu0 0.0
    %3035 = vmatpush1.msra.mxu0 0.0
    %3036 = vmatprep.subr.mxu0 0.0
    %3037 = vmatpush1.msra.mxu0 0.0
    %3038 = vmatprep.subr.mxu0 0.0
    %3039 = vmatpush1.msra.mxu0 0.0
    %3040 = vmatprep.subr.mxu0 0.0
    %3041 = vmatpush1.msra.mxu0 0.0
    %3042 = vmatprep.subr.mxu0 0.0
    %3043 = vmatpush1.msra.mxu0 0.0
    %3044 = vmatprep.subr.mxu0 0.0
    %3045 = vmatpush1.msra.mxu0 0.0
    %3046 = vmatprep.subr.mxu0 0.0
    %3047 = vmatpush1.msra.mxu0 0.0
    %3048 = vmatprep.subr.mxu0 0.0
    %3049 = vmatpush1.msra.mxu0 0.0
    %3050 = vmatprep.subr.mxu0 0.0
    %3051 = vmatpush1.msra.mxu0 0.0
    %3052 = vmatprep.subr.mxu0 0.0
    %3053 = vmatpush1.msra.mxu0 0.0
    %3054 = vmatprep.subr.mxu0 0.0
    %3055 = vmatpush1.msra.mxu0 0.0
    %3056 = vmatprep.subr.mxu0 0.0
    %3057 = vmatpush1.msra.mxu0 0.0
    %3058 = vmatprep.subr.mxu0 0.0
    %3059 = vmatpush1.msra.mxu0 0.0
    %3060 = vmatprep.mubr.f32.mxu0 0.0
    %3061 = vmatmul.mubr.f32.gmra.mrb[0].mxu0 %v2994
    %v3062 = vpop.f32.mrb[0].mxu0
    %v3063 = vadd.f32 0.0, %v3062
    %v3064 = vpop.f32.mrb[0].mxu0
    %3065 = vdwg.mxu0
    %v3066 = vld [vmem:[#allocation4 + $0x40] sm:$0xff]
    %v3067 = vld [vmem:[#allocation4 + $0x48] sm:$0xff]
    %v3068 = vld [vmem:[#allocation4 + $0x50] sm:$0xff]
    %v3069 = vld [vmem:[#allocation4 + $0x58] sm:$0xff]
    %v3070 = vld [vmem:[#allocation4 + $0x60] sm:$0xff]
    %v3071 = vld [vmem:[#allocation4 + $0x68] sm:$0xff]
    %v3072 = vld [vmem:[#allocation4 + $0x70] sm:$0xff]
    %v3073 = vld [vmem:[#allocation4 + $0x78] sm:$0xff]
    %v3075 = vsel %vm55, %v3063, 0
    %3077 = vmatprep.subr.mxu0 0.0
    %3078 = vmatpush1.msra.mxu0 %v3070
    %3079 = vmatprep.subr.mxu0 0.0
    %3080 = vmatpush1.msra.mxu0 %v3071
    %3081 = vmatprep.subr.mxu0 0.0
    %3082 = vmatpush1.msra.mxu0 %v3072
    %3083 = vmatprep.subr.mxu0 0.0
    %3084 = vmatpush1.msra.mxu0 %v3073
    %3085 = vmatprep.subr.mxu0 0.0
    %3086 = vmatpush1.msra.mxu0 0.0
    %3087 = vmatprep.subr.mxu0 0.0
    %3088 = vmatpush1.msra.mxu0 0.0
    %3089 = vmatprep.subr.mxu0 0.0
    %3090 = vmatpush1.msra.mxu0 0.0
    %3091 = vmatprep.subr.mxu0 0.0
    %3092 = vmatpush1.msra.mxu0 0.0
    %3093 = vmatprep.subr.mxu0 0.0
    %3094 = vmatpush1.msra.mxu0 0.0
    %3095 = vmatprep.subr.mxu0 0.0
    %3096 = vmatpush1.msra.mxu0 0.0
    %3097 = vmatprep.subr.mxu0 0.0
    %3098 = vmatpush1.msra.mxu0 0.0
    %3099 = vmatprep.subr.mxu0 0.0
    %3100 = vmatpush1.msra.mxu0 0.0
    %3101 = vmatprep.subr.mxu0 0.0
    %3102 = vmatpush1.msra.mxu0 0.0
    %3103 = vmatprep.subr.mxu0 0.0
    %3104 = vmatpush1.msra.mxu0 0.0
    %3105 = vmatprep.subr.mxu0 0.0
    %3106 = vmatpush1.msra.mxu0 0.0
    %3107 = vmatprep.subr.mxu0 0.0
    %3108 = vmatpush1.msra.mxu0 0.0
    %3109 = vmatprep.subr.mxu0 0.0
    %3110 = vmatpush1.msra.mxu0 0.0
    %3111 = vmatprep.subr.mxu0 0.0
    %3112 = vmatpush1.msra.mxu0 0.0
    %3113 = vmatprep.subr.mxu0 0.0
    %3114 = vmatpush1.msra.mxu0 0.0
    %3115 = vmatprep.subr.mxu0 0.0
    %3116 = vmatpush1.msra.mxu0 0.0
    %3117 = vmatprep.subr.mxu0 0.0
    %3118 = vmatpush1.msra.mxu0 0.0
    %3119 = vmatprep.subr.mxu0 0.0
    %3120 = vmatpush1.msra.mxu0 0.0
    %3121 = vmatprep.subr.mxu0 0.0
    %3122 = vmatpush1.msra.mxu0 0.0
    %3123 = vmatprep.subr.mxu0 0.0
    %3124 = vmatpush1.msra.mxu0 0.0
    %3125 = vmatprep.subr.mxu0 0.0
    %3126 = vmatpush1.msra.mxu0 0.0
    %3127 = vmatprep.subr.mxu0 0.0
    %3128 = vmatpush1.msra.mxu0 0.0
    %3129 = vmatprep.subr.mxu0 0.0
    %3130 = vmatpush1.msra.mxu0 0.0
    %3131 = vmatprep.subr.mxu0 0.0
    %3132 = vmatpush1.msra.mxu0 0.0
    %3133 = vmatprep.subr.mxu0 0.0
    %3134 = vmatpush1.msra.mxu0 0.0
    %3135 = vmatprep.subr.mxu0 0.0
    %3136 = vmatpush1.msra.mxu0 0.0
    %3137 = vmatprep.subr.mxu0 0.0
    %3138 = vmatpush1.msra.mxu0 0.0
    %3139 = vmatprep.subr.mxu0 0.0
    %3140 = vmatpush1.msra.mxu0 0.0
    %3141 = vmatprep.mubr.f32.mxu0 0.0
    %3142 = vmatmul.mubr.f32.gmra.mrb[0].mxu0 %v3075
    %v3143 = vpop.f32.mrb[0].mxu0
    %v3144 = vadd.f32 0.0, %v3143
    %v3145 = vpop.f32.mrb[0].mxu0
    %3146 = vdwg.mxu0
    %3147 = vmatprep.subr.mxu0 0.0
    %3148 = vmatpush1.msra.mxu0 %v3066
    %3149 = vmatprep.subr.mxu0 0.0
    %3150 = vmatpush1.msra.mxu0 %v3067
    %3151 = vmatprep.subr.mxu0 0.0
    %3152 = vmatpush1.msra.mxu0 %v3068
    %3153 = vmatprep.subr.mxu0 0.0
    %3154 = vmatpush1.msra.mxu0 %v3069
    %3155 = vmatprep.subr.mxu0 0.0
    %3156 = vmatpush1.msra.mxu0 0.0
    %3157 = vmatprep.subr.mxu0 0.0
    %3158 = vmatpush1.msra.mxu0 0.0
    %3159 = vmatprep.subr.mxu0 0.0
    %3160 = vmatpush1.msra.mxu0 0.0
    %3161 = vmatprep.subr.mxu0 0.0
    %3162 = vmatpush1.msra.mxu0 0.0
    %3163 = vmatprep.subr.mxu0 0.0
    %3164 = vmatpush1.msra.mxu0 0.0
    %3165 = vmatprep.subr.mxu0 0.0
    %3166 = vmatpush1.msra.mxu0 0.0
    %3167 = vmatprep.subr.mxu0 0.0
    %3168 = vmatpush1.msra.mxu0 0.0
    %3169 = vmatprep.subr.mxu0 0.0
    %3170 = vmatpush1.msra.mxu0 0.0
    %3171 = vmatprep.subr.mxu0 0.0
    %3172 = vmatpush1.msra.mxu0 0.0
    %3173 = vmatprep.subr.mxu0 0.0
    %3174 = vmatpush1.msra.mxu0 0.0
    %3175 = vmatprep.subr.mxu0 0.0
    %3176 = vmatpush1.msra.mxu0 0.0
    %3177 = vmatprep.subr.mxu0 0.0
    %3178 = vmatpush1.msra.mxu0 0.0
    %3179 = vmatprep.subr.mxu0 0.0
    %3180 = vmatpush1.msra.mxu0 0.0
    %3181 = vmatprep.subr.mxu0 0.0
    %3182 = vmatpush1.msra.mxu0 0.0
    %3183 = vmatprep.subr.mxu0 0.0
    %3184 = vmatpush1.msra.mxu0 0.0
    %3185 = vmatprep.subr.mxu0 0.0
    %3186 = vmatpush1.msra.mxu0 0.0
    %3187 = vmatprep.subr.mxu0 0.0
    %3188 = vmatpush1.msra.mxu0 0.0
    %3189 = vmatprep.subr.mxu0 0.0
    %3190 = vmatpush1.msra.mxu0 0.0
    %3191 = vmatprep.subr.mxu0 0.0
    %3192 = vmatpush1.msra.mxu0 0.0
    %3193 = vmatprep.subr.mxu0 0.0
    %3194 = vmatpush1.msra.mxu0 0.0
    %3195 = vmatprep.subr.mxu0 0.0
    %3196 = vmatpush1.msra.mxu0 0.0
    %3197 = vmatprep.subr.mxu0 0.0
    %3198 = vmatpush1.msra.mxu0 0.0
    %3199 = vmatprep.subr.mxu0 0.0
    %3200 = vmatpush1.msra.mxu0 0.0
    %3201 = vmatprep.subr.mxu0 0.0
    %3202 = vmatpush1.msra.mxu0 0.0
    %3203 = vmatprep.subr.mxu0 0.0
    %3204 = vmatpush1.msra.mxu0 0.0
    %3205 = vmatprep.subr.mxu0 0.0
    %3206 = vmatpush1.msra.mxu0 0.0
    %3207 = vmatprep.subr.mxu0 0.0
    %3208 = vmatpush1.msra.mxu0 0.0
    %3209 = vmatprep.subr.mxu0 0.0
    %3210 = vmatpush1.msra.mxu0 0.0
    %3211 = vmatprep.mubr.f32.mxu0 0.0
    %3212 = vmatmul.mubr.f32.gmra.mrb[0].mxu0 %v2905
    %v3213 = vpop.f32.mrb[0].mxu0
    %v3214 = vadd.f32 %v3144, %v3213
    %v3215 = vpop.f32.mrb[0].mxu0
    %3216 = vdwg.mxu0
    %v3217 = vld [vmem:[#allocation4 + $0xe1] sm:$0x1]
    %v3218 = vadd.f32 %v3214, %v3217
    %v3219 = vmax.f32 %v3218, 0.0
    %v3220 = vld [vmem:[#allocation4 + $0x80] sm:$0xff]
    %v3221 = vld [vmem:[#allocation4 + $0x88] sm:$0xff]
    %v3222 = vld [vmem:[#allocation4 + $0x90] sm:$0xff]
    %v3223 = vld [vmem:[#allocation4 + $0x98] sm:$0xff]
    %v3225 = vsel %vm55, %v3219, 0
    %3227 = vmatprep.subr.mxu0 0.0
    %3228 = vmatpush1.msra.mxu0 %v3220
    %3229 = vmatprep.subr.mxu0 0.0
    %3230 = vmatpush1.msra.mxu0 %v3221
    %3231 = vmatprep.subr.mxu0 0.0
    %3232 = vmatpush1.msra.mxu0 %v3222
    %3233 = vmatprep.subr.mxu0 0.0
    %3234 = vmatpush1.msra.mxu0 %v3223
    %3235 = vmatprep.subr.mxu0 0.0
    %3236 = vmatpush1.msra.mxu0 0.0
    %3237 = vmatprep.subr.mxu0 0.0
    %3238 = vmatpush1.msra.mxu0 0.0
    %3239 = vmatprep.subr.mxu0 0.0
    %3240 = vmatpush1.msra.mxu0 0.0
    %3241 = vmatprep.subr.mxu0 0.0
    %3242 = vmatpush1.msra.mxu0 0.0
    %3243 = vmatprep.subr.mxu0 0.0
    %3244 = vmatpush1.msra.mxu0 0.0
    %3245 = vmatprep.subr.mxu0 0.0
    %3246 = vmatpush1.msra.mxu0 0.0
    %3247 = vmatprep.subr.mxu0 0.0
    %3248 = vmatpush1.msra.mxu0 0.0
    %3249 = vmatprep.subr.mxu0 0.0
    %3250 = vmatpush1.msra.mxu0 0.0
    %3251 = vmatprep.subr.mxu0 0.0
    %3252 = vmatpush1.msra.mxu0 0.0
    %3253 = vmatprep.subr.mxu0 0.0
    %3254 = vmatpush1.msra.mxu0 0.0
    %3255 = vmatprep.subr.mxu0 0.0
    %3256 = vmatpush1.msra.mxu0 0.0
    %3257 = vmatprep.subr.mxu0 0.0
    %3258 = vmatpush1.msra.mxu0 0.0
    %3259 = vmatprep.subr.mxu0 0.0
    %3260 = vmatpush1.msra.mxu0 0.0
    %3261 = vmatprep.subr.mxu0 0.0
    %3262 = vmatpush1.msra.mxu0 0.0
    %3263 = vmatprep.subr.mxu0 0.0
    %3264 = vmatpush1.msra.mxu0 0.0
    %3265 = vmatprep.subr.mxu0 0.0
    %3266 = vmatpush1.msra.mxu0 0.0
    %3267 = vmatprep.subr.mxu0 0.0
    %3268 = vmatpush1.msra.mxu0 0.0
    %3269 = vmatprep.subr.mxu0 0.0
    %3270 = vmatpush1.msra.mxu0 0.0
    %3271 = vmatprep.subr.mxu0 0.0
    %3272 = vmatpush1.msra.mxu0 0.0
    %3273 = vmatprep.subr.mxu0 0.0
    %3274 = vmatpush1.msra.mxu0 0.0
    %3275 = vmatprep.subr.mxu0 0.0
    %3276 = vmatpush1.msra.mxu0 0.0
    %3277 = vmatprep.subr.mxu0 0.0
    %3278 = vmatpush1.msra.mxu0 0.0
    %3279 = vmatprep.subr.mxu0 0.0
    %3280 = vmatpush1.msra.mxu0 0.0
    %3281 = vmatprep.subr.mxu0 0.0
    %3282 = vmatpush1.msra.mxu0 0.0
    %3283 = vmatprep.subr.mxu0 0.0
    %3284 = vmatpush1.msra.mxu0 0.0
    %3285 = vmatprep.subr.mxu0 0.0
    %3286 = vmatpush1.msra.mxu0 0.0
    %3287 = vmatprep.subr.mxu0 0.0
    %3288 = vmatpush1.msra.mxu0 0.0
    %3289 = vmatprep.subr.mxu0 0.0
    %3290 = vmatpush1.msra.mxu0 0.0
    %3291 = vmatprep.mubr.f32.mxu0 0.0
    %3292 = vmatmul.mubr.f32.gmra.mrb[0].mxu0 %v3225
    %v3293 = vpop.f32.mrb[0].mxu0
    %v3294 = vadd.f32 %v2823, %v3293
    %v3295 = vpop.f32.mrb[0].mxu0
    %3296 = vdwg.mxu0
    %v3297 = vld [vmem:[#allocation4 + $0xe2] sm:$0x1]
    %v3298 = vadd.f32 %v3294, %v3297
    %v3299 = vxor.u32 %v3298, 2147483648
    %v3300 = vmul.f32 %v3299, 1.442695
    %v3301 = vpow.pop %v3300
    %v3302 = vadd.f32 %v3301, 1.0
    %v3303 = vrcp.pop %v3302
    %v3304 = vmul.f32 1.0, %v3303
    %3306 = vrot.lane.b32.xlu0 %v3298, 32
    %v3307 = vpop.permute.xlu0 %3306
    %v3309 = vmul.f32 %v3304, %v3307
    %3311 = vrot.lane.b32.xlu0 %v3309, 64
    %v3312 = vpop.permute.xlu0 %3311
    %v3314 = vadd.f32 %v3298, %v3312
    %v3315 = vtanh.pop %v3314
    %v3316 = vsub.f32 1.0, %v3304
    %3318 = vrot.lane.b32.xlu0 %v3315, 96
    %v3319 = vpop.permute.xlu0 %3318
    %v3321 = vmul.f32 %v3316, %v3319
    %v3322 = vmul.f32 %v3304, %v2651
    %v3323 = vadd.f32 %v3321, %v3322
    %v3324 = vld [vmem:[#allocation4 + $0xc0] sm:$0xff]
    %v3325 = vld [vmem:[#allocation4 + $0xc8] sm:$0xff]
    %v3326 = vld [vmem:[#allocation4 + $0xd0] sm:$0xff]
    %v3327 = vld [vmem:[#allocation4 + $0xd8] sm:$0xff]
    %v3328 = vld [vmem:[#allocation4 + $0xe3] sm:$0x1]
    %3330 = vrot.lane.b32.xlu0 %v3323, 96
    %v3331 = vpop.permute.xlu0 %3330
    %v3332 = vsel %vm55, %v3331, 0
    %3334 = vmatprep.subr.mxu0 0.0
    %3335 = vmatpush1.msra.mxu0 %v3324
    %3336 = vmatprep.subr.mxu0 0.0
    %3337 = vmatpush1.msra.mxu0 %v3325
    %3338 = vmatprep.subr.mxu0 0.0
    %3339 = vmatpush1.msra.mxu0 %v3326
    %3340 = vmatprep.subr.mxu0 0.0
    %3341 = vmatpush1.msra.mxu0 %v3327
    %3342 = vmatprep.subr.mxu0 0.0
    %3343 = vmatpush1.msra.mxu0 0.0
    %3344 = vmatprep.subr.mxu0 0.0
    %3345 = vmatpush1.msra.mxu0 0.0
    %3346 = vmatprep.subr.mxu0 0.0
    %3347 = vmatpush1.msra.mxu0 0.0
    %3348 = vmatprep.subr.mxu0 0.0
    %3349 = vmatpush1.msra.mxu0 0.0
    %3350 = vmatprep.subr.mxu0 0.0
    %3351 = vmatpush1.msra.mxu0 0.0
    %3352 = vmatprep.subr.mxu0 0.0
    %3353 = vmatpush1.msra.mxu0 0.0
    %3354 = vmatprep.subr.mxu0 0.0
    %3355 = vmatpush1.msra.mxu0 0.0
    %3356 = vmatprep.subr.mxu0 0.0
    %3357 = vmatpush1.msra.mxu0 0.0
    %3358 = vmatprep.subr.mxu0 0.0
    %3359 = vmatpush1.msra.mxu0 0.0
    %3360 = vmatprep.subr.mxu0 0.0
    %3361 = vmatpush1.msra.mxu0 0.0
    %3362 = vmatprep.subr.mxu0 0.0
    %3363 = vmatpush1.msra.mxu0 0.0
    %3364 = vmatprep.subr.mxu0 0.0
    %3365 = vmatpush1.msra.mxu0 0.0
    %3366 = vmatprep.subr.mxu0 0.0
    %3367 = vmatpush1.msra.mxu0 0.0
    %3368 = vmatprep.subr.mxu0 0.0
    %3369 = vmatpush1.msra.mxu0 0.0
    %3370 = vmatprep.subr.mxu0 0.0
    %3371 = vmatpush1.msra.mxu0 0.0
    %3372 = vmatprep.subr.mxu0 0.0
    %3373 = vmatpush1.msra.mxu0 0.0
    %3374 = vmatprep.subr.mxu0 0.0
    %3375 = vmatpush1.msra.mxu0 0.0
    %3376 = vmatprep.subr.mxu0 0.0
    %3377 = vmatpush1.msra.mxu0 0.0
    %3378 = vmatprep.subr.mxu0 0.0
    %3379 = vmatpush1.msra.mxu0 0.0
    %3380 = vmatprep.subr.mxu0 0.0
    %3381 = vmatpush1.msra.mxu0 0.0
    %3382 = vmatprep.subr.mxu0 0.0
    %3383 = vmatpush1.msra.mxu0 0.0
    %3384 = vmatprep.subr.mxu0 0.0
    %3385 = vmatpush1.msra.mxu0 0.0
    %3386 = vmatprep.subr.mxu0 0.0
    %3387 = vmatpush1.msra.mxu0 0.0
    %3388 = vmatprep.subr.mxu0 0.0
    %3389 = vmatpush1.msra.mxu0 0.0
    %3390 = vmatprep.subr.mxu0 0.0
    %3391 = vmatpush1.msra.mxu0 0.0
    %3392 = vmatprep.subr.mxu0 0.0
    %3393 = vmatpush1.msra.mxu0 0.0
    %3394 = vmatprep.subr.mxu0 0.0
    %3395 = vmatpush1.msra.mxu0 0.0
    %3396 = vmatprep.subr.mxu0 0.0
    %3397 = vmatpush1.msra.mxu0 0.0
    %3398 = vmatprep.mubr.f32.mxu0 0.0
    %3399 = vmatmul.mubr.f32.gmra.mrb[0].mxu0 %v3332
    %v3400 = vpop.f32.mrb[0].mxu0
    %v3401 = vadd.f32 %v3328, %v3400
    %v3402 = vpop.f32.mrb[0].mxu0
    %3403 = vdwg.mxu0
    %v3404 = vsel %vm715, %v3401, -inf
    %3405 = vmax.xlane.f32.xlu0 %v3404
    %v3406 = vpop.xlane.xlu0 %3405
    %v3407 = vsub.f32 %v3401, %v3406
    %v3408 = vmul.f32 %v3407, 1.442695
    %v3409 = vpow.pop %v3408
    %v3410 = vsel %vm715, %v3409, 0.0
    %3411 = vadd.xlane.f32.xlu0 %v3410
    %v3412 = vpop.xlane.xlu0 %3411
    %v3413 = vlog2.pop %v3412
    %v3414 = vmul.f32 %v3413, 0.6931472
    %v3415 = vadd.f32 %v3414, %v3406
    %v3416 = vsub.f32 %v3401, %v3415
    %3417 = vst.msk [vmem:[#allocation7 + $0x4] sm:$0x1] %vm715, %v3416
    %3419 = vst.msk [vmem:[#allocation8 + $0x4] sm:$0x1] %vm282, %v3331
    %3420 = vst.msk [vmem:[#allocation10 + $0x4] sm:$0x1] %vm282, %v2992
    %s3421 = sld [smem:[#allocation3 + $0x5]]
    %s3422 = scalar_lea.vmem %s1, %s3421
    %v3423 = vld [vmem:[%s3422] sm:$0x1]
    %v3424 = vld [vmem:[#allocation4 + $0xa0] sm:$0xff]
    %v3425 = vld [vmem:[#allocation4 + $0xa8] sm:$0xff]
    %v3426 = vld [vmem:[#allocation4 + $0xb0] sm:$0xff]
    %v3427 = vld [vmem:[#allocation4 + $0xb8] sm:$0xff]
    %3428 = vmatprep.subr.mxu0 0.0
    %3429 = vmatpush1.msra.mxu0 %v3424
    %3430 = vmatprep.subr.mxu0 0.0
    %3431 = vmatpush1.msra.mxu0 %v3425
    %3432 = vmatprep.subr.mxu0 0.0
    %3433 = vmatpush1.msra.mxu0 %v3426
    %3434 = vmatprep.subr.mxu0 0.0
    %3435 = vmatpush1.msra.mxu0 %v3427
    %3436 = vmatprep.subr.mxu0 0.0
    %3437 = vmatpush1.msra.mxu0 0.0
    %3438 = vmatprep.subr.mxu0 0.0
    %3439 = vmatpush1.msra.mxu0 0.0
    %3440 = vmatprep.subr.mxu0 0.0
    %3441 = vmatpush1.msra.mxu0 0.0
    %3442 = vmatprep.subr.mxu0 0.0
    %3443 = vmatpush1.msra.mxu0 0.0
    %3444 = vmatprep.subr.mxu0 0.0
    %3445 = vmatpush1.msra.mxu0 0.0
    %3446 = vmatprep.subr.mxu0 0.0
    %3447 = vmatpush1.msra.mxu0 0.0
    %3448 = vmatprep.subr.mxu0 0.0
    %3449 = vmatpush1.msra.mxu0 0.0
    %3450 = vmatprep.subr.mxu0 0.0
    %3451 = vmatpush1.msra.mxu0 0.0
    %3452 = vmatprep.subr.mxu0 0.0
    %3453 = vmatpush1.msra.mxu0 0.0
    %3454 = vmatprep.subr.mxu0 0.0
    %3455 = vmatpush1.msra.mxu0 0.0
    %3456 = vmatprep.subr.mxu0 0.0
    %3457 = vmatpush1.msra.mxu0 0.0
    %3458 = vmatprep.subr.mxu0 0.0
    %3459 = vmatpush1.msra.mxu0 0.0
    %3460 = vmatprep.subr.mxu0 0.0
    %3461 = vmatpush1.msra.mxu0 0.0
    %3462 = vmatprep.subr.mxu0 0.0
    %3463 = vmatpush1.msra.mxu0 0.0
    %3464 = vmatprep.subr.mxu0 0.0
    %3465 = vmatpush1.msra.mxu0 0.0
    %3466 = vmatprep.subr.mxu0 0.0
    %3467 = vmatpush1.msra.mxu0 0.0
    %3468 = vmatprep.subr.mxu0 0.0
    %3469 = vmatpush1.msra.mxu0 0.0
    %3470 = vmatprep.subr.mxu0 0.0
    %3471 = vmatpush1.msra.mxu0 0.0
    %3472 = vmatprep.subr.mxu0 0.0
    %3473 = vmatpush1.msra.mxu0 0.0
    %3474 = vmatprep.subr.mxu0 0.0
    %3475 = vmatpush1.msra.mxu0 0.0
    %3476 = vmatprep.subr.mxu0 0.0
    %3477 = vmatpush1.msra.mxu0 0.0
    %3478 = vmatprep.subr.mxu0 0.0
    %3479 = vmatpush1.msra.mxu0 0.0
    %3480 = vmatprep.subr.mxu0 0.0
    %3481 = vmatpush1.msra.mxu0 0.0
    %3482 = vmatprep.subr.mxu0 0.0
    %3483 = vmatpush1.msra.mxu0 0.0
    %3484 = vmatprep.subr.mxu0 0.0
    %3485 = vmatpush1.msra.mxu0 0.0
    %3486 = vmatprep.subr.mxu0 0.0
    %3487 = vmatpush1.msra.mxu0 0.0
    %3488 = vmatprep.subr.mxu0 0.0
    %3489 = vmatpush1.msra.mxu0 0.0
    %3490 = vmatprep.subr.mxu0 0.0
    %3491 = vmatpush1.msra.mxu0 0.0
    %3492 = vmatprep.mubr.f32.mxu0 0.0
    %3493 = vmatmul.mubr.f32.gmra.mrb[0].mxu0 %v3332
    %v3494 = vpop.f32.mrb[0].mxu0
    %v3495 = vadd.f32 0.0, %v3494
    %v3496 = vpop.f32.mrb[0].mxu0
    %3497 = vdwg.mxu0
    %v3498 = vld [vmem:[#allocation4] sm:$0xff]
    %v3499 = vld [vmem:[#allocation4 + $0x8] sm:$0xff]
    %v3500 = vld [vmem:[#allocation4 + $0x10] sm:$0xff]
    %v3501 = vld [vmem:[#allocation4 + $0x18] sm:$0xff]
    %v3502 = vld [vmem:[#allocation4 + $0x20] sm:$0xff]
    %v3503 = vld [vmem:[#allocation4 + $0x28] sm:$0xff]
    %v3504 = vld [vmem:[#allocation4 + $0x30] sm:$0xff]
    %v3505 = vld [vmem:[#allocation4 + $0x38] sm:$0xff]
    %3506 = vmatprep.subr.mxu0 0.0
    %3507 = vmatpush1.msra.mxu0 %v3502
    %3508 = vmatprep.subr.mxu0 0.0
    %3509 = vmatpush1.msra.mxu0 %v3503
    %3510 = vmatprep.subr.mxu0 0.0
    %3511 = vmatpush1.msra.mxu0 %v3504
    %3512 = vmatprep.subr.mxu0 0.0
    %3513 = vmatpush1.msra.mxu0 %v3505
    %3514 = vmatprep.subr.mxu0 0.0
    %3515 = vmatpush1.msra.mxu0 0.0
    %3516 = vmatprep.subr.mxu0 0.0
    %3517 = vmatpush1.msra.mxu0 0.0
    %3518 = vmatprep.subr.mxu0 0.0
    %3519 = vmatpush1.msra.mxu0 0.0
    %3520 = vmatprep.subr.mxu0 0.0
    %3521 = vmatpush1.msra.mxu0 0.0
    %3522 = vmatprep.subr.mxu0 0.0
    %3523 = vmatpush1.msra.mxu0 0.0
    %3524 = vmatprep.subr.mxu0 0.0
    %3525 = vmatpush1.msra.mxu0 0.0
    %3526 = vmatprep.subr.mxu0 0.0
    %3527 = vmatpush1.msra.mxu0 0.0
    %3528 = vmatprep.subr.mxu0 0.0
    %3529 = vmatpush1.msra.mxu0 0.0
    %3530 = vmatprep.subr.mxu0 0.0
    %3531 = vmatpush1.msra.mxu0 0.0
    %3532 = vmatprep.subr.mxu0 0.0
    %3533 = vmatpush1.msra.mxu0 0.0
    %3534 = vmatprep.subr.mxu0 0.0
    %3535 = vmatpush1.msra.mxu0 0.0
    %3536 = vmatprep.subr.mxu0 0.0
    %3537 = vmatpush1.msra.mxu0 0.0
    %3538 = vmatprep.subr.mxu0 0.0
    %3539 = vmatpush1.msra.mxu0 0.0
    %3540 = vmatprep.subr.mxu0 0.0
    %3541 = vmatpush1.msra.mxu0 0.0
    %3542 = vmatprep.subr.mxu0 0.0
    %3543 = vmatpush1.msra.mxu0 0.0
    %3544 = vmatprep.subr.mxu0 0.0
    %3545 = vmatpush1.msra.mxu0 0.0
    %3546 = vmatprep.subr.mxu0 0.0
    %3547 = vmatpush1.msra.mxu0 0.0
    %3548 = vmatprep.subr.mxu0 0.0
    %3549 = vmatpush1.msra.mxu0 0.0
    %3550 = vmatprep.subr.mxu0 0.0
    %3551 = vmatpush1.msra.mxu0 0.0
    %3552 = vmatprep.subr.mxu0 0.0
    %3553 = vmatpush1.msra.mxu0 0.0
    %3554 = vmatprep.subr.mxu0 0.0
    %3555 = vmatpush1.msra.mxu0 0.0
    %3556 = vmatprep.subr.mxu0 0.0
    %3557 = vmatpush1.msra.mxu0 0.0
    %3558 = vmatprep.subr.mxu0 0.0
    %3559 = vmatpush1.msra.mxu0 0.0
    %3560 = vmatprep.subr.mxu0 0.0
    %3561 = vmatpush1.msra.mxu0 0.0
    %3562 = vmatprep.subr.mxu0 0.0
    %3563 = vmatpush1.msra.mxu0 0.0
    %3564 = vmatprep.subr.mxu0 0.0
    %3565 = vmatpush1.msra.mxu0 0.0
    %3566 = vmatprep.subr.mxu0 0.0
    %3567 = vmatpush1.msra.mxu0 0.0
    %3568 = vmatprep.subr.mxu0 0.0
    %3569 = vmatpush1.msra.mxu0 0.0
    %3570 = vmatprep.mubr.f32.mxu0 0.0
    %3571 = vmatmul.mubr.f32.gmra.mrb[0].mxu0 %v3332
    %v3572 = vpop.f32.mrb[0].mxu0
    %v3573 = vadd.f32 0.0, %v3572
    %v3574 = vpop.f32.mrb[0].mxu0
    %3575 = vdwg.mxu0
    %v3577 = vsel %vm55, %v3423, 0
    %3579 = vmatprep.subr.mxu0 0.0
    %3580 = vmatpush1.msra.mxu0 %v3498
    %3581 = vmatprep.subr.mxu0 0.0
    %3582 = vmatpush1.msra.mxu0 %v3499
    %3583 = vmatprep.subr.mxu0 0.0
    %3584 = vmatpush1.msra.mxu0 %v3500
    %3585 = vmatprep.subr.mxu0 0.0
    %3586 = vmatpush1.msra.mxu0 %v3501
    %3587 = vmatprep.subr.mxu0 0.0
    %3588 = vmatpush1.msra.mxu0 0.0
    %3589 = vmatprep.subr.mxu0 0.0
    %3590 = vmatpush1.msra.mxu0 0.0
    %3591 = vmatprep.subr.mxu0 0.0
    %3592 = vmatpush1.msra.mxu0 0.0
    %3593 = vmatprep.subr.mxu0 0.0
    %3594 = vmatpush1.msra.mxu0 0.0
    %3595 = vmatprep.subr.mxu0 0.0
    %3596 = vmatpush1.msra.mxu0 0.0
    %3597 = vmatprep.subr.mxu0 0.0
    %3598 = vmatpush1.msra.mxu0 0.0
    %3599 = vmatprep.subr.mxu0 0.0
    %3600 = vmatpush1.msra.mxu0 0.0
    %3601 = vmatprep.subr.mxu0 0.0
    %3602 = vmatpush1.msra.mxu0 0.0
    %3603 = vmatprep.subr.mxu0 0.0
    %3604 = vmatpush1.msra.mxu0 0.0
    %3605 = vmatprep.subr.mxu0 0.0
    %3606 = vmatpush1.msra.mxu0 0.0
    %3607 = vmatprep.subr.mxu0 0.0
    %3608 = vmatpush1.msra.mxu0 0.0
    %3609 = vmatprep.subr.mxu0 0.0
    %3610 = vmatpush1.msra.mxu0 0.0
    %3611 = vmatprep.subr.mxu0 0.0
    %3612 = vmatpush1.msra.mxu0 0.0
    %3613 = vmatprep.subr.mxu0 0.0
    %3614 = vmatpush1.msra.mxu0 0.0
    %3615 = vmatprep.subr.mxu0 0.0
    %3616 = vmatpush1.msra.mxu0 0.0
    %3617 = vmatprep.subr.mxu0 0.0
    %3618 = vmatpush1.msra.mxu0 0.0
    %3619 = vmatprep.subr.mxu0 0.0
    %3620 = vmatpush1.msra.mxu0 0.0
    %3621 = vmatprep.subr.mxu0 0.0
    %3622 = vmatpush1.msra.mxu0 0.0
    %3623 = vmatprep.subr.mxu0 0.0
    %3624 = vmatpush1.msra.mxu0 0.0
    %3625 = vmatprep.subr.mxu0 0.0
    %3626 = vmatpush1.msra.mxu0 0.0
    %3627 = vmatprep.subr.mxu0 0.0
    %3628 = vmatpush1.msra.mxu0 0.0
    %3629 = vmatprep.subr.mxu0 0.0
    %3630 = vmatpush1.msra.mxu0 0.0
    %3631 = vmatprep.subr.mxu0 0.0
    %3632 = vmatpush1.msra.mxu0 0.0
    %3633 = vmatprep.subr.mxu0 0.0
    %3634 = vmatpush1.msra.mxu0 0.0
    %3635 = vmatprep.subr.mxu0 0.0
    %3636 = vmatpush1.msra.mxu0 0.0
    %3637 = vmatprep.subr.mxu0 0.0
    %3638 = vmatpush1.msra.mxu0 0.0
    %3639 = vmatprep.subr.mxu0 0.0
    %3640 = vmatpush1.msra.mxu0 0.0
    %3641 = vmatprep.subr.mxu0 0.0
    %3642 = vmatpush1.msra.mxu0 0.0
    %3643 = vmatprep.mubr.f32.mxu0 0.0
    %3644 = vmatmul.mubr.f32.gmra.mrb[0].mxu0 %v3577
    %v3645 = vpop.f32.mrb[0].mxu0
    %v3646 = vadd.f32 %v3573, %v3645
    %v3647 = vpop.f32.mrb[0].mxu0
    %3648 = vdwg.mxu0
    %v3649 = vld [vmem:[#allocation4 + $0xe0] sm:$0x1]
    %v3650 = vadd.f32 %v3646, %v3649
    %v3651 = vsel %vm282, %v3650, -inf
    %3652 = vmax.xlane.f32.xlu0 %v3651
    %v3653 = vpop.xlane.xlu0 %3652
    %v3654 = vsub.f32 %v3650, %v3653
    %v3655 = vmul.f32 %v3654, 1.442695
    %v3656 = vpow.pop %v3655
    %v3657 = vsel %vm282, %v3656, 0.0
    %3658 = vadd.xlane.f32.xlu0 %v3657
    %v3659 = vpop.xlane.xlu0 %3658
    %v3660 = vrcp.pop %v3659
    %v3661 = vmul.f32 %v3659, %v3660
    %v3662 = vsub.f32 2.0, %v3661
    %v3663 = vmul.f32 %v3660, %v3662
    %v3664 = vmul.f32 %v3656, %v3663
    %v3666 = vsel %vm55, %v3664, 0
    %3668 = vmatprep.subr.mxu0 0.0
    %3669 = vmatpush1.msra.mxu0 %v43
    %3670 = vmatprep.subr.mxu0 0.0
    %3671 = vmatpush1.msra.mxu0 %v44
    %3672 = vmatprep.subr.mxu0 0.0
    %3673 = vmatpush1.msra.mxu0 %v45
    %3674 = vmatprep.subr.mxu0 0.0
    %3675 = vmatpush1.msra.mxu0 %v46
    %3676 = vmatprep.subr.mxu0 0.0
    %3677 = vmatpush1.msra.mxu0 0.0
    %3678 = vmatprep.subr.mxu0 0.0
    %3679 = vmatpush1.msra.mxu0 0.0
    %3680 = vmatprep.subr.mxu0 0.0
    %3681 = vmatpush1.msra.mxu0 0.0
    %3682 = vmatprep.subr.mxu0 0.0
    %3683 = vmatpush1.msra.mxu0 0.0
    %3684 = vmatprep.subr.mxu0 0.0
    %3685 = vmatpush1.msra.mxu0 0.0
    %3686 = vmatprep.subr.mxu0 0.0
    %3687 = vmatpush1.msra.mxu0 0.0
    %3688 = vmatprep.subr.mxu0 0.0
    %3689 = vmatpush1.msra.mxu0 0.0
    %3690 = vmatprep.subr.mxu0 0.0
    %3691 = vmatpush1.msra.mxu0 0.0
    %3692 = vmatprep.subr.mxu0 0.0
    %3693 = vmatpush1.msra.mxu0 0.0
    %3694 = vmatprep.subr.mxu0 0.0
    %3695 = vmatpush1.msra.mxu0 0.0
    %3696 = vmatprep.subr.mxu0 0.0
    %3697 = vmatpush1.msra.mxu0 0.0
    %3698 = vmatprep.subr.mxu0 0.0
    %3699 = vmatpush1.msra.mxu0 0.0
    %3700 = vmatprep.subr.mxu0 0.0
    %3701 = vmatpush1.msra.mxu0 0.0
    %3702 = vmatprep.subr.mxu0 0.0
    %3703 = vmatpush1.msra.mxu0 0.0
    %3704 = vmatprep.subr.mxu0 0.0
    %3705 = vmatpush1.msra.mxu0 0.0
    %3706 = vmatprep.subr.mxu0 0.0
    %3707 = vmatpush1.msra.mxu0 0.0
    %3708 = vmatprep.subr.mxu0 0.0
    %3709 = vmatpush1.msra.mxu0 0.0
    %3710 = vmatprep.subr.mxu0 0.0
    %3711 = vmatpush1.msra.mxu0 0.0
    %3712 = vmatprep.subr.mxu0 0.0
    %3713 = vmatpush1.msra.mxu0 0.0
    %3714 = vmatprep.subr.mxu0 0.0
    %3715 = vmatpush1.msra.mxu0 0.0
    %3716 = vmatprep.subr.mxu0 0.0
    %3717 = vmatpush1.msra.mxu0 0.0
    %3718 = vmatprep.subr.mxu0 0.0
    %3719 = vmatpush1.msra.mxu0 0.0
    %3720 = vmatprep.subr.mxu0 0.0
    %3721 = vmatpush1.msra.mxu0 0.0
    %3722 = vmatprep.subr.mxu0 0.0
    %3723 = vmatpush1.msra.mxu0 0.0
    %3724 = vmatprep.subr.mxu0 0.0
    %3725 = vmatpush1.msra.mxu0 0.0
    %3726 = vmatprep.subr.mxu0 0.0
    %3727 = vmatpush1.msra.mxu0 0.0
    %3728 = vmatprep.subr.mxu0 0.0
    %3729 = vmatpush1.msra.mxu0 0.0
    %3730 = vmatprep.subr.mxu0 0.0
    %3731 = vmatpush1.msra.mxu0 0.0
    %3732 = vmatprep.mubr.f32.mxu0 0.0
    %3733 = vmatmul.mubr.f32.gmra.mrb[0].mxu0 %v3666
    %v3734 = vpop.f32.mrb[0].mxu0
    %v3735 = vadd.f32 0.0, %v3734
    %v3736 = vpop.f32.mrb[0].mxu0
    %3737 = vdwg.mxu0
    %v3738 = vld [vmem:[#allocation4 + $0x40] sm:$0xff]
    %v3739 = vld [vmem:[#allocation4 + $0x48] sm:$0xff]
    %v3740 = vld [vmem:[#allocation4 + $0x50] sm:$0xff]
    %v3741 = vld [vmem:[#allocation4 + $0x58] sm:$0xff]
    %v3742 = vld [vmem:[#allocation4 + $0x60] sm:$0xff]
    %v3743 = vld [vmem:[#allocation4 + $0x68] sm:$0xff]
    %v3744 = vld [vmem:[#allocation4 + $0x70] sm:$0xff]
    %v3745 = vld [vmem:[#allocation4 + $0x78] sm:$0xff]
    %v3747 = vsel %vm55, %v3735, 0
    %3749 = vmatprep.subr.mxu0 0.0
    %3750 = vmatpush1.msra.mxu0 %v3742
    %3751 = vmatprep.subr.mxu0 0.0
    %3752 = vmatpush1.msra.mxu0 %v3743
    %3753 = vmatprep.subr.mxu0 0.0
    %3754 = vmatpush1.msra.mxu0 %v3744
    %3755 = vmatprep.subr.mxu0 0.0
    %3756 = vmatpush1.msra.mxu0 %v3745
    %3757 = vmatprep.subr.mxu0 0.0
    %3758 = vmatpush1.msra.mxu0 0.0
    %3759 = vmatprep.subr.mxu0 0.0
    %3760 = vmatpush1.msra.mxu0 0.0
    %3761 = vmatprep.subr.mxu0 0.0
    %3762 = vmatpush1.msra.mxu0 0.0
    %3763 = vmatprep.subr.mxu0 0.0
    %3764 = vmatpush1.msra.mxu0 0.0
    %3765 = vmatprep.subr.mxu0 0.0
    %3766 = vmatpush1.msra.mxu0 0.0
    %3767 = vmatprep.subr.mxu0 0.0
    %3768 = vmatpush1.msra.mxu0 0.0
    %3769 = vmatprep.subr.mxu0 0.0
    %3770 = vmatpush1.msra.mxu0 0.0
    %3771 = vmatprep.subr.mxu0 0.0
    %3772 = vmatpush1.msra.mxu0 0.0
    %3773 = vmatprep.subr.mxu0 0.0
    %3774 = vmatpush1.msra.mxu0 0.0
    %3775 = vmatprep.subr.mxu0 0.0
    %3776 = vmatpush1.msra.mxu0 0.0
    %3777 = vmatprep.subr.mxu0 0.0
    %3778 = vmatpush1.msra.mxu0 0.0
    %3779 = vmatprep.subr.mxu0 0.0
    %3780 = vmatpush1.msra.mxu0 0.0
    %3781 = vmatprep.subr.mxu0 0.0
    %3782 = vmatpush1.msra.mxu0 0.0
    %3783 = vmatprep.subr.mxu0 0.0
    %3784 = vmatpush1.msra.mxu0 0.0
    %3785 = vmatprep.subr.mxu0 0.0
    %3786 = vmatpush1.msra.mxu0 0.0
    %3787 = vmatprep.subr.mxu0 0.0
    %3788 = vmatpush1.msra.mxu0 0.0
    %3789 = vmatprep.subr.mxu0 0.0
    %3790 = vmatpush1.msra.mxu0 0.0
    %3791 = vmatprep.subr.mxu0 0.0
    %3792 = vmatpush1.msra.mxu0 0.0
    %3793 = vmatprep.subr.mxu0 0.0
    %3794 = vmatpush1.msra.mxu0 0.0
    %3795 = vmatprep.subr.mxu0 0.0
    %3796 = vmatpush1.msra.mxu0 0.0
    %3797 = vmatprep.subr.mxu0 0.0
    %3798 = vmatpush1.msra.mxu0 0.0
    %3799 = vmatprep.subr.mxu0 0.0
    %3800 = vmatpush1.msra.mxu0 0.0
    %3801 = vmatprep.subr.mxu0 0.0
    %3802 = vmatpush1.msra.mxu0 0.0
    %3803 = vmatprep.subr.mxu0 0.0
    %3804 = vmatpush1.msra.mxu0 0.0
    %3805 = vmatprep.subr.mxu0 0.0
    %3806 = vmatpush1.msra.mxu0 0.0
    %3807 = vmatprep.subr.mxu0 0.0
    %3808 = vmatpush1.msra.mxu0 0.0
    %3809 = vmatprep.subr.mxu0 0.0
    %3810 = vmatpush1.msra.mxu0 0.0
    %3811 = vmatprep.subr.mxu0 0.0
    %3812 = vmatpush1.msra.mxu0 0.0
    %3813 = vmatprep.mubr.f32.mxu0 0.0
    %3814 = vmatmul.mubr.f32.gmra.mrb[0].mxu0 %v3747
    %v3815 = vpop.f32.mrb[0].mxu0
    %v3816 = vadd.f32 0.0, %v3815
    %v3817 = vpop.f32.mrb[0].mxu0
    %3818 = vdwg.mxu0
    %3819 = vmatprep.subr.mxu0 0.0
    %3820 = vmatpush1.msra.mxu0 %v3738
    %3821 = vmatprep.subr.mxu0 0.0
    %3822 = vmatpush1.msra.mxu0 %v3739
    %3823 = vmatprep.subr.mxu0 0.0
    %3824 = vmatpush1.msra.mxu0 %v3740
    %3825 = vmatprep.subr.mxu0 0.0
    %3826 = vmatpush1.msra.mxu0 %v3741
    %3827 = vmatprep.subr.mxu0 0.0
    %3828 = vmatpush1.msra.mxu0 0.0
    %3829 = vmatprep.subr.mxu0 0.0
    %3830 = vmatpush1.msra.mxu0 0.0
    %3831 = vmatprep.subr.mxu0 0.0
    %3832 = vmatpush1.msra.mxu0 0.0
    %3833 = vmatprep.subr.mxu0 0.0
    %3834 = vmatpush1.msra.mxu0 0.0
    %3835 = vmatprep.subr.mxu0 0.0
    %3836 = vmatpush1.msra.mxu0 0.0
    %3837 = vmatprep.subr.mxu0 0.0
    %3838 = vmatpush1.msra.mxu0 0.0
    %3839 = vmatprep.subr.mxu0 0.0
    %3840 = vmatpush1.msra.mxu0 0.0
    %3841 = vmatprep.subr.mxu0 0.0
    %3842 = vmatpush1.msra.mxu0 0.0
    %3843 = vmatprep.subr.mxu0 0.0
    %3844 = vmatpush1.msra.mxu0 0.0
    %3845 = vmatprep.subr.mxu0 0.0
    %3846 = vmatpush1.msra.mxu0 0.0
    %3847 = vmatprep.subr.mxu0 0.0
    %3848 = vmatpush1.msra.mxu0 0.0
    %3849 = vmatprep.subr.mxu0 0.0
    %3850 = vmatpush1.msra.mxu0 0.0
    %3851 = vmatprep.subr.mxu0 0.0
    %3852 = vmatpush1.msra.mxu0 0.0
    %3853 = vmatprep.subr.mxu0 0.0
    %3854 = vmatpush1.msra.mxu0 0.0
    %3855 = vmatprep.subr.mxu0 0.0
    %3856 = vmatpush1.msra.mxu0 0.0
    %3857 = vmatprep.subr.mxu0 0.0
    %3858 = vmatpush1.msra.mxu0 0.0
    %3859 = vmatprep.subr.mxu0 0.0
    %3860 = vmatpush1.msra.mxu0 0.0
    %3861 = vmatprep.subr.mxu0 0.0
    %3862 = vmatpush1.msra.mxu0 0.0
    %3863 = vmatprep.subr.mxu0 0.0
    %3864 = vmatpush1.msra.mxu0 0.0
    %3865 = vmatprep.subr.mxu0 0.0
    %3866 = vmatpush1.msra.mxu0 0.0
    %3867 = vmatprep.subr.mxu0 0.0
    %3868 = vmatpush1.msra.mxu0 0.0
    %3869 = vmatprep.subr.mxu0 0.0
    %3870 = vmatpush1.msra.mxu0 0.0
    %3871 = vmatprep.subr.mxu0 0.0
    %3872 = vmatpush1.msra.mxu0 0.0
    %3873 = vmatprep.subr.mxu0 0.0
    %3874 = vmatpush1.msra.mxu0 0.0
    %3875 = vmatprep.subr.mxu0 0.0
    %3876 = vmatpush1.msra.mxu0 0.0
    %3877 = vmatprep.subr.mxu0 0.0
    %3878 = vmatpush1.msra.mxu0 0.0
    %3879 = vmatprep.subr.mxu0 0.0
    %3880 = vmatpush1.msra.mxu0 0.0
    %3881 = vmatprep.subr.mxu0 0.0
    %3882 = vmatpush1.msra.mxu0 0.0
    %3883 = vmatprep.mubr.f32.mxu0 0.0
    %3884 = vmatmul.mubr.f32.gmra.mrb[0].mxu0 %v3577
    %v3885 = vpop.f32.mrb[0].mxu0
    %v3886 = vadd.f32 %v3816, %v3885
    %v3887 = vpop.f32.mrb[0].mxu0
    %3888 = vdwg.mxu0
    %v3889 = vld [vmem:[#allocation4 + $0xe1] sm:$0x1]
    %v3890 = vadd.f32 %v3886, %v3889
    %v3891 = vmax.f32 %v3890, 0.0
    %v3892 = vld [vmem:[#allocation4 + $0x80] sm:$0xff]
    %v3893 = vld [vmem:[#allocation4 + $0x88] sm:$0xff]
    %v3894 = vld [vmem:[#allocation4 + $0x90] sm:$0xff]
    %v3895 = vld [vmem:[#allocation4 + $0x98] sm:$0xff]
    %v3897 = vsel %vm55, %v3891, 0
    %3899 = vmatprep.subr.mxu0 0.0
    %3900 = vmatpush1.msra.mxu0 %v3892
    %3901 = vmatprep.subr.mxu0 0.0
    %3902 = vmatpush1.msra.mxu0 %v3893
    %3903 = vmatprep.subr.mxu0 0.0
    %3904 = vmatpush1.msra.mxu0 %v3894
    %3905 = vmatprep.subr.mxu0 0.0
    %3906 = vmatpush1.msra.mxu0 %v3895
    %3907 = vmatprep.subr.mxu0 0.0
    %3908 = vmatpush1.msra.mxu0 0.0
    %3909 = vmatprep.subr.mxu0 0.0
    %3910 = vmatpush1.msra.mxu0 0.0
    %3911 = vmatprep.subr.mxu0 0.0
    %3912 = vmatpush1.msra.mxu0 0.0
    %3913 = vmatprep.subr.mxu0 0.0
    %3914 = vmatpush1.msra.mxu0 0.0
    %3915 = vmatprep.subr.mxu0 0.0
    %3916 = vmatpush1.msra.mxu0 0.0
    %3917 = vmatprep.subr.mxu0 0.0
    %3918 = vmatpush1.msra.mxu0 0.0
    %3919 = vmatprep.subr.mxu0 0.0
    %3920 = vmatpush1.msra.mxu0 0.0
    %3921 = vmatprep.subr.mxu0 0.0
    %3922 = vmatpush1.msra.mxu0 0.0
    %3923 = vmatprep.subr.mxu0 0.0
    %3924 = vmatpush1.msra.mxu0 0.0
    %3925 = vmatprep.subr.mxu0 0.0
    %3926 = vmatpush1.msra.mxu0 0.0
    %3927 = vmatprep.subr.mxu0 0.0
    %3928 = vmatpush1.msra.mxu0 0.0
    %3929 = vmatprep.subr.mxu0 0.0
    %3930 = vmatpush1.msra.mxu0 0.0
    %3931 = vmatprep.subr.mxu0 0.0
    %3932 = vmatpush1.msra.mxu0 0.0
    %3933 = vmatprep.subr.mxu0 0.0
    %3934 = vmatpush1.msra.mxu0 0.0
    %3935 = vmatprep.subr.mxu0 0.0
    %3936 = vmatpush1.msra.mxu0 0.0
    %3937 = vmatprep.subr.mxu0 0.0
    %3938 = vmatpush1.msra.mxu0 0.0
    %3939 = vmatprep.subr.mxu0 0.0
    %3940 = vmatpush1.msra.mxu0 0.0
    %3941 = vmatprep.subr.mxu0 0.0
    %3942 = vmatpush1.msra.mxu0 0.0
    %3943 = vmatprep.subr.mxu0 0.0
    %3944 = vmatpush1.msra.mxu0 0.0
    %3945 = vmatprep.subr.mxu0 0.0
    %3946 = vmatpush1.msra.mxu0 0.0
    %3947 = vmatprep.subr.mxu0 0.0
    %3948 = vmatpush1.msra.mxu0 0.0
    %3949 = vmatprep.subr.mxu0 0.0
    %3950 = vmatpush1.msra.mxu0 0.0
    %3951 = vmatprep.subr.mxu0 0.0
    %3952 = vmatpush1.msra.mxu0 0.0
    %3953 = vmatprep.subr.mxu0 0.0
    %3954 = vmatpush1.msra.mxu0 0.0
    %3955 = vmatprep.subr.mxu0 0.0
    %3956 = vmatpush1.msra.mxu0 0.0
    %3957 = vmatprep.subr.mxu0 0.0
    %3958 = vmatpush1.msra.mxu0 0.0
    %3959 = vmatprep.subr.mxu0 0.0
    %3960 = vmatpush1.msra.mxu0 0.0
    %3961 = vmatprep.subr.mxu0 0.0
    %3962 = vmatpush1.msra.mxu0 0.0
    %3963 = vmatprep.mubr.f32.mxu0 0.0
    %3964 = vmatmul.mubr.f32.gmra.mrb[0].mxu0 %v3897
    %v3965 = vpop.f32.mrb[0].mxu0
    %v3966 = vadd.f32 %v3495, %v3965
    %v3967 = vpop.f32.mrb[0].mxu0
    %3968 = vdwg.mxu0
    %v3969 = vld [vmem:[#allocation4 + $0xe2] sm:$0x1]
    %v3970 = vadd.f32 %v3966, %v3969
    %v3971 = vxor.u32 %v3970, 2147483648
    %v3972 = vmul.f32 %v3971, 1.442695
    %v3973 = vpow.pop %v3972
    %v3974 = vadd.f32 %v3973, 1.0
    %v3975 = vrcp.pop %v3974
    %v3976 = vmul.f32 1.0, %v3975
    %3978 = vrot.lane.b32.xlu0 %v3970, 32
    %v3979 = vpop.permute.xlu0 %3978
    %v3981 = vmul.f32 %v3976, %v3979
    %3983 = vrot.lane.b32.xlu0 %v3981, 64
    %v3984 = vpop.permute.xlu0 %3983
    %v3986 = vadd.f32 %v3970, %v3984
    %v3987 = vtanh.pop %v3986
    %v3988 = vsub.f32 1.0, %v3976
    %3990 = vrot.lane.b32.xlu0 %v3987, 96
    %v3991 = vpop.permute.xlu0 %3990
    %v3993 = vmul.f32 %v3988, %v3991
    %v3994 = vmul.f32 %v3976, %v3323
    %v3995 = vadd.f32 %v3993, %v3994
    %v3996 = vld [vmem:[#allocation4 + $0xc0] sm:$0xff]
    %v3997 = vld [vmem:[#allocation4 + $0xc8] sm:$0xff]
    %v3998 = vld [vmem:[#allocation4 + $0xd0] sm:$0xff]
    %v3999 = vld [vmem:[#allocation4 + $0xd8] sm:$0xff]
    %v4000 = vld [vmem:[#allocation4 + $0xe3] sm:$0x1]
    %4002 = vrot.lane.b32.xlu0 %v3995, 96
    %v4003 = vpop.permute.xlu0 %4002
    %v4004 = vsel %vm55, %v4003, 0
    %4006 = vmatprep.subr.mxu0 0.0
    %4007 = vmatpush1.msra.mxu0 %v3996
    %4008 = vmatprep.subr.mxu0 0.0
    %4009 = vmatpush1.msra.mxu0 %v3997
    %4010 = vmatprep.subr.mxu0 0.0
    %4011 = vmatpush1.msra.mxu0 %v3998
    %4012 = vmatprep.subr.mxu0 0.0
    %4013 = vmatpush1.msra.mxu0 %v3999
    %4014 = vmatprep.subr.mxu0 0.0
    %4015 = vmatpush1.msra.mxu0 0.0
    %4016 = vmatprep.subr.mxu0 0.0
    %4017 = vmatpush1.msra.mxu0 0.0
    %4018 = vmatprep.subr.mxu0 0.0
    %4019 = vmatpush1.msra.mxu0 0.0
    %4020 = vmatprep.subr.mxu0 0.0
    %4021 = vmatpush1.msra.mxu0 0.0
    %4022 = vmatprep.subr.mxu0 0.0
    %4023 = vmatpush1.msra.mxu0 0.0
    %4024 = vmatprep.subr.mxu0 0.0
    %4025 = vmatpush1.msra.mxu0 0.0
    %4026 = vmatprep.subr.mxu0 0.0
    %4027 = vmatpush1.msra.mxu0 0.0
    %4028 = vmatprep.subr.mxu0 0.0
    %4029 = vmatpush1.msra.mxu0 0.0
    %4030 = vmatprep.subr.mxu0 0.0
    %4031 = vmatpush1.msra.mxu0 0.0
    %4032 = vmatprep.subr.mxu0 0.0
    %4033 = vmatpush1.msra.mxu0 0.0
    %4034 = vmatprep.subr.mxu0 0.0
    %4035 = vmatpush1.msra.mxu0 0.0
    %4036 = vmatprep.subr.mxu0 0.0
    %4037 = vmatpush1.msra.mxu0 0.0
    %4038 = vmatprep.subr.mxu0 0.0
    %4039 = vmatpush1.msra.mxu0 0.0
    %4040 = vmatprep.subr.mxu0 0.0
    %4041 = vmatpush1.msra.mxu0 0.0
    %4042 = vmatprep.subr.mxu0 0.0
    %4043 = vmatpush1.msra.mxu0 0.0
    %4044 = vmatprep.subr.mxu0 0.0
    %4045 = vmatpush1.msra.mxu0 0.0
    %4046 = vmatprep.subr.mxu0 0.0
    %4047 = vmatpush1.msra.mxu0 0.0
    %4048 = vmatprep.subr.mxu0 0.0
    %4049 = vmatpush1.msra.mxu0 0.0
    %4050 = vmatprep.subr.mxu0 0.0
    %4051 = vmatpush1.msra.mxu0 0.0
    %4052 = vmatprep.subr.mxu0 0.0
    %4053 = vmatpush1.msra.mxu0 0.0
    %4054 = vmatprep.subr.mxu0 0.0
    %4055 = vmatpush1.msra.mxu0 0.0
    %4056 = vmatprep.subr.mxu0 0.0
    %4057 = vmatpush1.msra.mxu0 0.0
    %4058 = vmatprep.subr.mxu0 0.0
    %4059 = vmatpush1.msra.mxu0 0.0
    %4060 = vmatprep.subr.mxu0 0.0
    %4061 = vmatpush1.msra.mxu0 0.0
    %4062 = vmatprep.subr.mxu0 0.0
    %4063 = vmatpush1.msra.mxu0 0.0
    %4064 = vmatprep.subr.mxu0 0.0
    %4065 = vmatpush1.msra.mxu0 0.0
    %4066 = vmatprep.subr.mxu0 0.0
    %4067 = vmatpush1.msra.mxu0 0.0
    %4068 = vmatprep.subr.mxu0 0.0
    %4069 = vmatpush1.msra.mxu0 0.0
    %4070 = vmatprep.mubr.f32.mxu0 0.0
    %4071 = vmatmul.mubr.f32.gmra.mrb[0].mxu0 %v4004
    %v4072 = vpop.f32.mrb[0].mxu0
    %v4073 = vadd.f32 %v4000, %v4072
    %v4074 = vpop.f32.mrb[0].mxu0
    %4075 = vdwg.mxu0
    %v4076 = vsel %vm715, %v4073, -inf
    %4077 = vmax.xlane.f32.xlu0 %v4076
    %v4078 = vpop.xlane.xlu0 %4077
    %v4079 = vsub.f32 %v4073, %v4078
    %v4080 = vmul.f32 %v4079, 1.442695
    %v4081 = vpow.pop %v4080
    %v4082 = vsel %vm715, %v4081, 0.0
    %4083 = vadd.xlane.f32.xlu0 %v4082
    %v4084 = vpop.xlane.xlu0 %4083
    %v4085 = vlog2.pop %v4084
    %v4086 = vmul.f32 %v4085, 0.6931472
    %v4087 = vadd.f32 %v4086, %v4078
    %v4088 = vsub.f32 %v4073, %v4087
    %4089 = vst.msk [vmem:[#allocation7 + $0x5] sm:$0x1] %vm715, %v4088
    %4091 = vst.msk [vmem:[#allocation8 + $0x5] sm:$0x1] %vm282, %v4003
    %4092 = vst.msk [vmem:[#allocation10 + $0x5] sm:$0x1] %vm282, %v3664
    %s4093 = sld [smem:[#allocation3 + $0x6]]
    %s4094 = scalar_lea.vmem %s1, %s4093
    %v4095 = vld [vmem:[%s4094] sm:$0x1]
    %v4096 = vld [vmem:[#allocation4 + $0xa0] sm:$0xff]
    %v4097 = vld [vmem:[#allocation4 + $0xa8] sm:$0xff]
    %v4098 = vld [vmem:[#allocation4 + $0xb0] sm:$0xff]
    %v4099 = vld [vmem:[#allocation4 + $0xb8] sm:$0xff]
    %4100 = vmatprep.subr.mxu0 0.0
    %4101 = vmatpush1.msra.mxu0 %v4096
    %4102 = vmatprep.subr.mxu0 0.0
    %4103 = vmatpush1.msra.mxu0 %v4097
    %4104 = vmatprep.subr.mxu0 0.0
    %4105 = vmatpush1.msra.mxu0 %v4098
    %4106 = vmatprep.subr.mxu0 0.0
    %4107 = vmatpush1.msra.mxu0 %v4099
    %4108 = vmatprep.subr.mxu0 0.0
    %4109 = vmatpush1.msra.mxu0 0.0
    %4110 = vmatprep.subr.mxu0 0.0
    %4111 = vmatpush1.msra.mxu0 0.0
    %4112 = vmatprep.subr.mxu0 0.0
    %4113 = vmatpush1.msra.mxu0 0.0
    %4114 = vmatprep.subr.mxu0 0.0
    %4115 = vmatpush1.msra.mxu0 0.0
    %4116 = vmatprep.subr.mxu0 0.0
    %4117 = vmatpush1.msra.mxu0 0.0
    %4118 = vmatprep.subr.mxu0 0.0
    %4119 = vmatpush1.msra.mxu0 0.0
    %4120 = vmatprep.subr.mxu0 0.0
    %4121 = vmatpush1.msra.mxu0 0.0
    %4122 = vmatprep.subr.mxu0 0.0
    %4123 = vmatpush1.msra.mxu0 0.0
    %4124 = vmatprep.subr.mxu0 0.0
    %4125 = vmatpush1.msra.mxu0 0.0
    %4126 = vmatprep.subr.mxu0 0.0
    %4127 = vmatpush1.msra.mxu0 0.0
    %4128 = vmatprep.subr.mxu0 0.0
    %4129 = vmatpush1.msra.mxu0 0.0
    %4130 = vmatprep.subr.mxu0 0.0
    %4131 = vmatpush1.msra.mxu0 0.0
    %4132 = vmatprep.subr.mxu0 0.0
    %4133 = vmatpush1.msra.mxu0 0.0
    %4134 = vmatprep.subr.mxu0 0.0
    %4135 = vmatpush1.msra.mxu0 0.0
    %4136 = vmatprep.subr.mxu0 0.0
    %4137 = vmatpush1.msra.mxu0 0.0
    %4138 = vmatprep.subr.mxu0 0.0
    %4139 = vmatpush1.msra.mxu0 0.0
    %4140 = vmatprep.subr.mxu0 0.0
    %4141 = vmatpush1.msra.mxu0 0.0
    %4142 = vmatprep.subr.mxu0 0.0
    %4143 = vmatpush1.msra.mxu0 0.0
    %4144 = vmatprep.subr.mxu0 0.0
    %4145 = vmatpush1.msra.mxu0 0.0
    %4146 = vmatprep.subr.mxu0 0.0
    %4147 = vmatpush1.msra.mxu0 0.0
    %4148 = vmatprep.subr.mxu0 0.0
    %4149 = vmatpush1.msra.mxu0 0.0
    %4150 = vmatprep.subr.mxu0 0.0
    %4151 = vmatpush1.msra.mxu0 0.0
    %4152 = vmatprep.subr.mxu0 0.0
    %4153 = vmatpush1.msra.mxu0 0.0
    %4154 = vmatprep.subr.mxu0 0.0
    %4155 = vmatpush1.msra.mxu0 0.0
    %4156 = vmatprep.subr.mxu0 0.0
    %4157 = vmatpush1.msra.mxu0 0.0
    %4158 = vmatprep.subr.mxu0 0.0
    %4159 = vmatpush1.msra.mxu0 0.0
    %4160 = vmatprep.subr.mxu0 0.0
    %4161 = vmatpush1.msra.mxu0 0.0
    %4162 = vmatprep.subr.mxu0 0.0
    %4163 = vmatpush1.msra.mxu0 0.0
    %4164 = vmatprep.mubr.f32.mxu0 0.0
    %4165 = vmatmul.mubr.f32.gmra.mrb[0].mxu0 %v4004
    %v4166 = vpop.f32.mrb[0].mxu0
    %v4167 = vadd.f32 0.0, %v4166
    %v4168 = vpop.f32.mrb[0].mxu0
    %4169 = vdwg.mxu0
    %v4170 = vld [vmem:[#allocation4] sm:$0xff]
    %v4171 = vld [vmem:[#allocation4 + $0x8] sm:$0xff]
    %v4172 = vld [vmem:[#allocation4 + $0x10] sm:$0xff]
    %v4173 = vld [vmem:[#allocation4 + $0x18] sm:$0xff]
    %v4174 = vld [vmem:[#allocation4 + $0x20] sm:$0xff]
    %v4175 = vld [vmem:[#allocation4 + $0x28] sm:$0xff]
    %v4176 = vld [vmem:[#allocation4 + $0x30] sm:$0xff]
    %v4177 = vld [vmem:[#allocation4 + $0x38] sm:$0xff]
    %4178 = vmatprep.subr.mxu0 0.0
    %4179 = vmatpush1.msra.mxu0 %v4174
    %4180 = vmatprep.subr.mxu0 0.0
    %4181 = vmatpush1.msra.mxu0 %v4175
    %4182 = vmatprep.subr.mxu0 0.0
    %4183 = vmatpush1.msra.mxu0 %v4176
    %4184 = vmatprep.subr.mxu0 0.0
    %4185 = vmatpush1.msra.mxu0 %v4177
    %4186 = vmatprep.subr.mxu0 0.0
    %4187 = vmatpush1.msra.mxu0 0.0
    %4188 = vmatprep.subr.mxu0 0.0
    %4189 = vmatpush1.msra.mxu0 0.0
    %4190 = vmatprep.subr.mxu0 0.0
    %4191 = vmatpush1.msra.mxu0 0.0
    %4192 = vmatprep.subr.mxu0 0.0
    %4193 = vmatpush1.msra.mxu0 0.0
    %4194 = vmatprep.subr.mxu0 0.0
    %4195 = vmatpush1.msra.mxu0 0.0
    %4196 = vmatprep.subr.mxu0 0.0
    %4197 = vmatpush1.msra.mxu0 0.0
    %4198 = vmatprep.subr.mxu0 0.0
    %4199 = vmatpush1.msra.mxu0 0.0
    %4200 = vmatprep.subr.mxu0 0.0
    %4201 = vmatpush1.msra.mxu0 0.0
    %4202 = vmatprep.subr.mxu0 0.0
    %4203 = vmatpush1.msra.mxu0 0.0
    %4204 = vmatprep.subr.mxu0 0.0
    %4205 = vmatpush1.msra.mxu0 0.0
    %4206 = vmatprep.subr.mxu0 0.0
    %4207 = vmatpush1.msra.mxu0 0.0
    %4208 = vmatprep.subr.mxu0 0.0
    %4209 = vmatpush1.msra.mxu0 0.0
    %4210 = vmatprep.subr.mxu0 0.0
    %4211 = vmatpush1.msra.mxu0 0.0
    %4212 = vmatprep.subr.mxu0 0.0
    %4213 = vmatpush1.msra.mxu0 0.0
    %4214 = vmatprep.subr.mxu0 0.0
    %4215 = vmatpush1.msra.mxu0 0.0
    %4216 = vmatprep.subr.mxu0 0.0
    %4217 = vmatpush1.msra.mxu0 0.0
    %4218 = vmatprep.subr.mxu0 0.0
    %4219 = vmatpush1.msra.mxu0 0.0
    %4220 = vmatprep.subr.mxu0 0.0
    %4221 = vmatpush1.msra.mxu0 0.0
    %4222 = vmatprep.subr.mxu0 0.0
    %4223 = vmatpush1.msra.mxu0 0.0
    %4224 = vmatprep.subr.mxu0 0.0
    %4225 = vmatpush1.msra.mxu0 0.0
    %4226 = vmatprep.subr.mxu0 0.0
    %4227 = vmatpush1.msra.mxu0 0.0
    %4228 = vmatprep.subr.mxu0 0.0
    %4229 = vmatpush1.msra.mxu0 0.0
    %4230 = vmatprep.subr.mxu0 0.0
    %4231 = vmatpush1.msra.mxu0 0.0
    %4232 = vmatprep.subr.mxu0 0.0
    %4233 = vmatpush1.msra.mxu0 0.0
    %4234 = vmatprep.subr.mxu0 0.0
    %4235 = vmatpush1.msra.mxu0 0.0
    %4236 = vmatprep.subr.mxu0 0.0
    %4237 = vmatpush1.msra.mxu0 0.0
    %4238 = vmatprep.subr.mxu0 0.0
    %4239 = vmatpush1.msra.mxu0 0.0
    %4240 = vmatprep.subr.mxu0 0.0
    %4241 = vmatpush1.msra.mxu0 0.0
    %4242 = vmatprep.mubr.f32.mxu0 0.0
    %4243 = vmatmul.mubr.f32.gmra.mrb[0].mxu0 %v4004
    %v4244 = vpop.f32.mrb[0].mxu0
    %v4245 = vadd.f32 0.0, %v4244
    %v4246 = vpop.f32.mrb[0].mxu0
    %4247 = vdwg.mxu0
    %v4249 = vsel %vm55, %v4095, 0
    %4251 = vmatprep.subr.mxu0 0.0
    %4252 = vmatpush1.msra.mxu0 %v4170
    %4253 = vmatprep.subr.mxu0 0.0
    %4254 = vmatpush1.msra.mxu0 %v4171
    %4255 = vmatprep.subr.mxu0 0.0
    %4256 = vmatpush1.msra.mxu0 %v4172
    %4257 = vmatprep.subr.mxu0 0.0
    %4258 = vmatpush1.msra.mxu0 %v4173
    %4259 = vmatprep.subr.mxu0 0.0
    %4260 = vmatpush1.msra.mxu0 0.0
    %4261 = vmatprep.subr.mxu0 0.0
    %4262 = vmatpush1.msra.mxu0 0.0
    %4263 = vmatprep.subr.mxu0 0.0
    %4264 = vmatpush1.msra.mxu0 0.0
    %4265 = vmatprep.subr.mxu0 0.0
    %4266 = vmatpush1.msra.mxu0 0.0
    %4267 = vmatprep.subr.mxu0 0.0
    %4268 = vmatpush1.msra.mxu0 0.0
    %4269 = vmatprep.subr.mxu0 0.0
    %4270 = vmatpush1.msra.mxu0 0.0
    %4271 = vmatprep.subr.mxu0 0.0
    %4272 = vmatpush1.msra.mxu0 0.0
    %4273 = vmatprep.subr.mxu0 0.0
    %4274 = vmatpush1.msra.mxu0 0.0
    %4275 = vmatprep.subr.mxu0 0.0
    %4276 = vmatpush1.msra.mxu0 0.0
    %4277 = vmatprep.subr.mxu0 0.0
    %4278 = vmatpush1.msra.mxu0 0.0
    %4279 = vmatprep.subr.mxu0 0.0
    %4280 = vmatpush1.msra.mxu0 0.0
    %4281 = vmatprep.subr.mxu0 0.0
    %4282 = vmatpush1.msra.mxu0 0.0
    %4283 = vmatprep.subr.mxu0 0.0
    %4284 = vmatpush1.msra.mxu0 0.0
    %4285 = vmatprep.subr.mxu0 0.0
    %4286 = vmatpush1.msra.mxu0 0.0
    %4287 = vmatprep.subr.mxu0 0.0
    %4288 = vmatpush1.msra.mxu0 0.0
    %4289 = vmatprep.subr.mxu0 0.0
    %4290 = vmatpush1.msra.mxu0 0.0
    %4291 = vmatprep.subr.mxu0 0.0
    %4292 = vmatpush1.msra.mxu0 0.0
    %4293 = vmatprep.subr.mxu0 0.0
    %4294 = vmatpush1.msra.mxu0 0.0
    %4295 = vmatprep.subr.mxu0 0.0
    %4296 = vmatpush1.msra.mxu0 0.0
    %4297 = vmatprep.subr.mxu0 0.0
    %4298 = vmatpush1.msra.mxu0 0.0
    %4299 = vmatprep.subr.mxu0 0.0
    %4300 = vmatpush1.msra.mxu0 0.0
    %4301 = vmatprep.subr.mxu0 0.0
    %4302 = vmatpush1.msra.mxu0 0.0
    %4303 = vmatprep.subr.mxu0 0.0
    %4304 = vmatpush1.msra.mxu0 0.0
    %4305 = vmatprep.subr.mxu0 0.0
    %4306 = vmatpush1.msra.mxu0 0.0
    %4307 = vmatprep.subr.mxu0 0.0
    %4308 = vmatpush1.msra.mxu0 0.0
    %4309 = vmatprep.subr.mxu0 0.0
    %4310 = vmatpush1.msra.mxu0 0.0
    %4311 = vmatprep.subr.mxu0 0.0
    %4312 = vmatpush1.msra.mxu0 0.0
    %4313 = vmatprep.subr.mxu0 0.0
    %4314 = vmatpush1.msra.mxu0 0.0
    %4315 = vmatprep.mubr.f32.mxu0 0.0
    %4316 = vmatmul.mubr.f32.gmra.mrb[0].mxu0 %v4249
    %v4317 = vpop.f32.mrb[0].mxu0
    %v4318 = vadd.f32 %v4245, %v4317
    %v4319 = vpop.f32.mrb[0].mxu0
    %4320 = vdwg.mxu0
    %v4321 = vld [vmem:[#allocation4 + $0xe0] sm:$0x1]
    %v4322 = vadd.f32 %v4318, %v4321
    %v4323 = vsel %vm282, %v4322, -inf
    %4324 = vmax.xlane.f32.xlu0 %v4323
    %v4325 = vpop.xlane.xlu0 %4324
    %v4326 = vsub.f32 %v4322, %v4325
    %v4327 = vmul.f32 %v4326, 1.442695
    %v4328 = vpow.pop %v4327
    %v4329 = vsel %vm282, %v4328, 0.0
    %4330 = vadd.xlane.f32.xlu0 %v4329
    %v4331 = vpop.xlane.xlu0 %4330
    %v4332 = vrcp.pop %v4331
    %v4333 = vmul.f32 %v4331, %v4332
    %v4334 = vsub.f32 2.0, %v4333
    %v4335 = vmul.f32 %v4332, %v4334
    %v4336 = vmul.f32 %v4328, %v4335
    %v4338 = vsel %vm55, %v4336, 0
    %4340 = vmatprep.subr.mxu0 0.0
    %4341 = vmatpush1.msra.mxu0 %v43
    %4342 = vmatprep.subr.mxu0 0.0
    %4343 = vmatpush1.msra.mxu0 %v44
    %4344 = vmatprep.subr.mxu0 0.0
    %4345 = vmatpush1.msra.mxu0 %v45
    %4346 = vmatprep.subr.mxu0 0.0
    %4347 = vmatpush1.msra.mxu0 %v46
    %4348 = vmatprep.subr.mxu0 0.0
    %4349 = vmatpush1.msra.mxu0 0.0
    %4350 = vmatprep.subr.mxu0 0.0
    %4351 = vmatpush1.msra.mxu0 0.0
    %4352 = vmatprep.subr.mxu0 0.0
    %4353 = vmatpush1.msra.mxu0 0.0
    %4354 = vmatprep.subr.mxu0 0.0
    %4355 = vmatpush1.msra.mxu0 0.0
    %4356 = vmatprep.subr.mxu0 0.0
    %4357 = vmatpush1.msra.mxu0 0.0
    %4358 = vmatprep.subr.mxu0 0.0
    %4359 = vmatpush1.msra.mxu0 0.0
    %4360 = vmatprep.subr.mxu0 0.0
    %4361 = vmatpush1.msra.mxu0 0.0
    %4362 = vmatprep.subr.mxu0 0.0
    %4363 = vmatpush1.msra.mxu0 0.0
    %4364 = vmatprep.subr.mxu0 0.0
    %4365 = vmatpush1.msra.mxu0 0.0
    %4366 = vmatprep.subr.mxu0 0.0
    %4367 = vmatpush1.msra.mxu0 0.0
    %4368 = vmatprep.subr.mxu0 0.0
    %4369 = vmatpush1.msra.mxu0 0.0
    %4370 = vmatprep.subr.mxu0 0.0
    %4371 = vmatpush1.msra.mxu0 0.0
    %4372 = vmatprep.subr.mxu0 0.0
    %4373 = vmatpush1.msra.mxu0 0.0
    %4374 = vmatprep.subr.mxu0 0.0
    %4375 = vmatpush1.msra.mxu0 0.0
    %4376 = vmatprep.subr.mxu0 0.0
    %4377 = vmatpush1.msra.mxu0 0.0
    %4378 = vmatprep.subr.mxu0 0.0
    %4379 = vmatpush1.msra.mxu0 0.0
    %4380 = vmatprep.subr.mxu0 0.0
    %4381 = vmatpush1.msra.mxu0 0.0
    %4382 = vmatprep.subr.mxu0 0.0
    %4383 = vmatpush1.msra.mxu0 0.0
    %4384 = vmatprep.subr.mxu0 0.0
    %4385 = vmatpush1.msra.mxu0 0.0
    %4386 = vmatprep.subr.mxu0 0.0
    %4387 = vmatpush1.msra.mxu0 0.0
    %4388 = vmatprep.subr.mxu0 0.0
    %4389 = vmatpush1.msra.mxu0 0.0
    %4390 = vmatprep.subr.mxu0 0.0
    %4391 = vmatpush1.msra.mxu0 0.0
    %4392 = vmatprep.subr.mxu0 0.0
    %4393 = vmatpush1.msra.mxu0 0.0
    %4394 = vmatprep.subr.mxu0 0.0
    %4395 = vmatpush1.msra.mxu0 0.0
    %4396 = vmatprep.subr.mxu0 0.0
    %4397 = vmatpush1.msra.mxu0 0.0
    %4398 = vmatprep.subr.mxu0 0.0
    %4399 = vmatpush1.msra.mxu0 0.0
    %4400 = vmatprep.subr.mxu0 0.0
    %4401 = vmatpush1.msra.mxu0 0.0
    %4402 = vmatprep.subr.mxu0 0.0
    %4403 = vmatpush1.msra.mxu0 0.0
    %4404 = vmatprep.mubr.f32.mxu0 0.0
    %4405 = vmatmul.mubr.f32.gmra.mrb[0].mxu0 %v4338
    %v4406 = vpop.f32.mrb[0].mxu0
    %v4407 = vadd.f32 0.0, %v4406
    %v4408 = vpop.f32.mrb[0].mxu0
    %4409 = vdwg.mxu0
    %v4410 = vld [vmem:[#allocation4 + $0x40] sm:$0xff]
    %v4411 = vld [vmem:[#allocation4 + $0x48] sm:$0xff]
    %v4412 = vld [vmem:[#allocation4 + $0x50] sm:$0xff]
    %v4413 = vld [vmem:[#allocation4 + $0x58] sm:$0xff]
    %v4414 = vld [vmem:[#allocation4 + $0x60] sm:$0xff]
    %v4415 = vld [vmem:[#allocation4 + $0x68] sm:$0xff]
    %v4416 = vld [vmem:[#allocation4 + $0x70] sm:$0xff]
    %v4417 = vld [vmem:[#allocation4 + $0x78] sm:$0xff]
    %v4419 = vsel %vm55, %v4407, 0
    %4421 = vmatprep.subr.mxu0 0.0
    %4422 = vmatpush1.msra.mxu0 %v4414
    %4423 = vmatprep.subr.mxu0 0.0
    %4424 = vmatpush1.msra.mxu0 %v4415
    %4425 = vmatprep.subr.mxu0 0.0
    %4426 = vmatpush1.msra.mxu0 %v4416
    %4427 = vmatprep.subr.mxu0 0.0
    %4428 = vmatpush1.msra.mxu0 %v4417
    %4429 = vmatprep.subr.mxu0 0.0
    %4430 = vmatpush1.msra.mxu0 0.0
    %4431 = vmatprep.subr.mxu0 0.0
    %4432 = vmatpush1.msra.mxu0 0.0
    %4433 = vmatprep.subr.mxu0 0.0
    %4434 = vmatpush1.msra.mxu0 0.0
    %4435 = vmatprep.subr.mxu0 0.0
    %4436 = vmatpush1.msra.mxu0 0.0
    %4437 = vmatprep.subr.mxu0 0.0
    %4438 = vmatpush1.msra.mxu0 0.0
    %4439 = vmatprep.subr.mxu0 0.0
    %4440 = vmatpush1.msra.mxu0 0.0
    %4441 = vmatprep.subr.mxu0 0.0
    %4442 = vmatpush1.msra.mxu0 0.0
    %4443 = vmatprep.subr.mxu0 0.0
    %4444 = vmatpush1.msra.mxu0 0.0
    %4445 = vmatprep.subr.mxu0 0.0
    %4446 = vmatpush1.msra.mxu0 0.0
    %4447 = vmatprep.subr.mxu0 0.0
    %4448 = vmatpush1.msra.mxu0 0.0
    %4449 = vmatprep.subr.mxu0 0.0
    %4450 = vmatpush1.msra.mxu0 0.0
    %4451 = vmatprep.subr.mxu0 0.0
    %4452 = vmatpush1.msra.mxu0 0.0
    %4453 = vmatprep.subr.mxu0 0.0
    %4454 = vmatpush1.msra.mxu0 0.0
    %4455 = vmatprep.subr.mxu0 0.0
    %4456 = vmatpush1.msra.mxu0 0.0
    %4457 = vmatprep.subr.mxu0 0.0
    %4458 = vmatpush1.msra.mxu0 0.0
    %4459 = vmatprep.subr.mxu0 0.0
    %4460 = vmatpush1.msra.mxu0 0.0
    %4461 = vmatprep.subr.mxu0 0.0
    %4462 = vmatpush1.msra.mxu0 0.0
    %4463 = vmatprep.subr.mxu0 0.0
    %4464 = vmatpush1.msra.mxu0 0.0
    %4465 = vmatprep.subr.mxu0 0.0
    %4466 = vmatpush1.msra.mxu0 0.0
    %4467 = vmatprep.subr.mxu0 0.0
    %4468 = vmatpush1.msra.mxu0 0.0
    %4469 = vmatprep.subr.mxu0 0.0
    %4470 = vmatpush1.msra.mxu0 0.0
    %4471 = vmatprep.subr.mxu0 0.0
    %4472 = vmatpush1.msra.mxu0 0.0
    %4473 = vmatprep.subr.mxu0 0.0
    %4474 = vmatpush1.msra.mxu0 0.0
    %4475 = vmatprep.subr.mxu0 0.0
    %4476 = vmatpush1.msra.mxu0 0.0
    %4477 = vmatprep.subr.mxu0 0.0
    %4478 = vmatpush1.msra.mxu0 0.0
    %4479 = vmatprep.subr.mxu0 0.0
    %4480 = vmatpush1.msra.mxu0 0.0
    %4481 = vmatprep.subr.mxu0 0.0
    %4482 = vmatpush1.msra.mxu0 0.0
    %4483 = vmatprep.subr.mxu0 0.0
    %4484 = vmatpush1.msra.mxu0 0.0
    %4485 = vmatprep.mubr.f32.mxu0 0.0
    %4486 = vmatmul.mubr.f32.gmra.mrb[0].mxu0 %v4419
    %v4487 = vpop.f32.mrb[0].mxu0
    %v4488 = vadd.f32 0.0, %v4487
    %v4489 = vpop.f32.mrb[0].mxu0
    %4490 = vdwg.mxu0
    %4491 = vmatprep.subr.mxu0 0.0
    %4492 = vmatpush1.msra.mxu0 %v4410
    %4493 = vmatprep.subr.mxu0 0.0
    %4494 = vmatpush1.msra.mxu0 %v4411
    %4495 = vmatprep.subr.mxu0 0.0
    %4496 = vmatpush1.msra.mxu0 %v4412
    %4497 = vmatprep.subr.mxu0 0.0
    %4498 = vmatpush1.msra.mxu0 %v4413
    %4499 = vmatprep.subr.mxu0 0.0
    %4500 = vmatpush1.msra.mxu0 0.0
    %4501 = vmatprep.subr.mxu0 0.0
    %4502 = vmatpush1.msra.mxu0 0.0
    %4503 = vmatprep.subr.mxu0 0.0
    %4504 = vmatpush1.msra.mxu0 0.0
    %4505 = vmatprep.subr.mxu0 0.0
    %4506 = vmatpush1.msra.mxu0 0.0
    %4507 = vmatprep.subr.mxu0 0.0
    %4508 = vmatpush1.msra.mxu0 0.0
    %4509 = vmatprep.subr.mxu0 0.0
    %4510 = vmatpush1.msra.mxu0 0.0
    %4511 = vmatprep.subr.mxu0 0.0
    %4512 = vmatpush1.msra.mxu0 0.0
    %4513 = vmatprep.subr.mxu0 0.0
    %4514 = vmatpush1.msra.mxu0 0.0
    %4515 = vmatprep.subr.mxu0 0.0
    %4516 = vmatpush1.msra.mxu0 0.0
    %4517 = vmatprep.subr.mxu0 0.0
    %4518 = vmatpush1.msra.mxu0 0.0
    %4519 = vmatprep.subr.mxu0 0.0
    %4520 = vmatpush1.msra.mxu0 0.0
    %4521 = vmatprep.subr.mxu0 0.0
    %4522 = vmatpush1.msra.mxu0 0.0
    %4523 = vmatprep.subr.mxu0 0.0
    %4524 = vmatpush1.msra.mxu0 0.0
    %4525 = vmatprep.subr.mxu0 0.0
    %4526 = vmatpush1.msra.mxu0 0.0
    %4527 = vmatprep.subr.mxu0 0.0
    %4528 = vmatpush1.msra.mxu0 0.0
    %4529 = vmatprep.subr.mxu0 0.0
    %4530 = vmatpush1.msra.mxu0 0.0
    %4531 = vmatprep.subr.mxu0 0.0
    %4532 = vmatpush1.msra.mxu0 0.0
    %4533 = vmatprep.subr.mxu0 0.0
    %4534 = vmatpush1.msra.mxu0 0.0
    %4535 = vmatprep.subr.mxu0 0.0
    %4536 = vmatpush1.msra.mxu0 0.0
    %4537 = vmatprep.subr.mxu0 0.0
    %4538 = vmatpush1.msra.mxu0 0.0
    %4539 = vmatprep.subr.mxu0 0.0
    %4540 = vmatpush1.msra.mxu0 0.0
    %4541 = vmatprep.subr.mxu0 0.0
    %4542 = vmatpush1.msra.mxu0 0.0
    %4543 = vmatprep.subr.mxu0 0.0
    %4544 = vmatpush1.msra.mxu0 0.0
    %4545 = vmatprep.subr.mxu0 0.0
    %4546 = vmatpush1.msra.mxu0 0.0
    %4547 = vmatprep.subr.mxu0 0.0
    %4548 = vmatpush1.msra.mxu0 0.0
    %4549 = vmatprep.subr.mxu0 0.0
    %4550 = vmatpush1.msra.mxu0 0.0
    %4551 = vmatprep.subr.mxu0 0.0
    %4552 = vmatpush1.msra.mxu0 0.0
    %4553 = vmatprep.subr.mxu0 0.0
    %4554 = vmatpush1.msra.mxu0 0.0
    %4555 = vmatprep.mubr.f32.mxu0 0.0
    %4556 = vmatmul.mubr.f32.gmra.mrb[0].mxu0 %v4249
    %v4557 = vpop.f32.mrb[0].mxu0
    %v4558 = vadd.f32 %v4488, %v4557
    %v4559 = vpop.f32.mrb[0].mxu0
    %4560 = vdwg.mxu0
    %v4561 = vld [vmem:[#allocation4 + $0xe1] sm:$0x1]
    %v4562 = vadd.f32 %v4558, %v4561
    %v4563 = vmax.f32 %v4562, 0.0
    %v4564 = vld [vmem:[#allocation4 + $0x80] sm:$0xff]
    %v4565 = vld [vmem:[#allocation4 + $0x88] sm:$0xff]
    %v4566 = vld [vmem:[#allocation4 + $0x90] sm:$0xff]
    %v4567 = vld [vmem:[#allocation4 + $0x98] sm:$0xff]
    %v4569 = vsel %vm55, %v4563, 0
    %4571 = vmatprep.subr.mxu0 0.0
    %4572 = vmatpush1.msra.mxu0 %v4564
    %4573 = vmatprep.subr.mxu0 0.0
    %4574 = vmatpush1.msra.mxu0 %v4565
    %4575 = vmatprep.subr.mxu0 0.0
    %4576 = vmatpush1.msra.mxu0 %v4566
    %4577 = vmatprep.subr.mxu0 0.0
    %4578 = vmatpush1.msra.mxu0 %v4567
    %4579 = vmatprep.subr.mxu0 0.0
    %4580 = vmatpush1.msra.mxu0 0.0
    %4581 = vmatprep.subr.mxu0 0.0
    %4582 = vmatpush1.msra.mxu0 0.0
    %4583 = vmatprep.subr.mxu0 0.0
    %4584 = vmatpush1.msra.mxu0 0.0
    %4585 = vmatprep.subr.mxu0 0.0
    %4586 = vmatpush1.msra.mxu0 0.0
    %4587 = vmatprep.subr.mxu0 0.0
    %4588 = vmatpush1.msra.mxu0 0.0
    %4589 = vmatprep.subr.mxu0 0.0
    %4590 = vmatpush1.msra.mxu0 0.0
    %4591 = vmatprep.subr.mxu0 0.0
    %4592 = vmatpush1.msra.mxu0 0.0
    %4593 = vmatprep.subr.mxu0 0.0
    %4594 = vmatpush1.msra.mxu0 0.0
    %4595 = vmatprep.subr.mxu0 0.0
    %4596 = vmatpush1.msra.mxu0 0.0
    %4597 = vmatprep.subr.mxu0 0.0
    %4598 = vmatpush1.msra.mxu0 0.0
    %4599 = vmatprep.subr.mxu0 0.0
    %4600 = vmatpush1.msra.mxu0 0.0
    %4601 = vmatprep.subr.mxu0 0.0
    %4602 = vmatpush1.msra.mxu0 0.0
    %4603 = vmatprep.subr.mxu0 0.0
    %4604 = vmatpush1.msra.mxu0 0.0
    %4605 = vmatprep.subr.mxu0 0.0
    %4606 = vmatpush1.msra.mxu0 0.0
    %4607 = vmatprep.subr.mxu0 0.0
    %4608 = vmatpush1.msra.mxu0 0.0
    %4609 = vmatprep.subr.mxu0 0.0
    %4610 = vmatpush1.msra.mxu0 0.0
    %4611 = vmatprep.subr.mxu0 0.0
    %4612 = vmatpush1.msra.mxu0 0.0
    %4613 = vmatprep.subr.mxu0 0.0
    %4614 = vmatpush1.msra.mxu0 0.0
    %4615 = vmatprep.subr.mxu0 0.0
    %4616 = vmatpush1.msra.mxu0 0.0
    %4617 = vmatprep.subr.mxu0 0.0
    %4618 = vmatpush1.msra.mxu0 0.0
    %4619 = vmatprep.subr.mxu0 0.0
    %4620 = vmatpush1.msra.mxu0 0.0
    %4621 = vmatprep.subr.mxu0 0.0
    %4622 = vmatpush1.msra.mxu0 0.0
    %4623 = vmatprep.subr.mxu0 0.0
    %4624 = vmatpush1.msra.mxu0 0.0
    %4625 = vmatprep.subr.mxu0 0.0
    %4626 = vmatpush1.msra.mxu0 0.0
    %4627 = vmatprep.subr.mxu0 0.0
    %4628 = vmatpush1.msra.mxu0 0.0
    %4629 = vmatprep.subr.mxu0 0.0
    %4630 = vmatpush1.msra.mxu0 0.0
    %4631 = vmatprep.subr.mxu0 0.0
    %4632 = vmatpush1.msra.mxu0 0.0
    %4633 = vmatprep.subr.mxu0 0.0
    %4634 = vmatpush1.msra.mxu0 0.0
    %4635 = vmatprep.mubr.f32.mxu0 0.0
    %4636 = vmatmul.mubr.f32.gmra.mrb[0].mxu0 %v4569
    %v4637 = vpop.f32.mrb[0].mxu0
    %v4638 = vadd.f32 %v4167, %v4637
    %v4639 = vpop.f32.mrb[0].mxu0
    %4640 = vdwg.mxu0
    %v4641 = vld [vmem:[#allocation4 + $0xe2] sm:$0x1]
    %v4642 = vadd.f32 %v4638, %v4641
    %v4643 = vxor.u32 %v4642, 2147483648
    %v4644 = vmul.f32 %v4643, 1.442695
    %v4645 = vpow.pop %v4644
    %v4646 = vadd.f32 %v4645, 1.0
    %v4647 = vrcp.pop %v4646
    %v4648 = vmul.f32 1.0, %v4647
    %4650 = vrot.lane.b32.xlu0 %v4642, 32
    %v4651 = vpop.permute.xlu0 %4650
    %v4653 = vmul.f32 %v4648, %v4651
    %4655 = vrot.lane.b32.xlu0 %v4653, 64
    %v4656 = vpop.permute.xlu0 %4655
    %v4658 = vadd.f32 %v4642, %v4656
    %v4659 = vtanh.pop %v4658
    %v4660 = vsub.f32 1.0, %v4648
    %4662 = vrot.lane.b32.xlu0 %v4659, 96
    %v4663 = vpop.permute.xlu0 %4662
    %v4665 = vmul.f32 %v4660, %v4663
    %v4666 = vmul.f32 %v4648, %v3995
    %v4667 = vadd.f32 %v4665, %v4666
    %v4668 = vld [vmem:[#allocation4 + $0xc0] sm:$0xff]
    %v4669 = vld [vmem:[#allocation4 + $0xc8] sm:$0xff]
    %v4670 = vld [vmem:[#allocation4 + $0xd0] sm:$0xff]
    %v4671 = vld [vmem:[#allocation4 + $0xd8] sm:$0xff]
    %v4672 = vld [vmem:[#allocation4 + $0xe3] sm:$0x1]
    %4674 = vrot.lane.b32.xlu0 %v4667, 96
    %v4675 = vpop.permute.xlu0 %4674
    %v4676 = vsel %vm55, %v4675, 0
    %4678 = vmatprep.subr.mxu0 0.0
    %4679 = vmatpush1.msra.mxu0 %v4668
    %4680 = vmatprep.subr.mxu0 0.0
    %4681 = vmatpush1.msra.mxu0 %v4669
    %4682 = vmatprep.subr.mxu0 0.0
    %4683 = vmatpush1.msra.mxu0 %v4670
    %4684 = vmatprep.subr.mxu0 0.0
    %4685 = vmatpush1.msra.mxu0 %v4671
    %4686 = vmatprep.subr.mxu0 0.0
    %4687 = vmatpush1.msra.mxu0 0.0
    %4688 = vmatprep.subr.mxu0 0.0
    %4689 = vmatpush1.msra.mxu0 0.0
    %4690 = vmatprep.subr.mxu0 0.0
    %4691 = vmatpush1.msra.mxu0 0.0
    %4692 = vmatprep.subr.mxu0 0.0
    %4693 = vmatpush1.msra.mxu0 0.0
    %4694 = vmatprep.subr.mxu0 0.0
    %4695 = vmatpush1.msra.mxu0 0.0
    %4696 = vmatprep.subr.mxu0 0.0
    %4697 = vmatpush1.msra.mxu0 0.0
    %4698 = vmatprep.subr.mxu0 0.0
    %4699 = vmatpush1.msra.mxu0 0.0
    %4700 = vmatprep.subr.mxu0 0.0
    %4701 = vmatpush1.msra.mxu0 0.0
    %4702 = vmatprep.subr.mxu0 0.0
    %4703 = vmatpush1.msra.mxu0 0.0
    %4704 = vmatprep.subr.mxu0 0.0
    %4705 = vmatpush1.msra.mxu0 0.0
    %4706 = vmatprep.subr.mxu0 0.0
    %4707 = vmatpush1.msra.mxu0 0.0
    %4708 = vmatprep.subr.mxu0 0.0
    %4709 = vmatpush1.msra.mxu0 0.0
    %4710 = vmatprep.subr.mxu0 0.0
    %4711 = vmatpush1.msra.mxu0 0.0
    %4712 = vmatprep.subr.mxu0 0.0
    %4713 = vmatpush1.msra.mxu0 0.0
    %4714 = vmatprep.subr.mxu0 0.0
    %4715 = vmatpush1.msra.mxu0 0.0
    %4716 = vmatprep.subr.mxu0 0.0
    %4717 = vmatpush1.msra.mxu0 0.0
    %4718 = vmatprep.subr.mxu0 0.0
    %4719 = vmatpush1.msra.mxu0 0.0
    %4720 = vmatprep.subr.mxu0 0.0
    %4721 = vmatpush1.msra.mxu0 0.0
    %4722 = vmatprep.subr.mxu0 0.0
    %4723 = vmatpush1.msra.mxu0 0.0
    %4724 = vmatprep.subr.mxu0 0.0
    %4725 = vmatpush1.msra.mxu0 0.0
    %4726 = vmatprep.subr.mxu0 0.0
    %4727 = vmatpush1.msra.mxu0 0.0
    %4728 = vmatprep.subr.mxu0 0.0
    %4729 = vmatpush1.msra.mxu0 0.0
    %4730 = vmatprep.subr.mxu0 0.0
    %4731 = vmatpush1.msra.mxu0 0.0
    %4732 = vmatprep.subr.mxu0 0.0
    %4733 = vmatpush1.msra.mxu0 0.0
    %4734 = vmatprep.subr.mxu0 0.0
    %4735 = vmatpush1.msra.mxu0 0.0
    %4736 = vmatprep.subr.mxu0 0.0
    %4737 = vmatpush1.msra.mxu0 0.0
    %4738 = vmatprep.subr.mxu0 0.0
    %4739 = vmatpush1.msra.mxu0 0.0
    %4740 = vmatprep.subr.mxu0 0.0
    %4741 = vmatpush1.msra.mxu0 0.0
    %4742 = vmatprep.mubr.f32.mxu0 0.0
    %4743 = vmatmul.mubr.f32.gmra.mrb[0].mxu0 %v4676
    %v4744 = vpop.f32.mrb[0].mxu0
    %v4745 = vadd.f32 %v4672, %v4744
    %v4746 = vpop.f32.mrb[0].mxu0
    %4747 = vdwg.mxu0
    %v4748 = vsel %vm715, %v4745, -inf
    %4749 = vmax.xlane.f32.xlu0 %v4748
    %v4750 = vpop.xlane.xlu0 %4749
    %v4751 = vsub.f32 %v4745, %v4750
    %v4752 = vmul.f32 %v4751, 1.442695
    %v4753 = vpow.pop %v4752
    %v4754 = vsel %vm715, %v4753, 0.0
    %4755 = vadd.xlane.f32.xlu0 %v4754
    %v4756 = vpop.xlane.xlu0 %4755
    %v4757 = vlog2.pop %v4756
    %v4758 = vmul.f32 %v4757, 0.6931472
    %v4759 = vadd.f32 %v4758, %v4750
    %v4760 = vsub.f32 %v4745, %v4759
    %4761 = vst.msk [vmem:[#allocation7 + $0x6] sm:$0x1] %vm715, %v4760
    %4763 = vst.msk [vmem:[#allocation8 + $0x6] sm:$0x1] %vm282, %v4675
    %4764 = vst.msk [vmem:[#allocation10 + $0x6] sm:$0x1] %vm282, %v4336
    %s4765 = sld [smem:[#allocation3 + $0x7]]
    %s4766 = scalar_lea.vmem %s1, %s4765
    %v4767 = vld [vmem:[%s4766] sm:$0x1]
    %v4768 = vld [vmem:[#allocation4 + $0xa0] sm:$0xff]
    %v4769 = vld [vmem:[#allocation4 + $0xa8] sm:$0xff]
    %v4770 = vld [vmem:[#allocation4 + $0xb0] sm:$0xff]
    %v4771 = vld [vmem:[#allocation4 + $0xb8] sm:$0xff]
    %4772 = vmatprep.subr.mxu0 0.0
    %4773 = vmatpush1.msra.mxu0 %v4768
    %4774 = vmatprep.subr.mxu0 0.0
    %4775 = vmatpush1.msra.mxu0 %v4769
    %4776 = vmatprep.subr.mxu0 0.0
    %4777 = vmatpush1.msra.mxu0 %v4770
    %4778 = vmatprep.subr.mxu0 0.0
    %4779 = vmatpush1.msra.mxu0 %v4771
    %4780 = vmatprep.subr.mxu0 0.0
    %4781 = vmatpush1.msra.mxu0 0.0
    %4782 = vmatprep.subr.mxu0 0.0
    %4783 = vmatpush1.msra.mxu0 0.0
    %4784 = vmatprep.subr.mxu0 0.0
    %4785 = vmatpush1.msra.mxu0 0.0
    %4786 = vmatprep.subr.mxu0 0.0
    %4787 = vmatpush1.msra.mxu0 0.0
    %4788 = vmatprep.subr.mxu0 0.0
    %4789 = vmatpush1.msra.mxu0 0.0
    %4790 = vmatprep.subr.mxu0 0.0
    %4791 = vmatpush1.msra.mxu0 0.0
    %4792 = vmatprep.subr.mxu0 0.0
    %4793 = vmatpush1.msra.mxu0 0.0
    %4794 = vmatprep.subr.mxu0 0.0
    %4795 = vmatpush1.msra.mxu0 0.0
    %4796 = vmatprep.subr.mxu0 0.0
    %4797 = vmatpush1.msra.mxu0 0.0
    %4798 = vmatprep.subr.mxu0 0.0
    %4799 = vmatpush1.msra.mxu0 0.0
    %4800 = vmatprep.subr.mxu0 0.0
    %4801 = vmatpush1.msra.mxu0 0.0
    %4802 = vmatprep.subr.mxu0 0.0
    %4803 = vmatpush1.msra.mxu0 0.0
    %4804 = vmatprep.subr.mxu0 0.0
    %4805 = vmatpush1.msra.mxu0 0.0
    %4806 = vmatprep.subr.mxu0 0.0
    %4807 = vmatpush1.msra.mxu0 0.0
    %4808 = vmatprep.subr.mxu0 0.0
    %4809 = vmatpush1.msra.mxu0 0.0
    %4810 = vmatprep.subr.mxu0 0.0
    %4811 = vmatpush1.msra.mxu0 0.0
    %4812 = vmatprep.subr.mxu0 0.0
    %4813 = vmatpush1.msra.mxu0 0.0
    %4814 = vmatprep.subr.mxu0 0.0
    %4815 = vmatpush1.msra.mxu0 0.0
    %4816 = vmatprep.subr.mxu0 0.0
    %4817 = vmatpush1.msra.mxu0 0.0
    %4818 = vmatprep.subr.mxu0 0.0
    %4819 = vmatpush1.msra.mxu0 0.0
    %4820 = vmatprep.subr.mxu0 0.0
    %4821 = vmatpush1.msra.mxu0 0.0
    %4822 = vmatprep.subr.mxu0 0.0
    %4823 = vmatpush1.msra.mxu0 0.0
    %4824 = vmatprep.subr.mxu0 0.0
    %4825 = vmatpush1.msra.mxu0 0.0
    %4826 = vmatprep.subr.mxu0 0.0
    %4827 = vmatpush1.msra.mxu0 0.0
    %4828 = vmatprep.subr.mxu0 0.0
    %4829 = vmatpush1.msra.mxu0 0.0
    %4830 = vmatprep.subr.mxu0 0.0
    %4831 = vmatpush1.msra.mxu0 0.0
    %4832 = vmatprep.subr.mxu0 0.0
    %4833 = vmatpush1.msra.mxu0 0.0
    %4834 = vmatprep.subr.mxu0 0.0
    %4835 = vmatpush1.msra.mxu0 0.0
    %4836 = vmatprep.mubr.f32.mxu0 0.0
    %4837 = vmatmul.mubr.f32.gmra.mrb[0].mxu0 %v4676
    %v4838 = vpop.f32.mrb[0].mxu0
    %v4839 = vadd.f32 0.0, %v4838
    %v4840 = vpop.f32.mrb[0].mxu0
    %4841 = vdwg.mxu0
    %v4842 = vld [vmem:[#allocation4] sm:$0xff]
    %v4843 = vld [vmem:[#allocation4 + $0x8] sm:$0xff]
    %v4844 = vld [vmem:[#allocation4 + $0x10] sm:$0xff]
    %v4845 = vld [vmem:[#allocation4 + $0x18] sm:$0xff]
    %v4846 = vld [vmem:[#allocation4 + $0x20] sm:$0xff]
    %v4847 = vld [vmem:[#allocation4 + $0x28] sm:$0xff]
    %v4848 = vld [vmem:[#allocation4 + $0x30] sm:$0xff]
    %v4849 = vld [vmem:[#allocation4 + $0x38] sm:$0xff]
    %4850 = vmatprep.subr.mxu0 0.0
    %4851 = vmatpush1.msra.mxu0 %v4846
    %4852 = vmatprep.subr.mxu0 0.0
    %4853 = vmatpush1.msra.mxu0 %v4847
    %4854 = vmatprep.subr.mxu0 0.0
    %4855 = vmatpush1.msra.mxu0 %v4848
    %4856 = vmatprep.subr.mxu0 0.0
    %4857 = vmatpush1.msra.mxu0 %v4849
    %4858 = vmatprep.subr.mxu0 0.0
    %4859 = vmatpush1.msra.mxu0 0.0
    %4860 = vmatprep.subr.mxu0 0.0
    %4861 = vmatpush1.msra.mxu0 0.0
    %4862 = vmatprep.subr.mxu0 0.0
    %4863 = vmatpush1.msra.mxu0 0.0
    %4864 = vmatprep.subr.mxu0 0.0
    %4865 = vmatpush1.msra.mxu0 0.0
    %4866 = vmatprep.subr.mxu0 0.0
    %4867 = vmatpush1.msra.mxu0 0.0
    %4868 = vmatprep.subr.mxu0 0.0
    %4869 = vmatpush1.msra.mxu0 0.0
    %4870 = vmatprep.subr.mxu0 0.0
    %4871 = vmatpush1.msra.mxu0 0.0
    %4872 = vmatprep.subr.mxu0 0.0
    %4873 = vmatpush1.msra.mxu0 0.0
    %4874 = vmatprep.subr.mxu0 0.0
    %4875 = vmatpush1.msra.mxu0 0.0
    %4876 = vmatprep.subr.mxu0 0.0
    %4877 = vmatpush1.msra.mxu0 0.0
    %4878 = vmatprep.subr.mxu0 0.0
    %4879 = vmatpush1.msra.mxu0 0.0
    %4880 = vmatprep.subr.mxu0 0.0
    %4881 = vmatpush1.msra.mxu0 0.0
    %4882 = vmatprep.subr.mxu0 0.0
    %4883 = vmatpush1.msra.mxu0 0.0
    %4884 = vmatprep.subr.mxu0 0.0
    %4885 = vmatpush1.msra.mxu0 0.0
    %4886 = vmatprep.subr.mxu0 0.0
    %4887 = vmatpush1.msra.mxu0 0.0
    %4888 = vmatprep.subr.mxu0 0.0
    %4889 = vmatpush1.msra.mxu0 0.0
    %4890 = vmatprep.subr.mxu0 0.0
    %4891 = vmatpush1.msra.mxu0 0.0
    %4892 = vmatprep.subr.mxu0 0.0
    %4893 = vmatpush1.msra.mxu0 0.0
    %4894 = vmatprep.subr.mxu0 0.0
    %4895 = vmatpush1.msra.mxu0 0.0
    %4896 = vmatprep.subr.mxu0 0.0
    %4897 = vmatpush1.msra.mxu0 0.0
    %4898 = vmatprep.subr.mxu0 0.0
    %4899 = vmatpush1.msra.mxu0 0.0
    %4900 = vmatprep.subr.mxu0 0.0
    %4901 = vmatpush1.msra.mxu0 0.0
    %4902 = vmatprep.subr.mxu0 0.0
    %4903 = vmatpush1.msra.mxu0 0.0
    %4904 = vmatprep.subr.mxu0 0.0
    %4905 = vmatpush1.msra.mxu0 0.0
    %4906 = vmatprep.subr.mxu0 0.0
    %4907 = vmatpush1.msra.mxu0 0.0
    %4908 = vmatprep.subr.mxu0 0.0
    %4909 = vmatpush1.msra.mxu0 0.0
    %4910 = vmatprep.subr.mxu0 0.0
    %4911 = vmatpush1.msra.mxu0 0.0
    %4912 = vmatprep.subr.mxu0 0.0
    %4913 = vmatpush1.msra.mxu0 0.0
    %4914 = vmatprep.mubr.f32.mxu0 0.0
    %4915 = vmatmul.mubr.f32.gmra.mrb[0].mxu0 %v4676
    %v4916 = vpop.f32.mrb[0].mxu0
    %v4917 = vadd.f32 0.0, %v4916
    %v4918 = vpop.f32.mrb[0].mxu0
    %4919 = vdwg.mxu0
    %v4921 = vsel %vm55, %v4767, 0
    %4923 = vmatprep.subr.mxu0 0.0
    %4924 = vmatpush1.msra.mxu0 %v4842
    %4925 = vmatprep.subr.mxu0 0.0
    %4926 = vmatpush1.msra.mxu0 %v4843
    %4927 = vmatprep.subr.mxu0 0.0
    %4928 = vmatpush1.msra.mxu0 %v4844
    %4929 = vmatprep.subr.mxu0 0.0
    %4930 = vmatpush1.msra.mxu0 %v4845
    %4931 = vmatprep.subr.mxu0 0.0
    %4932 = vmatpush1.msra.mxu0 0.0
    %4933 = vmatprep.subr.mxu0 0.0
    %4934 = vmatpush1.msra.mxu0 0.0
    %4935 = vmatprep.subr.mxu0 0.0
    %4936 = vmatpush1.msra.mxu0 0.0
    %4937 = vmatprep.subr.mxu0 0.0
    %4938 = vmatpush1.msra.mxu0 0.0
    %4939 = vmatprep.subr.mxu0 0.0
    %4940 = vmatpush1.msra.mxu0 0.0
    %4941 = vmatprep.subr.mxu0 0.0
    %4942 = vmatpush1.msra.mxu0 0.0
    %4943 = vmatprep.subr.mxu0 0.0
    %4944 = vmatpush1.msra.mxu0 0.0
    %4945 = vmatprep.subr.mxu0 0.0
    %4946 = vmatpush1.msra.mxu0 0.0
    %4947 = vmatprep.subr.mxu0 0.0
    %4948 = vmatpush1.msra.mxu0 0.0
    %4949 = vmatprep.subr.mxu0 0.0
    %4950 = vmatpush1.msra.mxu0 0.0
    %4951 = vmatprep.subr.mxu0 0.0
    %4952 = vmatpush1.msra.mxu0 0.0
    %4953 = vmatprep.subr.mxu0 0.0
    %4954 = vmatpush1.msra.mxu0 0.0
    %4955 = vmatprep.subr.mxu0 0.0
    %4956 = vmatpush1.msra.mxu0 0.0
    %4957 = vmatprep.subr.mxu0 0.0
    %4958 = vmatpush1.msra.mxu0 0.0
    %4959 = vmatprep.subr.mxu0 0.0
    %4960 = vmatpush1.msra.mxu0 0.0
    %4961 = vmatprep.subr.mxu0 0.0
    %4962 = vmatpush1.msra.mxu0 0.0
    %4963 = vmatprep.subr.mxu0 0.0
    %4964 = vmatpush1.msra.mxu0 0.0
    %4965 = vmatprep.subr.mxu0 0.0
    %4966 = vmatpush1.msra.mxu0 0.0
    %4967 = vmatprep.subr.mxu0 0.0
    %4968 = vmatpush1.msra.mxu0 0.0
    %4969 = vmatprep.subr.mxu0 0.0
    %4970 = vmatpush1.msra.mxu0 0.0
    %4971 = vmatprep.subr.mxu0 0.0
    %4972 = vmatpush1.msra.mxu0 0.0
    %4973 = vmatprep.subr.mxu0 0.0
    %4974 = vmatpush1.msra.mxu0 0.0
    %4975 = vmatprep.subr.mxu0 0.0
    %4976 = vmatpush1.msra.mxu0 0.0
    %4977 = vmatprep.subr.mxu0 0.0
    %4978 = vmatpush1.msra.mxu0 0.0
    %4979 = vmatprep.subr.mxu0 0.0
    %4980 = vmatpush1.msra.mxu0 0.0
    %4981 = vmatprep.subr.mxu0 0.0
    %4982 = vmatpush1.msra.mxu0 0.0
    %4983 = vmatprep.subr.mxu0 0.0
    %4984 = vmatpush1.msra.mxu0 0.0
    %4985 = vmatprep.subr.mxu0 0.0
    %4986 = vmatpush1.msra.mxu0 0.0
    %4987 = vmatprep.mubr.f32.mxu0 0.0
    %4988 = vmatmul.mubr.f32.gmra.mrb[0].mxu0 %v4921
    %v4989 = vpop.f32.mrb[0].mxu0
    %v4990 = vadd.f32 %v4917, %v4989
    %v4991 = vpop.f32.mrb[0].mxu0
    %4992 = vdwg.mxu0
    %v4993 = vld [vmem:[#allocation4 + $0xe0] sm:$0x1]
    %v4994 = vadd.f32 %v4990, %v4993
    %v4995 = vsel %vm282, %v4994, -inf
    %4996 = vmax.xlane.f32.xlu0 %v4995
    %v4997 = vpop.xlane.xlu0 %4996
    %v4998 = vsub.f32 %v4994, %v4997
    %v4999 = vmul.f32 %v4998, 1.442695
    %v5000 = vpow.pop %v4999
    %v5001 = vsel %vm282, %v5000, 0.0
    %5002 = vadd.xlane.f32.xlu0 %v5001
    %v5003 = vpop.xlane.xlu0 %5002
    %v5004 = vrcp.pop %v5003
    %v5005 = vmul.f32 %v5003, %v5004
    %v5006 = vsub.f32 2.0, %v5005
    %v5007 = vmul.f32 %v5004, %v5006
    %v5008 = vmul.f32 %v5000, %v5007
    %v5010 = vsel %vm55, %v5008, 0
    %5012 = vmatprep.subr.mxu0 0.0
    %5013 = vmatpush1.msra.mxu0 %v43
    %5014 = vmatprep.subr.mxu0 0.0
    %5015 = vmatpush1.msra.mxu0 %v44
    %5016 = vmatprep.subr.mxu0 0.0
    %5017 = vmatpush1.msra.mxu0 %v45
    %5018 = vmatprep.subr.mxu0 0.0
    %5019 = vmatpush1.msra.mxu0 %v46
    %5020 = vmatprep.subr.mxu0 0.0
    %5021 = vmatpush1.msra.mxu0 0.0
    %5022 = vmatprep.subr.mxu0 0.0
    %5023 = vmatpush1.msra.mxu0 0.0
    %5024 = vmatprep.subr.mxu0 0.0
    %5025 = vmatpush1.msra.mxu0 0.0
    %5026 = vmatprep.subr.mxu0 0.0
    %5027 = vmatpush1.msra.mxu0 0.0
    %5028 = vmatprep.subr.mxu0 0.0
    %5029 = vmatpush1.msra.mxu0 0.0
    %5030 = vmatprep.subr.mxu0 0.0
    %5031 = vmatpush1.msra.mxu0 0.0
    %5032 = vmatprep.subr.mxu0 0.0
    %5033 = vmatpush1.msra.mxu0 0.0
    %5034 = vmatprep.subr.mxu0 0.0
    %5035 = vmatpush1.msra.mxu0 0.0
    %5036 = vmatprep.subr.mxu0 0.0
    %5037 = vmatpush1.msra.mxu0 0.0
    %5038 = vmatprep.subr.mxu0 0.0
    %5039 = vmatpush1.msra.mxu0 0.0
    %5040 = vmatprep.subr.mxu0 0.0
    %5041 = vmatpush1.msra.mxu0 0.0
    %5042 = vmatprep.subr.mxu0 0.0
    %5043 = vmatpush1.msra.mxu0 0.0
    %5044 = vmatprep.subr.mxu0 0.0
    %5045 = vmatpush1.msra.mxu0 0.0
    %5046 = vmatprep.subr.mxu0 0.0
    %5047 = vmatpush1.msra.mxu0 0.0
    %5048 = vmatprep.subr.mxu0 0.0
    %5049 = vmatpush1.msra.mxu0 0.0
    %5050 = vmatprep.subr.mxu0 0.0
    %5051 = vmatpush1.msra.mxu0 0.0
    %5052 = vmatprep.subr.mxu0 0.0
    %5053 = vmatpush1.msra.mxu0 0.0
    %5054 = vmatprep.subr.mxu0 0.0
    %5055 = vmatpush1.msra.mxu0 0.0
    %5056 = vmatprep.subr.mxu0 0.0
    %5057 = vmatpush1.msra.mxu0 0.0
    %5058 = vmatprep.subr.mxu0 0.0
    %5059 = vmatpush1.msra.mxu0 0.0
    %5060 = vmatprep.subr.mxu0 0.0
    %5061 = vmatpush1.msra.mxu0 0.0
    %5062 = vmatprep.subr.mxu0 0.0
    %5063 = vmatpush1.msra.mxu0 0.0
    %5064 = vmatprep.subr.mxu0 0.0
    %5065 = vmatpush1.msra.mxu0 0.0
    %5066 = vmatprep.subr.mxu0 0.0
    %5067 = vmatpush1.msra.mxu0 0.0
    %5068 = vmatprep.subr.mxu0 0.0
    %5069 = vmatpush1.msra.mxu0 0.0
    %5070 = vmatprep.subr.mxu0 0.0
    %5071 = vmatpush1.msra.mxu0 0.0
    %5072 = vmatprep.subr.mxu0 0.0
    %5073 = vmatpush1.msra.mxu0 0.0
    %5074 = vmatprep.subr.mxu0 0.0
    %5075 = vmatpush1.msra.mxu0 0.0
    %5076 = vmatprep.mubr.f32.mxu0 0.0
    %5077 = vmatmul.mubr.f32.gmra.mrb[0].mxu0 %v5010
    %v5078 = vpop.f32.mrb[0].mxu0
    %v5079 = vadd.f32 0.0, %v5078
    %v5080 = vpop.f32.mrb[0].mxu0
    %5081 = vdwg.mxu0
    %v5082 = vld [vmem:[#allocation4 + $0x40] sm:$0xff]
    %v5083 = vld [vmem:[#allocation4 + $0x48] sm:$0xff]
    %v5084 = vld [vmem:[#allocation4 + $0x50] sm:$0xff]
    %v5085 = vld [vmem:[#allocation4 + $0x58] sm:$0xff]
    %v5086 = vld [vmem:[#allocation4 + $0x60] sm:$0xff]
    %v5087 = vld [vmem:[#allocation4 + $0x68] sm:$0xff]
    %v5088 = vld [vmem:[#allocation4 + $0x70] sm:$0xff]
    %v5089 = vld [vmem:[#allocation4 + $0x78] sm:$0xff]
    %v5091 = vsel %vm55, %v5079, 0
    %5093 = vmatprep.subr.mxu0 0.0
    %5094 = vmatpush1.msra.mxu0 %v5086
    %5095 = vmatprep.subr.mxu0 0.0
    %5096 = vmatpush1.msra.mxu0 %v5087
    %5097 = vmatprep.subr.mxu0 0.0
    %5098 = vmatpush1.msra.mxu0 %v5088
    %5099 = vmatprep.subr.mxu0 0.0
    %5100 = vmatpush1.msra.mxu0 %v5089
    %5101 = vmatprep.subr.mxu0 0.0
    %5102 = vmatpush1.msra.mxu0 0.0
    %5103 = vmatprep.subr.mxu0 0.0
    %5104 = vmatpush1.msra.mxu0 0.0
    %5105 = vmatprep.subr.mxu0 0.0
    %5106 = vmatpush1.msra.mxu0 0.0
    %5107 = vmatprep.subr.mxu0 0.0
    %5108 = vmatpush1.msra.mxu0 0.0
    %5109 = vmatprep.subr.mxu0 0.0
    %5110 = vmatpush1.msra.mxu0 0.0
    %5111 = vmatprep.subr.mxu0 0.0
    %5112 = vmatpush1.msra.mxu0 0.0
    %5113 = vmatprep.subr.mxu0 0.0
    %5114 = vmatpush1.msra.mxu0 0.0
    %5115 = vmatprep.subr.mxu0 0.0
    %5116 = vmatpush1.msra.mxu0 0.0
    %5117 = vmatprep.subr.mxu0 0.0
    %5118 = vmatpush1.msra.mxu0 0.0
    %5119 = vmatprep.subr.mxu0 0.0
    %5120 = vmatpush1.msra.mxu0 0.0
    %5121 = vmatprep.subr.mxu0 0.0
    %5122 = vmatpush1.msra.mxu0 0.0
    %5123 = vmatprep.subr.mxu0 0.0
    %5124 = vmatpush1.msra.mxu0 0.0
    %5125 = vmatprep.subr.mxu0 0.0
    %5126 = vmatpush1.msra.mxu0 0.0
    %5127 = vmatprep.subr.mxu0 0.0
    %5128 = vmatpush1.msra.mxu0 0.0
    %5129 = vmatprep.subr.mxu0 0.0
    %5130 = vmatpush1.msra.mxu0 0.0
    %5131 = vmatprep.subr.mxu0 0.0
    %5132 = vmatpush1.msra.mxu0 0.0
    %5133 = vmatprep.subr.mxu0 0.0
    %5134 = vmatpush1.msra.mxu0 0.0
    %5135 = vmatprep.subr.mxu0 0.0
    %5136 = vmatpush1.msra.mxu0 0.0
    %5137 = vmatprep.subr.mxu0 0.0
    %5138 = vmatpush1.msra.mxu0 0.0
    %5139 = vmatprep.subr.mxu0 0.0
    %5140 = vmatpush1.msra.mxu0 0.0
    %5141 = vmatprep.subr.mxu0 0.0
    %5142 = vmatpush1.msra.mxu0 0.0
    %5143 = vmatprep.subr.mxu0 0.0
    %5144 = vmatpush1.msra.mxu0 0.0
    %5145 = vmatprep.subr.mxu0 0.0
    %5146 = vmatpush1.msra.mxu0 0.0
    %5147 = vmatprep.subr.mxu0 0.0
    %5148 = vmatpush1.msra.mxu0 0.0
    %5149 = vmatprep.subr.mxu0 0.0
    %5150 = vmatpush1.msra.mxu0 0.0
    %5151 = vmatprep.subr.mxu0 0.0
    %5152 = vmatpush1.msra.mxu0 0.0
    %5153 = vmatprep.subr.mxu0 0.0
    %5154 = vmatpush1.msra.mxu0 0.0
    %5155 = vmatprep.subr.mxu0 0.0
    %5156 = vmatpush1.msra.mxu0 0.0
    %5157 = vmatprep.mubr.f32.mxu0 0.0
    %5158 = vmatmul.mubr.f32.gmra.mrb[0].mxu0 %v5091
    %v5159 = vpop.f32.mrb[0].mxu0
    %v5160 = vadd.f32 0.0, %v5159
    %v5161 = vpop.f32.mrb[0].mxu0
    %5162 = vdwg.mxu0
    %5163 = vmatprep.subr.mxu0 0.0
    %5164 = vmatpush1.msra.mxu0 %v5082
    %5165 = vmatprep.subr.mxu0 0.0
    %5166 = vmatpush1.msra.mxu0 %v5083
    %5167 = vmatprep.subr.mxu0 0.0
    %5168 = vmatpush1.msra.mxu0 %v5084
    %5169 = vmatprep.subr.mxu0 0.0
    %5170 = vmatpush1.msra.mxu0 %v5085
    %5171 = vmatprep.subr.mxu0 0.0
    %5172 = vmatpush1.msra.mxu0 0.0
    %5173 = vmatprep.subr.mxu0 0.0
    %5174 = vmatpush1.msra.mxu0 0.0
    %5175 = vmatprep.subr.mxu0 0.0
    %5176 = vmatpush1.msra.mxu0 0.0
    %5177 = vmatprep.subr.mxu0 0.0
    %5178 = vmatpush1.msra.mxu0 0.0
    %5179 = vmatprep.subr.mxu0 0.0
    %5180 = vmatpush1.msra.mxu0 0.0
    %5181 = vmatprep.subr.mxu0 0.0
    %5182 = vmatpush1.msra.mxu0 0.0
    %5183 = vmatprep.subr.mxu0 0.0
    %5184 = vmatpush1.msra.mxu0 0.0
    %5185 = vmatprep.subr.mxu0 0.0
    %5186 = vmatpush1.msra.mxu0 0.0
    %5187 = vmatprep.subr.mxu0 0.0
    %5188 = vmatpush1.msra.mxu0 0.0
    %5189 = vmatprep.subr.mxu0 0.0
    %5190 = vmatpush1.msra.mxu0 0.0
    %5191 = vmatprep.subr.mxu0 0.0
    %5192 = vmatpush1.msra.mxu0 0.0
    %5193 = vmatprep.subr.mxu0 0.0
    %5194 = vmatpush1.msra.mxu0 0.0
    %5195 = vmatprep.subr.mxu0 0.0
    %5196 = vmatpush1.msra.mxu0 0.0
    %5197 = vmatprep.subr.mxu0 0.0
    %5198 = vmatpush1.msra.mxu0 0.0
    %5199 = vmatprep.subr.mxu0 0.0
    %5200 = vmatpush1.msra.mxu0 0.0
    %5201 = vmatprep.subr.mxu0 0.0
    %5202 = vmatpush1.msra.mxu0 0.0
    %5203 = vmatprep.subr.mxu0 0.0
    %5204 = vmatpush1.msra.mxu0 0.0
    %5205 = vmatprep.subr.mxu0 0.0
    %5206 = vmatpush1.msra.mxu0 0.0
    %5207 = vmatprep.subr.mxu0 0.0
    %5208 = vmatpush1.msra.mxu0 0.0
    %5209 = vmatprep.subr.mxu0 0.0
    %5210 = vmatpush1.msra.mxu0 0.0
    %5211 = vmatprep.subr.mxu0 0.0
    %5212 = vmatpush1.msra.mxu0 0.0
    %5213 = vmatprep.subr.mxu0 0.0
    %5214 = vmatpush1.msra.mxu0 0.0
    %5215 = vmatprep.subr.mxu0 0.0
    %5216 = vmatpush1.msra.mxu0 0.0
    %5217 = vmatprep.subr.mxu0 0.0
    %5218 = vmatpush1.msra.mxu0 0.0
    %5219 = vmatprep.subr.mxu0 0.0
    %5220 = vmatpush1.msra.mxu0 0.0
    %5221 = vmatprep.subr.mxu0 0.0
    %5222 = vmatpush1.msra.mxu0 0.0
    %5223 = vmatprep.subr.mxu0 0.0
    %5224 = vmatpush1.msra.mxu0 0.0
    %5225 = vmatprep.subr.mxu0 0.0
    %5226 = vmatpush1.msra.mxu0 0.0
    %5227 = vmatprep.mubr.f32.mxu0 0.0
    %5228 = vmatmul.mubr.f32.gmra.mrb[0].mxu0 %v4921
    %v5229 = vpop.f32.mrb[0].mxu0
    %v5230 = vadd.f32 %v5160, %v5229
    %v5231 = vpop.f32.mrb[0].mxu0
    %5232 = vdwg.mxu0
    %v5233 = vld [vmem:[#allocation4 + $0xe1] sm:$0x1]
    %v5234 = vadd.f32 %v5230, %v5233
    %v5235 = vmax.f32 %v5234, 0.0
    %v5236 = vld [vmem:[#allocation4 + $0x80] sm:$0xff]
    %v5237 = vld [vmem:[#allocation4 + $0x88] sm:$0xff]
    %v5238 = vld [vmem:[#allocation4 + $0x90] sm:$0xff]
    %v5239 = vld [vmem:[#allocation4 + $0x98] sm:$0xff]
    %v5241 = vsel %vm55, %v5235, 0
    %5243 = vmatprep.subr.mxu0 0.0
    %5244 = vmatpush1.msra.mxu0 %v5236
    %5245 = vmatprep.subr.mxu0 0.0
    %5246 = vmatpush1.msra.mxu0 %v5237
    %5247 = vmatprep.subr.mxu0 0.0
    %5248 = vmatpush1.msra.mxu0 %v5238
    %5249 = vmatprep.subr.mxu0 0.0
    %5250 = vmatpush1.msra.mxu0 %v5239
    %5251 = vmatprep.subr.mxu0 0.0
    %5252 = vmatpush1.msra.mxu0 0.0
    %5253 = vmatprep.subr.mxu0 0.0
    %5254 = vmatpush1.msra.mxu0 0.0
    %5255 = vmatprep.subr.mxu0 0.0
    %5256 = vmatpush1.msra.mxu0 0.0
    %5257 = vmatprep.subr.mxu0 0.0
    %5258 = vmatpush1.msra.mxu0 0.0
    %5259 = vmatprep.subr.mxu0 0.0
    %5260 = vmatpush1.msra.mxu0 0.0
    %5261 = vmatprep.subr.mxu0 0.0
    %5262 = vmatpush1.msra.mxu0 0.0
    %5263 = vmatprep.subr.mxu0 0.0
    %5264 = vmatpush1.msra.mxu0 0.0
    %5265 = vmatprep.subr.mxu0 0.0
    %5266 = vmatpush1.msra.mxu0 0.0
    %5267 = vmatprep.subr.mxu0 0.0
    %5268 = vmatpush1.msra.mxu0 0.0
    %5269 = vmatprep.subr.mxu0 0.0
    %5270 = vmatpush1.msra.mxu0 0.0
    %5271 = vmatprep.subr.mxu0 0.0
    %5272 = vmatpush1.msra.mxu0 0.0
    %5273 = vmatprep.subr.mxu0 0.0
    %5274 = vmatpush1.msra.mxu0 0.0
    %5275 = vmatprep.subr.mxu0 0.0
    %5276 = vmatpush1.msra.mxu0 0.0
    %5277 = vmatprep.subr.mxu0 0.0
    %5278 = vmatpush1.msra.mxu0 0.0
    %5279 = vmatprep.subr.mxu0 0.0
    %5280 = vmatpush1.msra.mxu0 0.0
    %5281 = vmatprep.subr.mxu0 0.0
    %5282 = vmatpush1.msra.mxu0 0.0
    %5283 = vmatprep.subr.mxu0 0.0
    %5284 = vmatpush1.msra.mxu0 0.0
    %5285 = vmatprep.subr.mxu0 0.0
    %5286 = vmatpush1.msra.mxu0 0.0
    %5287 = vmatprep.subr.mxu0 0.0
    %5288 = vmatpush1.msra.mxu0 0.0
    %5289 = vmatprep.subr.mxu0 0.0
    %5290 = vmatpush1.msra.mxu0 0.0
    %5291 = vmatprep.subr.mxu0 0.0
    %5292 = vmatpush1.msra.mxu0 0.0
    %5293 = vmatprep.subr.mxu0 0.0
    %5294 = vmatpush1.msra.mxu0 0.0
    %5295 = vmatprep.subr.mxu0 0.0
    %5296 = vmatpush1.msra.mxu0 0.0
    %5297 = vmatprep.subr.mxu0 0.0
    %5298 = vmatpush1.msra.mxu0 0.0
    %5299 = vmatprep.subr.mxu0 0.0
    %5300 = vmatpush1.msra.mxu0 0.0
    %5301 = vmatprep.subr.mxu0 0.0
    %5302 = vmatpush1.msra.mxu0 0.0
    %5303 = vmatprep.subr.mxu0 0.0
    %5304 = vmatpush1.msra.mxu0 0.0
    %5305 = vmatprep.subr.mxu0 0.0
    %5306 = vmatpush1.msra.mxu0 0.0
    %5307 = vmatprep.mubr.f32.mxu0 0.0
    %5308 = vmatmul.mubr.f32.gmra.mrb[0].mxu0 %v5241
    %v5309 = vpop.f32.mrb[0].mxu0
    %v5310 = vadd.f32 %v4839, %v5309
    %v5311 = vpop.f32.mrb[0].mxu0
    %5312 = vdwg.mxu0
    %v5313 = vld [vmem:[#allocation4 + $0xe2] sm:$0x1]
    %v5314 = vadd.f32 %v5310, %v5313
    %v5315 = vxor.u32 %v5314, 2147483648
    %v5316 = vmul.f32 %v5315, 1.442695
    %v5317 = vpow.pop %v5316
    %v5318 = vadd.f32 %v5317, 1.0
    %v5319 = vrcp.pop %v5318
    %v5320 = vmul.f32 1.0, %v5319
    %5322 = vrot.lane.b32.xlu0 %v5314, 32
    %v5323 = vpop.permute.xlu0 %5322
    %v5325 = vmul.f32 %v5320, %v5323
    %5327 = vrot.lane.b32.xlu0 %v5325, 64
    %v5328 = vpop.permute.xlu0 %5327
    %v5330 = vadd.f32 %v5314, %v5328
    %v5331 = vtanh.pop %v5330
    %v5332 = vsub.f32 1.0, %v5320
    %5334 = vrot.lane.b32.xlu0 %v5331, 96
    %v5335 = vpop.permute.xlu0 %5334
    %v5337 = vmul.f32 %v5332, %v5335
    %v5338 = vmul.f32 %v5320, %v4667
    %v5339 = vadd.f32 %v5337, %v5338
    %v5340 = vld [vmem:[#allocation4 + $0xc0] sm:$0xff]
    %v5341 = vld [vmem:[#allocation4 + $0xc8] sm:$0xff]
    %v5342 = vld [vmem:[#allocation4 + $0xd0] sm:$0xff]
    %v5343 = vld [vmem:[#allocation4 + $0xd8] sm:$0xff]
    %v5344 = vld [vmem:[#allocation4 + $0xe3] sm:$0x1]
    %5346 = vrot.lane.b32.xlu0 %v5339, 96
    %v5347 = vpop.permute.xlu0 %5346
    %v5348 = vsel %vm55, %v5347, 0
    %5350 = vmatprep.subr.mxu0 0.0
    %5351 = vmatpush1.msra.mxu0 %v5340
    %5352 = vmatprep.subr.mxu0 0.0
    %5353 = vmatpush1.msra.mxu0 %v5341
    %5354 = vmatprep.subr.mxu0 0.0
    %5355 = vmatpush1.msra.mxu0 %v5342
    %5356 = vmatprep.subr.mxu0 0.0
    %5357 = vmatpush1.msra.mxu0 %v5343
    %5358 = vmatprep.subr.mxu0 0.0
    %5359 = vmatpush1.msra.mxu0 0.0
    %5360 = vmatprep.subr.mxu0 0.0
    %5361 = vmatpush1.msra.mxu0 0.0
    %5362 = vmatprep.subr.mxu0 0.0
    %5363 = vmatpush1.msra.mxu0 0.0
    %5364 = vmatprep.subr.mxu0 0.0
    %5365 = vmatpush1.msra.mxu0 0.0
    %5366 = vmatprep.subr.mxu0 0.0
    %5367 = vmatpush1.msra.mxu0 0.0
    %5368 = vmatprep.subr.mxu0 0.0
    %5369 = vmatpush1.msra.mxu0 0.0
    %5370 = vmatprep.subr.mxu0 0.0
    %5371 = vmatpush1.msra.mxu0 0.0
    %5372 = vmatprep.subr.mxu0 0.0
    %5373 = vmatpush1.msra.mxu0 0.0
    %5374 = vmatprep.subr.mxu0 0.0
    %5375 = vmatpush1.msra.mxu0 0.0
    %5376 = vmatprep.subr.mxu0 0.0
    %5377 = vmatpush1.msra.mxu0 0.0
    %5378 = vmatprep.subr.mxu0 0.0
    %5379 = vmatpush1.msra.mxu0 0.0
    %5380 = vmatprep.subr.mxu0 0.0
    %5381 = vmatpush1.msra.mxu0 0.0
    %5382 = vmatprep.subr.mxu0 0.0
    %5383 = vmatpush1.msra.mxu0 0.0
    %5384 = vmatprep.subr.mxu0 0.0
    %5385 = vmatpush1.msra.mxu0 0.0
    %5386 = vmatprep.subr.mxu0 0.0
    %5387 = vmatpush1.msra.mxu0 0.0
    %5388 = vmatprep.subr.mxu0 0.0
    %5389 = vmatpush1.msra.mxu0 0.0
    %5390 = vmatprep.subr.mxu0 0.0
    %5391 = vmatpush1.msra.mxu0 0.0
    %5392 = vmatprep.subr.mxu0 0.0
    %5393 = vmatpush1.msra.mxu0 0.0
    %5394 = vmatprep.subr.mxu0 0.0
    %5395 = vmatpush1.msra.mxu0 0.0
    %5396 = vmatprep.subr.mxu0 0.0
    %5397 = vmatpush1.msra.mxu0 0.0
    %5398 = vmatprep.subr.mxu0 0.0
    %5399 = vmatpush1.msra.mxu0 0.0
    %5400 = vmatprep.subr.mxu0 0.0
    %5401 = vmatpush1.msra.mxu0 0.0
    %5402 = vmatprep.subr.mxu0 0.0
    %5403 = vmatpush1.msra.mxu0 0.0
    %5404 = vmatprep.subr.mxu0 0.0
    %5405 = vmatpush1.msra.mxu0 0.0
    %5406 = vmatprep.subr.mxu0 0.0
    %5407 = vmatpush1.msra.mxu0 0.0
    %5408 = vmatprep.subr.mxu0 0.0
    %5409 = vmatpush1.msra.mxu0 0.0
    %5410 = vmatprep.subr.mxu0 0.0
    %5411 = vmatpush1.msra.mxu0 0.0
    %5412 = vmatprep.subr.mxu0 0.0
    %5413 = vmatpush1.msra.mxu0 0.0
    %5414 = vmatprep.mubr.f32.mxu0 0.0
    %5415 = vmatmul.mubr.f32.gmra.mrb[0].mxu0 %v5348
    %v5416 = vpop.f32.mrb[0].mxu0
    %v5417 = vadd.f32 %v5344, %v5416
    %v5418 = vpop.f32.mrb[0].mxu0
    %5419 = vdwg.mxu0
    %v5420 = vsel %vm715, %v5417, -inf
    %5421 = vmax.xlane.f32.xlu0 %v5420
    %v5422 = vpop.xlane.xlu0 %5421
    %v5423 = vsub.f32 %v5417, %v5422
    %v5424 = vmul.f32 %v5423, 1.442695
    %v5425 = vpow.pop %v5424
    %v5426 = vsel %vm715, %v5425, 0.0
    %5427 = vadd.xlane.f32.xlu0 %v5426
    %v5428 = vpop.xlane.xlu0 %5427
    %v5429 = vlog2.pop %v5428
    %v5430 = vmul.f32 %v5429, 0.6931472
    %v5431 = vadd.f32 %v5430, %v5422
    %v5432 = vsub.f32 %v5417, %v5431
    %5433 = vst.msk [vmem:[#allocation7 + $0x7] sm:$0x1] %vm715, %v5432
    %5435 = vst.msk [vmem:[#allocation8 + $0x7] sm:$0x1] %vm282, %v5347
    %5436 = vst.msk [vmem:[#allocation10 + $0x7] sm:$0x1] %vm282, %v5008
    // Predicated region
    $region22: #{attn_decoder_decode.1} parent=1 // pred_check
      _
    $region23: #{attn_decoder_decode.1} parent=1 // pred_check_branch
      %5438 = sbr.rel (0) target = $region25
    $region24: #{attn_decoder_decode.1} parent=1 // pred_region
      %s5440 = ssub.s32 128, 128
      %5441 = vsyncadd [#allocation6], %s5440
      %s5443 = sshll.u32 [#allocation7], 4
      %s5444 = int_to_ptr.vmem [resolvable:$true] %s5443
      %5446 = dma.vmem_to_hbm [thread:$0]  %s5444, 128, %s5, [#allocation6]
    $region25: #{attn_decoder_decode.1} parent=1 // pred_fallthru
      _
    // Predicated region
    $region26: #{attn_decoder_decode.1} parent=1 // pred_check
      _
    $region27: #{attn_decoder_decode.1} parent=1 // pred_check_branch
      %5448 = sbr.rel (0) target = $region29
    $region28: #{attn_decoder_decode.1} parent=1 // pred_region
      %s5450 = ssub.s32 128, 128
      %5451 = vsyncadd [#allocation9], %s5450
      %s5453 = sshll.u32 [#allocation8], 4
      %s5454 = int_to_ptr.vmem [resolvable:$true] %s5453
      %5456 = dma.vmem_to_hbm [thread:$0]  %s5454, 128, %s6, [#allocation9]
    $region29: #{attn_decoder_decode.1} parent=1 // pred_fallthru
      _
    // Predicated region
    $region30: #{attn_decoder_decode.1} parent=1 // pred_check
      _
    $region31: #{attn_decoder_decode.1} parent=1 // pred_check_branch
      %5458 = sbr.rel (0) target = $region33
    $region32: #{attn_decoder_decode.1} parent=1 // pred_region
      %s5460 = ssub.s32 128, 128
      %5461 = vsyncadd [#allocation9], %s5460
      %s5463 = sshll.u32 [#allocation10], 4
      %s5464 = int_to_ptr.vmem [resolvable:$true] %s5463
      %5466 = dma.vmem_to_hbm [thread:$0]  %s5464, 128, %s7, [#allocation9]
    $region33: #{attn_decoder_decode.1} parent=1 // pred_fallthru
      _
    // Predicated region
    $region34: #{attn_decoder_decode.1} parent=1 // pred_check
      _
    $region35: #{attn_decoder_decode.1} parent=1 // pred_check_branch
      %5468 = sbr.rel (0) target = $region37
    $region36: #{attn_decoder_decode.1} parent=1 // pred_region
      %5469 = dma.done [#allocation6], 128
    $region37: #{attn_decoder_decode.1} parent=1 // pred_fallthru
      _
    // Predicated region
    $region38: #{attn_decoder_decode.1} parent=1 // pred_check
      _
    $region39: #{attn_decoder_decode.1} parent=1 // pred_check_branch
      %5471 = sbr.rel (0) target = $region41
    $region40: #{attn_decoder_decode.1} parent=1 // pred_region
      %5472 = dma.done [#allocation9], 128
    $region41: #{attn_decoder_decode.1} parent=1 // pred_fallthru
      _
    // Predicated region
    $region42: #{attn_decoder_decode.1} parent=1 // pred_check
      _
    $region43: #{attn_decoder_decode.1} parent=1 // pred_check_branch
      %5474 = sbr.rel (0) target = $region45
    $region44: #{attn_decoder_decode.1} parent=1 // pred_region
      %5475 = dma.done [#allocation9], 128
    $region45: #{attn_decoder_decode.1} parent=1 // pred_fallthru
      _
    %5476 = vsyncpa [#allocation5], 1
    %5477 = vsyncpa [#allocation6], 1
    %5478 = vsyncpa [#allocation9], 1

</llo_original>
